<compile_context>
chip_gen: v5e
topology: v5e:2x2
jax: 0.10.0
libtpu: 0.0.40
codegen_flags: <defaults>
</compile_context>

<pallas_src>
import functools
import numpy as np
import jax
import jax.numpy as jnp
from jax.experimental import pallas as pl
from jax.experimental.pallas import tpu as pltpu


# ----------------------------------------------------------------------------
# sin/cos positional embeddings (fixed, non-trainable parameters)
# ----------------------------------------------------------------------------
def get_1d_sincos_pos_embed_from_grid(embed_dim, pos):
    omega = np.arange(embed_dim // 2, dtype=np.float64)
    omega /= embed_dim / 2.0
    omega = 1.0 / 10000 ** omega
    pos = np.asarray(pos, dtype=np.float64).reshape(-1)
    out = np.einsum("m,d->md", pos, omega)
    return np.concatenate([np.sin(out), np.cos(out)], axis=1)


def get_2d_sincos_pos_embed(embed_dim, grid_size):
    grid_h = np.arange(grid_size, dtype=np.float32)
    grid_w = np.arange(grid_size, dtype=np.float32)
    grid = np.meshgrid(grid_w, grid_h)  # w goes first
    grid = np.stack(grid, axis=0).reshape([2, -1])
    emb_h = get_1d_sincos_pos_embed_from_grid(embed_dim // 2, grid[0])
    emb_w = get_1d_sincos_pos_embed_from_grid(embed_dim // 2, grid[1])
    return np.concatenate([emb_h, emb_w], axis=1)


# ----------------------------------------------------------------------------
# in-kernel math helpers (elementwise math kept in f32 — v5e has no bf16 VPU)
# ----------------------------------------------------------------------------
def _silu(x):
    return x * jax.nn.sigmoid(x)


def _gelu_tanh(x):
    c = float(np.sqrt(2.0 / np.pi))
    return 0.5 * x * (1.0 + jnp.tanh(c * (x + 0.044715 * x * x * x)))


def _layernorm(x, eps=1e-6):
    mu = jnp.mean(x, axis=-1, keepdims=True)
    var = jnp.mean((x - mu) ** 2, axis=-1, keepdims=True)
    return (x - mu) * jax.lax.rsqrt(var + eps)


# ----------------------------------------------------------------------------
# small utilities
# ----------------------------------------------------------------------------
def _pick_row_tile(m, max_rt=8, min_steps=4):
    """Largest divisor of m (<= max_rt) that still leaves >= min_steps grid steps."""
    best = 1
    for rt in range(1, min(m, max_rt) + 1):
        if m % rt == 0 and (m // rt) >= min(min_steps, m):
            best = rt
    return best


def _vmem_limit_bytes(blocks, lo=32 << 20, hi=64 << 20, headroom=8 << 20):
    """Rough scoped-VMEM budget: 2x (double-buffer) sum of block bytes + headroom."""
    total = 0
    for shape, dtype in blocks:
        total += int(np.prod(shape)) * int(np.dtype(dtype).itemsize)
    return int(min(hi, max(lo, 2 * total + headroom)))


# ----------------------------------------------------------------------------
# Pallas kernels
# ----------------------------------------------------------------------------
def _cond_embed_kernel(tf_ref, a_ref, tw1, tb1, tw2, tb2, aw1, ab1, aw2, ab2,
                       t_out, a_out):
    """Fused timestep + action embedders (each Linear -> SiLU -> Linear)."""
    t = tf_ref[...].astype(jnp.bfloat16)
    ht = _silu(jnp.dot(t, tw1[...], preferred_element_type=jnp.float32) + tb1[...])
    t_out[...] = (jnp.dot(ht.astype(jnp.bfloat16), tw2[...],
                          preferred_element_type=jnp.float32) + tb2[...])
    a = a_ref[...].astype(jnp.bfloat16)
    ha = _silu(jnp.dot(a, aw1[...], preferred_element_type=jnp.float32) + ab1[...])
    a_out[...] = (jnp.dot(ha.astype(jnp.bfloat16), aw2[...],
                          preferred_element_type=jnp.float32) + ab2[...])


def cond_embed(t_freq, a2, params):
    B = t_freq.shape[0]
    M = a2.shape[0]
    D = params["temb_w2"].shape[1]
    return pl.pallas_call(
        _cond_embed_kernel,
        out_shape=(jax.ShapeDtypeStruct((B, D), jnp.float32),
                   jax.ShapeDtypeStruct((M, D), jnp.float32)),
    )(t_freq.astype(jnp.float32), a2.astype(jnp.float32),
      params["temb_w1"], params["temb_b1"].reshape(1, -1),
      params["temb_w2"], params["temb_b2"].reshape(1, -1),
      params["aemb_w1"], params["aemb_b1"].reshape(1, -1),
      params["aemb_w2"], params["aemb_b2"].reshape(1, -1))


def _patch_embed_kernel(x_ref, w_ref, b_ref, pos_ref, o_ref):
    """Conv2d(k=p, s=p) as a linear over flattened patches, pos-embed add fused."""
    rt, T, K = x_ref.shape
    D = w_ref.shape[1]
    x = x_ref[...].reshape(rt * T, K)
    y = jnp.dot(x, w_ref[...], preferred_element_type=jnp.float32) + b_ref[...]
    o_ref[...] = (y.reshape(rt, T, D) + pos_ref[...]).astype(o_ref.dtype)


def patch_embed(x_nchw, w, b, pos, patch):
    B, C, H, W = x_nchw.shape
    gh, gw = H // patch, W // patch
    T = gh * gw
    K = C * patch * patch
    D = w.shape[1]
    xp = x_nchw.reshape(B, C, gh, patch, gw, patch)
    xp = xp.transpose(0, 2, 4, 1, 3, 5).reshape(B, T, K).astype(jnp.bfloat16)
    rt = _pick_row_tile(B)
    return pl.pallas_call(
        _patch_embed_kernel,
        grid=(B // rt,),
        in_specs=[
            pl.BlockSpec((rt, T, K), lambda i: (i, 0, 0)),
            pl.BlockSpec((K, D), lambda i: (0, 0)),
            pl.BlockSpec((1, D), lambda i: (0, 0)),
            pl.BlockSpec((1, T, D), lambda i: (0, 0, 0)),
        ],
        out_specs=pl.BlockSpec((rt, T, D), lambda i: (i, 0, 0)),
        out_shape=jax.ShapeDtypeStruct((B, T, D), jnp.bfloat16),
        compiler_params=pltpu.CompilerParams(dimension_semantics=("parallel",)),
    )(xp, w, b.reshape(1, D), pos)


def _dit_block_kernel(x_ref, c_ref, aw, ab, qw, qb, pw, pb,
                      f1w, f1b, f2w, f2b, o_ref, *, num_heads):
    x = x_ref[...].astype(jnp.float32)            # (R, S, D)
    c = c_ref[...][:, 0, :].astype(jnp.float32)   # (R, D)
    R, S, D = x.shape
    H = num_heads
    hd = D // H

    # fused adaLN modulation: SiLU(c) @ W + b -> (R, 6, D); chunk-index leading axis
    mod = (jnp.dot(_silu(c).astype(jnp.bfloat16), aw[...],
                   preferred_element_type=jnp.float32) + ab[...]).reshape(R, 6, D)
    sh_msa = mod[:, 0, :][:, None, :]
    sc_msa = mod[:, 1, :][:, None, :]
    g_msa = mod[:, 2, :][:, None, :]
    sh_mlp = mod[:, 3, :][:, None, :]
    sc_mlp = mod[:, 4, :][:, None, :]
    g_mlp = mod[:, 5, :][:, None, :]

    # ---- attention branch (qk scale pre-folded into qw/qb at init) ----
    xm = _layernorm(x) * (1.0 + sc_msa) + sh_msa
    qkv = (jnp.dot(xm.reshape(R * S, D).astype(jnp.bfloat16), qw[...],
                   preferred_element_type=jnp.float32) + qb[...]).reshape(R, S, 3 * D)
    # TODO(synk): replace the static head loop with one (R*H)-batched einsum once
    # the (S,H)->(H,S) in-kernel relayout is confirmed to lower cleanly.
    attn = None
    for h in range(H):
        qh = qkv[:, :, h * hd:(h + 1) * hd].astype(jnp.bfloat16)
        kh = qkv[:, :, D + h * hd:D + (h + 1) * hd].astype(jnp.bfloat16)
        vh = qkv[:, :, 2 * D + h * hd:2 * D + (h + 1) * hd].astype(jnp.bfloat16)
        s = jnp.einsum("rqd,rkd->rqk", qh, kh, preferred_element_type=jnp.float32)
        s = s - jnp.max(s, axis=-1, keepdims=True)
        p = jnp.exp(s)
        p = p * pl.reciprocal(jnp.sum(p, axis=-1, keepdims=True), approx=True)
        oh = jnp.einsum("rqk,rkd->rqd", p.astype(jnp.bfloat16), vh,
                        preferred_element_type=jnp.float32)
        # head-major proj weight (H, hd, D): leading-axis slice, no concat needed
        contrib = jnp.dot(oh.reshape(R * S, hd).astype(jnp.bfloat16), pw[h],
                          preferred_element_type=jnp.float32)
        attn = contrib if attn is None else attn + contrib
    attn = (attn + pb[...]).reshape(R, S, D)
    x = x + g_msa * attn

    # ---- MLP branch ----
    xm2 = _layernorm(x) * (1.0 + sc_mlp) + sh_mlp
    h1 = jnp.dot(xm2.reshape(R * S, D).astype(jnp.bfloat16), f1w[...],
                 preferred_element_type=jnp.float32) + f1b[...]
    h1 = _gelu_tanh(h1)
    h2 = (jnp.dot(h1.astype(jnp.bfloat16), f2w[...],
                  preferred_element_type=jnp.float32) + f2b[...]).reshape(R, S, D)
    o_ref[...] = (x + g_mlp * h2).astype(o_ref.dtype)


def dit_block(x3, c3, p, num_heads):
    """One adaLN DiT block on flattened rows. x3: (M, S, D) bf16, c3: (M, 1, D) f32."""
    M, S, D = x3.shape
    Dm = p["fc1_w"].shape[1]
    H = num_heads
    hd = D // H
    rt = _pick_row_tile(M)
    kernel = functools.partial(_dit_block_kernel, num_heads=num_heads)
    rep = lambda shape: pl.BlockSpec(shape, lambda i: (0,) * len(shape))
    vmem_limit = _vmem_limit_bytes([
        ((rt, S, D), jnp.bfloat16), ((rt, 1, D), jnp.float32),
        ((D, 6 * D), jnp.bfloat16), ((D, 3 * D), jnp.bfloat16),
        ((H, hd, D), jnp.bfloat16), ((D, Dm), jnp.bfloat16),
        ((Dm, D), jnp.bfloat16), ((rt, S, D), jnp.bfloat16),
    ])
    return pl.pallas_call(
        kernel,
        grid=(M // rt,),
        in_specs=[
            pl.BlockSpec((rt, S, D), lambda i: (i, 0, 0)),
            pl.BlockSpec((rt, 1, D), lambda i: (i, 0, 0)),
            rep((D, 6 * D)), rep((1, 6 * D)),
            rep((D, 3 * D)), rep((1, 3 * D)),
            rep((H, hd, D)), rep((1, D)),
            rep((D, Dm)), rep((1, Dm)),
            rep((Dm, D)), rep((1, D)),
        ],
        out_specs=pl.BlockSpec((rt, S, D), lambda i: (i, 0, 0)),
        out_shape=jax.ShapeDtypeStruct((M, S, D), jnp.bfloat16),
        compiler_params=pltpu.CompilerParams(
            dimension_semantics=("parallel",),
            vmem_limit_bytes=vmem_limit),
    )(x3.astype(jnp.bfloat16), c3.astype(jnp.float32),
      p["ada_w"], p["ada_b"].reshape(1, -1),
      p["qkv_w"], p["qkv_b"].reshape(1, -1),
      p["proj_w"], p["proj_b"].reshape(1, -1),
      p["fc1_w"], p["fc1_b"].reshape(1, -1),
      p["fc2_w"], p["fc2_b"].reshape(1, -1))


def _final_layer_kernel(x_ref, c_ref, aw, ab, w_ref, b_ref, o_ref):
    x = x_ref[...].astype(jnp.float32)            # (R, S, D)
    c = c_ref[...][:, 0, :].astype(jnp.float32)   # (R, D)
    R, S, D = x.shape
    P = w_ref.shape[1]
    mod = (jnp.dot(_silu(c).astype(jnp.bfloat16), aw[...],
                   preferred_element_type=jnp.float32) + ab[...]).reshape(R, 2, D)
    shift = mod[:, 0, :][:, None, :]
    scale = mod[:, 1, :][:, None, :]
    xm = _layernorm(x) * (1.0 + scale) + shift
    y = jnp.dot(xm.reshape(R * S, D).astype(jnp.bfloat16), w_ref[...],
                preferred_element_type=jnp.float32) + b_ref[...]
    o_ref[...] = y.reshape(R, S, P)


def final_layer(x3, c3, p):
    M, S, D = x3.shape
    P = p["lin_w"].shape[1]
    rt = _pick_row_tile(M)
    rep = lambda shape: pl.BlockSpec(shape, lambda i: (0,) * len(shape))
    vmem_limit = _vmem_limit_bytes([
        ((rt, S, D), jnp.bfloat16), ((rt, 1, D), jnp.float32),
        ((D, 2 * D), jnp.bfloat16), ((D, P), jnp.bfloat16),
        ((rt, S, P), jnp.float32),
    ])
    return pl.pallas_call(
        _final_layer_kernel,
        grid=(M // rt,),
        in_specs=[
            pl.BlockSpec((rt, S, D), lambda i: (i, 0, 0)),
            pl.BlockSpec((rt, 1, D), lambda i: (i, 0, 0)),
            rep((D, 2 * D)), rep((1, 2 * D)),
            rep((D, P)), rep((1, P)),
        ],
        out_specs=pl.BlockSpec((rt, S, P), lambda i: (i, 0, 0)),
        out_shape=jax.ShapeDtypeStruct((M, S, P), jnp.float32),
        compiler_params=pltpu.CompilerParams(
            dimension_semantics=("parallel",),
            vmem_limit_bytes=vmem_limit),
    )(x3.astype(jnp.bfloat16), c3.astype(jnp.float32),
      p["ada_w"], p["ada_b"].reshape(1, -1),
      p["lin_w"], p["lin_b"].reshape(1, -1))


# ----------------------------------------------------------------------------
# Plain-JAX glue
# ----------------------------------------------------------------------------
def timestep_embedding(t, dim=256, max_period=10000):
    half = dim // 2
    freqs = jnp.exp(-float(np.log(max_period)) * jnp.arange(half, dtype=jnp.float32) / half)
    args = t.astype(jnp.float32)[:, None] * freqs[None, :]
    return jnp.concatenate([jnp.cos(args), jnp.sin(args)], axis=-1)


# ----------------------------------------------------------------------------
# Parameter init (deterministic, synthetic). Matmul weights stored in bf16.
# ----------------------------------------------------------------------------
def init_params(key, cfg):
    D = cfg["hidden_size"]
    p = cfg["patch_size"]
    C = cfg["in_channels"]
    A = cfg["action_dim"]
    H = cfg["num_heads"]
    hd = D // H
    mlp_hidden = int(D * cfg["mlp_ratio"])
    out_ch = cfg["out_channels"]
    freq_dim = 256
    keys = iter(jax.random.split(key, 256))

    def wf(shape, std=0.02):
        return jax.random.normal(next(keys), shape, jnp.float32) * std

    def w(shape, std=0.02):            # bf16 matmul weights (MXU native)
        return wf(shape, std).astype(jnp.bfloat16)

    def b(shape, std=0.02):            # f32 biases
        return wf(shape, std)

    qk_scale = 1.0 / float(np.sqrt(hd))

    def block_params():
        qkv_w = wf((D, 3 * D))
        qkv_b = wf((3 * D,))
        # fold attention 1/sqrt(hd) into the q projection at init (free)
        qkv_w = qkv_w.at[:, :D].multiply(qk_scale)
        qkv_b = qkv_b.at[:D].multiply(qk_scale)
        return dict(
            ada_w=w((D, 6 * D)), ada_b=b((6 * D,)),
            qkv_w=qkv_w.astype(jnp.bfloat16), qkv_b=qkv_b,
            proj_w=w((H, hd, D)), proj_b=b((D,)),   # head-major output projection
            fc1_w=w((D, mlp_hidden)), fc1_b=b((mlp_hidden,)),
            fc2_w=w((mlp_hidden, D)), fc2_b=b((D,)),
        )

    grid_size = cfg["input_size"] // p
    return dict(
        xemb_w=w((C * p * p, D)), xemb_b=b((D,)),
        aemb_w1=w((A, D)), aemb_b1=b((D,)),
        aemb_w2=w((D, D)), aemb_b2=b((D,)),
        temb_w1=w((freq_dim, D)), temb_b1=b((D,)),
        temb_w2=w((D, D)), temb_b2=b((D,)),
        pos_embed=jnp.asarray(get_2d_sincos_pos_embed(D, grid_size), jnp.float32)[None],
        temp_embed=jnp.asarray(
            get_1d_sincos_pos_embed_from_grid(D, np.arange(cfg["seq_len"])), jnp.float32)[None],
        blocks=[block_params() for _ in range(cfg["depth"])],
        blocks_mh=[block_params() for _ in range(4)],
        final=dict(ada_w=w((D, 2 * D)), ada_b=b((2 * D,)),
                   lin_w=w((D, p * p * out_ch)), lin_b=b((p * p * out_ch,))),
    )


# ----------------------------------------------------------------------------
# Full forward pass of LinearDiTActionSeqISim
# ----------------------------------------------------------------------------
def forward(params, x, t, a, cfg):
    batch, l, ch, H, W = x.shape
    patch = cfg["patch_size"]
    nh = cfg["num_heads"]
    D = cfg["hidden_size"]

    # patch-embed (+ pos-embed fused), bf16 tokens
    x2 = x.reshape(batch * l, ch, H, W)
    tok = patch_embed(x2, params["xemb_w"], params["xemb_b"], params["pos_embed"], patch)
    T = tok.shape[1]                                        # num_patches

    # conditioning: one fused kernel for both embedder MLPs
    t_freq = timestep_embedding(t, 256)
    t_emb, a_emb = cond_embed(t_freq, a.reshape(batch * l, -1), params)

    c_spatial = (jnp.repeat(t_emb, l, axis=0) + a_emb)[:, None, :]   # (b*f, 1, D)
    c_temp = jnp.repeat(t_emb, T, axis=0)[:, None, :]                # (b*t, 1, D)
    temp_bf = params["temp_embed"][0, :l].astype(jnp.bfloat16)       # (f, D)

    xs = tok                                                         # (b*f, t, D) bf16

    def to_temporal(z):
        # TODO(synk): fold this permutation into the block BlockSpec index_map
        # (needs sub-(8,128) second-minor blocks) to remove the HBM round-trip.
        return z.reshape(batch, l, T, D).transpose(0, 2, 1, 3).reshape(batch * T, l, D)

    def to_spatial(z):
        return z.reshape(batch, T, l, D).transpose(0, 2, 1, 3).reshape(batch * l, T, D)

    def spatial(z, blk):                        # attention over tokens
        return dit_block(z, c_spatial, blk, nh)

    def temporal(z, blk, add_temp=False):       # attention over frames
        zt = to_temporal(z)
        if add_temp:
            zt = zt + temp_bf[None, :, :]
        zt = dit_block(zt, c_temp, blk, nh)
        return to_spatial(zt)

    xs = spatial(xs, params["blocks_mh"][0])
    xs = temporal(xs, params["blocks_mh"][1], add_temp=True)
    for i in range(0, len(params["blocks"]), 2):
        xs = spatial(xs, params["blocks"][i])
        xs = temporal(xs, params["blocks"][i + 1])
    xs = spatial(xs, params["blocks_mh"][2])
    xs = temporal(xs, params["blocks_mh"][3])

    out = final_layer(xs, c_spatial, params["final"])       # (b*f, t, p*p*c) lane-dense f32

    # unpatchify (plain-JAX glue)
    c_out = cfg["out_channels"]
    hh = ww = int(np.sqrt(T))
    y = out.reshape(batch * l, hh, ww, patch, patch, c_out)
    y = jnp.einsum("nhwpqc->nchpwq", y)
    y = y.reshape(batch * l, c_out, hh * patch, ww * patch)
    return y.reshape(batch, l, c_out, hh * patch, ww * patch)


# ----------------------------------------------------------------------------
# main
# ----------------------------------------------------------------------------
if __name__ == "__main__":
    cfg = dict(
        input_size=16, patch_size=8, in_channels=4, hidden_size=32,
        depth=2, num_heads=4, mlp_ratio=4.0, action_dim=7,
        learn_sigma=False, seq_len=8, mask_n=2, attention_mode="math",
    )
    cfg["out_channels"] = cfg["in_channels"] * 2 if cfg["learn_sigma"] else 4

    key = jax.random.PRNGKey(0)
    kp, kx, ka = jax.random.split(key, 3)
    params = init_params(kp, cfg)

    batch, l = 2, 4
    x = jax.random.normal(kx, (batch, l, cfg["in_channels"], cfg["input_size"], cfg["input_size"]),
                          jnp.float32)
    t = jnp.array([3.0, 77.0], jnp.float32)
    a = jax.random.normal(ka, (batch, l, cfg["action_dim"]), jnp.float32)

    fwd = jax.jit(functools.partial(forward, cfg=cfg))
    out = fwd(params, x, t, a)
    out = jax.block_until_ready(out)
    assert out.shape == (batch, l, cfg["out_channels"], cfg["input_size"], cfg["input_size"])
    assert bool(jnp.all(jnp.isfinite(out)))
    print("KERNEL_OK")
</pallas_src>

<mosaic_0001>
module attributes {stable_mosaic.version = 11 : i64} {
  func.func @_cond_embed_kernel(%arg0: memref<2x256xf32, #tpu.memory_space<vmem>>, %arg1: memref<8x7xf32, #tpu.memory_space<vmem>>, %arg2: memref<256x32xbf16, #tpu.memory_space<vmem>>, %arg3: memref<1x32xf32, #tpu.memory_space<vmem>>, %arg4: memref<32x32xbf16, #tpu.memory_space<vmem>>, %arg5: memref<1x32xf32, #tpu.memory_space<vmem>>, %arg6: memref<7x32xbf16, #tpu.memory_space<vmem>>, %arg7: memref<1x32xf32, #tpu.memory_space<vmem>>, %arg8: memref<32x32xbf16, #tpu.memory_space<vmem>>, %arg9: memref<1x32xf32, #tpu.memory_space<vmem>>, %arg10: memref<2x32xf32, #tpu.memory_space<vmem>>, %arg11: memref<8x32xf32, #tpu.memory_space<vmem>>) attributes {dimension_semantics = [], scalar_prefetch = 0 : i64, scratch_operands = 0 : i64, tpu.core_type = #tpu.core_type<tc>} {
    %c0 = arith.constant 0 : index
    %c0_0 = arith.constant 0 : index
    %0 = vector.load %arg0[%c0, %c0_0] : memref<2x256xf32, #tpu.memory_space<vmem>>, vector<2x256xf32>
    %1 = arith.truncf %0 : vector<2x256xf32> to vector<2x256xbf16>
    %c0_1 = arith.constant 0 : index
    %c0_2 = arith.constant 0 : index
    %2 = vector.load %arg2[%c0_1, %c0_2] : memref<256x32xbf16, #tpu.memory_space<vmem>>, vector<256x32xbf16>
    %cst = arith.constant dense<0.000000e+00> : vector<2x32xf32>
    %3 = tpu.matmul %1, %2, %cst {dimension_numbers = #tpu.dot_dimension_numbers<[1], [0], [0], [1], [0, 0, 1, 1], [], []>} : vector<2x256xbf16>, vector<256x32xbf16>, vector<2x32xf32> -> vector<2x32xf32>
    %c0_3 = arith.constant 0 : index
    %c0_4 = arith.constant 0 : index
    %4 = vector.load %arg3[%c0_3, %c0_4] : memref<1x32xf32, #tpu.memory_space<vmem>>, vector<1x32xf32>
    %5 = vector.broadcast %4 : vector<1x32xf32> to vector<2x32xf32>
    %6 = arith.addf %3, %5 : vector<2x32xf32>
    %7 = arith.negf %6 : vector<2x32xf32>
    %8 = math.exp %7 : vector<2x32xf32>
    %cst_5 = arith.constant 1.000000e+00 : f32
    %9 = vector.broadcast %cst_5 : f32 to vector<2x32xf32>
    %10 = arith.addf %9, %8 : vector<2x32xf32>
    %11 = arith.divf %9, %10 : vector<2x32xf32>
    %12 = arith.mulf %6, %11 : vector<2x32xf32>
    %13 = arith.truncf %12 : vector<2x32xf32> to vector<2x32xbf16>
    %c0_6 = arith.constant 0 : index
    %c0_7 = arith.constant 0 : index
    %14 = vector.load %arg4[%c0_6, %c0_7] : memref<32x32xbf16, #tpu.memory_space<vmem>>, vector<32x32xbf16>
    %cst_8 = arith.constant dense<0.000000e+00> : vector<2x32xf32>
    %15 = tpu.matmul %13, %14, %cst_8 {dimension_numbers = #tpu.dot_dimension_numbers<[1], [0], [0], [1], [0, 0, 1, 1], [], []>} : vector<2x32xbf16>, vector<32x32xbf16>, vector<2x32xf32> -> vector<2x32xf32>
    %c0_9 = arith.constant 0 : index
    %c0_10 = arith.constant 0 : index
    %16 = vector.load %arg5[%c0_9, %c0_10] : memref<1x32xf32, #tpu.memory_space<vmem>>, vector<1x32xf32>
    %17 = vector.broadcast %16 : vector<1x32xf32> to vector<2x32xf32>
    %18 = arith.addf %15, %17 : vector<2x32xf32>
    %c0_11 = arith.constant 0 : index
    %c0_12 = arith.constant 0 : index
    %19 = vector.load %arg10[%c0_11, %c0_12] : memref<2x32xf32, #tpu.memory_space<vmem>>, vector<2x32xf32>
    tpu.vector_store %arg10[%c0_11, %c0_12], %18 {strides = array<i32>} : memref<2x32xf32, #tpu.memory_space<vmem>>, vector<2x32xf32>,
    %c0_13 = arith.constant 0 : index
    %c0_14 = arith.constant 0 : index
    %20 = vector.load %arg1[%c0_13, %c0_14] : memref<8x7xf32, #tpu.memory_space<vmem>>, vector<8x7xf32>
    %21 = arith.truncf %20 : vector<8x7xf32> to vector<8x7xbf16>
    %c0_15 = arith.constant 0 : index
    %c0_16 = arith.constant 0 : index
    %22 = vector.load %arg6[%c0_15, %c0_16] : memref<7x32xbf16, #tpu.memory_space<vmem>>, vector<7x32xbf16>
    %cst_17 = arith.constant dense<0.000000e+00> : vector<8x32xf32>
    %23 = tpu.matmul %21, %22, %cst_17 {dimension_numbers = #tpu.dot_dimension_numbers<[1], [0], [0], [1], [0, 0, 1, 1], [], []>} : vector<8x7xbf16>, vector<7x32xbf16>, vector<8x32xf32> -> vector<8x32xf32>
    %c0_18 = arith.constant 0 : index
    %c0_19 = arith.constant 0 : index
    %24 = vector.load %arg7[%c0_18, %c0_19] : memref<1x32xf32, #tpu.memory_space<vmem>>, vector<1x32xf32>
    %25 = vector.broadcast %24 : vector<1x32xf32> to vector<8x32xf32>
    %26 = arith.addf %23, %25 : vector<8x32xf32>
    %27 = arith.negf %26 : vector<8x32xf32>
    %28 = math.exp %27 : vector<8x32xf32>
    %cst_20 = arith.constant 1.000000e+00 : f32
    %29 = vector.broadcast %cst_20 : f32 to vector<8x32xf32>
    %30 = arith.addf %29, %28 : vector<8x32xf32>
    %31 = arith.divf %29, %30 : vector<8x32xf32>
    %32 = arith.mulf %26, %31 : vector<8x32xf32>
    %33 = arith.truncf %32 : vector<8x32xf32> to vector<8x32xbf16>
    %c0_21 = arith.constant 0 : index
    %c0_22 = arith.constant 0 : index
    %34 = vector.load %arg8[%c0_21, %c0_22] : memref<32x32xbf16, #tpu.memory_space<vmem>>, vector<32x32xbf16>
    %cst_23 = arith.constant dense<0.000000e+00> : vector<8x32xf32>
    %35 = tpu.matmul %33, %34, %cst_23 {dimension_numbers = #tpu.dot_dimension_numbers<[1], [0], [0], [1], [0, 0, 1, 1], [], []>} : vector<8x32xbf16>, vector<32x32xbf16>, vector<8x32xf32> -> vector<8x32xf32>
    %c0_24 = arith.constant 0 : index
    %c0_25 = arith.constant 0 : index
    %36 = vector.load %arg9[%c0_24, %c0_25] : memref<1x32xf32, #tpu.memory_space<vmem>>, vector<1x32xf32>
    %37 = vector.broadcast %36 : vector<1x32xf32> to vector<8x32xf32>
    %38 = arith.addf %35, %37 : vector<8x32xf32>
    %c0_26 = arith.constant 0 : index
    %c0_27 = arith.constant 0 : index
    %39 = vector.load %arg11[%c0_26, %c0_27] : memref<8x32xf32, #tpu.memory_space<vmem>>, vector<8x32xf32>
    tpu.vector_store %arg11[%c0_26, %c0_27], %38 {strides = array<i32>} : memref<8x32xf32, #tpu.memory_space<vmem>>, vector<8x32xf32>,
    return
  }
}

module attributes {stable_mosaic.version = 11 : i64} {
  func.func @_patch_embed_kernel(%arg0: i32, %arg1: memref<2x4x256xbf16, #tpu.memory_space<vmem>>, %arg2: memref<256x32xbf16, #tpu.memory_space<vmem>>, %arg3: memref<1x32xf32, #tpu.memory_space<vmem>>, %arg4: memref<1x4x32xf32, #tpu.memory_space<vmem>>, %arg5: memref<2x4x32xbf16, #tpu.memory_space<vmem>>) attributes {dimension_semantics = [#tpu.dimension_semantics<parallel>], iteration_bounds = array<i64: 4>, scalar_prefetch = 0 : i64, scratch_operands = 0 : i64, tpu.core_type = #tpu.core_type<tc>, window_params = [{transform_indices = @transform_0, window_bounds = array<i64: 2, 4, 256>}, {pipeline_mode = #tpu.pipeline_mode<synchronous>, transform_indices = @transform_1, window_bounds = array<i64: 256, 32>}, {pipeline_mode = #tpu.pipeline_mode<synchronous>, transform_indices = @transform_2, window_bounds = array<i64: 1, 32>}, {pipeline_mode = #tpu.pipeline_mode<synchronous>, transform_indices = @transform_3, window_bounds = array<i64: 1, 4, 32>}, {transform_indices = @transform_4, window_bounds = array<i64: 2, 4, 32>}]} {
    %c0 = arith.constant 0 : index
    %c0_0 = arith.constant 0 : index
    %c0_1 = arith.constant 0 : index
    %0 = vector.load %arg1[%c0, %c0_0, %c0_1] : memref<2x4x256xbf16, #tpu.memory_space<vmem>>, vector<2x4x256xbf16>
    %1 = vector.shape_cast %0 : vector<2x4x256xbf16> to vector<8x256xbf16>
    %c0_2 = arith.constant 0 : index
    %c0_3 = arith.constant 0 : index
    %2 = vector.load %arg2[%c0_2, %c0_3] : memref<256x32xbf16, #tpu.memory_space<vmem>>, vector<256x32xbf16>
    %cst = arith.constant dense<0.000000e+00> : vector<8x32xf32>
    %3 = tpu.matmul %1, %2, %cst {dimension_numbers = #tpu.dot_dimension_numbers<[1], [0], [0], [1], [0, 0, 1, 1], [], []>} : vector<8x256xbf16>, vector<256x32xbf16>, vector<8x32xf32> -> vector<8x32xf32>
    %c0_4 = arith.constant 0 : index
    %c0_5 = arith.constant 0 : index
    %4 = vector.load %arg3[%c0_4, %c0_5] : memref<1x32xf32, #tpu.memory_space<vmem>>, vector<1x32xf32>
    %5 = vector.broadcast %4 : vector<1x32xf32> to vector<8x32xf32>
    %6 = arith.addf %3, %5 : vector<8x32xf32>
    %7 = vector.shape_cast %6 : vector<8x32xf32> to vector<2x4x32xf32>
    %c0_6 = arith.constant 0 : index
    %c0_7 = arith.constant 0 : index
    %c0_8 = arith.constant 0 : index
    %8 = vector.load %arg4[%c0_6, %c0_7, %c0_8] : memref<1x4x32xf32, #tpu.memory_space<vmem>>, vector<1x4x32xf32>
    %9 = vector.broadcast %8 : vector<1x4x32xf32> to vector<2x4x32xf32>
    %10 = arith.addf %7, %9 : vector<2x4x32xf32>
    %11 = arith.truncf %10 : vector<2x4x32xf32> to vector<2x4x32xbf16>
    %c0_9 = arith.constant 0 : index
    %c0_10 = arith.constant 0 : index
    %c0_11 = arith.constant 0 : index
    %12 = vector.load %arg5[%c0_9, %c0_10, %c0_11] : memref<2x4x32xbf16, #tpu.memory_space<vmem>>, vector<2x4x32xbf16>
    tpu.vector_store %arg5[%c0_9, %c0_10, %c0_11], %11 {strides = array<i32>} : memref<2x4x32xbf16, #tpu.memory_space<vmem>>, vector<2x4x32xbf16>,
    return
  }
  func.func @transform_0(%arg0: i32) -> (i32, i32, i32) {
    %c0_i32 = arith.constant 0 : i32
    %c0_i32_0 = arith.constant 0 : i32
    %c0_i32_1 = arith.constant 0 : i32
    return %arg0, %c0_i32, %c0_i32_0 : i32, i32, i32
  }
  func.func @transform_1(%arg0: i32) -> (i32, i32) {
    %c0_i32 = arith.constant 0 : i32
    %c0_i32_0 = arith.constant 0 : i32
    %c0_i32_1 = arith.constant 0 : i32
    return %c0_i32, %c0_i32_0 : i32, i32
  }
  func.func @transform_2(%arg0: i32) -> (i32, i32) {
    %c0_i32 = arith.constant 0 : i32
    %c0_i32_0 = arith.constant 0 : i32
    %c0_i32_1 = arith.constant 0 : i32
    return %c0_i32, %c0_i32_0 : i32, i32
  }
  func.func @transform_3(%arg0: i32) -> (i32, i32, i32) {
    %c0_i32 = arith.constant 0 : i32
    %c0_i32_0 = arith.constant 0 : i32
    %c0_i32_1 = arith.constant 0 : i32
    %c0_i32_2 = arith.constant 0 : i32
    return %c0_i32, %c0_i32_0, %c0_i32_1 : i32, i32, i32
  }
  func.func @transform_4(%arg0: i32) -> (i32, i32, i32) {
    %c0_i32 = arith.constant 0 : i32
    %c0_i32_0 = arith.constant 0 : i32
    %c0_i32_1 = arith.constant 0 : i32
    return %arg0, %c0_i32, %c0_i32_0 : i32, i32, i32
  }
}

module attributes {stable_mosaic.version = 11 : i64} {
  func.func @_dit_block_kernel(%arg0: i32, %arg1: memref<2x4x32xbf16, #tpu.memory_space<vmem>>, %arg2: memref<2x1x32xf32, #tpu.memory_space<vmem>>, %arg3: memref<32x192xbf16, #tpu.memory_space<vmem>>, %arg4: memref<1x192xf32, #tpu.memory_space<vmem>>, %arg5: memref<32x96xbf16, #tpu.memory_space<vmem>>, %arg6: memref<1x96xf32, #tpu.memory_space<vmem>>, %arg7: memref<4x8x32xbf16, #tpu.memory_space<vmem>>, %arg8: memref<1x32xf32, #tpu.memory_space<vmem>>, %arg9: memref<32x128xbf16, #tpu.memory_space<vmem>>, %arg10: memref<1x128xf32, #tpu.memory_space<vmem>>, %arg11: memref<128x32xbf16, #tpu.memory_space<vmem>>, %arg12: memref<1x32xf32, #tpu.memory_space<vmem>>, %arg13: memref<2x4x32xbf16, #tpu.memory_space<vmem>>) attributes {dimension_semantics = [#tpu.dimension_semantics<parallel>], iteration_bounds = array<i64: 4>, scalar_prefetch = 0 : i64, scratch_operands = 0 : i64, tpu.core_type = #tpu.core_type<tc>, window_params = [{transform_indices = @transform_0, window_bounds = array<i64: 2, 4, 32>}, {transform_indices = @transform_1, window_bounds = array<i64: 2, 1, 32>}, {pipeline_mode = #tpu.pipeline_mode<synchronous>, transform_indices = @transform_2, window_bounds = array<i64: 32, 192>}, {pipeline_mode = #tpu.pipeline_mode<synchronous>, transform_indices = @transform_3, window_bounds = array<i64: 1, 192>}, {pipeline_mode = #tpu.pipeline_mode<synchronous>, transform_indices = @transform_4, window_bounds = array<i64: 32, 96>}, {pipeline_mode = #tpu.pipeline_mode<synchronous>, transform_indices = @transform_5, window_bounds = array<i64: 1, 96>}, {pipeline_mode = #tpu.pipeline_mode<synchronous>, transform_indices = @transform_6, window_bounds = array<i64: 4, 8, 32>}, {pipeline_mode = #tpu.pipeline_mode<synchronous>, transform_indices = @transform_7, window_bounds = array<i64: 1, 32>}, {pipeline_mode = #tpu.pipeline_mode<synchronous>, transform_indices = @transform_8, window_bounds = array<i64: 32, 128>}, {pipeline_mode = #tpu.pipeline_mode<synchronous>, transform_indices = @transform_9, window_bounds = array<i64: 1, 128>}, {pipeline_mode = #tpu.pipeline_mode<synchronous>, transform_indices = @transform_10, window_bounds = array<i64: 128, 32>}, {pipeline_mode = #tpu.pipeline_mode<synchronous>, transform_indices = @transform_11, window_bounds = array<i64: 1, 32>}, {transform_indices = @transform_12, window_bounds = array<i64: 2, 4, 32>}]} {
    %c0 = arith.constant 0 : index
    %c0_0 = arith.constant 0 : index
    %c0_1 = arith.constant 0 : index
    %0 = vector.load %arg1[%c0, %c0_0, %c0_1] : memref<2x4x32xbf16, #tpu.memory_space<vmem>>, vector<2x4x32xbf16>
    %1 = arith.extf %0 : vector<2x4x32xbf16> to vector<2x4x32xf32>
    %c0_2 = arith.constant 0 : index
    %c0_3 = arith.constant 0 : index
    %c0_4 = arith.constant 0 : index
    %2 = vector.load %arg2[%c0_2, %c0_3, %c0_4] : memref<2x1x32xf32, #tpu.memory_space<vmem>>, vector<2x1x32xf32>
    %3 = vector.shape_cast %2 : vector<2x1x32xf32> to vector<2x32xf32>
    %4 = arith.negf %3 : vector<2x32xf32>
    %5 = math.exp %4 : vector<2x32xf32>
    %cst = arith.constant 1.000000e+00 : f32
    %6 = vector.broadcast %cst : f32 to vector<2x32xf32>
    %7 = arith.addf %6, %5 : vector<2x32xf32>
    %8 = arith.divf %6, %7 : vector<2x32xf32>
    %9 = arith.mulf %3, %8 : vector<2x32xf32>
    %10 = arith.truncf %9 : vector<2x32xf32> to vector<2x32xbf16>
    %c0_5 = arith.constant 0 : index
    %c0_6 = arith.constant 0 : index
    %11 = vector.load %arg3[%c0_5, %c0_6] : memref<32x192xbf16, #tpu.memory_space<vmem>>, vector<32x192xbf16>
    %cst_7 = arith.constant dense<0.000000e+00> : vector<2x192xf32>
    %12 = tpu.matmul %10, %11, %cst_7 {dimension_numbers = #tpu.dot_dimension_numbers<[1], [0], [0], [1], [0, 0, 1, 1], [], []>} : vector<2x32xbf16>, vector<32x192xbf16>, vector<2x192xf32> -> vector<2x192xf32>
    %c0_8 = arith.constant 0 : index
    %c0_9 = arith.constant 0 : index
    %13 = vector.load %arg4[%c0_8, %c0_9] : memref<1x192xf32, #tpu.memory_space<vmem>>, vector<1x192xf32>
    %14 = vector.broadcast %13 : vector<1x192xf32> to vector<2x192xf32>
    %15 = arith.addf %12, %14 : vector<2x192xf32>
    %16 = vector.shape_cast %15 : vector<2x192xf32> to vector<2x6x32xf32>
    %17 = vector.extract_strided_slice %16 {offsets = [0, 0, 0], sizes = [2, 1, 32], strides = [1, 1, 1]} : vector<2x6x32xf32> to vector<2x1x32xf32>
    %18 = vector.shape_cast %17 : vector<2x1x32xf32> to vector<2x32xf32>
    %19 = vector.shape_cast %18 : vector<2x32xf32> to vector<2x1x32xf32>
    %20 = vector.extract_strided_slice %16 {offsets = [0, 1, 0], sizes = [2, 1, 32], strides = [1, 1, 1]} : vector<2x6x32xf32> to vector<2x1x32xf32>
    %21 = vector.shape_cast %20 : vector<2x1x32xf32> to vector<2x32xf32>
    %22 = vector.shape_cast %21 : vector<2x32xf32> to vector<2x1x32xf32>
    %23 = vector.extract_strided_slice %16 {offsets = [0, 2, 0], sizes = [2, 1, 32], strides = [1, 1, 1]} : vector<2x6x32xf32> to vector<2x1x32xf32>
    %24 = vector.shape_cast %23 : vector<2x1x32xf32> to vector<2x32xf32>
    %25 = vector.shape_cast %24 : vector<2x32xf32> to vector<2x1x32xf32>
    %26 = vector.extract_strided_slice %16 {offsets = [0, 3, 0], sizes = [2, 1, 32], strides = [1, 1, 1]} : vector<2x6x32xf32> to vector<2x1x32xf32>
    %27 = vector.shape_cast %26 : vector<2x1x32xf32> to vector<2x32xf32>
    %28 = vector.shape_cast %27 : vector<2x32xf32> to vector<2x1x32xf32>
    %29 = vector.extract_strided_slice %16 {offsets = [0, 4, 0], sizes = [2, 1, 32], strides = [1, 1, 1]} : vector<2x6x32xf32> to vector<2x1x32xf32>
    %30 = vector.shape_cast %29 : vector<2x1x32xf32> to vector<2x32xf32>
    %31 = vector.shape_cast %30 : vector<2x32xf32> to vector<2x1x32xf32>
    %32 = vector.extract_strided_slice %16 {offsets = [0, 5, 0], sizes = [2, 1, 32], strides = [1, 1, 1]} : vector<2x6x32xf32> to vector<2x1x32xf32>
    %33 = vector.shape_cast %32 : vector<2x1x32xf32> to vector<2x32xf32>
    %34 = vector.shape_cast %33 : vector<2x32xf32> to vector<2x1x32xf32>
    %cst_10 = arith.constant dense<0.000000e+00> : vector<2x4xf32>
    %35 = vector.multi_reduction <add>, %1, %cst_10 [2] : vector<2x4x32xf32> to vector<2x4xf32>
    %36 = vector.shape_cast %35 : vector<2x4xf32> to vector<2x4x1xf32>
    %cst_11 = arith.constant 3.200000e+01 : f32
    %37 = vector.broadcast %cst_11 : f32 to vector<2x4x1xf32>
    %38 = arith.divf %36, %37 : vector<2x4x1xf32>
    %39 = vector.broadcast %38 : vector<2x4x1xf32> to vector<2x4x32xf32>
    %40 = arith.subf %1, %39 : vector<2x4x32xf32>
    %41 = arith.mulf %40, %40 : vector<2x4x32xf32>
    %cst_12 = arith.constant dense<0.000000e+00> : vector<2x4xf32>
    %42 = vector.multi_reduction <add>, %41, %cst_12 [2] : vector<2x4x32xf32> to vector<2x4xf32>
    %43 = vector.shape_cast %42 : vector<2x4xf32> to vector<2x4x1xf32>
    %cst_13 = arith.constant 3.200000e+01 : f32
    %44 = vector.broadcast %cst_13 : f32 to vector<2x4x1xf32>
    %45 = arith.divf %43, %44 : vector<2x4x1xf32>
    %46 = vector.broadcast %38 : vector<2x4x1xf32> to vector<2x4x32xf32>
    %47 = arith.subf %1, %46 : vector<2x4x32xf32>
    %cst_14 = arith.constant 9.99999997E-7 : f32
    %48 = vector.broadcast %cst_14 : f32 to vector<2x4x1xf32>
    %49 = arith.addf %45, %48 : vector<2x4x1xf32>
    %50 = math.rsqrt %49 : vector<2x4x1xf32>
    %51 = vector.broadcast %50 : vector<2x4x1xf32> to vector<2x4x32xf32>
    %52 = arith.mulf %47, %51 : vector<2x4x32xf32>
    %cst_15 = arith.constant 1.000000e+00 : f32
    %53 = vector.broadcast %cst_15 : f32 to vector<2x1x32xf32>
    %54 = arith.addf %53, %22 : vector<2x1x32xf32>
    %55 = vector.broadcast %54 : vector<2x1x32xf32> to vector<2x4x32xf32>
    %56 = arith.mulf %52, %55 : vector<2x4x32xf32>
    %57 = vector.broadcast %19 : vector<2x1x32xf32> to vector<2x4x32xf32>
    %58 = arith.addf %56, %57 : vector<2x4x32xf32>
    %59 = vector.shape_cast %58 : vector<2x4x32xf32> to vector<8x32xf32>
    %60 = arith.truncf %59 : vector<8x32xf32> to vector<8x32xbf16>
    %c0_16 = arith.constant 0 : index
    %c0_17 = arith.constant 0 : index
    %61 = vector.load %arg5[%c0_16, %c0_17] : memref<32x96xbf16, #tpu.memory_space<vmem>>, vector<32x96xbf16>
    %cst_18 = arith.constant dense<0.000000e+00> : vector<8x96xf32>
    %62 = tpu.matmul %60, %61, %cst_18 {dimension_numbers = #tpu.dot_dimension_numbers<[1], [0], [0], [1], [0, 0, 1, 1], [], []>} : vector<8x32xbf16>, vector<32x96xbf16>, vector<8x96xf32> -> vector<8x96xf32>
    %c0_19 = arith.constant 0 : index
    %c0_20 = arith.constant 0 : index
    %63 = vector.load %arg6[%c0_19, %c0_20] : memref<1x96xf32, #tpu.memory_space<vmem>>, vector<1x96xf32>
    %64 = vector.broadcast %63 : vector<1x96xf32> to vector<8x96xf32>
    %65 = arith.addf %62, %64 : vector<8x96xf32>
    %66 = vector.shape_cast %65 : vector<8x96xf32> to vector<2x4x96xf32>
    %67 = vector.extract_strided_slice %66 {offsets = [0, 0, 0], sizes = [2, 4, 8], strides = [1, 1, 1]} : vector<2x4x96xf32> to vector<2x4x8xf32>
    %68 = arith.truncf %67 : vector<2x4x8xf32> to vector<2x4x8xbf16>
    %69 = vector.extract_strided_slice %66 {offsets = [0, 0, 32], sizes = [2, 4, 8], strides = [1, 1, 1]} : vector<2x4x96xf32> to vector<2x4x8xf32>
    %70 = arith.truncf %69 : vector<2x4x8xf32> to vector<2x4x8xbf16>
    %71 = vector.extract_strided_slice %66 {offsets = [0, 0, 64], sizes = [2, 4, 8], strides = [1, 1, 1]} : vector<2x4x96xf32> to vector<2x4x8xf32>
    %72 = arith.truncf %71 : vector<2x4x8xf32> to vector<2x4x8xbf16>
    "tpu.trace_start"() <{level = 10 : i32, message = "rqd,rkd->rqk"}> : () -> ()
    %cst_21 = arith.constant dense<0.000000e+00> : vector<2x4x4xf32>
    %73 = tpu.matmul %68, %70, %cst_21 {dimension_numbers = #tpu.dot_dimension_numbers<[2], [2], [1], [1], [0, 0, 0, 1, 1, 1], [0], [0]>} : vector<2x4x8xbf16>, vector<2x4x8xbf16>, vector<2x4x4xf32> -> vector<2x4x4xf32>
    "tpu.trace_stop"() : () -> ()
    %cst_22 = arith.constant dense<0xFF800000> : vector<2x4xf32>
    %74 = vector.multi_reduction <maximumf>, %73, %cst_22 [2] : vector<2x4x4xf32> to vector<2x4xf32>
    %75 = vector.shape_cast %74 : vector<2x4xf32> to vector<2x4x1xf32>
    %76 = vector.broadcast %75 : vector<2x4x1xf32> to vector<2x4x4xf32>
    %77 = arith.subf %73, %76 : vector<2x4x4xf32>
    %78 = math.exp %77 : vector<2x4x4xf32>
    %cst_23 = arith.constant dense<0.000000e+00> : vector<2x4xf32>
    %79 = vector.multi_reduction <add>, %78, %cst_23 [2] : vector<2x4x4xf32> to vector<2x4xf32>
    %80 = vector.shape_cast %79 : vector<2x4xf32> to vector<2x4x1xf32>
    %81 = tpu.reciprocal %80 {approx = true} : vector<2x4x1xf32> -> vector<2x4x1xf32>
    %82 = vector.broadcast %81 : vector<2x4x1xf32> to vector<2x4x4xf32>
    %83 = arith.mulf %78, %82 : vector<2x4x4xf32>
    %84 = arith.truncf %83 : vector<2x4x4xf32> to vector<2x4x4xbf16>
    "tpu.trace_start"() <{level = 10 : i32, message = "rqk,rkd->rqd"}> : () -> ()
    %cst_24 = arith.constant dense<0.000000e+00> : vector<2x4x8xf32>
    %85 = tpu.matmul %84, %72, %cst_24 {dimension_numbers = #tpu.dot_dimension_numbers<[2], [1], [1], [2], [0, 0, 0, 1, 1, 2], [0], [0]>} : vector<2x4x4xbf16>, vector<2x4x8xbf16>, vector<2x4x8xf32> -> vector<2x4x8xf32>
    "tpu.trace_stop"() : () -> ()
    %86 = vector.shape_cast %85 : vector<2x4x8xf32> to vector<8x8xf32>
    %87 = arith.truncf %86 : vector<8x8xf32> to vector<8x8xbf16>
    %c0_25 = arith.constant 0 : index
    %c0_26 = arith.constant 0 : index
    %c0_27 = arith.constant 0 : index
    %88 = vector.load %arg7[%c0_25, %c0_26, %c0_27] : memref<4x8x32xbf16, #tpu.memory_space<vmem>>, vector<1x8x32xbf16>
    %89 = vector.shape_cast %88 : vector<1x8x32xbf16> to vector<8x32xbf16>
    %cst_28 = arith.constant dense<0.000000e+00> : vector<8x32xf32>
    %90 = tpu.matmul %87, %89, %cst_28 {dimension_numbers = #tpu.dot_dimension_numbers<[1], [0], [0], [1], [0, 0, 1, 1], [], []>} : vector<8x8xbf16>, vector<8x32xbf16>, vector<8x32xf32> -> vector<8x32xf32>
    %91 = vector.extract_strided_slice %66 {offsets = [0, 0, 8], sizes = [2, 4, 8], strides = [1, 1, 1]} : vector<2x4x96xf32> to vector<2x4x8xf32>
    %92 = arith.truncf %91 : vector<2x4x8xf32> to vector<2x4x8xbf16>
    %93 = vector.extract_strided_slice %66 {offsets = [0, 0, 40], sizes = [2, 4, 8], strides = [1, 1, 1]} : vector<2x4x96xf32> to vector<2x4x8xf32>
    %94 = arith.truncf %93 : vector<2x4x8xf32> to vector<2x4x8xbf16>
    %95 = vector.extract_strided_slice %66 {offsets = [0, 0, 72], sizes = [2, 4, 8], strides = [1, 1, 1]} : vector<2x4x96xf32> to vector<2x4x8xf32>
    %96 = arith.truncf %95 : vector<2x4x8xf32> to vector<2x4x8xbf16>
    "tpu.trace_start"() <{level = 10 : i32, message = "rqd,rkd->rqk"}> : () -> ()
    %cst_29 = arith.constant dense<0.000000e+00> : vector<2x4x4xf32>
    %97 = tpu.matmul %92, %94, %cst_29 {dimension_numbers = #tpu.dot_dimension_numbers<[2], [2], [1], [1], [0, 0, 0, 1, 1, 1], [0], [0]>} : vector<2x4x8xbf16>, vector<2x4x8xbf16>, vector<2x4x4xf32> -> vector<2x4x4xf32>
    "tpu.trace_stop"() : () -> ()
    %cst_30 = arith.constant dense<0xFF800000> : vector<2x4xf32>
    %98 = vector.multi_reduction <maximumf>, %97, %cst_30 [2] : vector<2x4x4xf32> to vector<2x4xf32>
    %99 = vector.shape_cast %98 : vector<2x4xf32> to vector<2x4x1xf32>
    %100 = vector.broadcast %99 : vector<2x4x1xf32> to vector<2x4x4xf32>
    %101 = arith.subf %97, %100 : vector<2x4x4xf32>
    %102 = math.exp %101 : vector<2x4x4xf32>
    %cst_31 = arith.constant dense<0.000000e+00> : vector<2x4xf32>
    %103 = vector.multi_reduction <add>, %102, %cst_31 [2] : vector<2x4x4xf32> to vector<2x4xf32>
    %104 = vector.shape_cast %103 : vector<2x4xf32> to vector<2x4x1xf32>
    %105 = tpu.reciprocal %104 {approx = true} : vector<2x4x1xf32> -> vector<2x4x1xf32>
    %106 = vector.broadcast %105 : vector<2x4x1xf32> to vector<2x4x4xf32>
    %107 = arith.mulf %102, %106 : vector<2x4x4xf32>
    %108 = arith.truncf %107 : vector<2x4x4xf32> to vector<2x4x4xbf16>
    "tpu.trace_start"() <{level = 10 : i32, message = "rqk,rkd->rqd"}> : () -> ()
    %cst_32 = arith.constant dense<0.000000e+00> : vector<2x4x8xf32>
    %109 = tpu.matmul %108, %96, %cst_32 {dimension_numbers = #tpu.dot_dimension_numbers<[2], [1], [1], [2], [0, 0, 0, 1, 1, 2], [0], [0]>} : vector<2x4x4xbf16>, vector<2x4x8xbf16>, vector<2x4x8xf32> -> vector<2x4x8xf32>
    "tpu.trace_stop"() : () -> ()
    %110 = vector.shape_cast %109 : vector<2x4x8xf32> to vector<8x8xf32>
    %111 = arith.truncf %110 : vector<8x8xf32> to vector<8x8xbf16>
    %c1 = arith.constant 1 : index
    %c0_33 = arith.constant 0 : index
    %c0_34 = arith.constant 0 : index
    %112 = vector.load %arg7[%c1, %c0_33, %c0_34] : memref<4x8x32xbf16, #tpu.memory_space<vmem>>, vector<1x8x32xbf16>
    %113 = vector.shape_cast %112 : vector<1x8x32xbf16> to vector<8x32xbf16>
    %cst_35 = arith.constant dense<0.000000e+00> : vector<8x32xf32>
    %114 = tpu.matmul %111, %113, %cst_35 {dimension_numbers = #tpu.dot_dimension_numbers<[1], [0], [0], [1], [0, 0, 1, 1], [], []>} : vector<8x8xbf16>, vector<8x32xbf16>, vector<8x32xf32> -> vector<8x32xf32>
    %115 = arith.addf %90, %114 : vector<8x32xf32>
    %116 = vector.extract_strided_slice %66 {offsets = [0, 0, 16], sizes = [2, 4, 8], strides = [1, 1, 1]} : vector<2x4x96xf32> to vector<2x4x8xf32>
    %117 = arith.truncf %116 : vector<2x4x8xf32> to vector<2x4x8xbf16>
    %118 = vector.extract_strided_slice %66 {offsets = [0, 0, 48], sizes = [2, 4, 8], strides = [1, 1, 1]} : vector<2x4x96xf32> to vector<2x4x8xf32>
    %119 = arith.truncf %118 : vector<2x4x8xf32> to vector<2x4x8xbf16>
    %120 = vector.extract_strided_slice %66 {offsets = [0, 0, 80], sizes = [2, 4, 8], strides = [1, 1, 1]} : vector<2x4x96xf32> to vector<2x4x8xf32>
    %121 = arith.truncf %120 : vector<2x4x8xf32> to vector<2x4x8xbf16>
    "tpu.trace_start"() <{level = 10 : i32, message = "rqd,rkd->rqk"}> : () -> ()
    %cst_36 = arith.constant dense<0.000000e+00> : vector<2x4x4xf32>
    %122 = tpu.matmul %117, %119, %cst_36 {dimension_numbers = #tpu.dot_dimension_numbers<[2], [2], [1], [1], [0, 0, 0, 1, 1, 1], [0], [0]>} : vector<2x4x8xbf16>, vector<2x4x8xbf16>, vector<2x4x4xf32> -> vector<2x4x4xf32>
    "tpu.trace_stop"() : () -> ()
    %cst_37 = arith.constant dense<0xFF800000> : vector<2x4xf32>
    %123 = vector.multi_reduction <maximumf>, %122, %cst_37 [2] : vector<2x4x4xf32> to vector<2x4xf32>
    %124 = vector.shape_cast %123 : vector<2x4xf32> to vector<2x4x1xf32>
    %125 = vector.broadcast %124 : vector<2x4x1xf32> to vector<2x4x4xf32>
    %126 = arith.subf %122, %125 : vector<2x4x4xf32>
    %127 = math.exp %126 : vector<2x4x4xf32>
    %cst_38 = arith.constant dense<0.000000e+00> : vector<2x4xf32>
    %128 = vector.multi_reduction <add>, %127, %cst_38 [2] : vector<2x4x4xf32> to vector<2x4xf32>
    %129 = vector.shape_cast %128 : vector<2x4xf32> to vector<2x4x1xf32>
    %130 = tpu.reciprocal %129 {approx = true} : vector<2x4x1xf32> -> vector<2x4x1xf32>
    %131 = vector.broadcast %130 : vector<2x4x1xf32> to vector<2x4x4xf32>
    %132 = arith.mulf %127, %131 : vector<2x4x4xf32>
    %133 = arith.truncf %132 : vector<2x4x4xf32> to vector<2x4x4xbf16>
    "tpu.trace_start"() <{level = 10 : i32, message = "rqk,rkd->rqd"}> : () -> ()
    %cst_39 = arith.constant dense<0.000000e+00> : vector<2x4x8xf32>
    %134 = tpu.matmul %133, %121, %cst_39 {dimension_numbers = #tpu.dot_dimension_numbers<[2], [1], [1], [2], [0, 0, 0, 1, 1, 2], [0], [0]>} : vector<2x4x4xbf16>, vector<2x4x8xbf16>, vector<2x4x8xf32> -> vector<2x4x8xf32>
    "tpu.trace_stop"() : () -> ()
    %135 = vector.shape_cast %134 : vector<2x4x8xf32> to vector<8x8xf32>
    %136 = arith.truncf %135 : vector<8x8xf32> to vector<8x8xbf16>
    %c2 = arith.constant 2 : index
    %c0_40 = arith.constant 0 : index
    %c0_41 = arith.constant 0 : index
    %137 = vector.load %arg7[%c2, %c0_40, %c0_41] : memref<4x8x32xbf16, #tpu.memory_space<vmem>>, vector<1x8x32xbf16>
    %138 = vector.shape_cast %137 : vector<1x8x32xbf16> to vector<8x32xbf16>
    %cst_42 = arith.constant dense<0.000000e+00> : vector<8x32xf32>
    %139 = tpu.matmul %136, %138, %cst_42 {dimension_numbers = #tpu.dot_dimension_numbers<[1], [0], [0], [1], [0, 0, 1, 1], [], []>} : vector<8x8xbf16>, vector<8x32xbf16>, vector<8x32xf32> -> vector<8x32xf32>
    %140 = arith.addf %115, %139 : vector<8x32xf32>
    %141 = vector.extract_strided_slice %66 {offsets = [0, 0, 24], sizes = [2, 4, 8], strides = [1, 1, 1]} : vector<2x4x96xf32> to vector<2x4x8xf32>
    %142 = arith.truncf %141 : vector<2x4x8xf32> to vector<2x4x8xbf16>
    %143 = vector.extract_strided_slice %66 {offsets = [0, 0, 56], sizes = [2, 4, 8], strides = [1, 1, 1]} : vector<2x4x96xf32> to vector<2x4x8xf32>
    %144 = arith.truncf %143 : vector<2x4x8xf32> to vector<2x4x8xbf16>
    %145 = vector.extract_strided_slice %66 {offsets = [0, 0, 88], sizes = [2, 4, 8], strides = [1, 1, 1]} : vector<2x4x96xf32> to vector<2x4x8xf32>
    %146 = arith.truncf %145 : vector<2x4x8xf32> to vector<2x4x8xbf16>
    "tpu.trace_start"() <{level = 10 : i32, message = "rqd,rkd->rqk"}> : () -> ()
    %cst_43 = arith.constant dense<0.000000e+00> : vector<2x4x4xf32>
    %147 = tpu.matmul %142, %144, %cst_43 {dimension_numbers = #tpu.dot_dimension_numbers<[2], [2], [1], [1], [0, 0, 0, 1, 1, 1], [0], [0]>} : vector<2x4x8xbf16>, vector<2x4x8xbf16>, vector<2x4x4xf32> -> vector<2x4x4xf32>
    "tpu.trace_stop"() : () -> ()
    %cst_44 = arith.constant dense<0xFF800000> : vector<2x4xf32>
    %148 = vector.multi_reduction <maximumf>, %147, %cst_44 [2] : vector<2x4x4xf32> to vector<2x4xf32>
    %149 = vector.shape_cast %148 : vector<2x4xf32> to vector<2x4x1xf32>
    %150 = vector.broadcast %149 : vector<2x4x1xf32> to vector<2x4x4xf32>
    %151 = arith.subf %147, %150 : vector<2x4x4xf32>
    %152 = math.exp %151 : vector<2x4x4xf32>
    %cst_45 = arith.constant dense<0.000000e+00> : vector<2x4xf32>
    %153 = vector.multi_reduction <add>, %152, %cst_45 [2] : vector<2x4x4xf32> to vector<2x4xf32>
    %154 = vector.shape_cast %153 : vector<2x4xf32> to vector<2x4x1xf32>
    %155 = tpu.reciprocal %154 {approx = true} : vector<2x4x1xf32> -> vector<2x4x1xf32>
    %156 = vector.broadcast %155 : vector<2x4x1xf32> to vector<2x4x4xf32>
    %157 = arith.mulf %152, %156 : vector<2x4x4xf32>
    %158 = arith.truncf %157 : vector<2x4x4xf32> to vector<2x4x4xbf16>
    "tpu.trace_start"() <{level = 10 : i32, message = "rqk,rkd->rqd"}> : () -> ()
    %cst_46 = arith.constant dense<0.000000e+00> : vector<2x4x8xf32>
    %159 = tpu.matmul %158, %146, %cst_46 {dimension_numbers = #tpu.dot_dimension_numbers<[2], [1], [1], [2], [0, 0, 0, 1, 1, 2], [0], [0]>} : vector<2x4x4xbf16>, vector<2x4x8xbf16>, vector<2x4x8xf32> -> vector<2x4x8xf32>
    "tpu.trace_stop"() : () -> ()
    %160 = vector.shape_cast %159 : vector<2x4x8xf32> to vector<8x8xf32>
    %161 = arith.truncf %160 : vector<8x8xf32> to vector<8x8xbf16>
    %c3 = arith.constant 3 : index
    %c0_47 = arith.constant 0 : index
    %c0_48 = arith.constant 0 : index
    %162 = vector.load %arg7[%c3, %c0_47, %c0_48] : memref<4x8x32xbf16, #tpu.memory_space<vmem>>, vector<1x8x32xbf16>
    %163 = vector.shape_cast %162 : vector<1x8x32xbf16> to vector<8x32xbf16>
    %cst_49 = arith.constant dense<0.000000e+00> : vector<8x32xf32>
    %164 = tpu.matmul %161, %163, %cst_49 {dimension_numbers = #tpu.dot_dimension_numbers<[1], [0], [0], [1], [0, 0, 1, 1], [], []>} : vector<8x8xbf16>, vector<8x32xbf16>, vector<8x32xf32> -> vector<8x32xf32>
    %165 = arith.addf %140, %164 : vector<8x32xf32>
    %c0_50 = arith.constant 0 : index
    %c0_51 = arith.constant 0 : index
    %166 = vector.load %arg8[%c0_50, %c0_51] : memref<1x32xf32, #tpu.memory_space<vmem>>, vector<1x32xf32>
    %167 = vector.broadcast %166 : vector<1x32xf32> to vector<8x32xf32>
    %168 = arith.addf %165, %167 : vector<8x32xf32>
    %169 = vector.shape_cast %168 : vector<8x32xf32> to vector<2x4x32xf32>
    %170 = vector.broadcast %25 : vector<2x1x32xf32> to vector<2x4x32xf32>
    %171 = arith.mulf %170, %169 : vector<2x4x32xf32>
    %172 = arith.addf %1, %171 : vector<2x4x32xf32>
    %cst_52 = arith.constant dense<0.000000e+00> : vector<2x4xf32>
    %173 = vector.multi_reduction <add>, %172, %cst_52 [2] : vector<2x4x32xf32> to vector<2x4xf32>
    %174 = vector.shape_cast %173 : vector<2x4xf32> to vector<2x4x1xf32>
    %cst_53 = arith.constant 3.200000e+01 : f32
    %175 = vector.broadcast %cst_53 : f32 to vector<2x4x1xf32>
    %176 = arith.divf %174, %175 : vector<2x4x1xf32>
    %177 = vector.broadcast %176 : vector<2x4x1xf32> to vector<2x4x32xf32>
    %178 = arith.subf %172, %177 : vector<2x4x32xf32>
    %179 = arith.mulf %178, %178 : vector<2x4x32xf32>
    %cst_54 = arith.constant dense<0.000000e+00> : vector<2x4xf32>
    %180 = vector.multi_reduction <add>, %179, %cst_54 [2] : vector<2x4x32xf32> to vector<2x4xf32>
    %181 = vector.shape_cast %180 : vector<2x4xf32> to vector<2x4x1xf32>
    %cst_55 = arith.constant 3.200000e+01 : f32
    %182 = vector.broadcast %cst_55 : f32 to vector<2x4x1xf32>
    %183 = arith.divf %181, %182 : vector<2x4x1xf32>
    %184 = vector.broadcast %176 : vector<2x4x1xf32> to vector<2x4x32xf32>
    %185 = arith.subf %172, %184 : vector<2x4x32xf32>
    %cst_56 = arith.constant 9.99999997E-7 : f32
    %186 = vector.broadcast %cst_56 : f32 to vector<2x4x1xf32>
    %187 = arith.addf %183, %186 : vector<2x4x1xf32>
    %188 = math.rsqrt %187 : vector<2x4x1xf32>
    %189 = vector.broadcast %188 : vector<2x4x1xf32> to vector<2x4x32xf32>
    %190 = arith.mulf %185, %189 : vector<2x4x32xf32>
    %cst_57 = arith.constant 1.000000e+00 : f32
    %191 = vector.broadcast %cst_57 : f32 to vector<2x1x32xf32>
    %192 = arith.addf %191, %31 : vector<2x1x32xf32>
    %193 = vector.broadcast %192 : vector<2x1x32xf32> to vector<2x4x32xf32>
    %194 = arith.mulf %190, %193 : vector<2x4x32xf32>
    %195 = vector.broadcast %28 : vector<2x1x32xf32> to vector<2x4x32xf32>
    %196 = arith.addf %194, %195 : vector<2x4x32xf32>
    %197 = vector.shape_cast %196 : vector<2x4x32xf32> to vector<8x32xf32>
    %198 = arith.truncf %197 : vector<8x32xf32> to vector<8x32xbf16>
    %c0_58 = arith.constant 0 : index
    %c0_59 = arith.constant 0 : index
    %199 = vector.load %arg9[%c0_58, %c0_59] : memref<32x128xbf16, #tpu.memory_space<vmem>>, vector<32x128xbf16>
    %cst_60 = arith.constant dense<0.000000e+00> : vector<8x128xf32>
    %200 = tpu.matmul %198, %199, %cst_60 {dimension_numbers = #tpu.dot_dimension_numbers<[1], [0], [0], [1], [0, 0, 1, 1], [], []>} : vector<8x32xbf16>, vector<32x128xbf16>, vector<8x128xf32> -> vector<8x128xf32>
    %c0_61 = arith.constant 0 : index
    %c0_62 = arith.constant 0 : index
    %201 = vector.load %arg10[%c0_61, %c0_62] : memref<1x128xf32, #tpu.memory_space<vmem>>, vector<1x128xf32>
    %202 = vector.broadcast %201 : vector<1x128xf32> to vector<8x128xf32>
    %203 = arith.addf %200, %202 : vector<8x128xf32>
    %cst_63 = arith.constant 5.000000e-01 : f32
    %204 = vector.broadcast %cst_63 : f32 to vector<8x128xf32>
    %205 = arith.mulf %204, %203 : vector<8x128xf32>
    %cst_64 = arith.constant 4.471500e-02 : f32
    %206 = vector.broadcast %cst_64 : f32 to vector<8x128xf32>
    %207 = arith.mulf %206, %203 : vector<8x128xf32>
    %208 = arith.mulf %207, %203 : vector<8x128xf32>
    %209 = arith.mulf %208, %203 : vector<8x128xf32>
    %210 = arith.addf %203, %209 : vector<8x128xf32>
    %cst_65 = arith.constant 0.797884583 : f32
    %211 = vector.broadcast %cst_65 : f32 to vector<8x128xf32>
    %212 = arith.mulf %211, %210 : vector<8x128xf32>
    %213 = math.tanh %212 : vector<8x128xf32>
    %cst_66 = arith.constant 1.000000e+00 : f32
    %214 = vector.broadcast %cst_66 : f32 to vector<8x128xf32>
    %215 = arith.addf %214, %213 : vector<8x128xf32>
    %216 = arith.mulf %205, %215 : vector<8x128xf32>
    %217 = arith.truncf %216 : vector<8x128xf32> to vector<8x128xbf16>
    %c0_67 = arith.constant 0 : index
    %c0_68 = arith.constant 0 : index
    %218 = vector.load %arg11[%c0_67, %c0_68] : memref<128x32xbf16, #tpu.memory_space<vmem>>, vector<128x32xbf16>
    %cst_69 = arith.constant dense<0.000000e+00> : vector<8x32xf32>
    %219 = tpu.matmul %217, %218, %cst_69 {dimension_numbers = #tpu.dot_dimension_numbers<[1], [0], [0], [1], [0, 0, 1, 1], [], []>} : vector<8x128xbf16>, vector<128x32xbf16>, vector<8x32xf32> -> vector<8x32xf32>
    %c0_70 = arith.constant 0 : index
    %c0_71 = arith.constant 0 : index
    %220 = vector.load %arg12[%c0_70, %c0_71] : memref<1x32xf32, #tpu.memory_space<vmem>>, vector<1x32xf32>
    %221 = vector.broadcast %220 : vector<1x32xf32> to vector<8x32xf32>
    %222 = arith.addf %219, %221 : vector<8x32xf32>
    %223 = vector.shape_cast %222 : vector<8x32xf32> to vector<2x4x32xf32>
    %224 = vector.broadcast %34 : vector<2x1x32xf32> to vector<2x4x32xf32>
    %225 = arith.mulf %224, %223 : vector<2x4x32xf32>
    %226 = arith.addf %172, %225 : vector<2x4x32xf32>
    %227 = arith.truncf %226 : vector<2x4x32xf32> to vector<2x4x32xbf16>
    %c0_72 = arith.constant 0 : index
    %c0_73 = arith.constant 0 : index
    %c0_74 = arith.constant 0 : index
    %228 = vector.load %arg13[%c0_72, %c0_73, %c0_74] : memref<2x4x32xbf16, #tpu.memory_space<vmem>>, vector<2x4x32xbf16>
    tpu.vector_store %arg13[%c0_72, %c0_73, %c0_74], %227 {strides = array<i32>} : memref<2x4x32xbf16, #tpu.memory_space<vmem>>, vector<2x4x32xbf16>,
    return
  }
  func.func @transform_0(%arg0: i32) -> (i32, i32, i32) {
    %c0_i32 = arith.constant 0 : i32
    %c0_i32_0 = arith.constant 0 : i32
    %c0_i32_1 = arith.constant 0 : i32
    return %arg0, %c0_i32, %c0_i32_0 : i32, i32, i32
  }
  func.func @transform_1(%arg0: i32) -> (i32, i32, i32) {
    %c0_i32 = arith.constant 0 : i32
    %c0_i32_0 = arith.constant 0 : i32
    %c0_i32_1 = arith.constant 0 : i32
    return %arg0, %c0_i32, %c0_i32_0 : i32, i32, i32
  }
  func.func @transform_2(%arg0: i32) -> (i32, i32) {
    %c0_i32 = arith.constant 0 : i32
    %c0_i32_0 = arith.constant 0 : i32
    %c0_i32_1 = arith.constant 0 : i32
    return %c0_i32, %c0_i32_0 : i32, i32
  }
  func.func @transform_3(%arg0: i32) -> (i32, i32) {
    %c0_i32 = arith.constant 0 : i32
    %c0_i32_0 = arith.constant 0 : i32
    %c0_i32_1 = arith.constant 0 : i32
    return %c0_i32, %c0_i32_0 : i32, i32
  }
  func.func @transform_4(%arg0: i32) -> (i32, i32) {
    %c0_i32 = arith.constant 0 : i32
    %c0_i32_0 = arith.constant 0 : i32
    %c0_i32_1 = arith.constant 0 : i32
    return %c0_i32, %c0_i32_0 : i32, i32
  }
  func.func @transform_5(%arg0: i32) -> (i32, i32) {
    %c0_i32 = arith.constant 0 : i32
    %c0_i32_0 = arith.constant 0 : i32
    %c0_i32_1 = arith.constant 0 : i32
    return %c0_i32, %c0_i32_0 : i32, i32
  }
  func.func @transform_6(%arg0: i32) -> (i32, i32, i32) {
    %c0_i32 = arith.constant 0 : i32
    %c0_i32_0 = arith.constant 0 : i32
    %c0_i32_1 = arith.constant 0 : i32
    %c0_i32_2 = arith.constant 0 : i32
    return %c0_i32, %c0_i32_0, %c0_i32_1 : i32, i32, i32
  }
  func.func @transform_7(%arg0: i32) -> (i32, i32) {
    %c0_i32 = arith.constant 0 : i32
    %c0_i32_0 = arith.constant 0 : i32
    %c0_i32_1 = arith.constant 0 : i32
    return %c0_i32, %c0_i32_0 : i32, i32
  }
  func.func @transform_8(%arg0: i32) -> (i32, i32) {
    %c0_i32 = arith.constant 0 : i32
    %c0_i32_0 = arith.constant 0 : i32
    %c0_i32_1 = arith.constant 0 : i32
    return %c0_i32, %c0_i32_0 : i32, i32
  }
  func.func @transform_9(%arg0: i32) -> (i32, i32) {
    %c0_i32 = arith.constant 0 : i32
    %c0_i32_0 = arith.constant 0 : i32
    %c0_i32_1 = arith.constant 0 : i32
    return %c0_i32, %c0_i32_0 : i32, i32
  }
  func.func @transform_10(%arg0: i32) -> (i32, i32) {
    %c0_i32 = arith.constant 0 : i32
    %c0_i32_0 = arith.constant 0 : i32
    %c0_i32_1 = arith.constant 0 : i32
    return %c0_i32, %c0_i32_0 : i32, i32
  }
  func.func @transform_11(%arg0: i32) -> (i32, i32) {
    %c0_i32 = arith.constant 0 : i32
    %c0_i32_0 = arith.constant 0 : i32
    %c0_i32_1 = arith.constant 0 : i32
    return %c0_i32, %c0_i32_0 : i32, i32
  }
  func.func @transform_12(%arg0: i32) -> (i32, i32, i32) {
    %c0_i32 = arith.constant 0 : i32
    %c0_i32_0 = arith.constant 0 : i32
    %c0_i32_1 = arith.constant 0 : i32
    return %arg0, %c0_i32, %c0_i32_0 : i32, i32, i32
  }
}

module attributes {stable_mosaic.version = 11 : i64} {
  func.func @_dit_block_kernel(%arg0: i32, %arg1: memref<2x4x32xbf16, #tpu.memory_space<vmem>>, %arg2: memref<2x1x32xf32, #tpu.memory_space<vmem>>, %arg3: memref<32x192xbf16, #tpu.memory_space<vmem>>, %arg4: memref<1x192xf32, #tpu.memory_space<vmem>>, %arg5: memref<32x96xbf16, #tpu.memory_space<vmem>>, %arg6: memref<1x96xf32, #tpu.memory_space<vmem>>, %arg7: memref<4x8x32xbf16, #tpu.memory_space<vmem>>, %arg8: memref<1x32xf32, #tpu.memory_space<vmem>>, %arg9: memref<32x128xbf16, #tpu.memory_space<vmem>>, %arg10: memref<1x128xf32, #tpu.memory_space<vmem>>, %arg11: memref<128x32xbf16, #tpu.memory_space<vmem>>, %arg12: memref<1x32xf32, #tpu.memory_space<vmem>>, %arg13: memref<2x4x32xbf16, #tpu.memory_space<vmem>>) attributes {dimension_semantics = [#tpu.dimension_semantics<parallel>], iteration_bounds = array<i64: 4>, scalar_prefetch = 0 : i64, scratch_operands = 0 : i64, tpu.core_type = #tpu.core_type<tc>, window_params = [{transform_indices = @transform_0, window_bounds = array<i64: 2, 4, 32>}, {transform_indices = @transform_1, window_bounds = array<i64: 2, 1, 32>}, {pipeline_mode = #tpu.pipeline_mode<synchronous>, transform_indices = @transform_2, window_bounds = array<i64: 32, 192>}, {pipeline_mode = #tpu.pipeline_mode<synchronous>, transform_indices = @transform_3, window_bounds = array<i64: 1, 192>}, {pipeline_mode = #tpu.pipeline_mode<synchronous>, transform_indices = @transform_4, window_bounds = array<i64: 32, 96>}, {pipeline_mode = #tpu.pipeline_mode<synchronous>, transform_indices = @transform_5, window_bounds = array<i64: 1, 96>}, {pipeline_mode = #tpu.pipeline_mode<synchronous>, transform_indices = @transform_6, window_bounds = array<i64: 4, 8, 32>}, {pipeline_mode = #tpu.pipeline_mode<synchronous>, transform_indices = @transform_7, window_bounds = array<i64: 1, 32>}, {pipeline_mode = #tpu.pipeline_mode<synchronous>, transform_indices = @transform_8, window_bounds = array<i64: 32, 128>}, {pipeline_mode = #tpu.pipeline_mode<synchronous>, transform_indices = @transform_9, window_bounds = array<i64: 1, 128>}, {pipeline_mode = #tpu.pipeline_mode<synchronous>, transform_indices = @transform_10, window_bounds = array<i64: 128, 32>}, {pipeline_mode = #tpu.pipeline_mode<synchronous>, transform_indices = @transform_11, window_bounds = array<i64: 1, 32>}, {transform_indices = @transform_12, window_bounds = array<i64: 2, 4, 32>}]} {
    %c0 = arith.constant 0 : index
    %c0_0 = arith.constant 0 : index
    %c0_1 = arith.constant 0 : index
    %0 = vector.load %arg1[%c0, %c0_0, %c0_1] : memref<2x4x32xbf16, #tpu.memory_space<vmem>>, vector<2x4x32xbf16>
    %1 = arith.extf %0 : vector<2x4x32xbf16> to vector<2x4x32xf32>
    %c0_2 = arith.constant 0 : index
    %c0_3 = arith.constant 0 : index
    %c0_4 = arith.constant 0 : index
    %2 = vector.load %arg2[%c0_2, %c0_3, %c0_4] : memref<2x1x32xf32, #tpu.memory_space<vmem>>, vector<2x1x32xf32>
    %3 = vector.shape_cast %2 : vector<2x1x32xf32> to vector<2x32xf32>
    %4 = arith.negf %3 : vector<2x32xf32>
    %5 = math.exp %4 : vector<2x32xf32>
    %cst = arith.constant 1.000000e+00 : f32
    %6 = vector.broadcast %cst : f32 to vector<2x32xf32>
    %7 = arith.addf %6, %5 : vector<2x32xf32>
    %8 = arith.divf %6, %7 : vector<2x32xf32>
    %9 = arith.mulf %3, %8 : vector<2x32xf32>
    %10 = arith.truncf %9 : vector<2x32xf32> to vector<2x32xbf16>
    %c0_5 = arith.constant 0 : index
    %c0_6 = arith.constant 0 : index
    %11 = vector.load %arg3[%c0_5, %c0_6] : memref<32x192xbf16, #tpu.memory_space<vmem>>, vector<32x192xbf16>
    %cst_7 = arith.constant dense<0.000000e+00> : vector<2x192xf32>
    %12 = tpu.matmul %10, %11, %cst_7 {dimension_numbers = #tpu.dot_dimension_numbers<[1], [0], [0], [1], [0, 0, 1, 1], [], []>} : vector<2x32xbf16>, vector<32x192xbf16>, vector<2x192xf32> -> vector<2x192xf32>
    %c0_8 = arith.constant 0 : index
    %c0_9 = arith.constant 0 : index
    %13 = vector.load %arg4[%c0_8, %c0_9] : memref<1x192xf32, #tpu.memory_space<vmem>>, vector<1x192xf32>
    %14 = vector.broadcast %13 : vector<1x192xf32> to vector<2x192xf32>
    %15 = arith.addf %12, %14 : vector<2x192xf32>
    %16 = vector.shape_cast %15 : vector<2x192xf32> to vector<2x6x32xf32>
    %17 = vector.extract_strided_slice %16 {offsets = [0, 0, 0], sizes = [2, 1, 32], strides = [1, 1, 1]} : vector<2x6x32xf32> to vector<2x1x32xf32>
    %18 = vector.shape_cast %17 : vector<2x1x32xf32> to vector<2x32xf32>
    %19 = vector.shape_cast %18 : vector<2x32xf32> to vector<2x1x32xf32>
    %20 = vector.extract_strided_slice %16 {offsets = [0, 1, 0], sizes = [2, 1, 32], strides = [1, 1, 1]} : vector<2x6x32xf32> to vector<2x1x32xf32>
    %21 = vector.shape_cast %20 : vector<2x1x32xf32> to vector<2x32xf32>
    %22 = vector.shape_cast %21 : vector<2x32xf32> to vector<2x1x32xf32>
    %23 = vector.extract_strided_slice %16 {offsets = [0, 2, 0], sizes = [2, 1, 32], strides = [1, 1, 1]} : vector<2x6x32xf32> to vector<2x1x32xf32>
    %24 = vector.shape_cast %23 : vector<2x1x32xf32> to vector<2x32xf32>
    %25 = vector.shape_cast %24 : vector<2x32xf32> to vector<2x1x32xf32>
    %26 = vector.extract_strided_slice %16 {offsets = [0, 3, 0], sizes = [2, 1, 32], strides = [1, 1, 1]} : vector<2x6x32xf32> to vector<2x1x32xf32>
    %27 = vector.shape_cast %26 : vector<2x1x32xf32> to vector<2x32xf32>
    %28 = vector.shape_cast %27 : vector<2x32xf32> to vector<2x1x32xf32>
    %29 = vector.extract_strided_slice %16 {offsets = [0, 4, 0], sizes = [2, 1, 32], strides = [1, 1, 1]} : vector<2x6x32xf32> to vector<2x1x32xf32>
    %30 = vector.shape_cast %29 : vector<2x1x32xf32> to vector<2x32xf32>
    %31 = vector.shape_cast %30 : vector<2x32xf32> to vector<2x1x32xf32>
    %32 = vector.extract_strided_slice %16 {offsets = [0, 5, 0], sizes = [2, 1, 32], strides = [1, 1, 1]} : vector<2x6x32xf32> to vector<2x1x32xf32>
    %33 = vector.shape_cast %32 : vector<2x1x32xf32> to vector<2x32xf32>
    %34 = vector.shape_cast %33 : vector<2x32xf32> to vector<2x1x32xf32>
    %cst_10 = arith.constant dense<0.000000e+00> : vector<2x4xf32>
    %35 = vector.multi_reduction <add>, %1, %cst_10 [2] : vector<2x4x32xf32> to vector<2x4xf32>
    %36 = vector.shape_cast %35 : vector<2x4xf32> to vector<2x4x1xf32>
    %cst_11 = arith.constant 3.200000e+01 : f32
    %37 = vector.broadcast %cst_11 : f32 to vector<2x4x1xf32>
    %38 = arith.divf %36, %37 : vector<2x4x1xf32>
    %39 = vector.broadcast %38 : vector<2x4x1xf32> to vector<2x4x32xf32>
    %40 = arith.subf %1, %39 : vector<2x4x32xf32>
    %41 = arith.mulf %40, %40 : vector<2x4x32xf32>
    %cst_12 = arith.constant dense<0.000000e+00> : vector<2x4xf32>
    %42 = vector.multi_reduction <add>, %41, %cst_12 [2] : vector<2x4x32xf32> to vector<2x4xf32>
    %43 = vector.shape_cast %42 : vector<2x4xf32> to vector<2x4x1xf32>
    %cst_13 = arith.constant 3.200000e+01 : f32
    %44 = vector.broadcast %cst_13 : f32 to vector<2x4x1xf32>
    %45 = arith.divf %43, %44 : vector<2x4x1xf32>
    %46 = vector.broadcast %38 : vector<2x4x1xf32> to vector<2x4x32xf32>
    %47 = arith.subf %1, %46 : vector<2x4x32xf32>
    %cst_14 = arith.constant 9.99999997E-7 : f32
    %48 = vector.broadcast %cst_14 : f32 to vector<2x4x1xf32>
    %49 = arith.addf %45, %48 : vector<2x4x1xf32>
    %50 = math.rsqrt %49 : vector<2x4x1xf32>
    %51 = vector.broadcast %50 : vector<2x4x1xf32> to vector<2x4x32xf32>
    %52 = arith.mulf %47, %51 : vector<2x4x32xf32>
    %cst_15 = arith.constant 1.000000e+00 : f32
    %53 = vector.broadcast %cst_15 : f32 to vector<2x1x32xf32>
    %54 = arith.addf %53, %22 : vector<2x1x32xf32>
    %55 = vector.broadcast %54 : vector<2x1x32xf32> to vector<2x4x32xf32>
    %56 = arith.mulf %52, %55 : vector<2x4x32xf32>
    %57 = vector.broadcast %19 : vector<2x1x32xf32> to vector<2x4x32xf32>
    %58 = arith.addf %56, %57 : vector<2x4x32xf32>
    %59 = vector.shape_cast %58 : vector<2x4x32xf32> to vector<8x32xf32>
    %60 = arith.truncf %59 : vector<8x32xf32> to vector<8x32xbf16>
    %c0_16 = arith.constant 0 : index
    %c0_17 = arith.constant 0 : index
    %61 = vector.load %arg5[%c0_16, %c0_17] : memref<32x96xbf16, #tpu.memory_space<vmem>>, vector<32x96xbf16>
    %cst_18 = arith.constant dense<0.000000e+00> : vector<8x96xf32>
    %62 = tpu.matmul %60, %61, %cst_18 {dimension_numbers = #tpu.dot_dimension_numbers<[1], [0], [0], [1], [0, 0, 1, 1], [], []>} : vector<8x32xbf16>, vector<32x96xbf16>, vector<8x96xf32> -> vector<8x96xf32>
    %c0_19 = arith.constant 0 : index
    %c0_20 = arith.constant 0 : index
    %63 = vector.load %arg6[%c0_19, %c0_20] : memref<1x96xf32, #tpu.memory_space<vmem>>, vector<1x96xf32>
    %64 = vector.broadcast %63 : vector<1x96xf32> to vector<8x96xf32>
    %65 = arith.addf %62, %64 : vector<8x96xf32>
    %66 = vector.shape_cast %65 : vector<8x96xf32> to vector<2x4x96xf32>
    %67 = vector.extract_strided_slice %66 {offsets = [0, 0, 0], sizes = [2, 4, 8], strides = [1, 1, 1]} : vector<2x4x96xf32> to vector<2x4x8xf32>
    %68 = arith.truncf %67 : vector<2x4x8xf32> to vector<2x4x8xbf16>
    %69 = vector.extract_strided_slice %66 {offsets = [0, 0, 32], sizes = [2, 4, 8], strides = [1, 1, 1]} : vector<2x4x96xf32> to vector<2x4x8xf32>
    %70 = arith.truncf %69 : vector<2x4x8xf32> to vector<2x4x8xbf16>
    %71 = vector.extract_strided_slice %66 {offsets = [0, 0, 64], sizes = [2, 4, 8], strides = [1, 1, 1]} : vector<2x4x96xf32> to vector<2x4x8xf32>
    %72 = arith.truncf %71 : vector<2x4x8xf32> to vector<2x4x8xbf16>
    "tpu.trace_start"() <{level = 10 : i32, message = "rqd,rkd->rqk"}> : () -> ()
    %cst_21 = arith.constant dense<0.000000e+00> : vector<2x4x4xf32>
    %73 = tpu.matmul %68, %70, %cst_21 {dimension_numbers = #tpu.dot_dimension_numbers<[2], [2], [1], [1], [0, 0, 0, 1, 1, 1], [0], [0]>} : vector<2x4x8xbf16>, vector<2x4x8xbf16>, vector<2x4x4xf32> -> vector<2x4x4xf32>
    "tpu.trace_stop"() : () -> ()
    %cst_22 = arith.constant dense<0xFF800000> : vector<2x4xf32>
    %74 = vector.multi_reduction <maximumf>, %73, %cst_22 [2] : vector<2x4x4xf32> to vector<2x4xf32>
    %75 = vector.shape_cast %74 : vector<2x4xf32> to vector<2x4x1xf32>
    %76 = vector.broadcast %75 : vector<2x4x1xf32> to vector<2x4x4xf32>
    %77 = arith.subf %73, %76 : vector<2x4x4xf32>
    %78 = math.exp %77 : vector<2x4x4xf32>
    %cst_23 = arith.constant dense<0.000000e+00> : vector<2x4xf32>
    %79 = vector.multi_reduction <add>, %78, %cst_23 [2] : vector<2x4x4xf32> to vector<2x4xf32>
    %80 = vector.shape_cast %79 : vector<2x4xf32> to vector<2x4x1xf32>
    %81 = tpu.reciprocal %80 {approx = true} : vector<2x4x1xf32> -> vector<2x4x1xf32>
    %82 = vector.broadcast %81 : vector<2x4x1xf32> to vector<2x4x4xf32>
    %83 = arith.mulf %78, %82 : vector<2x4x4xf32>
    %84 = arith.truncf %83 : vector<2x4x4xf32> to vector<2x4x4xbf16>
    "tpu.trace_start"() <{level = 10 : i32, message = "rqk,rkd->rqd"}> : () -> ()
    %cst_24 = arith.constant dense<0.000000e+00> : vector<2x4x8xf32>
    %85 = tpu.matmul %84, %72, %cst_24 {dimension_numbers = #tpu.dot_dimension_numbers<[2], [1], [1], [2], [0, 0, 0, 1, 1, 2], [0], [0]>} : vector<2x4x4xbf16>, vector<2x4x8xbf16>, vector<2x4x8xf32> -> vector<2x4x8xf32>
    "tpu.trace_stop"() : () -> ()
    %86 = vector.shape_cast %85 : vector<2x4x8xf32> to vector<8x8xf32>
    %87 = arith.truncf %86 : vector<8x8xf32> to vector<8x8xbf16>
    %c0_25 = arith.constant 0 : index
    %c0_26 = arith.constant 0 : index
    %c0_27 = arith.constant 0 : index
    %88 = vector.load %arg7[%c0_25, %c0_26, %c0_27] : memref<4x8x32xbf16, #tpu.memory_space<vmem>>, vector<1x8x32xbf16>
    %89 = vector.shape_cast %88 : vector<1x8x32xbf16> to vector<8x32xbf16>
    %cst_28 = arith.constant dense<0.000000e+00> : vector<8x32xf32>
    %90 = tpu.matmul %87, %89, %cst_28 {dimension_numbers = #tpu.dot_dimension_numbers<[1], [0], [0], [1], [0, 0, 1, 1], [], []>} : vector<8x8xbf16>, vector<8x32xbf16>, vector<8x32xf32> -> vector<8x32xf32>
    %91 = vector.extract_strided_slice %66 {offsets = [0, 0, 8], sizes = [2, 4, 8], strides = [1, 1, 1]} : vector<2x4x96xf32> to vector<2x4x8xf32>
    %92 = arith.truncf %91 : vector<2x4x8xf32> to vector<2x4x8xbf16>
    %93 = vector.extract_strided_slice %66 {offsets = [0, 0, 40], sizes = [2, 4, 8], strides = [1, 1, 1]} : vector<2x4x96xf32> to vector<2x4x8xf32>
    %94 = arith.truncf %93 : vector<2x4x8xf32> to vector<2x4x8xbf16>
    %95 = vector.extract_strided_slice %66 {offsets = [0, 0, 72], sizes = [2, 4, 8], strides = [1, 1, 1]} : vector<2x4x96xf32> to vector<2x4x8xf32>
    %96 = arith.truncf %95 : vector<2x4x8xf32> to vector<2x4x8xbf16>
    "tpu.trace_start"() <{level = 10 : i32, message = "rqd,rkd->rqk"}> : () -> ()
    %cst_29 = arith.constant dense<0.000000e+00> : vector<2x4x4xf32>
    %97 = tpu.matmul %92, %94, %cst_29 {dimension_numbers = #tpu.dot_dimension_numbers<[2], [2], [1], [1], [0, 0, 0, 1, 1, 1], [0], [0]>} : vector<2x4x8xbf16>, vector<2x4x8xbf16>, vector<2x4x4xf32> -> vector<2x4x4xf32>
    "tpu.trace_stop"() : () -> ()
    %cst_30 = arith.constant dense<0xFF800000> : vector<2x4xf32>
    %98 = vector.multi_reduction <maximumf>, %97, %cst_30 [2] : vector<2x4x4xf32> to vector<2x4xf32>
    %99 = vector.shape_cast %98 : vector<2x4xf32> to vector<2x4x1xf32>
    %100 = vector.broadcast %99 : vector<2x4x1xf32> to vector<2x4x4xf32>
    %101 = arith.subf %97, %100 : vector<2x4x4xf32>
    %102 = math.exp %101 : vector<2x4x4xf32>
    %cst_31 = arith.constant dense<0.000000e+00> : vector<2x4xf32>
    %103 = vector.multi_reduction <add>, %102, %cst_31 [2] : vector<2x4x4xf32> to vector<2x4xf32>
    %104 = vector.shape_cast %103 : vector<2x4xf32> to vector<2x4x1xf32>
    %105 = tpu.reciprocal %104 {approx = true} : vector<2x4x1xf32> -> vector<2x4x1xf32>
    %106 = vector.broadcast %105 : vector<2x4x1xf32> to vector<2x4x4xf32>
    %107 = arith.mulf %102, %106 : vector<2x4x4xf32>
    %108 = arith.truncf %107 : vector<2x4x4xf32> to vector<2x4x4xbf16>
    "tpu.trace_start"() <{level = 10 : i32, message = "rqk,rkd->rqd"}> : () -> ()
    %cst_32 = arith.constant dense<0.000000e+00> : vector<2x4x8xf32>
    %109 = tpu.matmul %108, %96, %cst_32 {dimension_numbers = #tpu.dot_dimension_numbers<[2], [1], [1], [2], [0, 0, 0, 1, 1, 2], [0], [0]>} : vector<2x4x4xbf16>, vector<2x4x8xbf16>, vector<2x4x8xf32> -> vector<2x4x8xf32>
    "tpu.trace_stop"() : () -> ()
    %110 = vector.shape_cast %109 : vector<2x4x8xf32> to vector<8x8xf32>
    %111 = arith.truncf %110 : vector<8x8xf32> to vector<8x8xbf16>
    %c1 = arith.constant 1 : index
    %c0_33 = arith.constant 0 : index
    %c0_34 = arith.constant 0 : index
    %112 = vector.load %arg7[%c1, %c0_33, %c0_34] : memref<4x8x32xbf16, #tpu.memory_space<vmem>>, vector<1x8x32xbf16>
    %113 = vector.shape_cast %112 : vector<1x8x32xbf16> to vector<8x32xbf16>
    %cst_35 = arith.constant dense<0.000000e+00> : vector<8x32xf32>
    %114 = tpu.matmul %111, %113, %cst_35 {dimension_numbers = #tpu.dot_dimension_numbers<[1], [0], [0], [1], [0, 0, 1, 1], [], []>} : vector<8x8xbf16>, vector<8x32xbf16>, vector<8x32xf32> -> vector<8x32xf32>
    %115 = arith.addf %90, %114 : vector<8x32xf32>
    %116 = vector.extract_strided_slice %66 {offsets = [0, 0, 16], sizes = [2, 4, 8], strides = [1, 1, 1]} : vector<2x4x96xf32> to vector<2x4x8xf32>
    %117 = arith.truncf %116 : vector<2x4x8xf32> to vector<2x4x8xbf16>
    %118 = vector.extract_strided_slice %66 {offsets = [0, 0, 48], sizes = [2, 4, 8], strides = [1, 1, 1]} : vector<2x4x96xf32> to vector<2x4x8xf32>
    %119 = arith.truncf %118 : vector<2x4x8xf32> to vector<2x4x8xbf16>
    %120 = vector.extract_strided_slice %66 {offsets = [0, 0, 80], sizes = [2, 4, 8], strides = [1, 1, 1]} : vector<2x4x96xf32> to vector<2x4x8xf32>
    %121 = arith.truncf %120 : vector<2x4x8xf32> to vector<2x4x8xbf16>
    "tpu.trace_start"() <{level = 10 : i32, message = "rqd,rkd->rqk"}> : () -> ()
    %cst_36 = arith.constant dense<0.000000e+00> : vector<2x4x4xf32>
    %122 = tpu.matmul %117, %119, %cst_36 {dimension_numbers = #tpu.dot_dimension_numbers<[2], [2], [1], [1], [0, 0, 0, 1, 1, 1], [0], [0]>} : vector<2x4x8xbf16>, vector<2x4x8xbf16>, vector<2x4x4xf32> -> vector<2x4x4xf32>
    "tpu.trace_stop"() : () -> ()
    %cst_37 = arith.constant dense<0xFF800000> : vector<2x4xf32>
    %123 = vector.multi_reduction <maximumf>, %122, %cst_37 [2] : vector<2x4x4xf32> to vector<2x4xf32>
    %124 = vector.shape_cast %123 : vector<2x4xf32> to vector<2x4x1xf32>
    %125 = vector.broadcast %124 : vector<2x4x1xf32> to vector<2x4x4xf32>
    %126 = arith.subf %122, %125 : vector<2x4x4xf32>
    %127 = math.exp %126 : vector<2x4x4xf32>
    %cst_38 = arith.constant dense<0.000000e+00> : vector<2x4xf32>
    %128 = vector.multi_reduction <add>, %127, %cst_38 [2] : vector<2x4x4xf32> to vector<2x4xf32>
    %129 = vector.shape_cast %128 : vector<2x4xf32> to vector<2x4x1xf32>
    %130 = tpu.reciprocal %129 {approx = true} : vector<2x4x1xf32> -> vector<2x4x1xf32>
    %131 = vector.broadcast %130 : vector<2x4x1xf32> to vector<2x4x4xf32>
    %132 = arith.mulf %127, %131 : vector<2x4x4xf32>
    %133 = arith.truncf %132 : vector<2x4x4xf32> to vector<2x4x4xbf16>
    "tpu.trace_start"() <{level = 10 : i32, message = "rqk,rkd->rqd"}> : () -> ()
    %cst_39 = arith.constant dense<0.000000e+00> : vector<2x4x8xf32>
    %134 = tpu.matmul %133, %121, %cst_39 {dimension_numbers = #tpu.dot_dimension_numbers<[2], [1], [1], [2], [0, 0, 0, 1, 1, 2], [0], [0]>} : vector<2x4x4xbf16>, vector<2x4x8xbf16>, vector<2x4x8xf32> -> vector<2x4x8xf32>
    "tpu.trace_stop"() : () -> ()
    %135 = vector.shape_cast %134 : vector<2x4x8xf32> to vector<8x8xf32>
    %136 = arith.truncf %135 : vector<8x8xf32> to vector<8x8xbf16>
    %c2 = arith.constant 2 : index
    %c0_40 = arith.constant 0 : index
    %c0_41 = arith.constant 0 : index
    %137 = vector.load %arg7[%c2, %c0_40, %c0_41] : memref<4x8x32xbf16, #tpu.memory_space<vmem>>, vector<1x8x32xbf16>
    %138 = vector.shape_cast %137 : vector<1x8x32xbf16> to vector<8x32xbf16>
    %cst_42 = arith.constant dense<0.000000e+00> : vector<8x32xf32>
    %139 = tpu.matmul %136, %138, %cst_42 {dimension_numbers = #tpu.dot_dimension_numbers<[1], [0], [0], [1], [0, 0, 1, 1], [], []>} : vector<8x8xbf16>, vector<8x32xbf16>, vector<8x32xf32> -> vector<8x32xf32>
    %140 = arith.addf %115, %139 : vector<8x32xf32>
    %141 = vector.extract_strided_slice %66 {offsets = [0, 0, 24], sizes = [2, 4, 8], strides = [1, 1, 1]} : vector<2x4x96xf32> to vector<2x4x8xf32>
    %142 = arith.truncf %141 : vector<2x4x8xf32> to vector<2x4x8xbf16>
    %143 = vector.extract_strided_slice %66 {offsets = [0, 0, 56], sizes = [2, 4, 8], strides = [1, 1, 1]} : vector<2x4x96xf32> to vector<2x4x8xf32>
    %144 = arith.truncf %143 : vector<2x4x8xf32> to vector<2x4x8xbf16>
    %145 = vector.extract_strided_slice %66 {offsets = [0, 0, 88], sizes = [2, 4, 8], strides = [1, 1, 1]} : vector<2x4x96xf32> to vector<2x4x8xf32>
    %146 = arith.truncf %145 : vector<2x4x8xf32> to vector<2x4x8xbf16>
    "tpu.trace_start"() <{level = 10 : i32, message = "rqd,rkd->rqk"}> : () -> ()
    %cst_43 = arith.constant dense<0.000000e+00> : vector<2x4x4xf32>
    %147 = tpu.matmul %142, %144, %cst_43 {dimension_numbers = #tpu.dot_dimension_numbers<[2], [2], [1], [1], [0, 0, 0, 1, 1, 1], [0], [0]>} : vector<2x4x8xbf16>, vector<2x4x8xbf16>, vector<2x4x4xf32> -> vector<2x4x4xf32>
    "tpu.trace_stop"() : () -> ()
    %cst_44 = arith.constant dense<0xFF800000> : vector<2x4xf32>
    %148 = vector.multi_reduction <maximumf>, %147, %cst_44 [2] : vector<2x4x4xf32> to vector<2x4xf32>
    %149 = vector.shape_cast %148 : vector<2x4xf32> to vector<2x4x1xf32>
    %150 = vector.broadcast %149 : vector<2x4x1xf32> to vector<2x4x4xf32>
    %151 = arith.subf %147, %150 : vector<2x4x4xf32>
    %152 = math.exp %151 : vector<2x4x4xf32>
    %cst_45 = arith.constant dense<0.000000e+00> : vector<2x4xf32>
    %153 = vector.multi_reduction <add>, %152, %cst_45 [2] : vector<2x4x4xf32> to vector<2x4xf32>
    %154 = vector.shape_cast %153 : vector<2x4xf32> to vector<2x4x1xf32>
    %155 = tpu.reciprocal %154 {approx = true} : vector<2x4x1xf32> -> vector<2x4x1xf32>
    %156 = vector.broadcast %155 : vector<2x4x1xf32> to vector<2x4x4xf32>
    %157 = arith.mulf %152, %156 : vector<2x4x4xf32>
    %158 = arith.truncf %157 : vector<2x4x4xf32> to vector<2x4x4xbf16>
    "tpu.trace_start"() <{level = 10 : i32, message = "rqk,rkd->rqd"}> : () -> ()
    %cst_46 = arith.constant dense<0.000000e+00> : vector<2x4x8xf32>
    %159 = tpu.matmul %158, %146, %cst_46 {dimension_numbers = #tpu.dot_dimension_numbers<[2], [1], [1], [2], [0, 0, 0, 1, 1, 2], [0], [0]>} : vector<2x4x4xbf16>, vector<2x4x8xbf16>, vector<2x4x8xf32> -> vector<2x4x8xf32>
    "tpu.trace_stop"() : () -> ()
    %160 = vector.shape_cast %159 : vector<2x4x8xf32> to vector<8x8xf32>
    %161 = arith.truncf %160 : vector<8x8xf32> to vector<8x8xbf16>
    %c3 = arith.constant 3 : index
    %c0_47 = arith.constant 0 : index
    %c0_48 = arith.constant 0 : index
    %162 = vector.load %arg7[%c3, %c0_47, %c0_48] : memref<4x8x32xbf16, #tpu.memory_space<vmem>>, vector<1x8x32xbf16>
    %163 = vector.shape_cast %162 : vector<1x8x32xbf16> to vector<8x32xbf16>
    %cst_49 = arith.constant dense<0.000000e+00> : vector<8x32xf32>
    %164 = tpu.matmul %161, %163, %cst_49 {dimension_numbers = #tpu.dot_dimension_numbers<[1], [0], [0], [1], [0, 0, 1, 1], [], []>} : vector<8x8xbf16>, vector<8x32xbf16>, vector<8x32xf32> -> vector<8x32xf32>
    %165 = arith.addf %140, %164 : vector<8x32xf32>
    %c0_50 = arith.constant 0 : index
    %c0_51 = arith.constant 0 : index
    %166 = vector.load %arg8[%c0_50, %c0_51] : memref<1x32xf32, #tpu.memory_space<vmem>>, vector<1x32xf32>
    %167 = vector.broadcast %166 : vector<1x32xf32> to vector<8x32xf32>
    %168 = arith.addf %165, %167 : vector<8x32xf32>
    %169 = vector.shape_cast %168 : vector<8x32xf32> to vector<2x4x32xf32>
    %170 = vector.broadcast %25 : vector<2x1x32xf32> to vector<2x4x32xf32>
    %171 = arith.mulf %170, %169 : vector<2x4x32xf32>
    %172 = arith.addf %1, %171 : vector<2x4x32xf32>
    %cst_52 = arith.constant dense<0.000000e+00> : vector<2x4xf32>
    %173 = vector.multi_reduction <add>, %172, %cst_52 [2] : vector<2x4x32xf32> to vector<2x4xf32>
    %174 = vector.shape_cast %173 : vector<2x4xf32> to vector<2x4x1xf32>
    %cst_53 = arith.constant 3.200000e+01 : f32
    %175 = vector.broadcast %cst_53 : f32 to vector<2x4x1xf32>
    %176 = arith.divf %174, %175 : vector<2x4x1xf32>
    %177 = vector.broadcast %176 : vector<2x4x1xf32> to vector<2x4x32xf32>
    %178 = arith.subf %172, %177 : vector<2x4x32xf32>
    %179 = arith.mulf %178, %178 : vector<2x4x32xf32>
    %cst_54 = arith.constant dense<0.000000e+00> : vector<2x4xf32>
    %180 = vector.multi_reduction <add>, %179, %cst_54 [2] : vector<2x4x32xf32> to vector<2x4xf32>
    %181 = vector.shape_cast %180 : vector<2x4xf32> to vector<2x4x1xf32>
    %cst_55 = arith.constant 3.200000e+01 : f32
    %182 = vector.broadcast %cst_55 : f32 to vector<2x4x1xf32>
    %183 = arith.divf %181, %182 : vector<2x4x1xf32>
    %184 = vector.broadcast %176 : vector<2x4x1xf32> to vector<2x4x32xf32>
    %185 = arith.subf %172, %184 : vector<2x4x32xf32>
    %cst_56 = arith.constant 9.99999997E-7 : f32
    %186 = vector.broadcast %cst_56 : f32 to vector<2x4x1xf32>
    %187 = arith.addf %183, %186 : vector<2x4x1xf32>
    %188 = math.rsqrt %187 : vector<2x4x1xf32>
    %189 = vector.broadcast %188 : vector<2x4x1xf32> to vector<2x4x32xf32>
    %190 = arith.mulf %185, %189 : vector<2x4x32xf32>
    %cst_57 = arith.constant 1.000000e+00 : f32
    %191 = vector.broadcast %cst_57 : f32 to vector<2x1x32xf32>
    %192 = arith.addf %191, %31 : vector<2x1x32xf32>
    %193 = vector.broadcast %192 : vector<2x1x32xf32> to vector<2x4x32xf32>
    %194 = arith.mulf %190, %193 : vector<2x4x32xf32>
    %195 = vector.broadcast %28 : vector<2x1x32xf32> to vector<2x4x32xf32>
    %196 = arith.addf %194, %195 : vector<2x4x32xf32>
    %197 = vector.shape_cast %196 : vector<2x4x32xf32> to vector<8x32xf32>
    %198 = arith.truncf %197 : vector<8x32xf32> to vector<8x32xbf16>
    %c0_58 = arith.constant 0 : index
    %c0_59 = arith.constant 0 : index
    %199 = vector.load %arg9[%c0_58, %c0_59] : memref<32x128xbf16, #tpu.memory_space<vmem>>, vector<32x128xbf16>
    %cst_60 = arith.constant dense<0.000000e+00> : vector<8x128xf32>
    %200 = tpu.matmul %198, %199, %cst_60 {dimension_numbers = #tpu.dot_dimension_numbers<[1], [0], [0], [1], [0, 0, 1, 1], [], []>} : vector<8x32xbf16>, vector<32x128xbf16>, vector<8x128xf32> -> vector<8x128xf32>
    %c0_61 = arith.constant 0 : index
    %c0_62 = arith.constant 0 : index
    %201 = vector.load %arg10[%c0_61, %c0_62] : memref<1x128xf32, #tpu.memory_space<vmem>>, vector<1x128xf32>
    %202 = vector.broadcast %201 : vector<1x128xf32> to vector<8x128xf32>
    %203 = arith.addf %200, %202 : vector<8x128xf32>
    %cst_63 = arith.constant 5.000000e-01 : f32
    %204 = vector.broadcast %cst_63 : f32 to vector<8x128xf32>
    %205 = arith.mulf %204, %203 : vector<8x128xf32>
    %cst_64 = arith.constant 4.471500e-02 : f32
    %206 = vector.broadcast %cst_64 : f32 to vector<8x128xf32>
    %207 = arith.mulf %206, %203 : vector<8x128xf32>
    %208 = arith.mulf %207, %203 : vector<8x128xf32>
    %209 = arith.mulf %208, %203 : vector<8x128xf32>
    %210 = arith.addf %203, %209 : vector<8x128xf32>
    %cst_65 = arith.constant 0.797884583 : f32
    %211 = vector.broadcast %cst_65 : f32 to vector<8x128xf32>
    %212 = arith.mulf %211, %210 : vector<8x128xf32>
    %213 = math.tanh %212 : vector<8x128xf32>
    %cst_66 = arith.constant 1.000000e+00 : f32
    %214 = vector.broadcast %cst_66 : f32 to vector<8x128xf32>
    %215 = arith.addf %214, %213 : vector<8x128xf32>
    %216 = arith.mulf %205, %215 : vector<8x128xf32>
    %217 = arith.truncf %216 : vector<8x128xf32> to vector<8x128xbf16>
    %c0_67 = arith.constant 0 : index
    %c0_68 = arith.constant 0 : index
    %218 = vector.load %arg11[%c0_67, %c0_68] : memref<128x32xbf16, #tpu.memory_space<vmem>>, vector<128x32xbf16>
    %cst_69 = arith.constant dense<0.000000e+00> : vector<8x32xf32>
    %219 = tpu.matmul %217, %218, %cst_69 {dimension_numbers = #tpu.dot_dimension_numbers<[1], [0], [0], [1], [0, 0, 1, 1], [], []>} : vector<8x128xbf16>, vector<128x32xbf16>, vector<8x32xf32> -> vector<8x32xf32>
    %c0_70 = arith.constant 0 : index
    %c0_71 = arith.constant 0 : index
    %220 = vector.load %arg12[%c0_70, %c0_71] : memref<1x32xf32, #tpu.memory_space<vmem>>, vector<1x32xf32>
    %221 = vector.broadcast %220 : vector<1x32xf32> to vector<8x32xf32>
    %222 = arith.addf %219, %221 : vector<8x32xf32>
    %223 = vector.shape_cast %222 : vector<8x32xf32> to vector<2x4x32xf32>
    %224 = vector.broadcast %34 : vector<2x1x32xf32> to vector<2x4x32xf32>
    %225 = arith.mulf %224, %223 : vector<2x4x32xf32>
    %226 = arith.addf %172, %225 : vector<2x4x32xf32>
    %227 = arith.truncf %226 : vector<2x4x32xf32> to vector<2x4x32xbf16>
    %c0_72 = arith.constant 0 : index
    %c0_73 = arith.constant 0 : index
    %c0_74 = arith.constant 0 : index
    %228 = vector.load %arg13[%c0_72, %c0_73, %c0_74] : memref<2x4x32xbf16, #tpu.memory_space<vmem>>, vector<2x4x32xbf16>
    tpu.vector_store %arg13[%c0_72, %c0_73, %c0_74], %227 {strides = array<i32>} : memref<2x4x32xbf16, #tpu.memory_space<vmem>>, vector<2x4x32xbf16>,
    return
  }
  func.func @transform_0(%arg0: i32) -> (i32, i32, i32) {
    %c0_i32 = arith.constant 0 : i32
    %c0_i32_0 = arith.constant 0 : i32
    %c0_i32_1 = arith.constant 0 : i32
    return %arg0, %c0_i32, %c0_i32_0 : i32, i32, i32
  }
  func.func @transform_1(%arg0: i32) -> (i32, i32, i32) {
    %c0_i32 = arith.constant 0 : i32
    %c0_i32_0 = arith.constant 0 : i32
    %c0_i32_1 = arith.constant 0 : i32
    return %arg0, %c0_i32, %c0_i32_0 : i32, i32, i32
  }
  func.func @transform_2(%arg0: i32) -> (i32, i32) {
    %c0_i32 = arith.constant 0 : i32
    %c0_i32_0 = arith.constant 0 : i32
    %c0_i32_1 = arith.constant 0 : i32
    return %c0_i32, %c0_i32_0 : i32, i32
  }
  func.func @transform_3(%arg0: i32) -> (i32, i32) {
    %c0_i32 = arith.constant 0 : i32
    %c0_i32_0 = arith.constant 0 : i32
    %c0_i32_1 = arith.constant 0 : i32
    return %c0_i32, %c0_i32_0 : i32, i32
  }
  func.func @transform_4(%arg0: i32) -> (i32, i32) {
    %c0_i32 = arith.constant 0 : i32
    %c0_i32_0 = arith.constant 0 : i32
    %c0_i32_1 = arith.constant 0 : i32
    return %c0_i32, %c0_i32_0 : i32, i32
  }
  func.func @transform_5(%arg0: i32) -> (i32, i32) {
    %c0_i32 = arith.constant 0 : i32
    %c0_i32_0 = arith.constant 0 : i32
    %c0_i32_1 = arith.constant 0 : i32
    return %c0_i32, %c0_i32_0 : i32, i32
  }
  func.func @transform_6(%arg0: i32) -> (i32, i32, i32) {
    %c0_i32 = arith.constant 0 : i32
    %c0_i32_0 = arith.constant 0 : i32
    %c0_i32_1 = arith.constant 0 : i32
    %c0_i32_2 = arith.constant 0 : i32
    return %c0_i32, %c0_i32_0, %c0_i32_1 : i32, i32, i32
  }
  func.func @transform_7(%arg0: i32) -> (i32, i32) {
    %c0_i32 = arith.constant 0 : i32
    %c0_i32_0 = arith.constant 0 : i32
    %c0_i32_1 = arith.constant 0 : i32
    return %c0_i32, %c0_i32_0 : i32, i32
  }
  func.func @transform_8(%arg0: i32) -> (i32, i32) {
    %c0_i32 = arith.constant 0 : i32
    %c0_i32_0 = arith.constant 0 : i32
    %c0_i32_1 = arith.constant 0 : i32
    return %c0_i32, %c0_i32_0 : i32, i32
  }
  func.func @transform_9(%arg0: i32) -> (i32, i32) {
    %c0_i32 = arith.constant 0 : i32
    %c0_i32_0 = arith.constant 0 : i32
    %c0_i32_1 = arith.constant 0 : i32
    return %c0_i32, %c0_i32_0 : i32, i32
  }
  func.func @transform_10(%arg0: i32) -> (i32, i32) {
    %c0_i32 = arith.constant 0 : i32
    %c0_i32_0 = arith.constant 0 : i32
    %c0_i32_1 = arith.constant 0 : i32
    return %c0_i32, %c0_i32_0 : i32, i32
  }
  func.func @transform_11(%arg0: i32) -> (i32, i32) {
    %c0_i32 = arith.constant 0 : i32
    %c0_i32_0 = arith.constant 0 : i32
    %c0_i32_1 = arith.constant 0 : i32
    return %c0_i32, %c0_i32_0 : i32, i32
  }
  func.func @transform_12(%arg0: i32) -> (i32, i32, i32) {
    %c0_i32 = arith.constant 0 : i32
    %c0_i32_0 = arith.constant 0 : i32
    %c0_i32_1 = arith.constant 0 : i32
    return %arg0, %c0_i32, %c0_i32_0 : i32, i32, i32
  }
}

module attributes {stable_mosaic.version = 11 : i64} {
  func.func @_dit_block_kernel(%arg0: i32, %arg1: memref<2x4x32xbf16, #tpu.memory_space<vmem>>, %arg2: memref<2x1x32xf32, #tpu.memory_space<vmem>>, %arg3: memref<32x192xbf16, #tpu.memory_space<vmem>>, %arg4: memref<1x192xf32, #tpu.memory_space<vmem>>, %arg5: memref<32x96xbf16, #tpu.memory_space<vmem>>, %arg6: memref<1x96xf32, #tpu.memory_space<vmem>>, %arg7: memref<4x8x32xbf16, #tpu.memory_space<vmem>>, %arg8: memref<1x32xf32, #tpu.memory_space<vmem>>, %arg9: memref<32x128xbf16, #tpu.memory_space<vmem>>, %arg10: memref<1x128xf32, #tpu.memory_space<vmem>>, %arg11: memref<128x32xbf16, #tpu.memory_space<vmem>>, %arg12: memref<1x32xf32, #tpu.memory_space<vmem>>, %arg13: memref<2x4x32xbf16, #tpu.memory_space<vmem>>) attributes {dimension_semantics = [#tpu.dimension_semantics<parallel>], iteration_bounds = array<i64: 4>, scalar_prefetch = 0 : i64, scratch_operands = 0 : i64, tpu.core_type = #tpu.core_type<tc>, window_params = [{transform_indices = @transform_0, window_bounds = array<i64: 2, 4, 32>}, {transform_indices = @transform_1, window_bounds = array<i64: 2, 1, 32>}, {pipeline_mode = #tpu.pipeline_mode<synchronous>, transform_indices = @transform_2, window_bounds = array<i64: 32, 192>}, {pipeline_mode = #tpu.pipeline_mode<synchronous>, transform_indices = @transform_3, window_bounds = array<i64: 1, 192>}, {pipeline_mode = #tpu.pipeline_mode<synchronous>, transform_indices = @transform_4, window_bounds = array<i64: 32, 96>}, {pipeline_mode = #tpu.pipeline_mode<synchronous>, transform_indices = @transform_5, window_bounds = array<i64: 1, 96>}, {pipeline_mode = #tpu.pipeline_mode<synchronous>, transform_indices = @transform_6, window_bounds = array<i64: 4, 8, 32>}, {pipeline_mode = #tpu.pipeline_mode<synchronous>, transform_indices = @transform_7, window_bounds = array<i64: 1, 32>}, {pipeline_mode = #tpu.pipeline_mode<synchronous>, transform_indices = @transform_8, window_bounds = array<i64: 32, 128>}, {pipeline_mode = #tpu.pipeline_mode<synchronous>, transform_indices = @transform_9, window_bounds = array<i64: 1, 128>}, {pipeline_mode = #tpu.pipeline_mode<synchronous>, transform_indices = @transform_10, window_bounds = array<i64: 128, 32>}, {pipeline_mode = #tpu.pipeline_mode<synchronous>, transform_indices = @transform_11, window_bounds = array<i64: 1, 32>}, {transform_indices = @transform_12, window_bounds = array<i64: 2, 4, 32>}]} {
    %c0 = arith.constant 0 : index
    %c0_0 = arith.constant 0 : index
    %c0_1 = arith.constant 0 : index
    %0 = vector.load %arg1[%c0, %c0_0, %c0_1] : memref<2x4x32xbf16, #tpu.memory_space<vmem>>, vector<2x4x32xbf16>
    %1 = arith.extf %0 : vector<2x4x32xbf16> to vector<2x4x32xf32>
    %c0_2 = arith.constant 0 : index
    %c0_3 = arith.constant 0 : index
    %c0_4 = arith.constant 0 : index
    %2 = vector.load %arg2[%c0_2, %c0_3, %c0_4] : memref<2x1x32xf32, #tpu.memory_space<vmem>>, vector<2x1x32xf32>
    %3 = vector.shape_cast %2 : vector<2x1x32xf32> to vector<2x32xf32>
    %4 = arith.negf %3 : vector<2x32xf32>
    %5 = math.exp %4 : vector<2x32xf32>
    %cst = arith.constant 1.000000e+00 : f32
    %6 = vector.broadcast %cst : f32 to vector<2x32xf32>
    %7 = arith.addf %6, %5 : vector<2x32xf32>
    %8 = arith.divf %6, %7 : vector<2x32xf32>
    %9 = arith.mulf %3, %8 : vector<2x32xf32>
    %10 = arith.truncf %9 : vector<2x32xf32> to vector<2x32xbf16>
    %c0_5 = arith.constant 0 : index
    %c0_6 = arith.constant 0 : index
    %11 = vector.load %arg3[%c0_5, %c0_6] : memref<32x192xbf16, #tpu.memory_space<vmem>>, vector<32x192xbf16>
    %cst_7 = arith.constant dense<0.000000e+00> : vector<2x192xf32>
    %12 = tpu.matmul %10, %11, %cst_7 {dimension_numbers = #tpu.dot_dimension_numbers<[1], [0], [0], [1], [0, 0, 1, 1], [], []>} : vector<2x32xbf16>, vector<32x192xbf16>, vector<2x192xf32> -> vector<2x192xf32>
    %c0_8 = arith.constant 0 : index
    %c0_9 = arith.constant 0 : index
    %13 = vector.load %arg4[%c0_8, %c0_9] : memref<1x192xf32, #tpu.memory_space<vmem>>, vector<1x192xf32>
    %14 = vector.broadcast %13 : vector<1x192xf32> to vector<2x192xf32>
    %15 = arith.addf %12, %14 : vector<2x192xf32>
    %16 = vector.shape_cast %15 : vector<2x192xf32> to vector<2x6x32xf32>
    %17 = vector.extract_strided_slice %16 {offsets = [0, 0, 0], sizes = [2, 1, 32], strides = [1, 1, 1]} : vector<2x6x32xf32> to vector<2x1x32xf32>
    %18 = vector.shape_cast %17 : vector<2x1x32xf32> to vector<2x32xf32>
    %19 = vector.shape_cast %18 : vector<2x32xf32> to vector<2x1x32xf32>
    %20 = vector.extract_strided_slice %16 {offsets = [0, 1, 0], sizes = [2, 1, 32], strides = [1, 1, 1]} : vector<2x6x32xf32> to vector<2x1x32xf32>
    %21 = vector.shape_cast %20 : vector<2x1x32xf32> to vector<2x32xf32>
    %22 = vector.shape_cast %21 : vector<2x32xf32> to vector<2x1x32xf32>
    %23 = vector.extract_strided_slice %16 {offsets = [0, 2, 0], sizes = [2, 1, 32], strides = [1, 1, 1]} : vector<2x6x32xf32> to vector<2x1x32xf32>
    %24 = vector.shape_cast %23 : vector<2x1x32xf32> to vector<2x32xf32>
    %25 = vector.shape_cast %24 : vector<2x32xf32> to vector<2x1x32xf32>
    %26 = vector.extract_strided_slice %16 {offsets = [0, 3, 0], sizes = [2, 1, 32], strides = [1, 1, 1]} : vector<2x6x32xf32> to vector<2x1x32xf32>
    %27 = vector.shape_cast %26 : vector<2x1x32xf32> to vector<2x32xf32>
    %28 = vector.shape_cast %27 : vector<2x32xf32> to vector<2x1x32xf32>
    %29 = vector.extract_strided_slice %16 {offsets = [0, 4, 0], sizes = [2, 1, 32], strides = [1, 1, 1]} : vector<2x6x32xf32> to vector<2x1x32xf32>
    %30 = vector.shape_cast %29 : vector<2x1x32xf32> to vector<2x32xf32>
    %31 = vector.shape_cast %30 : vector<2x32xf32> to vector<2x1x32xf32>
    %32 = vector.extract_strided_slice %16 {offsets = [0, 5, 0], sizes = [2, 1, 32], strides = [1, 1, 1]} : vector<2x6x32xf32> to vector<2x1x32xf32>
    %33 = vector.shape_cast %32 : vector<2x1x32xf32> to vector<2x32xf32>
    %34 = vector.shape_cast %33 : vector<2x32xf32> to vector<2x1x32xf32>
    %cst_10 = arith.constant dense<0.000000e+00> : vector<2x4xf32>
    %35 = vector.multi_reduction <add>, %1, %cst_10 [2] : vector<2x4x32xf32> to vector<2x4xf32>
    %36 = vector.shape_cast %35 : vector<2x4xf32> to vector<2x4x1xf32>
    %cst_11 = arith.constant 3.200000e+01 : f32
    %37 = vector.broadcast %cst_11 : f32 to vector<2x4x1xf32>
    %38 = arith.divf %36, %37 : vector<2x4x1xf32>
    %39 = vector.broadcast %38 : vector<2x4x1xf32> to vector<2x4x32xf32>
    %40 = arith.subf %1, %39 : vector<2x4x32xf32>
    %41 = arith.mulf %40, %40 : vector<2x4x32xf32>
    %cst_12 = arith.constant dense<0.000000e+00> : vector<2x4xf32>
    %42 = vector.multi_reduction <add>, %41, %cst_12 [2] : vector<2x4x32xf32> to vector<2x4xf32>
    %43 = vector.shape_cast %42 : vector<2x4xf32> to vector<2x4x1xf32>
    %cst_13 = arith.constant 3.200000e+01 : f32
    %44 = vector.broadcast %cst_13 : f32 to vector<2x4x1xf32>
    %45 = arith.divf %43, %44 : vector<2x4x1xf32>
    %46 = vector.broadcast %38 : vector<2x4x1xf32> to vector<2x4x32xf32>
    %47 = arith.subf %1, %46 : vector<2x4x32xf32>
    %cst_14 = arith.constant 9.99999997E-7 : f32
    %48 = vector.broadcast %cst_14 : f32 to vector<2x4x1xf32>
    %49 = arith.addf %45, %48 : vector<2x4x1xf32>
    %50 = math.rsqrt %49 : vector<2x4x1xf32>
    %51 = vector.broadcast %50 : vector<2x4x1xf32> to vector<2x4x32xf32>
    %52 = arith.mulf %47, %51 : vector<2x4x32xf32>
    %cst_15 = arith.constant 1.000000e+00 : f32
    %53 = vector.broadcast %cst_15 : f32 to vector<2x1x32xf32>
    %54 = arith.addf %53, %22 : vector<2x1x32xf32>
    %55 = vector.broadcast %54 : vector<2x1x32xf32> to vector<2x4x32xf32>
    %56 = arith.mulf %52, %55 : vector<2x4x32xf32>
    %57 = vector.broadcast %19 : vector<2x1x32xf32> to vector<2x4x32xf32>
    %58 = arith.addf %56, %57 : vector<2x4x32xf32>
    %59 = vector.shape_cast %58 : vector<2x4x32xf32> to vector<8x32xf32>
    %60 = arith.truncf %59 : vector<8x32xf32> to vector<8x32xbf16>
    %c0_16 = arith.constant 0 : index
    %c0_17 = arith.constant 0 : index
    %61 = vector.load %arg5[%c0_16, %c0_17] : memref<32x96xbf16, #tpu.memory_space<vmem>>, vector<32x96xbf16>
    %cst_18 = arith.constant dense<0.000000e+00> : vector<8x96xf32>
    %62 = tpu.matmul %60, %61, %cst_18 {dimension_numbers = #tpu.dot_dimension_numbers<[1], [0], [0], [1], [0, 0, 1, 1], [], []>} : vector<8x32xbf16>, vector<32x96xbf16>, vector<8x96xf32> -> vector<8x96xf32>
    %c0_19 = arith.constant 0 : index
    %c0_20 = arith.constant 0 : index
    %63 = vector.load %arg6[%c0_19, %c0_20] : memref<1x96xf32, #tpu.memory_space<vmem>>, vector<1x96xf32>
    %64 = vector.broadcast %63 : vector<1x96xf32> to vector<8x96xf32>
    %65 = arith.addf %62, %64 : vector<8x96xf32>
    %66 = vector.shape_cast %65 : vector<8x96xf32> to vector<2x4x96xf32>
    %67 = vector.extract_strided_slice %66 {offsets = [0, 0, 0], sizes = [2, 4, 8], strides = [1, 1, 1]} : vector<2x4x96xf32> to vector<2x4x8xf32>
    %68 = arith.truncf %67 : vector<2x4x8xf32> to vector<2x4x8xbf16>
    %69 = vector.extract_strided_slice %66 {offsets = [0, 0, 32], sizes = [2, 4, 8], strides = [1, 1, 1]} : vector<2x4x96xf32> to vector<2x4x8xf32>
    %70 = arith.truncf %69 : vector<2x4x8xf32> to vector<2x4x8xbf16>
    %71 = vector.extract_strided_slice %66 {offsets = [0, 0, 64], sizes = [2, 4, 8], strides = [1, 1, 1]} : vector<2x4x96xf32> to vector<2x4x8xf32>
    %72 = arith.truncf %71 : vector<2x4x8xf32> to vector<2x4x8xbf16>
    "tpu.trace_start"() <{level = 10 : i32, message = "rqd,rkd->rqk"}> : () -> ()
    %cst_21 = arith.constant dense<0.000000e+00> : vector<2x4x4xf32>
    %73 = tpu.matmul %68, %70, %cst_21 {dimension_numbers = #tpu.dot_dimension_numbers<[2], [2], [1], [1], [0, 0, 0, 1, 1, 1], [0], [0]>} : vector<2x4x8xbf16>, vector<2x4x8xbf16>, vector<2x4x4xf32> -> vector<2x4x4xf32>
    "tpu.trace_stop"() : () -> ()
    %cst_22 = arith.constant dense<0xFF800000> : vector<2x4xf32>
    %74 = vector.multi_reduction <maximumf>, %73, %cst_22 [2] : vector<2x4x4xf32> to vector<2x4xf32>
    %75 = vector.shape_cast %74 : vector<2x4xf32> to vector<2x4x1xf32>
    %76 = vector.broadcast %75 : vector<2x4x1xf32> to vector<2x4x4xf32>
    %77 = arith.subf %73, %76 : vector<2x4x4xf32>
    %78 = math.exp %77 : vector<2x4x4xf32>
    %cst_23 = arith.constant dense<0.000000e+00> : vector<2x4xf32>
    %79 = vector.multi_reduction <add>, %78, %cst_23 [2] : vector<2x4x4xf32> to vector<2x4xf32>
    %80 = vector.shape_cast %79 : vector<2x4xf32> to vector<2x4x1xf32>
    %81 = tpu.reciprocal %80 {approx = true} : vector<2x4x1xf32> -> vector<2x4x1xf32>
    %82 = vector.broadcast %81 : vector<2x4x1xf32> to vector<2x4x4xf32>
    %83 = arith.mulf %78, %82 : vector<2x4x4xf32>
    %84 = arith.truncf %83 : vector<2x4x4xf32> to vector<2x4x4xbf16>
    "tpu.trace_start"() <{level = 10 : i32, message = "rqk,rkd->rqd"}> : () -> ()
    %cst_24 = arith.constant dense<0.000000e+00> : vector<2x4x8xf32>
    %85 = tpu.matmul %84, %72, %cst_24 {dimension_numbers = #tpu.dot_dimension_numbers<[2], [1], [1], [2], [0, 0, 0, 1, 1, 2], [0], [0]>} : vector<2x4x4xbf16>, vector<2x4x8xbf16>, vector<2x4x8xf32> -> vector<2x4x8xf32>
    "tpu.trace_stop"() : () -> ()
    %86 = vector.shape_cast %85 : vector<2x4x8xf32> to vector<8x8xf32>
    %87 = arith.truncf %86 : vector<8x8xf32> to vector<8x8xbf16>
    %c0_25 = arith.constant 0 : index
    %c0_26 = arith.constant 0 : index
    %c0_27 = arith.constant 0 : index
    %88 = vector.load %arg7[%c0_25, %c0_26, %c0_27] : memref<4x8x32xbf16, #tpu.memory_space<vmem>>, vector<1x8x32xbf16>
    %89 = vector.shape_cast %88 : vector<1x8x32xbf16> to vector<8x32xbf16>
    %cst_28 = arith.constant dense<0.000000e+00> : vector<8x32xf32>
    %90 = tpu.matmul %87, %89, %cst_28 {dimension_numbers = #tpu.dot_dimension_numbers<[1], [0], [0], [1], [0, 0, 1, 1], [], []>} : vector<8x8xbf16>, vector<8x32xbf16>, vector<8x32xf32> -> vector<8x32xf32>
    %91 = vector.extract_strided_slice %66 {offsets = [0, 0, 8], sizes = [2, 4, 8], strides = [1, 1, 1]} : vector<2x4x96xf32> to vector<2x4x8xf32>
    %92 = arith.truncf %91 : vector<2x4x8xf32> to vector<2x4x8xbf16>
    %93 = vector.extract_strided_slice %66 {offsets = [0, 0, 40], sizes = [2, 4, 8], strides = [1, 1, 1]} : vector<2x4x96xf32> to vector<2x4x8xf32>
    %94 = arith.truncf %93 : vector<2x4x8xf32> to vector<2x4x8xbf16>
    %95 = vector.extract_strided_slice %66 {offsets = [0, 0, 72], sizes = [2, 4, 8], strides = [1, 1, 1]} : vector<2x4x96xf32> to vector<2x4x8xf32>
    %96 = arith.truncf %95 : vector<2x4x8xf32> to vector<2x4x8xbf16>
    "tpu.trace_start"() <{level = 10 : i32, message = "rqd,rkd->rqk"}> : () -> ()
    %cst_29 = arith.constant dense<0.000000e+00> : vector<2x4x4xf32>
    %97 = tpu.matmul %92, %94, %cst_29 {dimension_numbers = #tpu.dot_dimension_numbers<[2], [2], [1], [1], [0, 0, 0, 1, 1, 1], [0], [0]>} : vector<2x4x8xbf16>, vector<2x4x8xbf16>, vector<2x4x4xf32> -> vector<2x4x4xf32>
    "tpu.trace_stop"() : () -> ()
    %cst_30 = arith.constant dense<0xFF800000> : vector<2x4xf32>
    %98 = vector.multi_reduction <maximumf>, %97, %cst_30 [2] : vector<2x4x4xf32> to vector<2x4xf32>
    %99 = vector.shape_cast %98 : vector<2x4xf32> to vector<2x4x1xf32>
    %100 = vector.broadcast %99 : vector<2x4x1xf32> to vector<2x4x4xf32>
    %101 = arith.subf %97, %100 : vector<2x4x4xf32>
    %102 = math.exp %101 : vector<2x4x4xf32>
    %cst_31 = arith.constant dense<0.000000e+00> : vector<2x4xf32>
    %103 = vector.multi_reduction <add>, %102, %cst_31 [2] : vector<2x4x4xf32> to vector<2x4xf32>
    %104 = vector.shape_cast %103 : vector<2x4xf32> to vector<2x4x1xf32>
    %105 = tpu.reciprocal %104 {approx = true} : vector<2x4x1xf32> -> vector<2x4x1xf32>
    %106 = vector.broadcast %105 : vector<2x4x1xf32> to vector<2x4x4xf32>
    %107 = arith.mulf %102, %106 : vector<2x4x4xf32>
    %108 = arith.truncf %107 : vector<2x4x4xf32> to vector<2x4x4xbf16>
    "tpu.trace_start"() <{level = 10 : i32, message = "rqk,rkd->rqd"}> : () -> ()
    %cst_32 = arith.constant dense<0.000000e+00> : vector<2x4x8xf32>
    %109 = tpu.matmul %108, %96, %cst_32 {dimension_numbers = #tpu.dot_dimension_numbers<[2], [1], [1], [2], [0, 0, 0, 1, 1, 2], [0], [0]>} : vector<2x4x4xbf16>, vector<2x4x8xbf16>, vector<2x4x8xf32> -> vector<2x4x8xf32>
    "tpu.trace_stop"() : () -> ()
    %110 = vector.shape_cast %109 : vector<2x4x8xf32> to vector<8x8xf32>
    %111 = arith.truncf %110 : vector<8x8xf32> to vector<8x8xbf16>
    %c1 = arith.constant 1 : index
    %c0_33 = arith.constant 0 : index
    %c0_34 = arith.constant 0 : index
    %112 = vector.load %arg7[%c1, %c0_33, %c0_34] : memref<4x8x32xbf16, #tpu.memory_space<vmem>>, vector<1x8x32xbf16>
    %113 = vector.shape_cast %112 : vector<1x8x32xbf16> to vector<8x32xbf16>
    %cst_35 = arith.constant dense<0.000000e+00> : vector<8x32xf32>
    %114 = tpu.matmul %111, %113, %cst_35 {dimension_numbers = #tpu.dot_dimension_numbers<[1], [0], [0], [1], [0, 0, 1, 1], [], []>} : vector<8x8xbf16>, vector<8x32xbf16>, vector<8x32xf32> -> vector<8x32xf32>
    %115 = arith.addf %90, %114 : vector<8x32xf32>
    %116 = vector.extract_strided_slice %66 {offsets = [0, 0, 16], sizes = [2, 4, 8], strides = [1, 1, 1]} : vector<2x4x96xf32> to vector<2x4x8xf32>
    %117 = arith.truncf %116 : vector<2x4x8xf32> to vector<2x4x8xbf16>
    %118 = vector.extract_strided_slice %66 {offsets = [0, 0, 48], sizes = [2, 4, 8], strides = [1, 1, 1]} : vector<2x4x96xf32> to vector<2x4x8xf32>
    %119 = arith.truncf %118 : vector<2x4x8xf32> to vector<2x4x8xbf16>
    %120 = vector.extract_strided_slice %66 {offsets = [0, 0, 80], sizes = [2, 4, 8], strides = [1, 1, 1]} : vector<2x4x96xf32> to vector<2x4x8xf32>
    %121 = arith.truncf %120 : vector<2x4x8xf32> to vector<2x4x8xbf16>
    "tpu.trace_start"() <{level = 10 : i32, message = "rqd,rkd->rqk"}> : () -> ()
    %cst_36 = arith.constant dense<0.000000e+00> : vector<2x4x4xf32>
    %122 = tpu.matmul %117, %119, %cst_36 {dimension_numbers = #tpu.dot_dimension_numbers<[2], [2], [1], [1], [0, 0, 0, 1, 1, 1], [0], [0]>} : vector<2x4x8xbf16>, vector<2x4x8xbf16>, vector<2x4x4xf32> -> vector<2x4x4xf32>
    "tpu.trace_stop"() : () -> ()
    %cst_37 = arith.constant dense<0xFF800000> : vector<2x4xf32>
    %123 = vector.multi_reduction <maximumf>, %122, %cst_37 [2] : vector<2x4x4xf32> to vector<2x4xf32>
    %124 = vector.shape_cast %123 : vector<2x4xf32> to vector<2x4x1xf32>
    %125 = vector.broadcast %124 : vector<2x4x1xf32> to vector<2x4x4xf32>
    %126 = arith.subf %122, %125 : vector<2x4x4xf32>
    %127 = math.exp %126 : vector<2x4x4xf32>
    %cst_38 = arith.constant dense<0.000000e+00> : vector<2x4xf32>
    %128 = vector.multi_reduction <add>, %127, %cst_38 [2] : vector<2x4x4xf32> to vector<2x4xf32>
    %129 = vector.shape_cast %128 : vector<2x4xf32> to vector<2x4x1xf32>
    %130 = tpu.reciprocal %129 {approx = true} : vector<2x4x1xf32> -> vector<2x4x1xf32>
    %131 = vector.broadcast %130 : vector<2x4x1xf32> to vector<2x4x4xf32>
    %132 = arith.mulf %127, %131 : vector<2x4x4xf32>
    %133 = arith.truncf %132 : vector<2x4x4xf32> to vector<2x4x4xbf16>
    "tpu.trace_start"() <{level = 10 : i32, message = "rqk,rkd->rqd"}> : () -> ()
    %cst_39 = arith.constant dense<0.000000e+00> : vector<2x4x8xf32>
    %134 = tpu.matmul %133, %121, %cst_39 {dimension_numbers = #tpu.dot_dimension_numbers<[2], [1], [1], [2], [0, 0, 0, 1, 1, 2], [0], [0]>} : vector<2x4x4xbf16>, vector<2x4x8xbf16>, vector<2x4x8xf32> -> vector<2x4x8xf32>
    "tpu.trace_stop"() : () -> ()
    %135 = vector.shape_cast %134 : vector<2x4x8xf32> to vector<8x8xf32>
    %136 = arith.truncf %135 : vector<8x8xf32> to vector<8x8xbf16>
    %c2 = arith.constant 2 : index
    %c0_40 = arith.constant 0 : index
    %c0_41 = arith.constant 0 : index
    %137 = vector.load %arg7[%c2, %c0_40, %c0_41] : memref<4x8x32xbf16, #tpu.memory_space<vmem>>, vector<1x8x32xbf16>
    %138 = vector.shape_cast %137 : vector<1x8x32xbf16> to vector<8x32xbf16>
    %cst_42 = arith.constant dense<0.000000e+00> : vector<8x32xf32>
    %139 = tpu.matmul %136, %138, %cst_42 {dimension_numbers = #tpu.dot_dimension_numbers<[1], [0], [0], [1], [0, 0, 1, 1], [], []>} : vector<8x8xbf16>, vector<8x32xbf16>, vector<8x32xf32> -> vector<8x32xf32>
    %140 = arith.addf %115, %139 : vector<8x32xf32>
    %141 = vector.extract_strided_slice %66 {offsets = [0, 0, 24], sizes = [2, 4, 8], strides = [1, 1, 1]} : vector<2x4x96xf32> to vector<2x4x8xf32>
    %142 = arith.truncf %141 : vector<2x4x8xf32> to vector<2x4x8xbf16>
    %143 = vector.extract_strided_slice %66 {offsets = [0, 0, 56], sizes = [2, 4, 8], strides = [1, 1, 1]} : vector<2x4x96xf32> to vector<2x4x8xf32>
    %144 = arith.truncf %143 : vector<2x4x8xf32> to vector<2x4x8xbf16>
    %145 = vector.extract_strided_slice %66 {offsets = [0, 0, 88], sizes = [2, 4, 8], strides = [1, 1, 1]} : vector<2x4x96xf32> to vector<2x4x8xf32>
    %146 = arith.truncf %145 : vector<2x4x8xf32> to vector<2x4x8xbf16>
    "tpu.trace_start"() <{level = 10 : i32, message = "rqd,rkd->rqk"}> : () -> ()
    %cst_43 = arith.constant dense<0.000000e+00> : vector<2x4x4xf32>
    %147 = tpu.matmul %142, %144, %cst_43 {dimension_numbers = #tpu.dot_dimension_numbers<[2], [2], [1], [1], [0, 0, 0, 1, 1, 1], [0], [0]>} : vector<2x4x8xbf16>, vector<2x4x8xbf16>, vector<2x4x4xf32> -> vector<2x4x4xf32>
    "tpu.trace_stop"() : () -> ()
    %cst_44 = arith.constant dense<0xFF800000> : vector<2x4xf32>
    %148 = vector.multi_reduction <maximumf>, %147, %cst_44 [2] : vector<2x4x4xf32> to vector<2x4xf32>
    %149 = vector.shape_cast %148 : vector<2x4xf32> to vector<2x4x1xf32>
    %150 = vector.broadcast %149 : vector<2x4x1xf32> to vector<2x4x4xf32>
    %151 = arith.subf %147, %150 : vector<2x4x4xf32>
    %152 = math.exp %151 : vector<2x4x4xf32>
    %cst_45 = arith.constant dense<0.000000e+00> : vector<2x4xf32>
    %153 = vector.multi_reduction <add>, %152, %cst_45 [2] : vector<2x4x4xf32> to vector<2x4xf32>
    %154 = vector.shape_cast %153 : vector<2x4xf32> to vector<2x4x1xf32>
    %155 = tpu.reciprocal %154 {approx = true} : vector<2x4x1xf32> -> vector<2x4x1xf32>
    %156 = vector.broadcast %155 : vector<2x4x1xf32> to vector<2x4x4xf32>
    %157 = arith.mulf %152, %156 : vector<2x4x4xf32>
    %158 = arith.truncf %157 : vector<2x4x4xf32> to vector<2x4x4xbf16>
    "tpu.trace_start"() <{level = 10 : i32, message = "rqk,rkd->rqd"}> : () -> ()
    %cst_46 = arith.constant dense<0.000000e+00> : vector<2x4x8xf32>
    %159 = tpu.matmul %158, %146, %cst_46 {dimension_numbers = #tpu.dot_dimension_numbers<[2], [1], [1], [2], [0, 0, 0, 1, 1, 2], [0], [0]>} : vector<2x4x4xbf16>, vector<2x4x8xbf16>, vector<2x4x8xf32> -> vector<2x4x8xf32>
    "tpu.trace_stop"() : () -> ()
    %160 = vector.shape_cast %159 : vector<2x4x8xf32> to vector<8x8xf32>
    %161 = arith.truncf %160 : vector<8x8xf32> to vector<8x8xbf16>
    %c3 = arith.constant 3 : index
    %c0_47 = arith.constant 0 : index
    %c0_48 = arith.constant 0 : index
    %162 = vector.load %arg7[%c3, %c0_47, %c0_48] : memref<4x8x32xbf16, #tpu.memory_space<vmem>>, vector<1x8x32xbf16>
    %163 = vector.shape_cast %162 : vector<1x8x32xbf16> to vector<8x32xbf16>
    %cst_49 = arith.constant dense<0.000000e+00> : vector<8x32xf32>
    %164 = tpu.matmul %161, %163, %cst_49 {dimension_numbers = #tpu.dot_dimension_numbers<[1], [0], [0], [1], [0, 0, 1, 1], [], []>} : vector<8x8xbf16>, vector<8x32xbf16>, vector<8x32xf32> -> vector<8x32xf32>
    %165 = arith.addf %140, %164 : vector<8x32xf32>
    %c0_50 = arith.constant 0 : index
    %c0_51 = arith.constant 0 : index
    %166 = vector.load %arg8[%c0_50, %c0_51] : memref<1x32xf32, #tpu.memory_space<vmem>>, vector<1x32xf32>
    %167 = vector.broadcast %166 : vector<1x32xf32> to vector<8x32xf32>
    %168 = arith.addf %165, %167 : vector<8x32xf32>
    %169 = vector.shape_cast %168 : vector<8x32xf32> to vector<2x4x32xf32>
    %170 = vector.broadcast %25 : vector<2x1x32xf32> to vector<2x4x32xf32>
    %171 = arith.mulf %170, %169 : vector<2x4x32xf32>
    %172 = arith.addf %1, %171 : vector<2x4x32xf32>
    %cst_52 = arith.constant dense<0.000000e+00> : vector<2x4xf32>
    %173 = vector.multi_reduction <add>, %172, %cst_52 [2] : vector<2x4x32xf32> to vector<2x4xf32>
    %174 = vector.shape_cast %173 : vector<2x4xf32> to vector<2x4x1xf32>
    %cst_53 = arith.constant 3.200000e+01 : f32
    %175 = vector.broadcast %cst_53 : f32 to vector<2x4x1xf32>
    %176 = arith.divf %174, %175 : vector<2x4x1xf32>
    %177 = vector.broadcast %176 : vector<2x4x1xf32> to vector<2x4x32xf32>
    %178 = arith.subf %172, %177 : vector<2x4x32xf32>
    %179 = arith.mulf %178, %178 : vector<2x4x32xf32>
    %cst_54 = arith.constant dense<0.000000e+00> : vector<2x4xf32>
    %180 = vector.multi_reduction <add>, %179, %cst_54 [2] : vector<2x4x32xf32> to vector<2x4xf32>
    %181 = vector.shape_cast %180 : vector<2x4xf32> to vector<2x4x1xf32>
    %cst_55 = arith.constant 3.200000e+01 : f32
    %182 = vector.broadcast %cst_55 : f32 to vector<2x4x1xf32>
    %183 = arith.divf %181, %182 : vector<2x4x1xf32>
    %184 = vector.broadcast %176 : vector<2x4x1xf32> to vector<2x4x32xf32>
    %185 = arith.subf %172, %184 : vector<2x4x32xf32>
    %cst_56 = arith.constant 9.99999997E-7 : f32
    %186 = vector.broadcast %cst_56 : f32 to vector<2x4x1xf32>
    %187 = arith.addf %183, %186 : vector<2x4x1xf32>
    %188 = math.rsqrt %187 : vector<2x4x1xf32>
    %189 = vector.broadcast %188 : vector<2x4x1xf32> to vector<2x4x32xf32>
    %190 = arith.mulf %185, %189 : vector<2x4x32xf32>
    %cst_57 = arith.constant 1.000000e+00 : f32
    %191 = vector.broadcast %cst_57 : f32 to vector<2x1x32xf32>
    %192 = arith.addf %191, %31 : vector<2x1x32xf32>
    %193 = vector.broadcast %192 : vector<2x1x32xf32> to vector<2x4x32xf32>
    %194 = arith.mulf %190, %193 : vector<2x4x32xf32>
    %195 = vector.broadcast %28 : vector<2x1x32xf32> to vector<2x4x32xf32>
    %196 = arith.addf %194, %195 : vector<2x4x32xf32>
    %197 = vector.shape_cast %196 : vector<2x4x32xf32> to vector<8x32xf32>
    %198 = arith.truncf %197 : vector<8x32xf32> to vector<8x32xbf16>
    %c0_58 = arith.constant 0 : index
    %c0_59 = arith.constant 0 : index
    %199 = vector.load %arg9[%c0_58, %c0_59] : memref<32x128xbf16, #tpu.memory_space<vmem>>, vector<32x128xbf16>
    %cst_60 = arith.constant dense<0.000000e+00> : vector<8x128xf32>
    %200 = tpu.matmul %198, %199, %cst_60 {dimension_numbers = #tpu.dot_dimension_numbers<[1], [0], [0], [1], [0, 0, 1, 1], [], []>} : vector<8x32xbf16>, vector<32x128xbf16>, vector<8x128xf32> -> vector<8x128xf32>
    %c0_61 = arith.constant 0 : index
    %c0_62 = arith.constant 0 : index
    %201 = vector.load %arg10[%c0_61, %c0_62] : memref<1x128xf32, #tpu.memory_space<vmem>>, vector<1x128xf32>
    %202 = vector.broadcast %201 : vector<1x128xf32> to vector<8x128xf32>
    %203 = arith.addf %200, %202 : vector<8x128xf32>
    %cst_63 = arith.constant 5.000000e-01 : f32
    %204 = vector.broadcast %cst_63 : f32 to vector<8x128xf32>
    %205 = arith.mulf %204, %203 : vector<8x128xf32>
    %cst_64 = arith.constant 4.471500e-02 : f32
    %206 = vector.broadcast %cst_64 : f32 to vector<8x128xf32>
    %207 = arith.mulf %206, %203 : vector<8x128xf32>
    %208 = arith.mulf %207, %203 : vector<8x128xf32>
    %209 = arith.mulf %208, %203 : vector<8x128xf32>
    %210 = arith.addf %203, %209 : vector<8x128xf32>
    %cst_65 = arith.constant 0.797884583 : f32
    %211 = vector.broadcast %cst_65 : f32 to vector<8x128xf32>
    %212 = arith.mulf %211, %210 : vector<8x128xf32>
    %213 = math.tanh %212 : vector<8x128xf32>
    %cst_66 = arith.constant 1.000000e+00 : f32
    %214 = vector.broadcast %cst_66 : f32 to vector<8x128xf32>
    %215 = arith.addf %214, %213 : vector<8x128xf32>
    %216 = arith.mulf %205, %215 : vector<8x128xf32>
    %217 = arith.truncf %216 : vector<8x128xf32> to vector<8x128xbf16>
    %c0_67 = arith.constant 0 : index
    %c0_68 = arith.constant 0 : index
    %218 = vector.load %arg11[%c0_67, %c0_68] : memref<128x32xbf16, #tpu.memory_space<vmem>>, vector<128x32xbf16>
    %cst_69 = arith.constant dense<0.000000e+00> : vector<8x32xf32>
    %219 = tpu.matmul %217, %218, %cst_69 {dimension_numbers = #tpu.dot_dimension_numbers<[1], [0], [0], [1], [0, 0, 1, 1], [], []>} : vector<8x128xbf16>, vector<128x32xbf16>, vector<8x32xf32> -> vector<8x32xf32>
    %c0_70 = arith.constant 0 : index
    %c0_71 = arith.constant 0 : index
    %220 = vector.load %arg12[%c0_70, %c0_71] : memref<1x32xf32, #tpu.memory_space<vmem>>, vector<1x32xf32>
    %221 = vector.broadcast %220 : vector<1x32xf32> to vector<8x32xf32>
    %222 = arith.addf %219, %221 : vector<8x32xf32>
    %223 = vector.shape_cast %222 : vector<8x32xf32> to vector<2x4x32xf32>
    %224 = vector.broadcast %34 : vector<2x1x32xf32> to vector<2x4x32xf32>
    %225 = arith.mulf %224, %223 : vector<2x4x32xf32>
    %226 = arith.addf %172, %225 : vector<2x4x32xf32>
    %227 = arith.truncf %226 : vector<2x4x32xf32> to vector<2x4x32xbf16>
    %c0_72 = arith.constant 0 : index
    %c0_73 = arith.constant 0 : index
    %c0_74 = arith.constant 0 : index
    %228 = vector.load %arg13[%c0_72, %c0_73, %c0_74] : memref<2x4x32xbf16, #tpu.memory_space<vmem>>, vector<2x4x32xbf16>
    tpu.vector_store %arg13[%c0_72, %c0_73, %c0_74], %227 {strides = array<i32>} : memref<2x4x32xbf16, #tpu.memory_space<vmem>>, vector<2x4x32xbf16>,
    return
  }
  func.func @transform_0(%arg0: i32) -> (i32, i32, i32) {
    %c0_i32 = arith.constant 0 : i32
    %c0_i32_0 = arith.constant 0 : i32
    %c0_i32_1 = arith.constant 0 : i32
    return %arg0, %c0_i32, %c0_i32_0 : i32, i32, i32
  }
  func.func @transform_1(%arg0: i32) -> (i32, i32, i32) {
    %c0_i32 = arith.constant 0 : i32
    %c0_i32_0 = arith.constant 0 : i32
    %c0_i32_1 = arith.constant 0 : i32
    return %arg0, %c0_i32, %c0_i32_0 : i32, i32, i32
  }
  func.func @transform_2(%arg0: i32) -> (i32, i32) {
    %c0_i32 = arith.constant 0 : i32
    %c0_i32_0 = arith.constant 0 : i32
    %c0_i32_1 = arith.constant 0 : i32
    return %c0_i32, %c0_i32_0 : i32, i32
  }
  func.func @transform_3(%arg0: i32) -> (i32, i32) {
    %c0_i32 = arith.constant 0 : i32
    %c0_i32_0 = arith.constant 0 : i32
    %c0_i32_1 = arith.constant 0 : i32
    return %c0_i32, %c0_i32_0 : i32, i32
  }
  func.func @transform_4(%arg0: i32) -> (i32, i32) {
    %c0_i32 = arith.constant 0 : i32
    %c0_i32_0 = arith.constant 0 : i32
    %c0_i32_1 = arith.constant 0 : i32
    return %c0_i32, %c0_i32_0 : i32, i32
  }
  func.func @transform_5(%arg0: i32) -> (i32, i32) {
    %c0_i32 = arith.constant 0 : i32
    %c0_i32_0 = arith.constant 0 : i32
    %c0_i32_1 = arith.constant 0 : i32
    return %c0_i32, %c0_i32_0 : i32, i32
  }
  func.func @transform_6(%arg0: i32) -> (i32, i32, i32) {
    %c0_i32 = arith.constant 0 : i32
    %c0_i32_0 = arith.constant 0 : i32
    %c0_i32_1 = arith.constant 0 : i32
    %c0_i32_2 = arith.constant 0 : i32
    return %c0_i32, %c0_i32_0, %c0_i32_1 : i32, i32, i32
  }
  func.func @transform_7(%arg0: i32) -> (i32, i32) {
    %c0_i32 = arith.constant 0 : i32
    %c0_i32_0 = arith.constant 0 : i32
    %c0_i32_1 = arith.constant 0 : i32
    return %c0_i32, %c0_i32_0 : i32, i32
  }
  func.func @transform_8(%arg0: i32) -> (i32, i32) {
    %c0_i32 = arith.constant 0 : i32
    %c0_i32_0 = arith.constant 0 : i32
    %c0_i32_1 = arith.constant 0 : i32
    return %c0_i32, %c0_i32_0 : i32, i32
  }
  func.func @transform_9(%arg0: i32) -> (i32, i32) {
    %c0_i32 = arith.constant 0 : i32
    %c0_i32_0 = arith.constant 0 : i32
    %c0_i32_1 = arith.constant 0 : i32
    return %c0_i32, %c0_i32_0 : i32, i32
  }
  func.func @transform_10(%arg0: i32) -> (i32, i32) {
    %c0_i32 = arith.constant 0 : i32
    %c0_i32_0 = arith.constant 0 : i32
    %c0_i32_1 = arith.constant 0 : i32
    return %c0_i32, %c0_i32_0 : i32, i32
  }
  func.func @transform_11(%arg0: i32) -> (i32, i32) {
    %c0_i32 = arith.constant 0 : i32
    %c0_i32_0 = arith.constant 0 : i32
    %c0_i32_1 = arith.constant 0 : i32
    return %c0_i32, %c0_i32_0 : i32, i32
  }
  func.func @transform_12(%arg0: i32) -> (i32, i32, i32) {
    %c0_i32 = arith.constant 0 : i32
    %c0_i32_0 = arith.constant 0 : i32
    %c0_i32_1 = arith.constant 0 : i32
    return %arg0, %c0_i32, %c0_i32_0 : i32, i32, i32
  }
}

module attributes {stable_mosaic.version = 11 : i64} {
  func.func @_final_layer_kernel(%arg0: i32, %arg1: memref<2x4x32xbf16, #tpu.memory_space<vmem>>, %arg2: memref<2x1x32xf32, #tpu.memory_space<vmem>>, %arg3: memref<32x64xbf16, #tpu.memory_space<vmem>>, %arg4: memref<1x64xf32, #tpu.memory_space<vmem>>, %arg5: memref<32x256xbf16, #tpu.memory_space<vmem>>, %arg6: memref<1x256xf32, #tpu.memory_space<vmem>>, %arg7: memref<2x4x256xf32, #tpu.memory_space<vmem>>) attributes {dimension_semantics = [#tpu.dimension_semantics<parallel>], iteration_bounds = array<i64: 4>, scalar_prefetch = 0 : i64, scratch_operands = 0 : i64, tpu.core_type = #tpu.core_type<tc>, window_params = [{transform_indices = @transform_0, window_bounds = array<i64: 2, 4, 32>}, {transform_indices = @transform_1, window_bounds = array<i64: 2, 1, 32>}, {pipeline_mode = #tpu.pipeline_mode<synchronous>, transform_indices = @transform_2, window_bounds = array<i64: 32, 64>}, {pipeline_mode = #tpu.pipeline_mode<synchronous>, transform_indices = @transform_3, window_bounds = array<i64: 1, 64>}, {pipeline_mode = #tpu.pipeline_mode<synchronous>, transform_indices = @transform_4, window_bounds = array<i64: 32, 256>}, {pipeline_mode = #tpu.pipeline_mode<synchronous>, transform_indices = @transform_5, window_bounds = array<i64: 1, 256>}, {transform_indices = @transform_6, window_bounds = array<i64: 2, 4, 256>}]} {
    %c0 = arith.constant 0 : index
    %c0_0 = arith.constant 0 : index
    %c0_1 = arith.constant 0 : index
    %0 = vector.load %arg1[%c0, %c0_0, %c0_1] : memref<2x4x32xbf16, #tpu.memory_space<vmem>>, vector<2x4x32xbf16>
    %1 = arith.extf %0 : vector<2x4x32xbf16> to vector<2x4x32xf32>
    %c0_2 = arith.constant 0 : index
    %c0_3 = arith.constant 0 : index
    %c0_4 = arith.constant 0 : index
    %2 = vector.load %arg2[%c0_2, %c0_3, %c0_4] : memref<2x1x32xf32, #tpu.memory_space<vmem>>, vector<2x1x32xf32>
    %3 = vector.shape_cast %2 : vector<2x1x32xf32> to vector<2x32xf32>
    %4 = arith.negf %3 : vector<2x32xf32>
    %5 = math.exp %4 : vector<2x32xf32>
    %cst = arith.constant 1.000000e+00 : f32
    %6 = vector.broadcast %cst : f32 to vector<2x32xf32>
    %7 = arith.addf %6, %5 : vector<2x32xf32>
    %8 = arith.divf %6, %7 : vector<2x32xf32>
    %9 = arith.mulf %3, %8 : vector<2x32xf32>
    %10 = arith.truncf %9 : vector<2x32xf32> to vector<2x32xbf16>
    %c0_5 = arith.constant 0 : index
    %c0_6 = arith.constant 0 : index
    %11 = vector.load %arg3[%c0_5, %c0_6] : memref<32x64xbf16, #tpu.memory_space<vmem>>, vector<32x64xbf16>
    %cst_7 = arith.constant dense<0.000000e+00> : vector<2x64xf32>
    %12 = tpu.matmul %10, %11, %cst_7 {dimension_numbers = #tpu.dot_dimension_numbers<[1], [0], [0], [1], [0, 0, 1, 1], [], []>} : vector<2x32xbf16>, vector<32x64xbf16>, vector<2x64xf32> -> vector<2x64xf32>
    %c0_8 = arith.constant 0 : index
    %c0_9 = arith.constant 0 : index
    %13 = vector.load %arg4[%c0_8, %c0_9] : memref<1x64xf32, #tpu.memory_space<vmem>>, vector<1x64xf32>
    %14 = vector.broadcast %13 : vector<1x64xf32> to vector<2x64xf32>
    %15 = arith.addf %12, %14 : vector<2x64xf32>
    %16 = vector.shape_cast %15 : vector<2x64xf32> to vector<2x2x32xf32>
    %17 = vector.extract_strided_slice %16 {offsets = [0, 0, 0], sizes = [2, 1, 32], strides = [1, 1, 1]} : vector<2x2x32xf32> to vector<2x1x32xf32>
    %18 = vector.shape_cast %17 : vector<2x1x32xf32> to vector<2x32xf32>
    %19 = vector.shape_cast %18 : vector<2x32xf32> to vector<2x1x32xf32>
    %20 = vector.extract_strided_slice %16 {offsets = [0, 1, 0], sizes = [2, 1, 32], strides = [1, 1, 1]} : vector<2x2x32xf32> to vector<2x1x32xf32>
    %21 = vector.shape_cast %20 : vector<2x1x32xf32> to vector<2x32xf32>
    %22 = vector.shape_cast %21 : vector<2x32xf32> to vector<2x1x32xf32>
    %cst_10 = arith.constant dense<0.000000e+00> : vector<2x4xf32>
    %23 = vector.multi_reduction <add>, %1, %cst_10 [2] : vector<2x4x32xf32> to vector<2x4xf32>
    %24 = vector.shape_cast %23 : vector<2x4xf32> to vector<2x4x1xf32>
    %cst_11 = arith.constant 3.200000e+01 : f32
    %25 = vector.broadcast %cst_11 : f32 to vector<2x4x1xf32>
    %26 = arith.divf %24, %25 : vector<2x4x1xf32>
    %27 = vector.broadcast %26 : vector<2x4x1xf32> to vector<2x4x32xf32>
    %28 = arith.subf %1, %27 : vector<2x4x32xf32>
    %29 = arith.mulf %28, %28 : vector<2x4x32xf32>
    %cst_12 = arith.constant dense<0.000000e+00> : vector<2x4xf32>
    %30 = vector.multi_reduction <add>, %29, %cst_12 [2] : vector<2x4x32xf32> to vector<2x4xf32>
    %31 = vector.shape_cast %30 : vector<2x4xf32> to vector<2x4x1xf32>
    %cst_13 = arith.constant 3.200000e+01 : f32
    %32 = vector.broadcast %cst_13 : f32 to vector<2x4x1xf32>
    %33 = arith.divf %31, %32 : vector<2x4x1xf32>
    %34 = vector.broadcast %26 : vector<2x4x1xf32> to vector<2x4x32xf32>
    %35 = arith.subf %1, %34 : vector<2x4x32xf32>
    %cst_14 = arith.constant 9.99999997E-7 : f32
    %36 = vector.broadcast %cst_14 : f32 to vector<2x4x1xf32>
    %37 = arith.addf %33, %36 : vector<2x4x1xf32>
    %38 = math.rsqrt %37 : vector<2x4x1xf32>
    %39 = vector.broadcast %38 : vector<2x4x1xf32> to vector<2x4x32xf32>
    %40 = arith.mulf %35, %39 : vector<2x4x32xf32>
    %cst_15 = arith.constant 1.000000e+00 : f32
    %41 = vector.broadcast %cst_15 : f32 to vector<2x1x32xf32>
    %42 = arith.addf %41, %22 : vector<2x1x32xf32>
    %43 = vector.broadcast %42 : vector<2x1x32xf32> to vector<2x4x32xf32>
    %44 = arith.mulf %40, %43 : vector<2x4x32xf32>
    %45 = vector.broadcast %19 : vector<2x1x32xf32> to vector<2x4x32xf32>
    %46 = arith.addf %44, %45 : vector<2x4x32xf32>
    %47 = vector.shape_cast %46 : vector<2x4x32xf32> to vector<8x32xf32>
    %48 = arith.truncf %47 : vector<8x32xf32> to vector<8x32xbf16>
    %c0_16 = arith.constant 0 : index
    %c0_17 = arith.constant 0 : index
    %49 = vector.load %arg5[%c0_16, %c0_17] : memref<32x256xbf16, #tpu.memory_space<vmem>>, vector<32x256xbf16>
    %cst_18 = arith.constant dense<0.000000e+00> : vector<8x256xf32>
    %50 = tpu.matmul %48, %49, %cst_18 {dimension_numbers = #tpu.dot_dimension_numbers<[1], [0], [0], [1], [0, 0, 1, 1], [], []>} : vector<8x32xbf16>, vector<32x256xbf16>, vector<8x256xf32> -> vector<8x256xf32>
    %c0_19 = arith.constant 0 : index
    %c0_20 = arith.constant 0 : index
    %51 = vector.load %arg6[%c0_19, %c0_20] : memref<1x256xf32, #tpu.memory_space<vmem>>, vector<1x256xf32>
    %52 = vector.broadcast %51 : vector<1x256xf32> to vector<8x256xf32>
    %53 = arith.addf %50, %52 : vector<8x256xf32>
    %54 = vector.shape_cast %53 : vector<8x256xf32> to vector<2x4x256xf32>
    %c0_21 = arith.constant 0 : index
    %c0_22 = arith.constant 0 : index
    %c0_23 = arith.constant 0 : index
    %55 = vector.load %arg7[%c0_21, %c0_22, %c0_23] : memref<2x4x256xf32, #tpu.memory_space<vmem>>, vector<2x4x256xf32>
    tpu.vector_store %arg7[%c0_21, %c0_22, %c0_23], %54 {strides = array<i32>} : memref<2x4x256xf32, #tpu.memory_space<vmem>>, vector<2x4x256xf32>,
    return
  }
  func.func @transform_0(%arg0: i32) -> (i32, i32, i32) {
    %c0_i32 = arith.constant 0 : i32
    %c0_i32_0 = arith.constant 0 : i32
    %c0_i32_1 = arith.constant 0 : i32
    return %arg0, %c0_i32, %c0_i32_0 : i32, i32, i32
  }
  func.func @transform_1(%arg0: i32) -> (i32, i32, i32) {
    %c0_i32 = arith.constant 0 : i32
    %c0_i32_0 = arith.constant 0 : i32
    %c0_i32_1 = arith.constant 0 : i32
    return %arg0, %c0_i32, %c0_i32_0 : i32, i32, i32
  }
  func.func @transform_2(%arg0: i32) -> (i32, i32) {
    %c0_i32 = arith.constant 0 : i32
    %c0_i32_0 = arith.constant 0 : i32
    %c0_i32_1 = arith.constant 0 : i32
    return %c0_i32, %c0_i32_0 : i32, i32
  }
  func.func @transform_3(%arg0: i32) -> (i32, i32) {
    %c0_i32 = arith.constant 0 : i32
    %c0_i32_0 = arith.constant 0 : i32
    %c0_i32_1 = arith.constant 0 : i32
    return %c0_i32, %c0_i32_0 : i32, i32
  }
  func.func @transform_4(%arg0: i32) -> (i32, i32) {
    %c0_i32 = arith.constant 0 : i32
    %c0_i32_0 = arith.constant 0 : i32
    %c0_i32_1 = arith.constant 0 : i32
    return %c0_i32, %c0_i32_0 : i32, i32
  }
  func.func @transform_5(%arg0: i32) -> (i32, i32) {
    %c0_i32 = arith.constant 0 : i32
    %c0_i32_0 = arith.constant 0 : i32
    %c0_i32_1 = arith.constant 0 : i32
    return %c0_i32, %c0_i32_0 : i32, i32
  }
  func.func @transform_6(%arg0: i32) -> (i32, i32, i32) {
    %c0_i32 = arith.constant 0 : i32
    %c0_i32_0 = arith.constant 0 : i32
    %c0_i32_1 = arith.constant 0 : i32
    return %arg0, %c0_i32, %c0_i32_0 : i32, i32, i32
  }
}

</mosaic_0001>

<llo_original>
// kernel: forward.9
$region0: #{forward.9}
  #allocation0 [shape = 'u32[]', space=smem, size = 0x4, offset = 0x4, fixed_abs, tag = 'smem constant byte address 0x4 - core index']
  #allocation1 [shape = 'u32[72,128]{1,0:T(1,128)}', space=vmem, size = 0x9000, scoped, tag = 'internal scratch']
  %s0 = inlined_call_operand.vmem [shape: bf16[8,4,256], index: 0, kind: input, shape index: {}]
  %s1 = inlined_call_operand.vmem [shape: bf16[256,32], index: 1, kind: input, shape index: {}]
  %s2 = inlined_call_operand.vmem [shape: f32[1,32], index: 2, kind: input, shape index: {}]
  %s3 = inlined_call_operand.vmem [shape: f32[1,4,32], index: 3, kind: input, shape index: {}]
  %s4 = inlined_call_operand.vmem [shape: bf16[8,4,32], index: 4, kind: output, shape index: {}]
  %s5 = sld [smem:[#allocation0]]
  $region49: #{forward.9} parent=0
    _
  %s7 = ssub.s32 1, %s5
  %s8 = scalar_select 0, %s7, %s5
  loop: start=0, step=1, limit=6
  $region2: #{forward.9} parent=0 // loop_pre_header
    _
  $region3: #{forward.9} parent=0 // loop_header
    %s10 = sphi 0, %s14
    %p11 = scmp.ge.s32.totalorder %s10, 6
    %s20 = sphi 0, %s22
    %s23 = sphi 0, %s20
    %s24 = sphi 0, %s23
    %s40 = sphi 0, %s24
    %s44 = sphi 0, %s44
    %s46 = sphi 0, %s44
    %s47 = sphi 0, %s46
    %s61 = sphi 0, %s47
    %s65 = sphi 0, %s65
    %s67 = sphi 0, %s65
    %s68 = sphi 0, %s67
    %s82 = sphi 0, %s68
    %s86 = sphi 0, %s86
    %s88 = sphi 0, %s86
    %s89 = sphi 0, %s88
    %s103 = sphi 0, %s89
    %s109 = sphi 0, %s111
    %s112 = sphi 0, %s109
    %s113 = sphi 0, %s112
    %s129 = sphi 0, %s113
  $region4: #{forward.9} parent=0 // loop_header_branch
    %13 = sbr.rel (%p11) target = $region8
  $region5: #{forward.9} parent=0 // loop_body
    %s15 = ssub.s32 %s10, 1
    %s16 = ssub.s32 %s10, 2
    %s17 = sadd.s32 %s10, 1
    %s18 = ssub.s32 %s10, %s17
    %p19 = scmp.eq.s32.totalorder %s18, 0
    %s21 = sadd.s32 %s20, 1
    %s22 = scalar_select %p19, %s20, %s21
    %p25 = pneg %p19
    %p26 = scmp.eq.s32.totalorder %s10, 3
    %p27 = por %p25, %p26
    %p28 = scmp.ne.s32.totalorder %s20, %s23
    %p29 = scmp.eq.s32.totalorder %s10, 0
    %p30 = por %p28, %p29
    %p31 = scmp.ne.s32.totalorder %s20, %s23
    %p32 = scmp.eq.s32.totalorder %s15, 3
    %p33 = por %p31, %p32
    %p34 = scmp.ne.s32.totalorder %s23, %s24
    %p35 = scmp.eq.s32.totalorder %s15, 0
    %p36 = por %p34, %p35
    %p37 = scmp.ne.s32.totalorder %s23, %s24
    %p38 = scmp.eq.s32.totalorder %s16, 3
    %p39 = por %p37, %p38
    %p41 = scmp.ne.s32.totalorder %s24, %s40
    %p42 = scmp.eq.s32.totalorder %s16, 0
    %p43 = por %p41, %p42
    %s45 = sadd.s32 %s44, 1
    %p48 = scmp.eq.s32.totalorder %s10, 3
    %p49 = scmp.ne.s32.totalorder %s44, %s46
    %p50 = scmp.eq.s32.totalorder %s10, 0
    %p51 = por %p49, %p50
    %p52 = scmp.ne.s32.totalorder %s44, %s46
    %p53 = scmp.eq.s32.totalorder %s15, 3
    %p54 = por %p52, %p53
    %p55 = scmp.ne.s32.totalorder %s46, %s47
    %p56 = scmp.eq.s32.totalorder %s15, 0
    %p57 = por %p55, %p56
    %p58 = scmp.ne.s32.totalorder %s46, %s47
    %p59 = scmp.eq.s32.totalorder %s16, 3
    %p60 = por %p58, %p59
    %p62 = scmp.ne.s32.totalorder %s47, %s61
    %p63 = scmp.eq.s32.totalorder %s16, 0
    %p64 = por %p62, %p63
    %s66 = sadd.s32 %s65, 1
    %p69 = scmp.eq.s32.totalorder %s10, 3
    %p70 = scmp.ne.s32.totalorder %s65, %s67
    %p71 = scmp.eq.s32.totalorder %s10, 0
    %p72 = por %p70, %p71
    %p73 = scmp.ne.s32.totalorder %s65, %s67
    %p74 = scmp.eq.s32.totalorder %s15, 3
    %p75 = por %p73, %p74
    %p76 = scmp.ne.s32.totalorder %s67, %s68
    %p77 = scmp.eq.s32.totalorder %s15, 0
    %p78 = por %p76, %p77
    %p79 = scmp.ne.s32.totalorder %s67, %s68
    %p80 = scmp.eq.s32.totalorder %s16, 3
    %p81 = por %p79, %p80
    %p83 = scmp.ne.s32.totalorder %s68, %s82
    %p84 = scmp.eq.s32.totalorder %s16, 0
    %p85 = por %p83, %p84
    %s87 = sadd.s32 %s86, 1
    %p90 = scmp.eq.s32.totalorder %s10, 3
    %p91 = scmp.ne.s32.totalorder %s86, %s88
    %p92 = scmp.eq.s32.totalorder %s10, 0
    %p93 = por %p91, %p92
    %p94 = scmp.ne.s32.totalorder %s86, %s88
    %p95 = scmp.eq.s32.totalorder %s15, 3
    %p96 = por %p94, %p95
    %p97 = scmp.ne.s32.totalorder %s88, %s89
    %p98 = scmp.eq.s32.totalorder %s15, 0
    %p99 = por %p97, %p98
    %p100 = scmp.ne.s32.totalorder %s88, %s89
    %p101 = scmp.eq.s32.totalorder %s16, 3
    %p102 = por %p100, %p101
    %p104 = scmp.ne.s32.totalorder %s89, %s103
    %p105 = scmp.eq.s32.totalorder %s16, 0
    %p106 = por %p104, %p105
    %s107 = ssub.s32 %s10, %s17
    %p108 = scmp.eq.s32.totalorder %s107, 0
    %s110 = sadd.s32 %s109, 1
    %s111 = scalar_select %p108, %s109, %s110
    %p114 = pneg %p108
    %p115 = scmp.eq.s32.totalorder %s10, 3
    %p116 = por %p114, %p115
    %p117 = scmp.ne.s32.totalorder %s109, %s112
    %p118 = scmp.eq.s32.totalorder %s10, 0
    %p119 = por %p117, %p118
    %p120 = scmp.ne.s32.totalorder %s109, %s112
    %p121 = scmp.eq.s32.totalorder %s15, 3
    %p122 = por %p120, %p121
    %p123 = scmp.ne.s32.totalorder %s112, %s113
    %p124 = scmp.eq.s32.totalorder %s15, 0
    %p125 = por %p123, %p124
    %p126 = scmp.ne.s32.totalorder %s112, %s113
    %p127 = scmp.eq.s32.totalorder %s16, 3
    %p128 = por %p126, %p127
    %p130 = scmp.ne.s32.totalorder %s113, %s129
    %p131 = scmp.eq.s32.totalorder %s16, 0
    %p132 = por %p130, %p131
    %p133 = scmp.le.s32.totalorder 1, %s10
    %p134 = scmp.lt.s32.totalorder %s10, 5
    %p135 = pnand %p133, %p134
    %p136 = pneg %p135
    // Predicated region
    $region9: #{forward.9} parent=5 // pred_check
      _
    $region10: #{forward.9} parent=5 // pred_check_branch
      %138 = sbr.rel (%p135) target = $region12
    $region11: #{forward.9} parent=5 // pred_region
      %s139 = ssub.s32 %s10, 1
      // Predicated region
      $region13: #{forward.9} parent=11 // pred_check
        %p140 = pneg %p57
      $region14: #{forward.9} parent=11 // pred_check_branch
        %142 = sbr.rel (%p140) target = $region16
      $region15: #{forward.9} parent=11 // pred_region
        _
      $region16: #{forward.9} parent=11 // pred_fallthru
        _
      // Predicated region
      $region17: #{forward.9} parent=11 // pred_check
        %p143 = pneg %p78
      $region18: #{forward.9} parent=11 // pred_check_branch
        %145 = sbr.rel (%p143) target = $region20
      $region19: #{forward.9} parent=11 // pred_region
        _
      $region20: #{forward.9} parent=11 // pred_fallthru
        _
      // Predicated region
      $region21: #{forward.9} parent=11 // pred_check
        %p146 = pneg %p99
      $region22: #{forward.9} parent=11 // pred_check_branch
        %148 = sbr.rel (%p146) target = $region24
      $region23: #{forward.9} parent=11 // pred_region
        _
      $region24: #{forward.9} parent=11 // pred_fallthru
        _
    $region12: #{forward.9} parent=5 // pred_fallthru
      _
    %p149 = scmp.lt.s32.totalorder %s10, 4
    // Predicated region
    $region25: #{forward.9} parent=5 // pred_check
      %p150 = pneg %p149
    $region26: #{forward.9} parent=5 // pred_check_branch
      %152 = sbr.rel (%p150) target = $region28
    $region27: #{forward.9} parent=5 // pred_region
      // Predicated region
      $region29: #{forward.9} parent=27 // pred_check
        %p153 = pneg %p30
      $region30: #{forward.9} parent=27 // pred_check_branch
        %155 = sbr.rel (%p153) target = $region32
      $region31: #{forward.9} parent=27 // pred_region
        %s156 = smul.u32 2, %s10
        %p157 = scmp.lt.s32.totalorder %s156, 7
        %s158 = scalar_select %p157, %s156, 7
        %s159 = smul.addr %s158, 2
        %s160 = smul.addr %s159, 2
        %s161 = scalar_lea.vmem %s0, %s160
        %s162 = smul.u32 2, %s10
      $region32: #{forward.9} parent=27 // pred_fallthru
        _
    $region28: #{forward.9} parent=5 // pred_fallthru
      _
    %p163 = scmp.le.s32.totalorder 1, %s10
    %p164 = scmp.lt.s32.totalorder %s10, 5
    %p165 = pnand %p163, %p164
    %p166 = pneg %p165
    // Predicated region
    $region33: #{forward.9} parent=5 // pred_check
      _
    $region34: #{forward.9} parent=5 // pred_check_branch
      %168 = sbr.rel (%p165) target = $region36
    $region35: #{forward.9} parent=5 // pred_region
      %s169 = ssub.s32 %s10, 1
      %s170 = smul.u32 2, %s15
      %p171 = scmp.lt.s32.totalorder %s170, 7
      %s172 = scalar_select %p171, %s170, 7
      %s173 = smul.addr %s172, 2
      %s174 = smul.addr %s173, 2
      %s175 = scalar_lea.vmem %s0, %s174
      %p176 = pneg %p36
      %p177 = pneg %p33
      %p178 = pneg %p57
      %p179 = pneg %p54
      %p180 = pneg %p78
      %p181 = pneg %p75
      %p182 = pneg %p99
      %p183 = pneg %p96
      %p184 = pneg %p125
      %p185 = pneg %p122
      %s186 = smul.u32 2, %s15
      %p187 = scmp.lt.s32.totalorder %s186, 7
      %s188 = scalar_select %p187, %s186, 7
      %s189 = smul.addr %s188, 2
      %s190 = scalar_lea.vmem %s4, %s189
      %s191 = smul.u32 2, %s15
      %p192 = scmp.lt.s32.totalorder %s191, 7
      %s193 = scalar_select %p192, %s191, 7
      %s194 = smul.addr %s193, 2
      %s195 = smul.addr %s194, 2
      %s196 = scalar_lea.vmem %s0, %s195
      %s197 = smul.u32 2, %s15
      %s198 = smul.u32 2, %s15
      %p199 = scmp.lt.s32.totalorder %s198, 7
      %s200 = scalar_select %p199, %s198, 7
      %s201 = smul.addr %s200, 2
      %s202 = scalar_lea.vmem %s4, %s201
      %s203 = smul.u32 2, %s15
      %v204 = vld [vmem:[%s196] sm:$0xf]
      %v205 = vld [vmem:[%s196 + $0x4] sm:$0xf]
      %v206 = vld [vmem:[%s1] sm:$0xf]
      %v207 = vld [vmem:[%s1 + $0x4] sm:$0xf]
      %v208 = vld [vmem:[%s1 + $0x8] sm:$0xf]
      %v209 = vld [vmem:[%s1 + $0xc] sm:$0xf]
      %v210 = vld [vmem:[%s1 + $0x10] sm:$0xf]
      %v211 = vld [vmem:[%s1 + $0x14] sm:$0xf]
      %v212 = vld [vmem:[%s1 + $0x18] sm:$0xf]
      %v213 = vld [vmem:[%s1 + $0x1c] sm:$0xf]
      %v214 = vld [vmem:[%s1 + $0x20] sm:$0xf]
      %v215 = vld [vmem:[%s1 + $0x24] sm:$0xf]
      %v216 = vld [vmem:[%s1 + $0x28] sm:$0xf]
      %v217 = vld [vmem:[%s1 + $0x2c] sm:$0xf]
      %v218 = vld [vmem:[%s1 + $0x30] sm:$0xf]
      %v219 = vld [vmem:[%s1 + $0x34] sm:$0xf]
      %v220 = vld [vmem:[%s1 + $0x38] sm:$0xf]
      %v221 = vld [vmem:[%s1 + $0x3c] sm:$0xf]
      %v222 = vld [vmem:[%s1 + $0x40] sm:$0xf]
      %v223 = vld [vmem:[%s1 + $0x44] sm:$0xf]
      %v224 = vld [vmem:[%s1 + $0x48] sm:$0xf]
      %v225 = vld [vmem:[%s1 + $0x4c] sm:$0xf]
      %v226 = vld [vmem:[%s1 + $0x50] sm:$0xf]
      %v227 = vld [vmem:[%s1 + $0x54] sm:$0xf]
      %v228 = vld [vmem:[%s1 + $0x58] sm:$0xf]
      %v229 = vld [vmem:[%s1 + $0x5c] sm:$0xf]
      %v230 = vld [vmem:[%s1 + $0x60] sm:$0xf]
      %v231 = vld [vmem:[%s1 + $0x64] sm:$0xf]
      %v232 = vld [vmem:[%s1 + $0x68] sm:$0xf]
      %v233 = vld [vmem:[%s1 + $0x6c] sm:$0xf]
      %v234 = vld [vmem:[%s1 + $0x70] sm:$0xf]
      %v235 = vld [vmem:[%s1 + $0x74] sm:$0xf]
      %v236 = vld [vmem:[%s1 + $0x78] sm:$0xf]
      %v237 = vld [vmem:[%s1 + $0x7c] sm:$0xf]
      %v238 = vld [vmem:[%s2] sm:$0x1]
      %v240 = vperm.slane %v238, 0
      %243 = vst [vmem:[#allocation1] ss:$4 sm:$0xff] %v204
      %s245 = scalar_lea.vmem [#allocation1], 1
      %246 = vst [vmem:[%s245] ss:$4 sm:$0xff] %v205
      %v247 = vld.sshfl [vmem:[#allocation1] sm:$0xff pattern:$0x73625140]
      %v248 = vld.sshfl [vmem:[#allocation1 + $0x8] sm:$0xff pattern:$0x73625140]
      %v283 = vunpack.c.l.b16 %v206
      %v284 = vunpack.c.l.b16 %v207
      %v285 = vunpack.c.l.b16 %v208
      %v286 = vunpack.c.l.b16 %v209
      %v287 = vunpack.c.l.b16 %v210
      %v288 = vunpack.c.l.b16 %v211
      %v289 = vunpack.c.l.b16 %v212
      %v290 = vunpack.c.l.b16 %v213
      %v291 = vunpack.c.l.b16 %v214
      %v292 = vunpack.c.l.b16 %v215
      %v293 = vunpack.c.l.b16 %v216
      %v294 = vunpack.c.l.b16 %v217
      %v295 = vunpack.c.l.b16 %v218
      %v296 = vunpack.c.l.b16 %v219
      %v297 = vunpack.c.l.b16 %v220
      %v298 = vunpack.c.l.b16 %v221
      %v299 = vunpack.c.l.b16 %v222
      %v300 = vunpack.c.l.b16 %v223
      %v301 = vunpack.c.l.b16 %v224
      %v302 = vunpack.c.l.b16 %v225
      %v303 = vunpack.c.l.b16 %v226
      %v304 = vunpack.c.l.b16 %v227
      %v305 = vunpack.c.l.b16 %v228
      %v306 = vunpack.c.l.b16 %v229
      %v307 = vunpack.c.l.b16 %v230
      %v308 = vunpack.c.l.b16 %v231
      %v309 = vunpack.c.l.b16 %v232
      %v310 = vunpack.c.l.b16 %v233
      %v311 = vunpack.c.l.b16 %v234
      %v312 = vunpack.c.l.b16 %v235
      %v313 = vunpack.c.l.b16 %v236
      %v314 = vunpack.c.l.b16 %v237
      %v315 = vpack.c.b16 %v284, %v283
      %v316 = vpack.c.b16 %v286, %v285
      %v317 = vpack.c.b16 %v288, %v287
      %v318 = vpack.c.b16 %v290, %v289
      %v319 = vpack.c.b16 %v292, %v291
      %v320 = vpack.c.b16 %v294, %v293
      %v321 = vpack.c.b16 %v296, %v295
      %v322 = vpack.c.b16 %v298, %v297
      %v323 = vpack.c.b16 %v300, %v299
      %v324 = vpack.c.b16 %v302, %v301
      %v325 = vpack.c.b16 %v304, %v303
      %v326 = vpack.c.b16 %v306, %v305
      %v327 = vpack.c.b16 %v308, %v307
      %v328 = vpack.c.b16 %v310, %v309
      %v329 = vpack.c.b16 %v312, %v311
      %v330 = vpack.c.b16 %v314, %v313
      %347 = vmatpush.bf16.msra.mxu0 %v322
      %348 = vmatpush.bf16.msra.mxu0 %v321
      %349 = vmatpush.bf16.msra.mxu0 %v320
      %350 = vmatpush.bf16.msra.mxu0 %v319
      %351 = vmatpush.bf16.msra.mxu0 %v318
      %352 = vmatpush.bf16.msra.mxu0 %v317
      %353 = vmatpush.bf16.msra.mxu0 %v316
      %354 = vmatpush.bf16.msra.mxu0 %v315
      %355 = vmatmul.bf16.gmra.mxu0 %v247
      %v356 = vpop.f32.mrf.mxu0
      %v357 = vadd.f32 %v240, %v356
      %v358 = vpop.f32.mrf.mxu0
      %359 = vdwg.mxu0
      %360 = vmatpush.bf16.msra.mxu0 %v330
      %361 = vmatpush.bf16.msra.mxu0 %v329
      %362 = vmatpush.bf16.msra.mxu0 %v328
      %363 = vmatpush.bf16.msra.mxu0 %v327
      %364 = vmatpush.bf16.msra.mxu0 %v326
      %365 = vmatpush.bf16.msra.mxu0 %v325
      %366 = vmatpush.bf16.msra.mxu0 %v324
      %367 = vmatpush.bf16.msra.mxu0 %v323
      %368 = vmatmul.bf16.gmra.mxu0 %v248
      %v369 = vpop.f32.mrf.mxu0
      %v370 = vadd.f32 %v357, %v369
      %v371 = vpop.f32.mrf.mxu0
      %372 = vdwg.mxu0
      %v374 = vrot.slane %v370, 4
      %v376 = vld [vmem:[%s3] sm:$0xf]
      %v377 = vadd.f32 %v370, %v376
      %v378 = vadd.f32 %v374, %v376
      %v379 = vpack.c.bf16 %v377, %v377
      %v380 = vpack.c.bf16 %v378, %v378
      %vm381 = vcmask 254976
      %382 = vst.msk [vmem:[%s202] sm:$0x3] %vm381, %v379
      %383 = vst.msk [vmem:[%s202 + $0x2] sm:$0x3] %vm381, %v380
      %s384 = smul.u32 2, %s15
      %p385 = scmp.lt.s32.totalorder %s384, 7
      %s386 = scalar_select %p385, %s384, 7
      %s387 = smul.addr %s386, 2
      %s388 = scalar_lea.vmem %s4, %s387
      // Predicated region
      $region37: #{forward.9} parent=35 // pred_check
        %p389 = pneg %p122
      $region38: #{forward.9} parent=35 // pred_check_branch
        %391 = sbr.rel (%p389) target = $region40
      $region39: #{forward.9} parent=35 // pred_region
        %s392 = smul.u32 2, %s15
      $region40: #{forward.9} parent=35 // pred_fallthru
        _
    $region36: #{forward.9} parent=5 // pred_fallthru
      _
    %p393 = scmp.le.s32.totalorder 2, %s10
    // Predicated region
    $region41: #{forward.9} parent=5 // pred_check
      %p394 = pneg %p393
    $region42: #{forward.9} parent=5 // pred_check_branch
      %396 = sbr.rel (%p394) target = $region44
    $region43: #{forward.9} parent=5 // pred_region
      %s397 = ssub.s32 %s10, 2
      // Predicated region
      $region45: #{forward.9} parent=43 // pred_check
        %p398 = pneg %p128
      $region46: #{forward.9} parent=43 // pred_check_branch
        %400 = sbr.rel (%p398) target = $region48
      $region47: #{forward.9} parent=43 // pred_region
        %s401 = smul.u32 2, %s16
        %p402 = scmp.lt.s32.totalorder %s401, 7
        %s403 = scalar_select %p402, %s401, 7
        %s404 = smul.addr %s403, 2
        %s405 = scalar_lea.vmem %s4, %s404
      $region48: #{forward.9} parent=43 // pred_fallthru
        _
    $region44: #{forward.9} parent=5 // pred_fallthru
      _
  $region6: #{forward.9} parent=0 // loop_footer
    %s14 = sadd.s32 1, %s10
  $region7: #{forward.9} parent=0 // loop_footer_branch
    %9 = sbr.rel target = $region3
  $region8: #{forward.9} parent=0 // loop_exit
    _

// kernel: forward.10
$region0: #{forward.10}
  #allocation0 [shape = 'u32[]', space=smem, size = 0x4, offset = 0x4, fixed_abs, tag = 'smem constant byte address 0x4 - core index']
  #allocation1 [shape = 'u32[72,128]{1,0:T(1,128)}', space=vmem, size = 0x9000, scoped, tag = 'internal scratch']
  %s0 = inlined_call_operand.vmem [shape: f32[2,256], index: 0, kind: input, shape index: {}]
  %s1 = inlined_call_operand.vmem [shape: f32[8,7], index: 1, kind: input, shape index: {}]
  %s2 = inlined_call_operand.vmem [shape: bf16[256,32], index: 2, kind: input, shape index: {}]
  %s3 = inlined_call_operand.vmem [shape: f32[1,32], index: 3, kind: input, shape index: {}]
  %s4 = inlined_call_operand.vmem [shape: bf16[32,32], index: 4, kind: input, shape index: {}]
  %s5 = inlined_call_operand.vmem [shape: f32[1,32], index: 5, kind: input, shape index: {}]
  %s6 = inlined_call_operand.vmem [shape: bf16[7,32], index: 6, kind: input, shape index: {}]
  %s7 = inlined_call_operand.vmem [shape: f32[1,32], index: 7, kind: input, shape index: {}]
  %s8 = inlined_call_operand.vmem [shape: bf16[32,32], index: 8, kind: input, shape index: {}]
  %s9 = inlined_call_operand.vmem [shape: f32[1,32], index: 9, kind: input, shape index: {}]
  %s10 = inlined_call_operand.vmem [shape: f32[2,32], index: 10, kind: output, shape index: {0}]
  %s11 = inlined_call_operand.vmem [shape: f32[8,32], index: 11, kind: output, shape index: {1}]
  %12 = xla_tuple %s10, %s11
  %s13 = sld [smem:[#allocation0]]
  $region58: #{forward.10} parent=0
    _
  %s15 = ssub.s32 1, %s13
  %s16 = scalar_select 0, %s15, %s13
  // Predicated region
  $region2: #{forward.10} parent=0 // pred_check
    _
  $region3: #{forward.10} parent=0 // pred_check_branch
    %18 = sbr.rel (0) target = $region5
  $region4: #{forward.10} parent=0 // pred_region
    _
  $region5: #{forward.10} parent=0 // pred_fallthru
    _
  // Predicated region
  $region6: #{forward.10} parent=0 // pred_check
    _
  $region7: #{forward.10} parent=0 // pred_check_branch
    %20 = sbr.rel (0) target = $region9
  $region8: #{forward.10} parent=0 // pred_region
    _
  $region9: #{forward.10} parent=0 // pred_fallthru
    _
  // Predicated region
  $region10: #{forward.10} parent=0 // pred_check
    _
  $region11: #{forward.10} parent=0 // pred_check_branch
    %22 = sbr.rel (0) target = $region13
  $region12: #{forward.10} parent=0 // pred_region
    _
  $region13: #{forward.10} parent=0 // pred_fallthru
    _
  // Predicated region
  $region14: #{forward.10} parent=0 // pred_check
    _
  $region15: #{forward.10} parent=0 // pred_check_branch
    %24 = sbr.rel (0) target = $region17
  $region16: #{forward.10} parent=0 // pred_region
    _
  $region17: #{forward.10} parent=0 // pred_fallthru
    _
  // Predicated region
  $region18: #{forward.10} parent=0 // pred_check
    _
  $region19: #{forward.10} parent=0 // pred_check_branch
    %26 = sbr.rel (0) target = $region21
  $region20: #{forward.10} parent=0 // pred_region
    _
  $region21: #{forward.10} parent=0 // pred_fallthru
    _
  // Predicated region
  $region22: #{forward.10} parent=0 // pred_check
    _
  $region23: #{forward.10} parent=0 // pred_check_branch
    %28 = sbr.rel (0) target = $region25
  $region24: #{forward.10} parent=0 // pred_region
    _
  $region25: #{forward.10} parent=0 // pred_fallthru
    _
  // Predicated region
  $region26: #{forward.10} parent=0 // pred_check
    _
  $region27: #{forward.10} parent=0 // pred_check_branch
    %30 = sbr.rel (0) target = $region29
  $region28: #{forward.10} parent=0 // pred_region
    _
  $region29: #{forward.10} parent=0 // pred_fallthru
    _
  // Predicated region
  $region30: #{forward.10} parent=0 // pred_check
    _
  $region31: #{forward.10} parent=0 // pred_check_branch
    %32 = sbr.rel (0) target = $region33
  $region32: #{forward.10} parent=0 // pred_region
    _
  $region33: #{forward.10} parent=0 // pred_fallthru
    _
  // Predicated region
  $region34: #{forward.10} parent=0 // pred_check
    _
  $region35: #{forward.10} parent=0 // pred_check_branch
    %34 = sbr.rel (0) target = $region37
  $region36: #{forward.10} parent=0 // pred_region
    _
  $region37: #{forward.10} parent=0 // pred_fallthru
    _
  // Predicated region
  $region38: #{forward.10} parent=0 // pred_check
    _
  $region39: #{forward.10} parent=0 // pred_check_branch
    %36 = sbr.rel (0) target = $region41
  $region40: #{forward.10} parent=0 // pred_region
    _
  $region41: #{forward.10} parent=0 // pred_fallthru
    _
  %v38 = vld [vmem:[%s0] sm:$0xf]
  %40 = vst [vmem:[#allocation1] ss:$4 sm:$0xff] %v38
  %v41 = vld.sshfl [vmem:[#allocation1] sm:$0xff pattern:$0x73625140]
  %v42 = vld.sshfl [vmem:[#allocation1 + $0x8] sm:$0xff pattern:$0x73625140]
  %v45 = vpack.c.bf16 %v41, %v41
  %v46 = vpack.c.bf16 %v42, %v42
  %v47 = vld [vmem:[%s2] sm:$0xf]
  %v48 = vld [vmem:[%s2 + $0x4] sm:$0xf]
  %v49 = vld [vmem:[%s2 + $0x8] sm:$0xf]
  %v50 = vld [vmem:[%s2 + $0xc] sm:$0xf]
  %v51 = vld [vmem:[%s2 + $0x10] sm:$0xf]
  %v52 = vld [vmem:[%s2 + $0x14] sm:$0xf]
  %v53 = vld [vmem:[%s2 + $0x18] sm:$0xf]
  %v54 = vld [vmem:[%s2 + $0x1c] sm:$0xf]
  %v55 = vld [vmem:[%s2 + $0x20] sm:$0xf]
  %v56 = vld [vmem:[%s2 + $0x24] sm:$0xf]
  %v57 = vld [vmem:[%s2 + $0x28] sm:$0xf]
  %v58 = vld [vmem:[%s2 + $0x2c] sm:$0xf]
  %v59 = vld [vmem:[%s2 + $0x30] sm:$0xf]
  %v60 = vld [vmem:[%s2 + $0x34] sm:$0xf]
  %v61 = vld [vmem:[%s2 + $0x38] sm:$0xf]
  %v62 = vld [vmem:[%s2 + $0x3c] sm:$0xf]
  %v63 = vld [vmem:[%s2 + $0x40] sm:$0xf]
  %v64 = vld [vmem:[%s2 + $0x44] sm:$0xf]
  %v65 = vld [vmem:[%s2 + $0x48] sm:$0xf]
  %v66 = vld [vmem:[%s2 + $0x4c] sm:$0xf]
  %v67 = vld [vmem:[%s2 + $0x50] sm:$0xf]
  %v68 = vld [vmem:[%s2 + $0x54] sm:$0xf]
  %v69 = vld [vmem:[%s2 + $0x58] sm:$0xf]
  %v70 = vld [vmem:[%s2 + $0x5c] sm:$0xf]
  %v71 = vld [vmem:[%s2 + $0x60] sm:$0xf]
  %v72 = vld [vmem:[%s2 + $0x64] sm:$0xf]
  %v73 = vld [vmem:[%s2 + $0x68] sm:$0xf]
  %v74 = vld [vmem:[%s2 + $0x6c] sm:$0xf]
  %v75 = vld [vmem:[%s2 + $0x70] sm:$0xf]
  %v76 = vld [vmem:[%s2 + $0x74] sm:$0xf]
  %v77 = vld [vmem:[%s2 + $0x78] sm:$0xf]
  %v78 = vld [vmem:[%s2 + $0x7c] sm:$0xf]
  %v79 = vld [vmem:[%s3] sm:$0x1]
  %v81 = vperm.slane %v79, 0
  %v115 = vunpack.c.l.b16 %v47
  %v116 = vunpack.c.l.b16 %v48
  %v117 = vunpack.c.l.b16 %v49
  %v118 = vunpack.c.l.b16 %v50
  %v119 = vunpack.c.l.b16 %v51
  %v120 = vunpack.c.l.b16 %v52
  %v121 = vunpack.c.l.b16 %v53
  %v122 = vunpack.c.l.b16 %v54
  %v123 = vunpack.c.l.b16 %v55
  %v124 = vunpack.c.l.b16 %v56
  %v125 = vunpack.c.l.b16 %v57
  %v126 = vunpack.c.l.b16 %v58
  %v127 = vunpack.c.l.b16 %v59
  %v128 = vunpack.c.l.b16 %v60
  %v129 = vunpack.c.l.b16 %v61
  %v130 = vunpack.c.l.b16 %v62
  %v131 = vunpack.c.l.b16 %v63
  %v132 = vunpack.c.l.b16 %v64
  %v133 = vunpack.c.l.b16 %v65
  %v134 = vunpack.c.l.b16 %v66
  %v135 = vunpack.c.l.b16 %v67
  %v136 = vunpack.c.l.b16 %v68
  %v137 = vunpack.c.l.b16 %v69
  %v138 = vunpack.c.l.b16 %v70
  %v139 = vunpack.c.l.b16 %v71
  %v140 = vunpack.c.l.b16 %v72
  %v141 = vunpack.c.l.b16 %v73
  %v142 = vunpack.c.l.b16 %v74
  %v143 = vunpack.c.l.b16 %v75
  %v144 = vunpack.c.l.b16 %v76
  %v145 = vunpack.c.l.b16 %v77
  %v146 = vunpack.c.l.b16 %v78
  %v147 = vpack.c.b16 %v116, %v115
  %v148 = vpack.c.b16 %v118, %v117
  %v149 = vpack.c.b16 %v120, %v119
  %v150 = vpack.c.b16 %v122, %v121
  %v151 = vpack.c.b16 %v124, %v123
  %v152 = vpack.c.b16 %v126, %v125
  %v153 = vpack.c.b16 %v128, %v127
  %v154 = vpack.c.b16 %v130, %v129
  %v155 = vpack.c.b16 %v132, %v131
  %v156 = vpack.c.b16 %v134, %v133
  %v157 = vpack.c.b16 %v136, %v135
  %v158 = vpack.c.b16 %v138, %v137
  %v159 = vpack.c.b16 %v140, %v139
  %v160 = vpack.c.b16 %v142, %v141
  %v161 = vpack.c.b16 %v144, %v143
  %v162 = vpack.c.b16 %v146, %v145
  %179 = vmatpush.bf16.msra.mxu0 %v154
  %180 = vmatpush.bf16.msra.mxu0 %v153
  %181 = vmatpush.bf16.msra.mxu0 %v152
  %182 = vmatpush.bf16.msra.mxu0 %v151
  %183 = vmatpush.bf16.msra.mxu0 %v150
  %184 = vmatpush.bf16.msra.mxu0 %v149
  %185 = vmatpush.bf16.msra.mxu0 %v148
  %186 = vmatpush.bf16.msra.mxu0 %v147
  %187 = vmatmul.bf16.gmra.mxu0 %v45
  %v188 = vpop.f32.mrf.mxu0
  %v189 = vadd.f32 %v81, %v188
  %v190 = vpop.f32.mrf.mxu0
  %191 = vdwg.mxu0
  %192 = vmatpush.bf16.msra.mxu0 %v162
  %193 = vmatpush.bf16.msra.mxu0 %v161
  %194 = vmatpush.bf16.msra.mxu0 %v160
  %195 = vmatpush.bf16.msra.mxu0 %v159
  %196 = vmatpush.bf16.msra.mxu0 %v158
  %197 = vmatpush.bf16.msra.mxu0 %v157
  %198 = vmatpush.bf16.msra.mxu0 %v156
  %199 = vmatpush.bf16.msra.mxu0 %v155
  %200 = vmatmul.bf16.gmra.mxu0 %v46
  %v201 = vpop.f32.mrf.mxu0
  %v202 = vadd.f32 %v189, %v201
  %v203 = vpop.f32.mrf.mxu0
  %204 = vdwg.mxu0
  %v205 = vxor.u32 %v202, 2147483648
  %v206 = vmul.f32 %v205, 1.442695
  %v207 = vpow.pop %v206
  %v208 = vadd.f32 %v207, 1.0
  %v209 = vrcp.pop %v208
  %v210 = vmul.f32 %v208, %v209
  %v211 = vsub.f32 1.0, %v210
  %v212 = vmul.f32 %v209, %v211
  %v213 = vadd.f32 %v209, %v212
  %vm214 = vweird.f32 %v208
  %vm215 = vweird.f32 %v209
  %vm216 = vmor %vm214, %vm215
  %v217 = vsel %vm216, %v209, %v213
  %v218 = vand.u32 2147483647, %v208
  %vm219 = vcmp.eq.f32.partialorder %v218, 8.507059e+37
  %v220 = vand.u32 %v208, 2147483648
  %v221 = vor.u32 1.1754944e-38, %v220
  %v222 = vsel %vm219, %v221, %v217
  %v223 = vmul.f32 1.0, %v222
  %v224 = vmul.f32 %v202, %v223
  %v225 = vpack.c.bf16 %v224, %v224
  %v226 = vld [vmem:[%s4] sm:$0xf]
  %v227 = vld [vmem:[%s4 + $0x4] sm:$0xf]
  %v228 = vld [vmem:[%s4 + $0x8] sm:$0xf]
  %v229 = vld [vmem:[%s4 + $0xc] sm:$0xf]
  %v230 = vld [vmem:[%s5] sm:$0x1]
  %v232 = vperm.slane %v230, 0
  %v238 = vunpack.c.l.b16 %v226
  %v239 = vunpack.c.l.b16 %v227
  %v240 = vunpack.c.l.b16 %v228
  %v241 = vunpack.c.l.b16 %v229
  %v242 = vpack.c.b16 %v239, %v238
  %v243 = vpack.c.b16 %v241, %v240
  %vm246 = vcmask 261120
  %v248 = vsel %vm246, %v225, 0
  %250 = vmatpush.bf16.msra.mxu0 0
  %251 = vmatpush.bf16.msra.mxu0 0
  %252 = vmatpush.bf16.msra.mxu0 0
  %253 = vmatpush.bf16.msra.mxu0 0
  %254 = vmatpush.bf16.msra.mxu0 0
  %255 = vmatpush.bf16.msra.mxu0 0
  %256 = vmatpush.bf16.msra.mxu0 %v243
  %257 = vmatpush.bf16.msra.mxu0 %v242
  %258 = vmatmul.bf16.gmra.mxu0 %v248
  %v259 = vpop.f32.mrf.mxu0
  %v260 = vadd.f32 %v232, %v259
  %v261 = vpop.f32.mrf.mxu0
  %262 = vdwg.mxu0
  %vm263 = vcmask 254976
  %264 = vst.msk [vmem:[%s10] sm:$0x3] %vm263, %v260
  %v265 = vld [vmem:[%s1] sm:$0xff]
  %v266 = vpack.c.bf16 %v265, %v265
  %v267 = vld [vmem:[%s6] sm:$0xf]
  %v268 = vld [vmem:[%s7] sm:$0x1]
  %v270 = vperm.slane %v268, 0
  %vm272 = vcmask 56320
  %v274 = vsel %vm272, %v266, 0
  %vm276 = vcmask 1042432
  %vm277 = vcmask 1043456
  %v278 = vsel %vm276, 4294967295, 65535
  %v279 = vsel %vm277, %v278, 0
  %v281 = vand.u32 %v267, %v279
  %283 = vmatpush.bf16.msra.mxu0 0
  %284 = vmatpush.bf16.msra.mxu0 0
  %285 = vmatpush.bf16.msra.mxu0 0
  %286 = vmatpush.bf16.msra.mxu0 0
  %287 = vmatpush.bf16.msra.mxu0 0
  %288 = vmatpush.bf16.msra.mxu0 0
  %289 = vmatpush.bf16.msra.mxu0 0
  %290 = vmatpush.bf16.msra.mxu0 %v281
  %291 = vmatmul.bf16.gmra.mxu0 %v274
  %v292 = vpop.f32.mrf.mxu0
  %v293 = vadd.f32 %v270, %v292
  %v294 = vpop.f32.mrf.mxu0
  %295 = vdwg.mxu0
  %v296 = vxor.u32 %v293, 2147483648
  %v297 = vmul.f32 %v296, 1.442695
  %v298 = vpow.pop %v297
  %v299 = vadd.f32 %v298, 1.0
  %v300 = vrcp.pop %v299
  %v301 = vmul.f32 %v299, %v300
  %v302 = vsub.f32 1.0, %v301
  %v303 = vmul.f32 %v300, %v302
  %v304 = vadd.f32 %v300, %v303
  %vm305 = vweird.f32 %v299
  %vm306 = vweird.f32 %v300
  %vm307 = vmor %vm305, %vm306
  %v308 = vsel %vm307, %v300, %v304
  %v309 = vand.u32 2147483647, %v299
  %vm310 = vcmp.eq.f32.partialorder %v309, 8.507059e+37
  %v311 = vand.u32 %v299, 2147483648
  %v312 = vor.u32 1.1754944e-38, %v311
  %v313 = vsel %vm310, %v312, %v308
  %v314 = vmul.f32 1.0, %v313
  %v315 = vmul.f32 %v293, %v314
  %v316 = vpack.c.bf16 %v315, %v315
  %v317 = vld [vmem:[%s8] sm:$0xf]
  %v318 = vld [vmem:[%s8 + $0x4] sm:$0xf]
  %v319 = vld [vmem:[%s8 + $0x8] sm:$0xf]
  %v320 = vld [vmem:[%s8 + $0xc] sm:$0xf]
  %v321 = vld [vmem:[%s9] sm:$0x1]
  %v323 = vperm.slane %v321, 0
  %v329 = vunpack.c.l.b16 %v317
  %v330 = vunpack.c.l.b16 %v318
  %v331 = vunpack.c.l.b16 %v319
  %v332 = vunpack.c.l.b16 %v320
  %v333 = vpack.c.b16 %v330, %v329
  %v334 = vpack.c.b16 %v332, %v331
  %v338 = vsel %vm246, %v316, 0
  %340 = vmatpush.bf16.msra.mxu0 0
  %341 = vmatpush.bf16.msra.mxu0 0
  %342 = vmatpush.bf16.msra.mxu0 0
  %343 = vmatpush.bf16.msra.mxu0 0
  %344 = vmatpush.bf16.msra.mxu0 0
  %345 = vmatpush.bf16.msra.mxu0 0
  %346 = vmatpush.bf16.msra.mxu0 %v334
  %347 = vmatpush.bf16.msra.mxu0 %v333
  %348 = vmatmul.bf16.gmra.mxu0 %v338
  %v349 = vpop.f32.mrf.mxu0
  %v350 = vadd.f32 %v323, %v349
  %v351 = vpop.f32.mrf.mxu0
  %352 = vdwg.mxu0
  %353 = vst.msk [vmem:[%s11] sm:$0xff] %vm246, %v350
  // Predicated region
  $region42: #{forward.10} parent=0 // pred_check
    _
  $region43: #{forward.10} parent=0 // pred_check_branch
    %355 = sbr.rel (0) target = $region45
  $region44: #{forward.10} parent=0 // pred_region
    _
  $region45: #{forward.10} parent=0 // pred_fallthru
    _
  // Predicated region
  $region46: #{forward.10} parent=0 // pred_check
    _
  $region47: #{forward.10} parent=0 // pred_check_branch
    %357 = sbr.rel (0) target = $region49
  $region48: #{forward.10} parent=0 // pred_region
    _
  $region49: #{forward.10} parent=0 // pred_fallthru
    _
  // Predicated region
  $region50: #{forward.10} parent=0 // pred_check
    _
  $region51: #{forward.10} parent=0 // pred_check_branch
    %359 = sbr.rel (0) target = $region53
  $region52: #{forward.10} parent=0 // pred_region
    _
  $region53: #{forward.10} parent=0 // pred_fallthru
    _
  // Predicated region
  $region54: #{forward.10} parent=0 // pred_check
    _
  $region55: #{forward.10} parent=0 // pred_check_branch
    %361 = sbr.rel (0) target = $region57
  $region56: #{forward.10} parent=0 // pred_region
    _
  $region57: #{forward.10} parent=0 // pred_fallthru
    _

// kernel: forward.13
$region0: #{forward.13}
  #allocation0 [shape = 'u32[]', space=smem, size = 0x4, offset = 0x4, fixed_abs, tag = 'smem constant byte address 0x4 - core index']
  #allocation1 [shape = 'u32[72,128]{1,0:T(1,128)}', space=vmem, size = 0x9000, scoped, tag = 'internal scratch']
  %s0 = inlined_call_operand.vmem [shape: bf16[8,4,32], index: 0, kind: input, shape index: {}]
  %s1 = inlined_call_operand.vmem [shape: f32[8,1,32], index: 1, kind: input, shape index: {}]
  %s2 = inlined_call_operand.vmem [shape: bf16[32,192], index: 2, kind: input, shape index: {}]
  %s3 = inlined_call_operand.vmem [shape: f32[1,192], index: 3, kind: input, shape index: {}]
  %s4 = inlined_call_operand.vmem [shape: bf16[32,96], index: 4, kind: input, shape index: {}]
  %s5 = inlined_call_operand.vmem [shape: f32[1,96], index: 5, kind: input, shape index: {}]
  %s6 = inlined_call_operand.vmem [shape: bf16[4,8,32], index: 6, kind: input, shape index: {}]
  %s7 = inlined_call_operand.vmem [shape: f32[1,32], index: 7, kind: input, shape index: {}]
  %s8 = inlined_call_operand.vmem [shape: bf16[32,128], index: 8, kind: input, shape index: {}]
  %s9 = inlined_call_operand.hbm [shape: f32[1,128], index: 9, kind: input, shape index: {}]
  %s10 = inlined_call_operand.vmem [shape: bf16[128,32], index: 10, kind: input, shape index: {}]
  %s11 = inlined_call_operand.hbm [shape: f32[1,32], index: 11, kind: input, shape index: {}]
  %s12 = inlined_call_operand.vmem [shape: bf16[8,4,32], index: 12, kind: output, shape index: {}]
  %s13 = sld [smem:[#allocation0]]
  $region89: #{forward.13} parent=0
    _
  %s15 = ssub.s32 1, %s13
  %s16 = scalar_select 0, %s15, %s13
  $region1: #{forward.13} parent=0
    #allocation2 [shape = 'u8[512]{0}', space=vmem, size = 0x400, scoped, tag = 'input window, operand 9, single buffered']
    #allocation3 [shape = 's32[2]{0}', space=sflag, size = 0x8, scoped, tag = 'scoped memory for forward.13']
    #allocation4 [shape = 'u8[512]{0}', space=vmem, size = 0x400, scoped, tag = 'input window, operand 11, single buffered']
    #allocation5 [shape = 's32[1]{0}', space=sflag, size = 0x4, scoped, tag = 'scoped memory for forward.13']
    %17 = vsyncpa [#allocation3], 0
    %18 = vsyncpa [#allocation5], 0
    loop: start=0, step=1, limit=6
    $region2: #{forward.13} parent=1 // loop_pre_header
      _
    $region3: #{forward.13} parent=1 // loop_header
      %s20 = sphi 0, %s24
      %p21 = scmp.ge.s32.totalorder %s20, 6
      %s30 = sphi 0, %s32
      %s33 = sphi 0, %s30
      %s34 = sphi 0, %s33
      %s50 = sphi 0, %s34
      %s56 = sphi 0, %s58
      %s59 = sphi 0, %s56
      %s60 = sphi 0, %s59
      %s76 = sphi 0, %s60
      %s80 = sphi 0, %s80
      %s82 = sphi 0, %s80
      %s83 = sphi 0, %s82
      %s97 = sphi 0, %s83
      %s101 = sphi 0, %s101
      %s103 = sphi 0, %s101
      %s104 = sphi 0, %s103
      %s118 = sphi 0, %s104
      %s122 = sphi 0, %s122
      %s124 = sphi 0, %s122
      %s125 = sphi 0, %s124
      %s139 = sphi 0, %s125
      %s143 = sphi 0, %s143
      %s145 = sphi 0, %s143
      %s146 = sphi 0, %s145
      %s160 = sphi 0, %s146
      %s164 = sphi 0, %s164
      %s166 = sphi 0, %s164
      %s167 = sphi 0, %s166
      %s181 = sphi 0, %s167
      %s185 = sphi 0, %s185
      %s187 = sphi 0, %s185
      %s188 = sphi 0, %s187
      %s202 = sphi 0, %s188
      %s206 = sphi 0, %s206
      %s208 = sphi 0, %s206
      %s209 = sphi 0, %s208
      %s223 = sphi 0, %s209
      %s227 = sphi 0, %s227
      %s229 = sphi 0, %s227
      %s230 = sphi 0, %s229
      %s244 = sphi 0, %s230
      %s248 = sphi 0, %s248
      %s250 = sphi 0, %s248
      %s251 = sphi 0, %s250
      %s265 = sphi 0, %s251
      %s269 = sphi 0, %s269
      %s271 = sphi 0, %s269
      %s272 = sphi 0, %s271
      %s286 = sphi 0, %s272
      %s292 = sphi 0, %s294
      %s295 = sphi 0, %s292
      %s296 = sphi 0, %s295
      %s312 = sphi 0, %s296
    $region4: #{forward.13} parent=1 // loop_header_branch
      %23 = sbr.rel (%p21) target = $region8
    $region5: #{forward.13} parent=1 // loop_body
      %s25 = ssub.s32 %s20, 1
      %s26 = ssub.s32 %s20, 2
      %s27 = sadd.s32 %s20, 1
      %s28 = ssub.s32 %s20, %s27
      %p29 = scmp.eq.s32.totalorder %s28, 0
      %s31 = sadd.s32 %s30, 1
      %s32 = scalar_select %p29, %s30, %s31
      %p35 = pneg %p29
      %p36 = scmp.eq.s32.totalorder %s20, 3
      %p37 = por %p35, %p36
      %p38 = scmp.ne.s32.totalorder %s30, %s33
      %p39 = scmp.eq.s32.totalorder %s20, 0
      %p40 = por %p38, %p39
      %p41 = scmp.ne.s32.totalorder %s30, %s33
      %p42 = scmp.eq.s32.totalorder %s25, 3
      %p43 = por %p41, %p42
      %p44 = scmp.ne.s32.totalorder %s33, %s34
      %p45 = scmp.eq.s32.totalorder %s25, 0
      %p46 = por %p44, %p45
      %p47 = scmp.ne.s32.totalorder %s33, %s34
      %p48 = scmp.eq.s32.totalorder %s26, 3
      %p49 = por %p47, %p48
      %p51 = scmp.ne.s32.totalorder %s34, %s50
      %p52 = scmp.eq.s32.totalorder %s26, 0
      %p53 = por %p51, %p52
      %s54 = ssub.s32 %s20, %s27
      %p55 = scmp.eq.s32.totalorder %s54, 0
      %s57 = sadd.s32 %s56, 1
      %s58 = scalar_select %p55, %s56, %s57
      %p61 = pneg %p55
      %p62 = scmp.eq.s32.totalorder %s20, 3
      %p63 = por %p61, %p62
      %p64 = scmp.ne.s32.totalorder %s56, %s59
      %p65 = scmp.eq.s32.totalorder %s20, 0
      %p66 = por %p64, %p65
      %p67 = scmp.ne.s32.totalorder %s56, %s59
      %p68 = scmp.eq.s32.totalorder %s25, 3
      %p69 = por %p67, %p68
      %p70 = scmp.ne.s32.totalorder %s59, %s60
      %p71 = scmp.eq.s32.totalorder %s25, 0
      %p72 = por %p70, %p71
      %p73 = scmp.ne.s32.totalorder %s59, %s60
      %p74 = scmp.eq.s32.totalorder %s26, 3
      %p75 = por %p73, %p74
      %p77 = scmp.ne.s32.totalorder %s60, %s76
      %p78 = scmp.eq.s32.totalorder %s26, 0
      %p79 = por %p77, %p78
      %s81 = sadd.s32 %s80, 1
      %p84 = scmp.eq.s32.totalorder %s20, 3
      %p85 = scmp.ne.s32.totalorder %s80, %s82
      %p86 = scmp.eq.s32.totalorder %s20, 0
      %p87 = por %p85, %p86
      %p88 = scmp.ne.s32.totalorder %s80, %s82
      %p89 = scmp.eq.s32.totalorder %s25, 3
      %p90 = por %p88, %p89
      %p91 = scmp.ne.s32.totalorder %s82, %s83
      %p92 = scmp.eq.s32.totalorder %s25, 0
      %p93 = por %p91, %p92
      %p94 = scmp.ne.s32.totalorder %s82, %s83
      %p95 = scmp.eq.s32.totalorder %s26, 3
      %p96 = por %p94, %p95
      %p98 = scmp.ne.s32.totalorder %s83, %s97
      %p99 = scmp.eq.s32.totalorder %s26, 0
      %p100 = por %p98, %p99
      %s102 = sadd.s32 %s101, 1
      %p105 = scmp.eq.s32.totalorder %s20, 3
      %p106 = scmp.ne.s32.totalorder %s101, %s103
      %p107 = scmp.eq.s32.totalorder %s20, 0
      %p108 = por %p106, %p107
      %p109 = scmp.ne.s32.totalorder %s101, %s103
      %p110 = scmp.eq.s32.totalorder %s25, 3
      %p111 = por %p109, %p110
      %p112 = scmp.ne.s32.totalorder %s103, %s104
      %p113 = scmp.eq.s32.totalorder %s25, 0
      %p114 = por %p112, %p113
      %p115 = scmp.ne.s32.totalorder %s103, %s104
      %p116 = scmp.eq.s32.totalorder %s26, 3
      %p117 = por %p115, %p116
      %p119 = scmp.ne.s32.totalorder %s104, %s118
      %p120 = scmp.eq.s32.totalorder %s26, 0
      %p121 = por %p119, %p120
      %s123 = sadd.s32 %s122, 1
      %p126 = scmp.eq.s32.totalorder %s20, 3
      %p127 = scmp.ne.s32.totalorder %s122, %s124
      %p128 = scmp.eq.s32.totalorder %s20, 0
      %p129 = por %p127, %p128
      %p130 = scmp.ne.s32.totalorder %s122, %s124
      %p131 = scmp.eq.s32.totalorder %s25, 3
      %p132 = por %p130, %p131
      %p133 = scmp.ne.s32.totalorder %s124, %s125
      %p134 = scmp.eq.s32.totalorder %s25, 0
      %p135 = por %p133, %p134
      %p136 = scmp.ne.s32.totalorder %s124, %s125
      %p137 = scmp.eq.s32.totalorder %s26, 3
      %p138 = por %p136, %p137
      %p140 = scmp.ne.s32.totalorder %s125, %s139
      %p141 = scmp.eq.s32.totalorder %s26, 0
      %p142 = por %p140, %p141
      %s144 = sadd.s32 %s143, 1
      %p147 = scmp.eq.s32.totalorder %s20, 3
      %p148 = scmp.ne.s32.totalorder %s143, %s145
      %p149 = scmp.eq.s32.totalorder %s20, 0
      %p150 = por %p148, %p149
      %p151 = scmp.ne.s32.totalorder %s143, %s145
      %p152 = scmp.eq.s32.totalorder %s25, 3
      %p153 = por %p151, %p152
      %p154 = scmp.ne.s32.totalorder %s145, %s146
      %p155 = scmp.eq.s32.totalorder %s25, 0
      %p156 = por %p154, %p155
      %p157 = scmp.ne.s32.totalorder %s145, %s146
      %p158 = scmp.eq.s32.totalorder %s26, 3
      %p159 = por %p157, %p158
      %p161 = scmp.ne.s32.totalorder %s146, %s160
      %p162 = scmp.eq.s32.totalorder %s26, 0
      %p163 = por %p161, %p162
      %s165 = sadd.s32 %s164, 1
      %p168 = scmp.eq.s32.totalorder %s20, 3
      %p169 = scmp.ne.s32.totalorder %s164, %s166
      %p170 = scmp.eq.s32.totalorder %s20, 0
      %p171 = por %p169, %p170
      %p172 = scmp.ne.s32.totalorder %s164, %s166
      %p173 = scmp.eq.s32.totalorder %s25, 3
      %p174 = por %p172, %p173
      %p175 = scmp.ne.s32.totalorder %s166, %s167
      %p176 = scmp.eq.s32.totalorder %s25, 0
      %p177 = por %p175, %p176
      %p178 = scmp.ne.s32.totalorder %s166, %s167
      %p179 = scmp.eq.s32.totalorder %s26, 3
      %p180 = por %p178, %p179
      %p182 = scmp.ne.s32.totalorder %s167, %s181
      %p183 = scmp.eq.s32.totalorder %s26, 0
      %p184 = por %p182, %p183
      %s186 = sadd.s32 %s185, 1
      %p189 = scmp.eq.s32.totalorder %s20, 3
      %p190 = scmp.ne.s32.totalorder %s185, %s187
      %p191 = scmp.eq.s32.totalorder %s20, 0
      %p192 = por %p190, %p191
      %p193 = scmp.ne.s32.totalorder %s185, %s187
      %p194 = scmp.eq.s32.totalorder %s25, 3
      %p195 = por %p193, %p194
      %p196 = scmp.ne.s32.totalorder %s187, %s188
      %p197 = scmp.eq.s32.totalorder %s25, 0
      %p198 = por %p196, %p197
      %p199 = scmp.ne.s32.totalorder %s187, %s188
      %p200 = scmp.eq.s32.totalorder %s26, 3
      %p201 = por %p199, %p200
      %p203 = scmp.ne.s32.totalorder %s188, %s202
      %p204 = scmp.eq.s32.totalorder %s26, 0
      %p205 = por %p203, %p204
      %s207 = sadd.s32 %s206, 1
      %p210 = scmp.eq.s32.totalorder %s20, 3
      %p211 = scmp.ne.s32.totalorder %s206, %s208
      %p212 = scmp.eq.s32.totalorder %s20, 0
      %p213 = por %p211, %p212
      %p214 = scmp.ne.s32.totalorder %s206, %s208
      %p215 = scmp.eq.s32.totalorder %s25, 3
      %p216 = por %p214, %p215
      %p217 = scmp.ne.s32.totalorder %s208, %s209
      %p218 = scmp.eq.s32.totalorder %s25, 0
      %p219 = por %p217, %p218
      %p220 = scmp.ne.s32.totalorder %s208, %s209
      %p221 = scmp.eq.s32.totalorder %s26, 3
      %p222 = por %p220, %p221
      %p224 = scmp.ne.s32.totalorder %s209, %s223
      %p225 = scmp.eq.s32.totalorder %s26, 0
      %p226 = por %p224, %p225
      %s228 = sadd.s32 %s227, 1
      %p231 = scmp.eq.s32.totalorder %s20, 3
      %p232 = scmp.ne.s32.totalorder %s227, %s229
      %p233 = scmp.eq.s32.totalorder %s20, 0
      %p234 = por %p232, %p233
      %p235 = scmp.ne.s32.totalorder %s227, %s229
      %p236 = scmp.eq.s32.totalorder %s25, 3
      %p237 = por %p235, %p236
      %p238 = scmp.ne.s32.totalorder %s229, %s230
      %p239 = scmp.eq.s32.totalorder %s25, 0
      %p240 = por %p238, %p239
      %p241 = scmp.ne.s32.totalorder %s229, %s230
      %p242 = scmp.eq.s32.totalorder %s26, 3
      %p243 = por %p241, %p242
      %p245 = scmp.ne.s32.totalorder %s230, %s244
      %p246 = scmp.eq.s32.totalorder %s26, 0
      %p247 = por %p245, %p246
      %s249 = sadd.s32 %s248, 1
      %p252 = scmp.eq.s32.totalorder %s20, 3
      %p253 = scmp.ne.s32.totalorder %s248, %s250
      %p254 = scmp.eq.s32.totalorder %s20, 0
      %p255 = por %p253, %p254
      %p256 = scmp.ne.s32.totalorder %s248, %s250
      %p257 = scmp.eq.s32.totalorder %s25, 3
      %p258 = por %p256, %p257
      %p259 = scmp.ne.s32.totalorder %s250, %s251
      %p260 = scmp.eq.s32.totalorder %s25, 0
      %p261 = por %p259, %p260
      %p262 = scmp.ne.s32.totalorder %s250, %s251
      %p263 = scmp.eq.s32.totalorder %s26, 3
      %p264 = por %p262, %p263
      %p266 = scmp.ne.s32.totalorder %s251, %s265
      %p267 = scmp.eq.s32.totalorder %s26, 0
      %p268 = por %p266, %p267
      %s270 = sadd.s32 %s269, 1
      %p273 = scmp.eq.s32.totalorder %s20, 3
      %p274 = scmp.ne.s32.totalorder %s269, %s271
      %p275 = scmp.eq.s32.totalorder %s20, 0
      %p276 = por %p274, %p275
      %p277 = scmp.ne.s32.totalorder %s269, %s271
      %p278 = scmp.eq.s32.totalorder %s25, 3
      %p279 = por %p277, %p278
      %p280 = scmp.ne.s32.totalorder %s271, %s272
      %p281 = scmp.eq.s32.totalorder %s25, 0
      %p282 = por %p280, %p281
      %p283 = scmp.ne.s32.totalorder %s271, %s272
      %p284 = scmp.eq.s32.totalorder %s26, 3
      %p285 = por %p283, %p284
      %p287 = scmp.ne.s32.totalorder %s272, %s286
      %p288 = scmp.eq.s32.totalorder %s26, 0
      %p289 = por %p287, %p288
      %s290 = ssub.s32 %s20, %s27
      %p291 = scmp.eq.s32.totalorder %s290, 0
      %s293 = sadd.s32 %s292, 1
      %s294 = scalar_select %p291, %s292, %s293
      %p297 = pneg %p291
      %p298 = scmp.eq.s32.totalorder %s20, 3
      %p299 = por %p297, %p298
      %p300 = scmp.ne.s32.totalorder %s292, %s295
      %p301 = scmp.eq.s32.totalorder %s20, 0
      %p302 = por %p300, %p301
      %p303 = scmp.ne.s32.totalorder %s292, %s295
      %p304 = scmp.eq.s32.totalorder %s25, 3
      %p305 = por %p303, %p304
      %p306 = scmp.ne.s32.totalorder %s295, %s296
      %p307 = scmp.eq.s32.totalorder %s25, 0
      %p308 = por %p306, %p307
      %p309 = scmp.ne.s32.totalorder %s295, %s296
      %p310 = scmp.eq.s32.totalorder %s26, 3
      %p311 = por %p309, %p310
      %p313 = scmp.ne.s32.totalorder %s296, %s312
      %p314 = scmp.eq.s32.totalorder %s26, 0
      %p315 = por %p313, %p314
      %p316 = scmp.le.s32.totalorder 1, %s20
      %p317 = scmp.lt.s32.totalorder %s20, 5
      %p318 = pnand %p316, %p317
      %p319 = pneg %p318
      // Predicated region
      $region9: #{forward.13} parent=5 // pred_check
        _
      $region10: #{forward.13} parent=5 // pred_check_branch
        %321 = sbr.rel (%p318) target = $region12
      $region11: #{forward.13} parent=5 // pred_region
        %s322 = ssub.s32 %s20, 1
        // Predicated region
        $region13: #{forward.13} parent=11 // pred_check
          %p323 = pneg %p93
        $region14: #{forward.13} parent=11 // pred_check_branch
          %325 = sbr.rel (%p323) target = $region16
        $region15: #{forward.13} parent=11 // pred_region
          _
        $region16: #{forward.13} parent=11 // pred_fallthru
          _
        // Predicated region
        $region17: #{forward.13} parent=11 // pred_check
          %p326 = pneg %p114
        $region18: #{forward.13} parent=11 // pred_check_branch
          %328 = sbr.rel (%p326) target = $region20
        $region19: #{forward.13} parent=11 // pred_region
          _
        $region20: #{forward.13} parent=11 // pred_fallthru
          _
        // Predicated region
        $region21: #{forward.13} parent=11 // pred_check
          %p329 = pneg %p135
        $region22: #{forward.13} parent=11 // pred_check_branch
          %331 = sbr.rel (%p329) target = $region24
        $region23: #{forward.13} parent=11 // pred_region
          _
        $region24: #{forward.13} parent=11 // pred_fallthru
          _
        // Predicated region
        $region25: #{forward.13} parent=11 // pred_check
          %p332 = pneg %p156
        $region26: #{forward.13} parent=11 // pred_check_branch
          %334 = sbr.rel (%p332) target = $region28
        $region27: #{forward.13} parent=11 // pred_region
          _
        $region28: #{forward.13} parent=11 // pred_fallthru
          _
        // Predicated region
        $region29: #{forward.13} parent=11 // pred_check
          %p335 = pneg %p177
        $region30: #{forward.13} parent=11 // pred_check_branch
          %337 = sbr.rel (%p335) target = $region32
        $region31: #{forward.13} parent=11 // pred_region
          _
        $region32: #{forward.13} parent=11 // pred_fallthru
          _
        // Predicated region
        $region33: #{forward.13} parent=11 // pred_check
          %p338 = pneg %p198
        $region34: #{forward.13} parent=11 // pred_check_branch
          %340 = sbr.rel (%p338) target = $region36
        $region35: #{forward.13} parent=11 // pred_region
          _
        $region36: #{forward.13} parent=11 // pred_fallthru
          _
        // Predicated region
        $region37: #{forward.13} parent=11 // pred_check
          %p341 = pneg %p219
        $region38: #{forward.13} parent=11 // pred_check_branch
          %343 = sbr.rel (%p341) target = $region40
        $region39: #{forward.13} parent=11 // pred_region
          _
        $region40: #{forward.13} parent=11 // pred_fallthru
          _
        // Predicated region
        $region41: #{forward.13} parent=11 // pred_check
          %p344 = pneg %p240
        $region42: #{forward.13} parent=11 // pred_check_branch
          %346 = sbr.rel (%p344) target = $region44
        $region43: #{forward.13} parent=11 // pred_region
          %348 = vsyncadd [#allocation3], 0
          %s350 = sshll.u32 %s9, 4
          %s351 = int_to_ptr.hbm [resolvable:$true] %s350
          %s352 = sshll.u32 [#allocation2], 4
          %s353 = int_to_ptr.vmem [resolvable:$true] %s352
          %355 = dma.hbm_to_vmem [thread:$0]  %s351, 16, %s353, [#allocation3]
        $region44: #{forward.13} parent=11 // pred_fallthru
          _
        // Predicated region
        $region45: #{forward.13} parent=11 // pred_check
          %p356 = pneg %p261
        $region46: #{forward.13} parent=11 // pred_check_branch
          %358 = sbr.rel (%p356) target = $region48
        $region47: #{forward.13} parent=11 // pred_region
          _
        $region48: #{forward.13} parent=11 // pred_fallthru
          _
        // Predicated region
        $region49: #{forward.13} parent=11 // pred_check
          %p359 = pneg %p282
        $region50: #{forward.13} parent=11 // pred_check_branch
          %361 = sbr.rel (%p359) target = $region52
        $region51: #{forward.13} parent=11 // pred_region
          %363 = vsyncadd [#allocation5], 0
          %s365 = sshll.u32 %s11, 4
          %s366 = int_to_ptr.hbm [resolvable:$true] %s365
          %s367 = sshll.u32 [#allocation4], 4
          %s368 = int_to_ptr.vmem [resolvable:$true] %s367
          %370 = dma.hbm_to_vmem [thread:$0]  %s366, 16, %s368, [#allocation5]
        $region52: #{forward.13} parent=11 // pred_fallthru
          _
      $region12: #{forward.13} parent=5 // pred_fallthru
        _
      %p371 = scmp.lt.s32.totalorder %s20, 4
      // Predicated region
      $region53: #{forward.13} parent=5 // pred_check
        %p372 = pneg %p371
      $region54: #{forward.13} parent=5 // pred_check_branch
        %374 = sbr.rel (%p372) target = $region56
      $region55: #{forward.13} parent=5 // pred_region
        // Predicated region
        $region57: #{forward.13} parent=55 // pred_check
          %p375 = pneg %p40
        $region58: #{forward.13} parent=55 // pred_check_branch
          %377 = sbr.rel (%p375) target = $region60
        $region59: #{forward.13} parent=55 // pred_region
          %s378 = smul.u32 2, %s20
          %p379 = scmp.lt.s32.totalorder %s378, 7
          %s380 = scalar_select %p379, %s378, 7
          %s381 = smul.addr %s380, 2
          %s382 = scalar_lea.vmem %s0, %s381
          %s383 = smul.u32 2, %s20
        $region60: #{forward.13} parent=55 // pred_fallthru
          _
        // Predicated region
        $region61: #{forward.13} parent=55 // pred_check
          %p384 = pneg %p66
        $region62: #{forward.13} parent=55 // pred_check_branch
          %386 = sbr.rel (%p384) target = $region64
        $region63: #{forward.13} parent=55 // pred_region
          %s387 = smul.u32 2, %s20
          %p388 = scmp.lt.s32.totalorder %s387, 7
          %s389 = scalar_select %p388, %s387, 7
          %s390 = scalar_lea.vmem %s1, %s389
          %s391 = smul.u32 2, %s20
        $region64: #{forward.13} parent=55 // pred_fallthru
          _
      $region56: #{forward.13} parent=5 // pred_fallthru
        _
      %p392 = scmp.le.s32.totalorder 1, %s20
      %p393 = scmp.lt.s32.totalorder %s20, 5
      %p394 = pnand %p392, %p393
      %p395 = pneg %p394
      // Predicated region
      $region65: #{forward.13} parent=5 // pred_check
        _
      $region66: #{forward.13} parent=5 // pred_check_branch
        %397 = sbr.rel (%p394) target = $region68
      $region67: #{forward.13} parent=5 // pred_region
        %s398 = ssub.s32 %s20, 1
        // Predicated region
        $region69: #{forward.13} parent=67 // pred_check
          %p399 = pneg %p240
        $region70: #{forward.13} parent=67 // pred_check_branch
          %401 = sbr.rel (%p399) target = $region72
        $region71: #{forward.13} parent=67 // pred_region
          %403 = dma.done [#allocation3], 16
        $region72: #{forward.13} parent=67 // pred_fallthru
          _
        // Predicated region
        $region73: #{forward.13} parent=67 // pred_check
          %p404 = pneg %p282
        $region74: #{forward.13} parent=67 // pred_check_branch
          %406 = sbr.rel (%p404) target = $region76
        $region75: #{forward.13} parent=67 // pred_region
          %408 = dma.done [#allocation5], 16
        $region76: #{forward.13} parent=67 // pred_fallthru
          _
        %s409 = smul.u32 2, %s25
        %p410 = scmp.lt.s32.totalorder %s409, 7
        %s411 = scalar_select %p410, %s409, 7
        %s412 = smul.addr %s411, 2
        %s413 = scalar_lea.vmem %s0, %s412
        %p414 = pneg %p46
        %p415 = pneg %p43
        %s416 = smul.u32 2, %s25
        %p417 = scmp.lt.s32.totalorder %s416, 7
        %s418 = scalar_select %p417, %s416, 7
        %s419 = scalar_lea.vmem %s1, %s418
        %p420 = pneg %p72
        %p421 = pneg %p69
        %p422 = pneg %p93
        %p423 = pneg %p90
        %p424 = pneg %p114
        %p425 = pneg %p111
        %p426 = pneg %p135
        %p427 = pneg %p132
        %p428 = pneg %p156
        %p429 = pneg %p153
        %p430 = pneg %p177
        %p431 = pneg %p174
        %p432 = pneg %p198
        %p433 = pneg %p195
        %p434 = pneg %p219
        %p435 = pneg %p216
        %p436 = pneg %p240
        %p437 = pneg %p237
        %p438 = pneg %p261
        %p439 = pneg %p258
        %p440 = pneg %p282
        %p441 = pneg %p279
        %p442 = pneg %p308
        %p443 = pneg %p305
        %s444 = smul.u32 2, %s25
        %p445 = scmp.lt.s32.totalorder %s444, 7
        %s446 = scalar_select %p445, %s444, 7
        %s447 = smul.addr %s446, 2
        %s448 = scalar_lea.vmem %s12, %s447
        %s449 = smul.u32 2, %s25
        %p450 = scmp.lt.s32.totalorder %s449, 7
        %s451 = scalar_select %p450, %s449, 7
        %s452 = smul.addr %s451, 2
        %s453 = scalar_lea.vmem %s0, %s452
        %s454 = smul.u32 2, %s25
        %s455 = smul.u32 2, %s25
        %p456 = scmp.lt.s32.totalorder %s455, 7
        %s457 = scalar_select %p456, %s455, 7
        %s458 = scalar_lea.vmem %s1, %s457
        %s459 = smul.u32 2, %s25
        %s460 = smul.u32 2, %s25
        %p461 = scmp.lt.s32.totalorder %s460, 7
        %s462 = scalar_select %p461, %s460, 7
        %s463 = smul.addr %s462, 2
        %s464 = scalar_lea.vmem %s12, %s463
        %s465 = smul.u32 2, %s25
        %v467 = vld [vmem:[%s453] sm:$0x3]
        %v468 = vld [vmem:[%s453 + $0x2] sm:$0x3]
        %v469 = vunpack.c.l.bf16 %v467
        %v470 = vunpack.c.l.bf16 %v468
        %v471 = vld [vmem:[%s458] sm:$0x1]
        %v472 = vld [vmem:[%s458 + $0x1] sm:$0x1]
        %v473 = vxor.u32 %v471, 2147483648
        %v474 = vxor.u32 %v472, 2147483648
        %v475 = vmul.f32 %v473, 1.442695
        %v476 = vpow.pop %v475
        %v477 = vmul.f32 %v474, 1.442695
        %v478 = vpow.pop %v477
        %v479 = vadd.f32 %v476, 1.0
        %v480 = vadd.f32 %v478, 1.0
        %v481 = vrcp.pop %v479
        %v482 = vmul.f32 %v479, %v481
        %v483 = vsub.f32 1.0, %v482
        %v484 = vmul.f32 %v481, %v483
        %v485 = vadd.f32 %v481, %v484
        %vm486 = vweird.f32 %v479
        %vm487 = vweird.f32 %v481
        %vm488 = vmor %vm486, %vm487
        %v489 = vsel %vm488, %v481, %v485
        %v490 = vand.u32 2147483647, %v479
        %vm491 = vcmp.eq.f32.partialorder %v490, 8.507059e+37
        %v492 = vand.u32 %v479, 2147483648
        %v493 = vor.u32 1.1754944e-38, %v492
        %v494 = vsel %vm491, %v493, %v489
        %v495 = vmul.f32 1.0, %v494
        %v496 = vrcp.pop %v480
        %v497 = vmul.f32 %v480, %v496
        %v498 = vsub.f32 1.0, %v497
        %v499 = vmul.f32 %v496, %v498
        %v500 = vadd.f32 %v496, %v499
        %vm501 = vweird.f32 %v480
        %vm502 = vweird.f32 %v496
        %vm503 = vmor %vm501, %vm502
        %v504 = vsel %vm503, %v496, %v500
        %v505 = vand.u32 2147483647, %v480
        %vm506 = vcmp.eq.f32.partialorder %v505, 8.507059e+37
        %v507 = vand.u32 %v480, 2147483648
        %v508 = vor.u32 1.1754944e-38, %v507
        %v509 = vsel %vm506, %v508, %v504
        %v510 = vmul.f32 1.0, %v509
        %v511 = vmul.f32 %v471, %v495
        %v512 = vmul.f32 %v472, %v510
        %v513 = vpack.c.bf16 %v511, %v511
        %v514 = vpack.c.bf16 %v512, %v512
        %v515 = vld [vmem:[%s2] sm:$0xff]
        %v516 = vld [vmem:[%s2 + $0x8] sm:$0xff]
        %v517 = vld [vmem:[%s2 + $0x10] sm:$0xff]
        %v518 = vld [vmem:[%s2 + $0x18] sm:$0xff]
        %v519 = vld [vmem:[%s3] sm:$0x3]
        %v521 = vperm.slane %v519, 0
        %v522 = vperm.slane %v519, 1
        %v527 = vunpack.c.l.b16 %v513
        %v528 = vunpack.c.l.b16 %v514
        %v529 = vrot.slane %v528, 7
        %vm530 = vcmask 1041409
        %v531 = vsel %vm530, %v529, %v527
        %v532 = vpack.c.b16 %v531, %v531
        %v537 = vunpack.c.l.b16 %v515
        %v538 = vunpack.c.h.b16 %v515
        %v539 = vunpack.c.l.b16 %v516
        %v540 = vunpack.c.h.b16 %v516
        %v541 = vunpack.c.l.b16 %v517
        %v542 = vunpack.c.h.b16 %v517
        %v543 = vunpack.c.l.b16 %v518
        %v544 = vunpack.c.h.b16 %v518
        %v545 = vpack.c.b16 %v539, %v537
        %v546 = vpack.c.b16 %v540, %v538
        %v547 = vpack.c.b16 %v543, %v541
        %v548 = vpack.c.b16 %v544, %v542
        %vm553 = vcmask 261120
        %v555 = vsel %vm553, %v532, 0
        %557 = vmatpush.bf16.msra.mxu0 0
        %558 = vmatpush.bf16.msra.mxu0 0
        %559 = vmatpush.bf16.msra.mxu0 0
        %560 = vmatpush.bf16.msra.mxu0 0
        %561 = vmatpush.bf16.msra.mxu0 0
        %562 = vmatpush.bf16.msra.mxu0 0
        %563 = vmatpush.bf16.msra.mxu0 %v547
        %564 = vmatpush.bf16.msra.mxu0 %v545
        %565 = vmatmul.bf16.gmra.mxu0 %v555
        %v566 = vpop.f32.mrf.mxu0
        %v567 = vadd.f32 %v521, %v566
        %v568 = vpop.f32.mrf.mxu0
        %569 = vdwg.mxu0
        %570 = vmatpush.bf16.msra.mxu0 0
        %571 = vmatpush.bf16.msra.mxu0 0
        %572 = vmatpush.bf16.msra.mxu0 0
        %573 = vmatpush.bf16.msra.mxu0 0
        %574 = vmatpush.bf16.msra.mxu0 0
        %575 = vmatpush.bf16.msra.mxu0 0
        %576 = vmatpush.bf16.msra.mxu0 %v548
        %577 = vmatpush.bf16.msra.mxu0 %v546
        %578 = vmatmul.bf16.gmra.mxu0 %v555
        %v579 = vpop.f32.mrf.mxu0
        %v580 = vadd.f32 %v522, %v579
        %v581 = vpop.f32.mrf.mxu0
        %582 = vdwg.mxu0
        %584 = vrot.lane.b32.xlu0 %v567, 96
        %v585 = vpop.permute.xlu0 %584
        %587 = vrot.lane.b32.xlu0 %v567, 64
        %v588 = vpop.permute.xlu0 %587
        %590 = vrot.lane.b32.xlu0 %v567, 32
        %v591 = vpop.permute.xlu0 %590
        %594 = vrot.lane.b32.xlu0 %v580, 96
        %v595 = vpop.permute.xlu0 %594
        %v596 = vrot.slane %v588, 4
        %vm597 = vcmask 1047556
        %v598 = vsel %vm597, %v596, %v567
        %v600 = vunpack.c.l.s4 1983009808
        %v601 = vunpack.c.0.s8 %v600
        %v602 = vperm.slane %v598, %v601
        %v603 = vrot.slane %v591, 4
        %v604 = vsel %vm597, %v603, %v585
        %v606 = vunpack.c.l.s4 1983009808
        %v607 = vunpack.c.0.s8 %v606
        %v608 = vperm.slane %v604, %v607
        %v610 = vrot.slane %v608, 4
        %v611 = vsel %vm597, %v610, %v602
        %v613 = vunpack.c.l.s4 1934713408
        %v614 = vunpack.c.0.s8 %v613
        %v615 = vperm.slane %v611, %v614
        %v616 = vrot.slane %v595, 4
        %v617 = vsel %vm597, %v616, %v580
        %v619 = vunpack.c.l.s4 1934713408
        %v620 = vunpack.c.0.s8 %v619
        %v621 = vperm.slane %v617, %v620
        %v622 = vrot.slane %v621, 4
        %v623 = vsel %vm597, %v622, %v615
        %v624 = vrot.slane %v615, 4
        %v625 = vsel %vm597, %v621, %v624
        %vm626 = vcmask 257024
        %v627 = vsel %vm626, %v469, 0.0
        %628 = vadd.xlane.f32.xlu0 %v627
        %v629 = vpop.xlane.xlu0 %628
        %v630 = vsel %vm626, %v470, 0.0
        %631 = vadd.xlane.f32.xlu0 %v630
        %v632 = vpop.xlane.xlu0 %631
        %v633 = vrcp.pop 32.0
        %v634 = vmul.f32 32.0, %v633
        %v635 = vsub.f32 1.0, %v634
        %v636 = vmul.f32 %v633, %v635
        %v637 = vadd.f32 %v633, %v636
        %vm638 = vweird.f32 %v633
        %v639 = vsel %vm638, %v633, %v637
        %v640 = vmul.f32 %v629, %v639
        %v641 = vmul.f32 %v632, %v639
        %v642 = vsub.f32 %v469, %v640
        %v643 = vsub.f32 %v470, %v641
        %v644 = vmul.f32 %v642, %v642
        %v645 = vmul.f32 %v643, %v643
        %v646 = vsel %vm626, %v644, 0.0
        %647 = vadd.xlane.f32.xlu0 %v646
        %v648 = vpop.xlane.xlu0 %647
        %v649 = vsel %vm626, %v645, 0.0
        %650 = vadd.xlane.f32.xlu0 %v649
        %v651 = vpop.xlane.xlu0 %650
        %v652 = vmul.f32 %v648, %v639
        %v653 = vmul.f32 %v651, %v639
        %v654 = vadd.f32 %v652, 1e-06
        %v655 = vadd.f32 %v653, 1e-06
        %v656 = vrsqrt.pop %v654
        %v657 = vmul.f32 %v656, %v654
        %v658 = vmul.f32 %v657, %v656
        %v659 = vmul.f32 0.5, %v658
        %v660 = vsub.f32 1.5, %v659
        %v661 = vmul.f32 %v656, %v660
        %vm662 = vweird.f32 %v654
        %vm663 = vweird.f32 %v656
        %vm664 = vmor %vm662, %vm663
        %v665 = vsel %vm664, %v656, %v661
        %v666 = vrsqrt.pop %v655
        %v667 = vmul.f32 %v666, %v655
        %v668 = vmul.f32 %v667, %v666
        %v669 = vmul.f32 0.5, %v668
        %v670 = vsub.f32 1.5, %v669
        %v671 = vmul.f32 %v666, %v670
        %vm672 = vweird.f32 %v655
        %vm673 = vweird.f32 %v666
        %vm674 = vmor %vm672, %vm673
        %v675 = vsel %vm674, %v666, %v671
        %v676 = vmul.f32 %v642, %v665
        %v677 = vmul.f32 %v643, %v675
        %v678 = vadd.f32 %v623, 1.0
        %v679 = vadd.f32 %v625, 1.0
        %v680 = vperm.slane %v678, 1
        %v681 = vperm.slane %v679, 1
        %v682 = vmul.f32 %v676, %v680
        %v683 = vmul.f32 %v677, %v681
        %v684 = vperm.slane %v623, 0
        %v685 = vperm.slane %v625, 0
        %v686 = vadd.f32 %v682, %v684
        %v687 = vadd.f32 %v683, %v685
        %690 = vst [vmem:[#allocation1] ss:$2 sm:$0xff] %v686
        %s691 = scalar_lea.vmem [#allocation1], 1
        %692 = vst [vmem:[%s691] ss:$2 sm:$0xff] %v687
        %v693 = vld.sshfl [vmem:[#allocation1] sm:$0xff pattern:$0x75316420]
        %v695 = vpack.c.bf16 %v693, %v693
        %v696 = vld [vmem:[%s4] sm:$0xf]
        %v697 = vld [vmem:[%s4 + $0x4] sm:$0xf]
        %v698 = vld [vmem:[%s4 + $0x8] sm:$0xf]
        %v699 = vld [vmem:[%s4 + $0xc] sm:$0xf]
        %v700 = vld [vmem:[%s5] sm:$0x1]
        %v702 = vperm.slane %v700, 0
        %v708 = vunpack.c.l.b16 %v696
        %v709 = vunpack.c.l.b16 %v697
        %v710 = vunpack.c.l.b16 %v698
        %v711 = vunpack.c.l.b16 %v699
        %v712 = vpack.c.b16 %v709, %v708
        %v713 = vpack.c.b16 %v711, %v710
        %v717 = vsel %vm553, %v695, 0
        %719 = vmatpush.bf16.msra.mxu0 0
        %720 = vmatpush.bf16.msra.mxu0 0
        %721 = vmatpush.bf16.msra.mxu0 0
        %722 = vmatpush.bf16.msra.mxu0 0
        %723 = vmatpush.bf16.msra.mxu0 0
        %724 = vmatpush.bf16.msra.mxu0 0
        %725 = vmatpush.bf16.msra.mxu0 %v713
        %726 = vmatpush.bf16.msra.mxu0 %v712
        %727 = vmatmul.bf16.gmra.mxu0 %v717
        %v728 = vpop.f32.mrf.mxu0
        %v729 = vadd.f32 %v702, %v728
        %v730 = vpop.f32.mrf.mxu0
        %731 = vdwg.mxu0
        %v733 = vrot.slane %v729, 4
        %v735 = vpack.c.bf16 %v729, %v729
        %v736 = vpack.c.bf16 %v733, %v733
        %v738 = vunpack.c.l.b16 %v735
        %v739 = vpack.c.b16 %v738, %v738
        %740 = vrot.lane.b32.xlu0 %v739, 96
        %v741 = vpop.permute.xlu0 %740
        %vm742 = vcmask 64512
        %v744 = vsel %vm742, %v735, 0
        %v747 = vsel %vm742, %v741, 0
        %749 = vmatpush.bf16.xpose.msra.mxu0 0
        %750 = vmatpush.bf16.xpose.msra.mxu0 0
        %751 = vmatpush.bf16.xpose.msra.mxu0 0
        %752 = vmatpush.bf16.xpose.msra.mxu0 0
        %753 = vmatpush.bf16.xpose.msra.mxu0 0
        %754 = vmatpush.bf16.xpose.msra.mxu0 0
        %755 = vmatpush.bf16.xpose.msra.mxu0 0
        %756 = vmatpush.bf16.xpose.msra.mxu0 %v747
        %757 = vmatmul.bf16.gmra.mxu0 %v744
        %v758 = vpop.f32.mrf.mxu0
        %v759 = vadd.f32 0.0, %v758
        %v760 = vpop.f32.mrf.mxu0
        %761 = vdwg.mxu0
        %v763 = vunpack.c.l.b16 %v736
        %v764 = vpack.c.b16 %v763, %v763
        %765 = vrot.lane.b32.xlu0 %v764, 96
        %v766 = vpop.permute.xlu0 %765
        %v768 = vsel %vm742, %v736, 0
        %v771 = vsel %vm742, %v766, 0
        %773 = vmatpush.bf16.xpose.msra.mxu0 0
        %774 = vmatpush.bf16.xpose.msra.mxu0 0
        %775 = vmatpush.bf16.xpose.msra.mxu0 0
        %776 = vmatpush.bf16.xpose.msra.mxu0 0
        %777 = vmatpush.bf16.xpose.msra.mxu0 0
        %778 = vmatpush.bf16.xpose.msra.mxu0 0
        %779 = vmatpush.bf16.xpose.msra.mxu0 0
        %780 = vmatpush.bf16.xpose.msra.mxu0 %v771
        %781 = vmatmul.bf16.gmra.mxu0 %v768
        %v782 = vpop.f32.mrf.mxu0
        %v783 = vadd.f32 0.0, %v782
        %v784 = vpop.f32.mrf.mxu0
        %785 = vdwg.mxu0
        %vm786 = vcmask 27648
        %v787 = vsel %vm786, %v759, -inf
        %788 = vmax.xlane.f32.xlu0 %v787
        %v789 = vpop.xlane.xlu0 %788
        %v790 = vsel %vm786, %v783, -inf
        %791 = vmax.xlane.f32.xlu0 %v790
        %v792 = vpop.xlane.xlu0 %791
        %v793 = vsub.f32 %v759, %v789
        %v794 = vsub.f32 %v783, %v792
        %v795 = vmul.f32 %v793, 1.442695
        %v796 = vpow.pop %v795
        %v797 = vmul.f32 %v794, 1.442695
        %v798 = vpow.pop %v797
        %v799 = vsel %vm786, %v796, 0.0
        %800 = vadd.xlane.f32.xlu0 %v799
        %v801 = vpop.xlane.xlu0 %800
        %v802 = vsel %vm786, %v798, 0.0
        %803 = vadd.xlane.f32.xlu0 %v802
        %v804 = vpop.xlane.xlu0 %803
        %v805 = vrcp.pop %v801
        %v806 = vrcp.pop %v804
        %v807 = vmul.f32 %v796, %v805
        %v808 = vmul.f32 %v798, %v806
        %v809 = vpack.c.bf16 %v807, %v807
        %v810 = vpack.c.bf16 %v808, %v808
        %811 = vrot.lane.b32.xlu0 %v739, 64
        %v812 = vpop.permute.xlu0 %811
        %vm813 = vcmask 31744
        %v815 = vsel %vm813, %v809, 0
        %vm817 = vcmask 1041408
        %v819 = vsel %vm817, %v812, 0
        %821 = vmatpush.bf16.msra.mxu0 0
        %822 = vmatpush.bf16.msra.mxu0 0
        %823 = vmatpush.bf16.msra.mxu0 0
        %824 = vmatpush.bf16.msra.mxu0 0
        %825 = vmatpush.bf16.msra.mxu0 0
        %826 = vmatpush.bf16.msra.mxu0 0
        %827 = vmatpush.bf16.msra.mxu0 0
        %828 = vmatpush.bf16.msra.mxu0 %v819
        %829 = vmatmul.bf16.gmra.mxu0 %v815
        %v830 = vpop.f32.mrf.mxu0
        %v831 = vadd.f32 0.0, %v830
        %v832 = vpop.f32.mrf.mxu0
        %833 = vdwg.mxu0
        %834 = vrot.lane.b32.xlu0 %v764, 64
        %v835 = vpop.permute.xlu0 %834
        %v837 = vsel %vm813, %v810, 0
        %v840 = vsel %vm817, %v835, 0
        %842 = vmatpush.bf16.msra.mxu0 0
        %843 = vmatpush.bf16.msra.mxu0 0
        %844 = vmatpush.bf16.msra.mxu0 0
        %845 = vmatpush.bf16.msra.mxu0 0
        %846 = vmatpush.bf16.msra.mxu0 0
        %847 = vmatpush.bf16.msra.mxu0 0
        %848 = vmatpush.bf16.msra.mxu0 0
        %849 = vmatpush.bf16.msra.mxu0 %v840
        %850 = vmatmul.bf16.gmra.mxu0 %v837
        %v851 = vpop.f32.mrf.mxu0
        %v852 = vadd.f32 0.0, %v851
        %v853 = vpop.f32.mrf.mxu0
        %854 = vdwg.mxu0
        %857 = vst [vmem:[#allocation1] ss:$2 sm:$0xff] %v831
        %s858 = scalar_lea.vmem [#allocation1], 1
        %859 = vst [vmem:[%s858] ss:$2 sm:$0xff] %v852
        %v860 = vld.sshfl [vmem:[#allocation1] sm:$0xff pattern:$0x75316420]
        %v862 = vpack.c.bf16 %v860, %v860
        %v863 = vld [vmem:[%s6] sm:$0xf]
        %864 = vrot.lane.b32.xlu0 %v739, 120
        %v865 = vpop.permute.xlu0 %864
        %866 = vrot.lane.b32.xlu0 %v739, 88
        %v867 = vpop.permute.xlu0 %866
        %v869 = vsel %vm742, %v865, 0
        %v872 = vsel %vm742, %v867, 0
        %874 = vmatpush.bf16.xpose.msra.mxu0 0
        %875 = vmatpush.bf16.xpose.msra.mxu0 0
        %876 = vmatpush.bf16.xpose.msra.mxu0 0
        %877 = vmatpush.bf16.xpose.msra.mxu0 0
        %878 = vmatpush.bf16.xpose.msra.mxu0 0
        %879 = vmatpush.bf16.xpose.msra.mxu0 0
        %880 = vmatpush.bf16.xpose.msra.mxu0 0
        %881 = vmatpush.bf16.xpose.msra.mxu0 %v872
        %882 = vmatmul.bf16.gmra.mxu0 %v869
        %v883 = vpop.f32.mrf.mxu0
        %v884 = vadd.f32 0.0, %v883
        %v885 = vpop.f32.mrf.mxu0
        %886 = vdwg.mxu0
        %887 = vrot.lane.b32.xlu0 %v764, 120
        %v888 = vpop.permute.xlu0 %887
        %889 = vrot.lane.b32.xlu0 %v764, 88
        %v890 = vpop.permute.xlu0 %889
        %v892 = vsel %vm742, %v888, 0
        %v895 = vsel %vm742, %v890, 0
        %897 = vmatpush.bf16.xpose.msra.mxu0 0
        %898 = vmatpush.bf16.xpose.msra.mxu0 0
        %899 = vmatpush.bf16.xpose.msra.mxu0 0
        %900 = vmatpush.bf16.xpose.msra.mxu0 0
        %901 = vmatpush.bf16.xpose.msra.mxu0 0
        %902 = vmatpush.bf16.xpose.msra.mxu0 0
        %903 = vmatpush.bf16.xpose.msra.mxu0 0
        %904 = vmatpush.bf16.xpose.msra.mxu0 %v895
        %905 = vmatmul.bf16.gmra.mxu0 %v892
        %v906 = vpop.f32.mrf.mxu0
        %v907 = vadd.f32 0.0, %v906
        %v908 = vpop.f32.mrf.mxu0
        %909 = vdwg.mxu0
        %v910 = vsel %vm786, %v884, -inf
        %911 = vmax.xlane.f32.xlu0 %v910
        %v912 = vpop.xlane.xlu0 %911
        %v913 = vsel %vm786, %v907, -inf
        %914 = vmax.xlane.f32.xlu0 %v913
        %v915 = vpop.xlane.xlu0 %914
        %v916 = vsub.f32 %v884, %v912
        %v917 = vsub.f32 %v907, %v915
        %v918 = vmul.f32 %v916, 1.442695
        %v919 = vpow.pop %v918
        %v920 = vmul.f32 %v917, 1.442695
        %v921 = vpow.pop %v920
        %v922 = vsel %vm786, %v919, 0.0
        %923 = vadd.xlane.f32.xlu0 %v922
        %v924 = vpop.xlane.xlu0 %923
        %v925 = vsel %vm786, %v921, 0.0
        %926 = vadd.xlane.f32.xlu0 %v925
        %v927 = vpop.xlane.xlu0 %926
        %v928 = vrcp.pop %v924
        %v929 = vrcp.pop %v927
        %v930 = vmul.f32 %v919, %v928
        %v931 = vmul.f32 %v921, %v929
        %v932 = vpack.c.bf16 %v930, %v930
        %v933 = vpack.c.bf16 %v931, %v931
        %934 = vrot.lane.b32.xlu0 %v739, 56
        %v935 = vpop.permute.xlu0 %934
        %v937 = vsel %vm813, %v932, 0
        %v940 = vsel %vm817, %v935, 0
        %942 = vmatpush.bf16.msra.mxu0 0
        %943 = vmatpush.bf16.msra.mxu0 0
        %944 = vmatpush.bf16.msra.mxu0 0
        %945 = vmatpush.bf16.msra.mxu0 0
        %946 = vmatpush.bf16.msra.mxu0 0
        %947 = vmatpush.bf16.msra.mxu0 0
        %948 = vmatpush.bf16.msra.mxu0 0
        %949 = vmatpush.bf16.msra.mxu0 %v940
        %950 = vmatmul.bf16.gmra.mxu0 %v937
        %v951 = vpop.f32.mrf.mxu0
        %v952 = vadd.f32 0.0, %v951
        %v953 = vpop.f32.mrf.mxu0
        %954 = vdwg.mxu0
        %955 = vrot.lane.b32.xlu0 %v764, 56
        %v956 = vpop.permute.xlu0 %955
        %v958 = vsel %vm813, %v933, 0
        %v961 = vsel %vm817, %v956, 0
        %963 = vmatpush.bf16.msra.mxu0 0
        %964 = vmatpush.bf16.msra.mxu0 0
        %965 = vmatpush.bf16.msra.mxu0 0
        %966 = vmatpush.bf16.msra.mxu0 0
        %967 = vmatpush.bf16.msra.mxu0 0
        %968 = vmatpush.bf16.msra.mxu0 0
        %969 = vmatpush.bf16.msra.mxu0 0
        %970 = vmatpush.bf16.msra.mxu0 %v961
        %971 = vmatmul.bf16.gmra.mxu0 %v958
        %v972 = vpop.f32.mrf.mxu0
        %v973 = vadd.f32 0.0, %v972
        %v974 = vpop.f32.mrf.mxu0
        %975 = vdwg.mxu0
        %978 = vst [vmem:[#allocation1] ss:$2 sm:$0xff] %v952
        %s979 = scalar_lea.vmem [#allocation1], 1
        %980 = vst [vmem:[%s979] ss:$2 sm:$0xff] %v973
        %v981 = vld.sshfl [vmem:[#allocation1] sm:$0xff pattern:$0x75316420]
        %v983 = vpack.c.bf16 %v981, %v981
        %s984 = scalar_lea.vmem %s6, 4
        %v985 = vld [vmem:[%s984] sm:$0xf]
        %v987 = vsel %vm742, %v983, 0
        %vm989 = vcmask 1043456
        %v991 = vsel %vm989, %v985, 0
        %993 = vmatpush.bf16.msra.mxu0 0
        %994 = vmatpush.bf16.msra.mxu0 0
        %995 = vmatpush.bf16.msra.mxu0 0
        %996 = vmatpush.bf16.msra.mxu0 0
        %997 = vmatpush.bf16.msra.mxu0 0
        %998 = vmatpush.bf16.msra.mxu0 0
        %999 = vmatpush.bf16.msra.mxu0 0
        %1000 = vmatpush.bf16.msra.mxu0 %v991
        %1001 = vmatmul.bf16.gmra.mxu0 %v987
        %v1002 = vpop.f32.mrf.mxu0
        %v1003 = vadd.f32 0.0, %v1002
        %v1004 = vpop.f32.mrf.mxu0
        %1005 = vdwg.mxu0
        %v1007 = vsel %vm742, %v862, 0
        %v1010 = vsel %vm989, %v863, 0
        %1012 = vmatpush.bf16.msra.mxu0 0
        %1013 = vmatpush.bf16.msra.mxu0 0
        %1014 = vmatpush.bf16.msra.mxu0 0
        %1015 = vmatpush.bf16.msra.mxu0 0
        %1016 = vmatpush.bf16.msra.mxu0 0
        %1017 = vmatpush.bf16.msra.mxu0 0
        %1018 = vmatpush.bf16.msra.mxu0 0
        %1019 = vmatpush.bf16.msra.mxu0 %v1010
        %1020 = vmatmul.bf16.gmra.mxu0 %v1007
        %v1021 = vpop.f32.mrf.mxu0
        %v1022 = vadd.f32 %v1003, %v1021
        %v1023 = vpop.f32.mrf.mxu0
        %1024 = vdwg.mxu0
        %1025 = vrot.lane.b32.xlu0 %v739, 112
        %v1026 = vpop.permute.xlu0 %1025
        %1027 = vrot.lane.b32.xlu0 %v739, 80
        %v1028 = vpop.permute.xlu0 %1027
        %v1030 = vsel %vm742, %v1026, 0
        %v1033 = vsel %vm742, %v1028, 0
        %1035 = vmatpush.bf16.xpose.msra.mxu0 0
        %1036 = vmatpush.bf16.xpose.msra.mxu0 0
        %1037 = vmatpush.bf16.xpose.msra.mxu0 0
        %1038 = vmatpush.bf16.xpose.msra.mxu0 0
        %1039 = vmatpush.bf16.xpose.msra.mxu0 0
        %1040 = vmatpush.bf16.xpose.msra.mxu0 0
        %1041 = vmatpush.bf16.xpose.msra.mxu0 0
        %1042 = vmatpush.bf16.xpose.msra.mxu0 %v1033
        %1043 = vmatmul.bf16.gmra.mxu0 %v1030
        %v1044 = vpop.f32.mrf.mxu0
        %v1045 = vadd.f32 0.0, %v1044
        %v1046 = vpop.f32.mrf.mxu0
        %1047 = vdwg.mxu0
        %1048 = vrot.lane.b32.xlu0 %v764, 112
        %v1049 = vpop.permute.xlu0 %1048
        %1050 = vrot.lane.b32.xlu0 %v764, 80
        %v1051 = vpop.permute.xlu0 %1050
        %v1053 = vsel %vm742, %v1049, 0
        %v1056 = vsel %vm742, %v1051, 0
        %1058 = vmatpush.bf16.xpose.msra.mxu0 0
        %1059 = vmatpush.bf16.xpose.msra.mxu0 0
        %1060 = vmatpush.bf16.xpose.msra.mxu0 0
        %1061 = vmatpush.bf16.xpose.msra.mxu0 0
        %1062 = vmatpush.bf16.xpose.msra.mxu0 0
        %1063 = vmatpush.bf16.xpose.msra.mxu0 0
        %1064 = vmatpush.bf16.xpose.msra.mxu0 0
        %1065 = vmatpush.bf16.xpose.msra.mxu0 %v1056
        %1066 = vmatmul.bf16.gmra.mxu0 %v1053
        %v1067 = vpop.f32.mrf.mxu0
        %v1068 = vadd.f32 0.0, %v1067
        %v1069 = vpop.f32.mrf.mxu0
        %1070 = vdwg.mxu0
        %v1071 = vsel %vm786, %v1045, -inf
        %1072 = vmax.xlane.f32.xlu0 %v1071
        %v1073 = vpop.xlane.xlu0 %1072
        %v1074 = vsel %vm786, %v1068, -inf
        %1075 = vmax.xlane.f32.xlu0 %v1074
        %v1076 = vpop.xlane.xlu0 %1075
        %v1077 = vsub.f32 %v1045, %v1073
        %v1078 = vsub.f32 %v1068, %v1076
        %v1079 = vmul.f32 %v1077, 1.442695
        %v1080 = vpow.pop %v1079
        %v1081 = vmul.f32 %v1078, 1.442695
        %v1082 = vpow.pop %v1081
        %v1083 = vsel %vm786, %v1080, 0.0
        %1084 = vadd.xlane.f32.xlu0 %v1083
        %v1085 = vpop.xlane.xlu0 %1084
        %v1086 = vsel %vm786, %v1082, 0.0
        %1087 = vadd.xlane.f32.xlu0 %v1086
        %v1088 = vpop.xlane.xlu0 %1087
        %v1089 = vrcp.pop %v1085
        %v1090 = vrcp.pop %v1088
        %v1091 = vmul.f32 %v1080, %v1089
        %v1092 = vmul.f32 %v1082, %v1090
        %v1093 = vpack.c.bf16 %v1091, %v1091
        %v1094 = vpack.c.bf16 %v1092, %v1092
        %1095 = vrot.lane.b32.xlu0 %v739, 48
        %v1096 = vpop.permute.xlu0 %1095
        %v1098 = vsel %vm813, %v1093, 0
        %v1101 = vsel %vm817, %v1096, 0
        %1103 = vmatpush.bf16.msra.mxu0 0
        %1104 = vmatpush.bf16.msra.mxu0 0
        %1105 = vmatpush.bf16.msra.mxu0 0
        %1106 = vmatpush.bf16.msra.mxu0 0
        %1107 = vmatpush.bf16.msra.mxu0 0
        %1108 = vmatpush.bf16.msra.mxu0 0
        %1109 = vmatpush.bf16.msra.mxu0 0
        %1110 = vmatpush.bf16.msra.mxu0 %v1101
        %1111 = vmatmul.bf16.gmra.mxu0 %v1098
        %v1112 = vpop.f32.mrf.mxu0
        %v1113 = vadd.f32 0.0, %v1112
        %v1114 = vpop.f32.mrf.mxu0
        %1115 = vdwg.mxu0
        %1116 = vrot.lane.b32.xlu0 %v764, 48
        %v1117 = vpop.permute.xlu0 %1116
        %v1119 = vsel %vm813, %v1094, 0
        %v1122 = vsel %vm817, %v1117, 0
        %1124 = vmatpush.bf16.msra.mxu0 0
        %1125 = vmatpush.bf16.msra.mxu0 0
        %1126 = vmatpush.bf16.msra.mxu0 0
        %1127 = vmatpush.bf16.msra.mxu0 0
        %1128 = vmatpush.bf16.msra.mxu0 0
        %1129 = vmatpush.bf16.msra.mxu0 0
        %1130 = vmatpush.bf16.msra.mxu0 0
        %1131 = vmatpush.bf16.msra.mxu0 %v1122
        %1132 = vmatmul.bf16.gmra.mxu0 %v1119
        %v1133 = vpop.f32.mrf.mxu0
        %v1134 = vadd.f32 0.0, %v1133
        %v1135 = vpop.f32.mrf.mxu0
        %1136 = vdwg.mxu0
        %1139 = vst [vmem:[#allocation1] ss:$2 sm:$0xff] %v1113
        %s1140 = scalar_lea.vmem [#allocation1], 1
        %1141 = vst [vmem:[%s1140] ss:$2 sm:$0xff] %v1134
        %v1142 = vld.sshfl [vmem:[#allocation1] sm:$0xff pattern:$0x75316420]
        %v1144 = vpack.c.bf16 %v1142, %v1142
        %s1145 = scalar_lea.vmem %s6, 8
        %v1146 = vld [vmem:[%s1145] sm:$0xf]
        %v1148 = vsel %vm742, %v1144, 0
        %v1151 = vsel %vm989, %v1146, 0
        %1153 = vmatpush.bf16.msra.mxu0 0
        %1154 = vmatpush.bf16.msra.mxu0 0
        %1155 = vmatpush.bf16.msra.mxu0 0
        %1156 = vmatpush.bf16.msra.mxu0 0
        %1157 = vmatpush.bf16.msra.mxu0 0
        %1158 = vmatpush.bf16.msra.mxu0 0
        %1159 = vmatpush.bf16.msra.mxu0 0
        %1160 = vmatpush.bf16.msra.mxu0 %v1151
        %1161 = vmatmul.bf16.gmra.mxu0 %v1148
        %v1162 = vpop.f32.mrf.mxu0
        %v1163 = vadd.f32 0.0, %v1162
        %v1164 = vpop.f32.mrf.mxu0
        %1165 = vdwg.mxu0
        %v1166 = vadd.f32 %v1022, %v1163
        %1167 = vrot.lane.b32.xlu0 %v739, 104
        %v1168 = vpop.permute.xlu0 %1167
        %1169 = vrot.lane.b32.xlu0 %v739, 72
        %v1170 = vpop.permute.xlu0 %1169
        %v1172 = vsel %vm742, %v1168, 0
        %v1175 = vsel %vm742, %v1170, 0
        %1177 = vmatpush.bf16.xpose.msra.mxu0 0
        %1178 = vmatpush.bf16.xpose.msra.mxu0 0
        %1179 = vmatpush.bf16.xpose.msra.mxu0 0
        %1180 = vmatpush.bf16.xpose.msra.mxu0 0
        %1181 = vmatpush.bf16.xpose.msra.mxu0 0
        %1182 = vmatpush.bf16.xpose.msra.mxu0 0
        %1183 = vmatpush.bf16.xpose.msra.mxu0 0
        %1184 = vmatpush.bf16.xpose.msra.mxu0 %v1175
        %1185 = vmatmul.bf16.gmra.mxu0 %v1172
        %v1186 = vpop.f32.mrf.mxu0
        %v1187 = vadd.f32 0.0, %v1186
        %v1188 = vpop.f32.mrf.mxu0
        %1189 = vdwg.mxu0
        %1190 = vrot.lane.b32.xlu0 %v764, 104
        %v1191 = vpop.permute.xlu0 %1190
        %1192 = vrot.lane.b32.xlu0 %v764, 72
        %v1193 = vpop.permute.xlu0 %1192
        %v1195 = vsel %vm742, %v1191, 0
        %v1198 = vsel %vm742, %v1193, 0
        %1200 = vmatpush.bf16.xpose.msra.mxu0 0
        %1201 = vmatpush.bf16.xpose.msra.mxu0 0
        %1202 = vmatpush.bf16.xpose.msra.mxu0 0
        %1203 = vmatpush.bf16.xpose.msra.mxu0 0
        %1204 = vmatpush.bf16.xpose.msra.mxu0 0
        %1205 = vmatpush.bf16.xpose.msra.mxu0 0
        %1206 = vmatpush.bf16.xpose.msra.mxu0 0
        %1207 = vmatpush.bf16.xpose.msra.mxu0 %v1198
        %1208 = vmatmul.bf16.gmra.mxu0 %v1195
        %v1209 = vpop.f32.mrf.mxu0
        %v1210 = vadd.f32 0.0, %v1209
        %v1211 = vpop.f32.mrf.mxu0
        %1212 = vdwg.mxu0
        %v1213 = vsel %vm786, %v1187, -inf
        %1214 = vmax.xlane.f32.xlu0 %v1213
        %v1215 = vpop.xlane.xlu0 %1214
        %v1216 = vsel %vm786, %v1210, -inf
        %1217 = vmax.xlane.f32.xlu0 %v1216
        %v1218 = vpop.xlane.xlu0 %1217
        %v1219 = vsub.f32 %v1187, %v1215
        %v1220 = vsub.f32 %v1210, %v1218
        %v1221 = vmul.f32 %v1219, 1.442695
        %v1222 = vpow.pop %v1221
        %v1223 = vmul.f32 %v1220, 1.442695
        %v1224 = vpow.pop %v1223
        %v1225 = vsel %vm786, %v1222, 0.0
        %1226 = vadd.xlane.f32.xlu0 %v1225
        %v1227 = vpop.xlane.xlu0 %1226
        %v1228 = vsel %vm786, %v1224, 0.0
        %1229 = vadd.xlane.f32.xlu0 %v1228
        %v1230 = vpop.xlane.xlu0 %1229
        %v1231 = vrcp.pop %v1227
        %v1232 = vrcp.pop %v1230
        %v1233 = vmul.f32 %v1222, %v1231
        %v1234 = vmul.f32 %v1224, %v1232
        %v1235 = vpack.c.bf16 %v1233, %v1233
        %v1236 = vpack.c.bf16 %v1234, %v1234
        %1237 = vrot.lane.b32.xlu0 %v739, 40
        %v1238 = vpop.permute.xlu0 %1237
        %v1240 = vsel %vm813, %v1235, 0
        %v1243 = vsel %vm817, %v1238, 0
        %1245 = vmatpush.bf16.msra.mxu0 0
        %1246 = vmatpush.bf16.msra.mxu0 0
        %1247 = vmatpush.bf16.msra.mxu0 0
        %1248 = vmatpush.bf16.msra.mxu0 0
        %1249 = vmatpush.bf16.msra.mxu0 0
        %1250 = vmatpush.bf16.msra.mxu0 0
        %1251 = vmatpush.bf16.msra.mxu0 0
        %1252 = vmatpush.bf16.msra.mxu0 %v1243
        %1253 = vmatmul.bf16.gmra.mxu0 %v1240
        %v1254 = vpop.f32.mrf.mxu0
        %v1255 = vadd.f32 0.0, %v1254
        %v1256 = vpop.f32.mrf.mxu0
        %1257 = vdwg.mxu0
        %1258 = vrot.lane.b32.xlu0 %v764, 40
        %v1259 = vpop.permute.xlu0 %1258
        %v1261 = vsel %vm813, %v1236, 0
        %v1264 = vsel %vm817, %v1259, 0
        %1266 = vmatpush.bf16.msra.mxu0 0
        %1267 = vmatpush.bf16.msra.mxu0 0
        %1268 = vmatpush.bf16.msra.mxu0 0
        %1269 = vmatpush.bf16.msra.mxu0 0
        %1270 = vmatpush.bf16.msra.mxu0 0
        %1271 = vmatpush.bf16.msra.mxu0 0
        %1272 = vmatpush.bf16.msra.mxu0 0
        %1273 = vmatpush.bf16.msra.mxu0 %v1264
        %1274 = vmatmul.bf16.gmra.mxu0 %v1261
        %v1275 = vpop.f32.mrf.mxu0
        %v1276 = vadd.f32 0.0, %v1275
        %v1277 = vpop.f32.mrf.mxu0
        %1278 = vdwg.mxu0
        %1281 = vst [vmem:[#allocation1] ss:$2 sm:$0xff] %v1255
        %s1282 = scalar_lea.vmem [#allocation1], 1
        %1283 = vst [vmem:[%s1282] ss:$2 sm:$0xff] %v1276
        %v1284 = vld.sshfl [vmem:[#allocation1] sm:$0xff pattern:$0x75316420]
        %v1286 = vpack.c.bf16 %v1284, %v1284
        %s1287 = scalar_lea.vmem %s6, 12
        %v1288 = vld [vmem:[%s1287] sm:$0xf]
        %v1290 = vsel %vm742, %v1286, 0
        %v1293 = vsel %vm989, %v1288, 0
        %1295 = vmatpush.bf16.msra.mxu0 0
        %1296 = vmatpush.bf16.msra.mxu0 0
        %1297 = vmatpush.bf16.msra.mxu0 0
        %1298 = vmatpush.bf16.msra.mxu0 0
        %1299 = vmatpush.bf16.msra.mxu0 0
        %1300 = vmatpush.bf16.msra.mxu0 0
        %1301 = vmatpush.bf16.msra.mxu0 0
        %1302 = vmatpush.bf16.msra.mxu0 %v1293
        %1303 = vmatmul.bf16.gmra.mxu0 %v1290
        %v1304 = vpop.f32.mrf.mxu0
        %v1305 = vadd.f32 0.0, %v1304
        %v1306 = vpop.f32.mrf.mxu0
        %1307 = vdwg.mxu0
        %v1308 = vadd.f32 %v1166, %v1305
        %v1309 = vld [vmem:[%s7] sm:$0x1]
        %v1311 = vperm.slane %v1309, 0
        %v1313 = vadd.f32 %v1308, %v1311
        %v1315 = vrot.slane %v1313, 4
        %v1317 = vperm.slane %v623, 2
        %v1318 = vperm.slane %v625, 2
        %v1319 = vmul.f32 %v1317, %v1313
        %v1320 = vmul.f32 %v1318, %v1315
        %v1321 = vadd.f32 %v469, %v1319
        %v1322 = vadd.f32 %v470, %v1320
        %v1323 = vsel %vm626, %v1321, 0.0
        %1324 = vadd.xlane.f32.xlu0 %v1323
        %v1325 = vpop.xlane.xlu0 %1324
        %v1326 = vsel %vm626, %v1322, 0.0
        %1327 = vadd.xlane.f32.xlu0 %v1326
        %v1328 = vpop.xlane.xlu0 %1327
        %v1329 = vmul.f32 %v1325, %v639
        %v1330 = vmul.f32 %v1328, %v639
        %v1331 = vsub.f32 %v1321, %v1329
        %v1332 = vsub.f32 %v1322, %v1330
        %v1333 = vmul.f32 %v1331, %v1331
        %v1334 = vmul.f32 %v1332, %v1332
        %v1335 = vsel %vm626, %v1333, 0.0
        %1336 = vadd.xlane.f32.xlu0 %v1335
        %v1337 = vpop.xlane.xlu0 %1336
        %v1338 = vsel %vm626, %v1334, 0.0
        %1339 = vadd.xlane.f32.xlu0 %v1338
        %v1340 = vpop.xlane.xlu0 %1339
        %v1341 = vmul.f32 %v1337, %v639
        %v1342 = vmul.f32 %v1340, %v639
        %v1343 = vadd.f32 %v1341, 1e-06
        %v1344 = vadd.f32 %v1342, 1e-06
        %v1345 = vrsqrt.pop %v1343
        %v1346 = vmul.f32 %v1345, %v1343
        %v1347 = vmul.f32 %v1346, %v1345
        %v1348 = vmul.f32 0.5, %v1347
        %v1349 = vsub.f32 1.5, %v1348
        %v1350 = vmul.f32 %v1345, %v1349
        %vm1351 = vweird.f32 %v1343
        %vm1352 = vweird.f32 %v1345
        %vm1353 = vmor %vm1351, %vm1352
        %v1354 = vsel %vm1353, %v1345, %v1350
        %v1355 = vrsqrt.pop %v1344
        %v1356 = vmul.f32 %v1355, %v1344
        %v1357 = vmul.f32 %v1356, %v1355
        %v1358 = vmul.f32 0.5, %v1357
        %v1359 = vsub.f32 1.5, %v1358
        %v1360 = vmul.f32 %v1355, %v1359
        %vm1361 = vweird.f32 %v1344
        %vm1362 = vweird.f32 %v1355
        %vm1363 = vmor %vm1361, %vm1362
        %v1364 = vsel %vm1363, %v1355, %v1360
        %v1365 = vmul.f32 %v1331, %v1354
        %v1366 = vmul.f32 %v1332, %v1364
        %v1367 = vperm.slane %v678, 4
        %v1368 = vperm.slane %v679, 4
        %v1369 = vmul.f32 %v1365, %v1367
        %v1370 = vmul.f32 %v1366, %v1368
        %v1371 = vperm.slane %v623, 3
        %v1372 = vperm.slane %v625, 3
        %v1373 = vadd.f32 %v1369, %v1371
        %v1374 = vadd.f32 %v1370, %v1372
        %1377 = vst [vmem:[#allocation1] ss:$2 sm:$0xff] %v1373
        %s1378 = scalar_lea.vmem [#allocation1], 1
        %1379 = vst [vmem:[%s1378] ss:$2 sm:$0xff] %v1374
        %v1380 = vld.sshfl [vmem:[#allocation1] sm:$0xff pattern:$0x75316420]
        %v1382 = vpack.c.bf16 %v1380, %v1380
        %v1383 = vld [vmem:[%s8] sm:$0xf]
        %v1384 = vld [vmem:[%s8 + $0x4] sm:$0xf]
        %v1385 = vld [vmem:[%s8 + $0x8] sm:$0xf]
        %v1386 = vld [vmem:[%s8 + $0xc] sm:$0xf]
        %v1387 = vld [vmem:[#allocation2] sm:$0x1]
        %v1389 = vperm.slane %v1387, 0
        %v1395 = vunpack.c.l.b16 %v1383
        %v1396 = vunpack.c.l.b16 %v1384
        %v1397 = vunpack.c.l.b16 %v1385
        %v1398 = vunpack.c.l.b16 %v1386
        %v1399 = vpack.c.b16 %v1396, %v1395
        %v1400 = vpack.c.b16 %v1398, %v1397
        %v1404 = vsel %vm553, %v1382, 0
        %1406 = vmatpush.bf16.msra.mxu0 0
        %1407 = vmatpush.bf16.msra.mxu0 0
        %1408 = vmatpush.bf16.msra.mxu0 0
        %1409 = vmatpush.bf16.msra.mxu0 0
        %1410 = vmatpush.bf16.msra.mxu0 0
        %1411 = vmatpush.bf16.msra.mxu0 0
        %1412 = vmatpush.bf16.msra.mxu0 %v1400
        %1413 = vmatpush.bf16.msra.mxu0 %v1399
        %1414 = vmatmul.bf16.gmra.mxu0 %v1404
        %v1415 = vpop.f32.mrf.mxu0
        %v1416 = vadd.f32 %v1389, %v1415
        %v1417 = vpop.f32.mrf.mxu0
        %1418 = vdwg.mxu0
        %v1419 = vmul.f32 %v1416, 0.5
        %v1420 = vmul.f32 %v1416, 0.044715
        %v1421 = vmul.f32 %v1420, %v1416
        %v1422 = vmul.f32 %v1421, %v1416
        %v1423 = vadd.f32 %v1416, %v1422
        %v1424 = vmul.f32 %v1423, 0.7978846
        %v1425 = vtanh.pop %v1424
        %v1426 = vadd.f32 %v1425, 1.0
        %v1427 = vmul.f32 %v1419, %v1426
        %v1428 = vpack.c.bf16 %v1427, %v1427
        %v1429 = vld [vmem:[%s10] sm:$0xf]
        %v1430 = vld [vmem:[%s10 + $0x4] sm:$0xf]
        %v1431 = vld [vmem:[%s10 + $0x8] sm:$0xf]
        %v1432 = vld [vmem:[%s10 + $0xc] sm:$0xf]
        %v1433 = vld [vmem:[%s10 + $0x10] sm:$0xf]
        %v1434 = vld [vmem:[%s10 + $0x14] sm:$0xf]
        %v1435 = vld [vmem:[%s10 + $0x18] sm:$0xf]
        %v1436 = vld [vmem:[%s10 + $0x1c] sm:$0xf]
        %v1437 = vld [vmem:[%s10 + $0x20] sm:$0xf]
        %v1438 = vld [vmem:[%s10 + $0x24] sm:$0xf]
        %v1439 = vld [vmem:[%s10 + $0x28] sm:$0xf]
        %v1440 = vld [vmem:[%s10 + $0x2c] sm:$0xf]
        %v1441 = vld [vmem:[%s10 + $0x30] sm:$0xf]
        %v1442 = vld [vmem:[%s10 + $0x34] sm:$0xf]
        %v1443 = vld [vmem:[%s10 + $0x38] sm:$0xf]
        %v1444 = vld [vmem:[%s10 + $0x3c] sm:$0xf]
        %v1445 = vld [vmem:[#allocation4] sm:$0x1]
        %v1447 = vperm.slane %v1445, 0
        %v1465 = vunpack.c.l.b16 %v1429
        %v1466 = vunpack.c.l.b16 %v1430
        %v1467 = vunpack.c.l.b16 %v1431
        %v1468 = vunpack.c.l.b16 %v1432
        %v1469 = vunpack.c.l.b16 %v1433
        %v1470 = vunpack.c.l.b16 %v1434
        %v1471 = vunpack.c.l.b16 %v1435
        %v1472 = vunpack.c.l.b16 %v1436
        %v1473 = vunpack.c.l.b16 %v1437
        %v1474 = vunpack.c.l.b16 %v1438
        %v1475 = vunpack.c.l.b16 %v1439
        %v1476 = vunpack.c.l.b16 %v1440
        %v1477 = vunpack.c.l.b16 %v1441
        %v1478 = vunpack.c.l.b16 %v1442
        %v1479 = vunpack.c.l.b16 %v1443
        %v1480 = vunpack.c.l.b16 %v1444
        %v1481 = vpack.c.b16 %v1466, %v1465
        %v1482 = vpack.c.b16 %v1468, %v1467
        %v1483 = vpack.c.b16 %v1470, %v1469
        %v1484 = vpack.c.b16 %v1472, %v1471
        %v1485 = vpack.c.b16 %v1474, %v1473
        %v1486 = vpack.c.b16 %v1476, %v1475
        %v1487 = vpack.c.b16 %v1478, %v1477
        %v1488 = vpack.c.b16 %v1480, %v1479
        %1497 = vmatpush.bf16.msra.mxu0 %v1488
        %1498 = vmatpush.bf16.msra.mxu0 %v1487
        %1499 = vmatpush.bf16.msra.mxu0 %v1486
        %1500 = vmatpush.bf16.msra.mxu0 %v1485
        %1501 = vmatpush.bf16.msra.mxu0 %v1484
        %1502 = vmatpush.bf16.msra.mxu0 %v1483
        %1503 = vmatpush.bf16.msra.mxu0 %v1482
        %1504 = vmatpush.bf16.msra.mxu0 %v1481
        %1505 = vmatmul.bf16.gmra.mxu0 %v1428
        %v1506 = vpop.f32.mrf.mxu0
        %v1507 = vadd.f32 %v1447, %v1506
        %v1508 = vpop.f32.mrf.mxu0
        %1509 = vdwg.mxu0
        %v1511 = vrot.slane %v1507, 4
        %v1513 = vperm.slane %v623, 5
        %v1514 = vperm.slane %v625, 5
        %v1515 = vmul.f32 %v1513, %v1507
        %v1516 = vmul.f32 %v1514, %v1511
        %v1517 = vadd.f32 %v1321, %v1515
        %v1518 = vadd.f32 %v1322, %v1516
        %v1519 = vpack.c.bf16 %v1517, %v1517
        %v1520 = vpack.c.bf16 %v1518, %v1518
        %vm1521 = vcmask 254976
        %1522 = vst.msk [vmem:[%s464] sm:$0x3] %vm1521, %v1519
        %1523 = vst.msk [vmem:[%s464 + $0x2] sm:$0x3] %vm1521, %v1520
        %s1524 = smul.u32 2, %s25
        %p1525 = scmp.lt.s32.totalorder %s1524, 7
        %s1526 = scalar_select %p1525, %s1524, 7
        %s1527 = smul.addr %s1526, 2
        %s1528 = scalar_lea.vmem %s12, %s1527
        // Predicated region
        $region77: #{forward.13} parent=67 // pred_check
          %p1529 = pneg %p305
        $region78: #{forward.13} parent=67 // pred_check_branch
          %1531 = sbr.rel (%p1529) target = $region80
        $region79: #{forward.13} parent=67 // pred_region
          %s1532 = smul.u32 2, %s25
        $region80: #{forward.13} parent=67 // pred_fallthru
          _
      $region68: #{forward.13} parent=5 // pred_fallthru
        _
      %p1533 = scmp.le.s32.totalorder 2, %s20
      // Predicated region
      $region81: #{forward.13} parent=5 // pred_check
        %p1534 = pneg %p1533
      $region82: #{forward.13} parent=5 // pred_check_branch
        %1536 = sbr.rel (%p1534) target = $region84
      $region83: #{forward.13} parent=5 // pred_region
        %s1537 = ssub.s32 %s20, 2
        // Predicated region
        $region85: #{forward.13} parent=83 // pred_check
          %p1538 = pneg %p311
        $region86: #{forward.13} parent=83 // pred_check_branch
          %1540 = sbr.rel (%p1538) target = $region88
        $region87: #{forward.13} parent=83 // pred_region
          %s1541 = smul.u32 2, %s26
          %p1542 = scmp.lt.s32.totalorder %s1541, 7
          %s1543 = scalar_select %p1542, %s1541, 7
          %s1544 = smul.addr %s1543, 2
          %s1545 = scalar_lea.vmem %s12, %s1544
        $region88: #{forward.13} parent=83 // pred_fallthru
          _
      $region84: #{forward.13} parent=5 // pred_fallthru
        _
    $region6: #{forward.13} parent=1 // loop_footer
      %s24 = sadd.s32 1, %s20
    $region7: #{forward.13} parent=1 // loop_footer_branch
      %19 = sbr.rel target = $region3
    $region8: #{forward.13} parent=1 // loop_exit
      _
    %1546 = vsyncpa [#allocation3], 1
    %s1547 = scalar_lea.sflag [#allocation3], 1
    %1548 = vsyncpa %s1547, 1
    %1549 = vsyncpa [#allocation5], 1

// kernel: forward.11
$region0: #{forward.11}
  #allocation0 [shape = 'u32[]', space=smem, size = 0x4, offset = 0x4, fixed_abs, tag = 'smem constant byte address 0x4 - core index']
  #allocation1 [shape = 'u32[72,128]{1,0:T(1,128)}', space=vmem, size = 0x9000, scoped, tag = 'internal scratch']
  %s0 = inlined_call_operand.vmem [shape: bf16[8,4,32], index: 0, kind: input, shape index: {}]
  %s1 = inlined_call_operand.vmem [shape: f32[8,1,32], index: 1, kind: input, shape index: {}]
  %s2 = inlined_call_operand.vmem [shape: bf16[32,192], index: 2, kind: input, shape index: {}]
  %s3 = inlined_call_operand.vmem [shape: f32[1,192], index: 3, kind: input, shape index: {}]
  %s4 = inlined_call_operand.vmem [shape: bf16[32,96], index: 4, kind: input, shape index: {}]
  %s5 = inlined_call_operand.vmem [shape: f32[1,96], index: 5, kind: input, shape index: {}]
  %s6 = inlined_call_operand.vmem [shape: bf16[4,8,32], index: 6, kind: input, shape index: {}]
  %s7 = inlined_call_operand.vmem [shape: f32[1,32], index: 7, kind: input, shape index: {}]
  %s8 = inlined_call_operand.vmem [shape: bf16[32,128], index: 8, kind: input, shape index: {}]
  %s9 = inlined_call_operand.vmem [shape: f32[1,128], index: 9, kind: input, shape index: {}]
  %s10 = inlined_call_operand.vmem [shape: bf16[128,32], index: 10, kind: input, shape index: {}]
  %s11 = inlined_call_operand.vmem [shape: f32[1,32], index: 11, kind: input, shape index: {}]
  %s12 = inlined_call_operand.vmem [shape: bf16[8,4,32], index: 12, kind: output, shape index: {}]
  %s13 = sld [smem:[#allocation0]]
  $region81: #{forward.11} parent=0
    _
  %s15 = ssub.s32 1, %s13
  %s16 = scalar_select 0, %s15, %s13
  loop: start=0, step=1, limit=6
  $region2: #{forward.11} parent=0 // loop_pre_header
    _
  $region3: #{forward.11} parent=0 // loop_header
    %s18 = sphi 0, %s22
    %p19 = scmp.ge.s32.totalorder %s18, 6
    %s28 = sphi 0, %s30
    %s31 = sphi 0, %s28
    %s32 = sphi 0, %s31
    %s48 = sphi 0, %s32
    %s54 = sphi 0, %s56
    %s57 = sphi 0, %s54
    %s58 = sphi 0, %s57
    %s74 = sphi 0, %s58
    %s78 = sphi 0, %s78
    %s80 = sphi 0, %s78
    %s81 = sphi 0, %s80
    %s95 = sphi 0, %s81
    %s99 = sphi 0, %s99
    %s101 = sphi 0, %s99
    %s102 = sphi 0, %s101
    %s116 = sphi 0, %s102
    %s120 = sphi 0, %s120
    %s122 = sphi 0, %s120
    %s123 = sphi 0, %s122
    %s137 = sphi 0, %s123
    %s141 = sphi 0, %s141
    %s143 = sphi 0, %s141
    %s144 = sphi 0, %s143
    %s158 = sphi 0, %s144
    %s162 = sphi 0, %s162
    %s164 = sphi 0, %s162
    %s165 = sphi 0, %s164
    %s179 = sphi 0, %s165
    %s183 = sphi 0, %s183
    %s185 = sphi 0, %s183
    %s186 = sphi 0, %s185
    %s200 = sphi 0, %s186
    %s204 = sphi 0, %s204
    %s206 = sphi 0, %s204
    %s207 = sphi 0, %s206
    %s221 = sphi 0, %s207
    %s225 = sphi 0, %s225
    %s227 = sphi 0, %s225
    %s228 = sphi 0, %s227
    %s242 = sphi 0, %s228
    %s246 = sphi 0, %s246
    %s248 = sphi 0, %s246
    %s249 = sphi 0, %s248
    %s263 = sphi 0, %s249
    %s267 = sphi 0, %s267
    %s269 = sphi 0, %s267
    %s270 = sphi 0, %s269
    %s284 = sphi 0, %s270
    %s290 = sphi 0, %s292
    %s293 = sphi 0, %s290
    %s294 = sphi 0, %s293
    %s310 = sphi 0, %s294
  $region4: #{forward.11} parent=0 // loop_header_branch
    %21 = sbr.rel (%p19) target = $region8
  $region5: #{forward.11} parent=0 // loop_body
    %s23 = ssub.s32 %s18, 1
    %s24 = ssub.s32 %s18, 2
    %s25 = sadd.s32 %s18, 1
    %s26 = ssub.s32 %s18, %s25
    %p27 = scmp.eq.s32.totalorder %s26, 0
    %s29 = sadd.s32 %s28, 1
    %s30 = scalar_select %p27, %s28, %s29
    %p33 = pneg %p27
    %p34 = scmp.eq.s32.totalorder %s18, 3
    %p35 = por %p33, %p34
    %p36 = scmp.ne.s32.totalorder %s28, %s31
    %p37 = scmp.eq.s32.totalorder %s18, 0
    %p38 = por %p36, %p37
    %p39 = scmp.ne.s32.totalorder %s28, %s31
    %p40 = scmp.eq.s32.totalorder %s23, 3
    %p41 = por %p39, %p40
    %p42 = scmp.ne.s32.totalorder %s31, %s32
    %p43 = scmp.eq.s32.totalorder %s23, 0
    %p44 = por %p42, %p43
    %p45 = scmp.ne.s32.totalorder %s31, %s32
    %p46 = scmp.eq.s32.totalorder %s24, 3
    %p47 = por %p45, %p46
    %p49 = scmp.ne.s32.totalorder %s32, %s48
    %p50 = scmp.eq.s32.totalorder %s24, 0
    %p51 = por %p49, %p50
    %s52 = ssub.s32 %s18, %s25
    %p53 = scmp.eq.s32.totalorder %s52, 0
    %s55 = sadd.s32 %s54, 1
    %s56 = scalar_select %p53, %s54, %s55
    %p59 = pneg %p53
    %p60 = scmp.eq.s32.totalorder %s18, 3
    %p61 = por %p59, %p60
    %p62 = scmp.ne.s32.totalorder %s54, %s57
    %p63 = scmp.eq.s32.totalorder %s18, 0
    %p64 = por %p62, %p63
    %p65 = scmp.ne.s32.totalorder %s54, %s57
    %p66 = scmp.eq.s32.totalorder %s23, 3
    %p67 = por %p65, %p66
    %p68 = scmp.ne.s32.totalorder %s57, %s58
    %p69 = scmp.eq.s32.totalorder %s23, 0
    %p70 = por %p68, %p69
    %p71 = scmp.ne.s32.totalorder %s57, %s58
    %p72 = scmp.eq.s32.totalorder %s24, 3
    %p73 = por %p71, %p72
    %p75 = scmp.ne.s32.totalorder %s58, %s74
    %p76 = scmp.eq.s32.totalorder %s24, 0
    %p77 = por %p75, %p76
    %s79 = sadd.s32 %s78, 1
    %p82 = scmp.eq.s32.totalorder %s18, 3
    %p83 = scmp.ne.s32.totalorder %s78, %s80
    %p84 = scmp.eq.s32.totalorder %s18, 0
    %p85 = por %p83, %p84
    %p86 = scmp.ne.s32.totalorder %s78, %s80
    %p87 = scmp.eq.s32.totalorder %s23, 3
    %p88 = por %p86, %p87
    %p89 = scmp.ne.s32.totalorder %s80, %s81
    %p90 = scmp.eq.s32.totalorder %s23, 0
    %p91 = por %p89, %p90
    %p92 = scmp.ne.s32.totalorder %s80, %s81
    %p93 = scmp.eq.s32.totalorder %s24, 3
    %p94 = por %p92, %p93
    %p96 = scmp.ne.s32.totalorder %s81, %s95
    %p97 = scmp.eq.s32.totalorder %s24, 0
    %p98 = por %p96, %p97
    %s100 = sadd.s32 %s99, 1
    %p103 = scmp.eq.s32.totalorder %s18, 3
    %p104 = scmp.ne.s32.totalorder %s99, %s101
    %p105 = scmp.eq.s32.totalorder %s18, 0
    %p106 = por %p104, %p105
    %p107 = scmp.ne.s32.totalorder %s99, %s101
    %p108 = scmp.eq.s32.totalorder %s23, 3
    %p109 = por %p107, %p108
    %p110 = scmp.ne.s32.totalorder %s101, %s102
    %p111 = scmp.eq.s32.totalorder %s23, 0
    %p112 = por %p110, %p111
    %p113 = scmp.ne.s32.totalorder %s101, %s102
    %p114 = scmp.eq.s32.totalorder %s24, 3
    %p115 = por %p113, %p114
    %p117 = scmp.ne.s32.totalorder %s102, %s116
    %p118 = scmp.eq.s32.totalorder %s24, 0
    %p119 = por %p117, %p118
    %s121 = sadd.s32 %s120, 1
    %p124 = scmp.eq.s32.totalorder %s18, 3
    %p125 = scmp.ne.s32.totalorder %s120, %s122
    %p126 = scmp.eq.s32.totalorder %s18, 0
    %p127 = por %p125, %p126
    %p128 = scmp.ne.s32.totalorder %s120, %s122
    %p129 = scmp.eq.s32.totalorder %s23, 3
    %p130 = por %p128, %p129
    %p131 = scmp.ne.s32.totalorder %s122, %s123
    %p132 = scmp.eq.s32.totalorder %s23, 0
    %p133 = por %p131, %p132
    %p134 = scmp.ne.s32.totalorder %s122, %s123
    %p135 = scmp.eq.s32.totalorder %s24, 3
    %p136 = por %p134, %p135
    %p138 = scmp.ne.s32.totalorder %s123, %s137
    %p139 = scmp.eq.s32.totalorder %s24, 0
    %p140 = por %p138, %p139
    %s142 = sadd.s32 %s141, 1
    %p145 = scmp.eq.s32.totalorder %s18, 3
    %p146 = scmp.ne.s32.totalorder %s141, %s143
    %p147 = scmp.eq.s32.totalorder %s18, 0
    %p148 = por %p146, %p147
    %p149 = scmp.ne.s32.totalorder %s141, %s143
    %p150 = scmp.eq.s32.totalorder %s23, 3
    %p151 = por %p149, %p150
    %p152 = scmp.ne.s32.totalorder %s143, %s144
    %p153 = scmp.eq.s32.totalorder %s23, 0
    %p154 = por %p152, %p153
    %p155 = scmp.ne.s32.totalorder %s143, %s144
    %p156 = scmp.eq.s32.totalorder %s24, 3
    %p157 = por %p155, %p156
    %p159 = scmp.ne.s32.totalorder %s144, %s158
    %p160 = scmp.eq.s32.totalorder %s24, 0
    %p161 = por %p159, %p160
    %s163 = sadd.s32 %s162, 1
    %p166 = scmp.eq.s32.totalorder %s18, 3
    %p167 = scmp.ne.s32.totalorder %s162, %s164
    %p168 = scmp.eq.s32.totalorder %s18, 0
    %p169 = por %p167, %p168
    %p170 = scmp.ne.s32.totalorder %s162, %s164
    %p171 = scmp.eq.s32.totalorder %s23, 3
    %p172 = por %p170, %p171
    %p173 = scmp.ne.s32.totalorder %s164, %s165
    %p174 = scmp.eq.s32.totalorder %s23, 0
    %p175 = por %p173, %p174
    %p176 = scmp.ne.s32.totalorder %s164, %s165
    %p177 = scmp.eq.s32.totalorder %s24, 3
    %p178 = por %p176, %p177
    %p180 = scmp.ne.s32.totalorder %s165, %s179
    %p181 = scmp.eq.s32.totalorder %s24, 0
    %p182 = por %p180, %p181
    %s184 = sadd.s32 %s183, 1
    %p187 = scmp.eq.s32.totalorder %s18, 3
    %p188 = scmp.ne.s32.totalorder %s183, %s185
    %p189 = scmp.eq.s32.totalorder %s18, 0
    %p190 = por %p188, %p189
    %p191 = scmp.ne.s32.totalorder %s183, %s185
    %p192 = scmp.eq.s32.totalorder %s23, 3
    %p193 = por %p191, %p192
    %p194 = scmp.ne.s32.totalorder %s185, %s186
    %p195 = scmp.eq.s32.totalorder %s23, 0
    %p196 = por %p194, %p195
    %p197 = scmp.ne.s32.totalorder %s185, %s186
    %p198 = scmp.eq.s32.totalorder %s24, 3
    %p199 = por %p197, %p198
    %p201 = scmp.ne.s32.totalorder %s186, %s200
    %p202 = scmp.eq.s32.totalorder %s24, 0
    %p203 = por %p201, %p202
    %s205 = sadd.s32 %s204, 1
    %p208 = scmp.eq.s32.totalorder %s18, 3
    %p209 = scmp.ne.s32.totalorder %s204, %s206
    %p210 = scmp.eq.s32.totalorder %s18, 0
    %p211 = por %p209, %p210
    %p212 = scmp.ne.s32.totalorder %s204, %s206
    %p213 = scmp.eq.s32.totalorder %s23, 3
    %p214 = por %p212, %p213
    %p215 = scmp.ne.s32.totalorder %s206, %s207
    %p216 = scmp.eq.s32.totalorder %s23, 0
    %p217 = por %p215, %p216
    %p218 = scmp.ne.s32.totalorder %s206, %s207
    %p219 = scmp.eq.s32.totalorder %s24, 3
    %p220 = por %p218, %p219
    %p222 = scmp.ne.s32.totalorder %s207, %s221
    %p223 = scmp.eq.s32.totalorder %s24, 0
    %p224 = por %p222, %p223
    %s226 = sadd.s32 %s225, 1
    %p229 = scmp.eq.s32.totalorder %s18, 3
    %p230 = scmp.ne.s32.totalorder %s225, %s227
    %p231 = scmp.eq.s32.totalorder %s18, 0
    %p232 = por %p230, %p231
    %p233 = scmp.ne.s32.totalorder %s225, %s227
    %p234 = scmp.eq.s32.totalorder %s23, 3
    %p235 = por %p233, %p234
    %p236 = scmp.ne.s32.totalorder %s227, %s228
    %p237 = scmp.eq.s32.totalorder %s23, 0
    %p238 = por %p236, %p237
    %p239 = scmp.ne.s32.totalorder %s227, %s228
    %p240 = scmp.eq.s32.totalorder %s24, 3
    %p241 = por %p239, %p240
    %p243 = scmp.ne.s32.totalorder %s228, %s242
    %p244 = scmp.eq.s32.totalorder %s24, 0
    %p245 = por %p243, %p244
    %s247 = sadd.s32 %s246, 1
    %p250 = scmp.eq.s32.totalorder %s18, 3
    %p251 = scmp.ne.s32.totalorder %s246, %s248
    %p252 = scmp.eq.s32.totalorder %s18, 0
    %p253 = por %p251, %p252
    %p254 = scmp.ne.s32.totalorder %s246, %s248
    %p255 = scmp.eq.s32.totalorder %s23, 3
    %p256 = por %p254, %p255
    %p257 = scmp.ne.s32.totalorder %s248, %s249
    %p258 = scmp.eq.s32.totalorder %s23, 0
    %p259 = por %p257, %p258
    %p260 = scmp.ne.s32.totalorder %s248, %s249
    %p261 = scmp.eq.s32.totalorder %s24, 3
    %p262 = por %p260, %p261
    %p264 = scmp.ne.s32.totalorder %s249, %s263
    %p265 = scmp.eq.s32.totalorder %s24, 0
    %p266 = por %p264, %p265
    %s268 = sadd.s32 %s267, 1
    %p271 = scmp.eq.s32.totalorder %s18, 3
    %p272 = scmp.ne.s32.totalorder %s267, %s269
    %p273 = scmp.eq.s32.totalorder %s18, 0
    %p274 = por %p272, %p273
    %p275 = scmp.ne.s32.totalorder %s267, %s269
    %p276 = scmp.eq.s32.totalorder %s23, 3
    %p277 = por %p275, %p276
    %p278 = scmp.ne.s32.totalorder %s269, %s270
    %p279 = scmp.eq.s32.totalorder %s23, 0
    %p280 = por %p278, %p279
    %p281 = scmp.ne.s32.totalorder %s269, %s270
    %p282 = scmp.eq.s32.totalorder %s24, 3
    %p283 = por %p281, %p282
    %p285 = scmp.ne.s32.totalorder %s270, %s284
    %p286 = scmp.eq.s32.totalorder %s24, 0
    %p287 = por %p285, %p286
    %s288 = ssub.s32 %s18, %s25
    %p289 = scmp.eq.s32.totalorder %s288, 0
    %s291 = sadd.s32 %s290, 1
    %s292 = scalar_select %p289, %s290, %s291
    %p295 = pneg %p289
    %p296 = scmp.eq.s32.totalorder %s18, 3
    %p297 = por %p295, %p296
    %p298 = scmp.ne.s32.totalorder %s290, %s293
    %p299 = scmp.eq.s32.totalorder %s18, 0
    %p300 = por %p298, %p299
    %p301 = scmp.ne.s32.totalorder %s290, %s293
    %p302 = scmp.eq.s32.totalorder %s23, 3
    %p303 = por %p301, %p302
    %p304 = scmp.ne.s32.totalorder %s293, %s294
    %p305 = scmp.eq.s32.totalorder %s23, 0
    %p306 = por %p304, %p305
    %p307 = scmp.ne.s32.totalorder %s293, %s294
    %p308 = scmp.eq.s32.totalorder %s24, 3
    %p309 = por %p307, %p308
    %p311 = scmp.ne.s32.totalorder %s294, %s310
    %p312 = scmp.eq.s32.totalorder %s24, 0
    %p313 = por %p311, %p312
    %p314 = scmp.le.s32.totalorder 1, %s18
    %p315 = scmp.lt.s32.totalorder %s18, 5
    %p316 = pnand %p314, %p315
    %p317 = pneg %p316
    // Predicated region
    $region9: #{forward.11} parent=5 // pred_check
      _
    $region10: #{forward.11} parent=5 // pred_check_branch
      %319 = sbr.rel (%p316) target = $region12
    $region11: #{forward.11} parent=5 // pred_region
      %s320 = ssub.s32 %s18, 1
      // Predicated region
      $region13: #{forward.11} parent=11 // pred_check
        %p321 = pneg %p91
      $region14: #{forward.11} parent=11 // pred_check_branch
        %323 = sbr.rel (%p321) target = $region16
      $region15: #{forward.11} parent=11 // pred_region
        _
      $region16: #{forward.11} parent=11 // pred_fallthru
        _
      // Predicated region
      $region17: #{forward.11} parent=11 // pred_check
        %p324 = pneg %p112
      $region18: #{forward.11} parent=11 // pred_check_branch
        %326 = sbr.rel (%p324) target = $region20
      $region19: #{forward.11} parent=11 // pred_region
        _
      $region20: #{forward.11} parent=11 // pred_fallthru
        _
      // Predicated region
      $region21: #{forward.11} parent=11 // pred_check
        %p327 = pneg %p133
      $region22: #{forward.11} parent=11 // pred_check_branch
        %329 = sbr.rel (%p327) target = $region24
      $region23: #{forward.11} parent=11 // pred_region
        _
      $region24: #{forward.11} parent=11 // pred_fallthru
        _
      // Predicated region
      $region25: #{forward.11} parent=11 // pred_check
        %p330 = pneg %p154
      $region26: #{forward.11} parent=11 // pred_check_branch
        %332 = sbr.rel (%p330) target = $region28
      $region27: #{forward.11} parent=11 // pred_region
        _
      $region28: #{forward.11} parent=11 // pred_fallthru
        _
      // Predicated region
      $region29: #{forward.11} parent=11 // pred_check
        %p333 = pneg %p175
      $region30: #{forward.11} parent=11 // pred_check_branch
        %335 = sbr.rel (%p333) target = $region32
      $region31: #{forward.11} parent=11 // pred_region
        _
      $region32: #{forward.11} parent=11 // pred_fallthru
        _
      // Predicated region
      $region33: #{forward.11} parent=11 // pred_check
        %p336 = pneg %p196
      $region34: #{forward.11} parent=11 // pred_check_branch
        %338 = sbr.rel (%p336) target = $region36
      $region35: #{forward.11} parent=11 // pred_region
        _
      $region36: #{forward.11} parent=11 // pred_fallthru
        _
      // Predicated region
      $region37: #{forward.11} parent=11 // pred_check
        %p339 = pneg %p217
      $region38: #{forward.11} parent=11 // pred_check_branch
        %341 = sbr.rel (%p339) target = $region40
      $region39: #{forward.11} parent=11 // pred_region
        _
      $region40: #{forward.11} parent=11 // pred_fallthru
        _
      // Predicated region
      $region41: #{forward.11} parent=11 // pred_check
        %p342 = pneg %p238
      $region42: #{forward.11} parent=11 // pred_check_branch
        %344 = sbr.rel (%p342) target = $region44
      $region43: #{forward.11} parent=11 // pred_region
        _
      $region44: #{forward.11} parent=11 // pred_fallthru
        _
      // Predicated region
      $region45: #{forward.11} parent=11 // pred_check
        %p345 = pneg %p259
      $region46: #{forward.11} parent=11 // pred_check_branch
        %347 = sbr.rel (%p345) target = $region48
      $region47: #{forward.11} parent=11 // pred_region
        _
      $region48: #{forward.11} parent=11 // pred_fallthru
        _
      // Predicated region
      $region49: #{forward.11} parent=11 // pred_check
        %p348 = pneg %p280
      $region50: #{forward.11} parent=11 // pred_check_branch
        %350 = sbr.rel (%p348) target = $region52
      $region51: #{forward.11} parent=11 // pred_region
        _
      $region52: #{forward.11} parent=11 // pred_fallthru
        _
    $region12: #{forward.11} parent=5 // pred_fallthru
      _
    %p351 = scmp.lt.s32.totalorder %s18, 4
    // Predicated region
    $region53: #{forward.11} parent=5 // pred_check
      %p352 = pneg %p351
    $region54: #{forward.11} parent=5 // pred_check_branch
      %354 = sbr.rel (%p352) target = $region56
    $region55: #{forward.11} parent=5 // pred_region
      // Predicated region
      $region57: #{forward.11} parent=55 // pred_check
        %p355 = pneg %p38
      $region58: #{forward.11} parent=55 // pred_check_branch
        %357 = sbr.rel (%p355) target = $region60
      $region59: #{forward.11} parent=55 // pred_region
        %s358 = smul.u32 2, %s18
        %p359 = scmp.lt.s32.totalorder %s358, 7
        %s360 = scalar_select %p359, %s358, 7
        %s361 = smul.addr %s360, 2
        %s362 = scalar_lea.vmem %s0, %s361
        %s363 = smul.u32 2, %s18
      $region60: #{forward.11} parent=55 // pred_fallthru
        _
      // Predicated region
      $region61: #{forward.11} parent=55 // pred_check
        %p364 = pneg %p64
      $region62: #{forward.11} parent=55 // pred_check_branch
        %366 = sbr.rel (%p364) target = $region64
      $region63: #{forward.11} parent=55 // pred_region
        %s367 = smul.u32 2, %s18
        %p368 = scmp.lt.s32.totalorder %s367, 7
        %s369 = scalar_select %p368, %s367, 7
        %s370 = scalar_lea.vmem %s1, %s369
        %s371 = smul.u32 2, %s18
      $region64: #{forward.11} parent=55 // pred_fallthru
        _
    $region56: #{forward.11} parent=5 // pred_fallthru
      _
    %p372 = scmp.le.s32.totalorder 1, %s18
    %p373 = scmp.lt.s32.totalorder %s18, 5
    %p374 = pnand %p372, %p373
    %p375 = pneg %p374
    // Predicated region
    $region65: #{forward.11} parent=5 // pred_check
      _
    $region66: #{forward.11} parent=5 // pred_check_branch
      %377 = sbr.rel (%p374) target = $region68
    $region67: #{forward.11} parent=5 // pred_region
      %s378 = ssub.s32 %s18, 1
      %s379 = smul.u32 2, %s23
      %p380 = scmp.lt.s32.totalorder %s379, 7
      %s381 = scalar_select %p380, %s379, 7
      %s382 = smul.addr %s381, 2
      %s383 = scalar_lea.vmem %s0, %s382
      %p384 = pneg %p44
      %p385 = pneg %p41
      %s386 = smul.u32 2, %s23
      %p387 = scmp.lt.s32.totalorder %s386, 7
      %s388 = scalar_select %p387, %s386, 7
      %s389 = scalar_lea.vmem %s1, %s388
      %p390 = pneg %p70
      %p391 = pneg %p67
      %p392 = pneg %p91
      %p393 = pneg %p88
      %p394 = pneg %p112
      %p395 = pneg %p109
      %p396 = pneg %p133
      %p397 = pneg %p130
      %p398 = pneg %p154
      %p399 = pneg %p151
      %p400 = pneg %p175
      %p401 = pneg %p172
      %p402 = pneg %p196
      %p403 = pneg %p193
      %p404 = pneg %p217
      %p405 = pneg %p214
      %p406 = pneg %p238
      %p407 = pneg %p235
      %p408 = pneg %p259
      %p409 = pneg %p256
      %p410 = pneg %p280
      %p411 = pneg %p277
      %p412 = pneg %p306
      %p413 = pneg %p303
      %s414 = smul.u32 2, %s23
      %p415 = scmp.lt.s32.totalorder %s414, 7
      %s416 = scalar_select %p415, %s414, 7
      %s417 = smul.addr %s416, 2
      %s418 = scalar_lea.vmem %s12, %s417
      %s419 = smul.u32 2, %s23
      %p420 = scmp.lt.s32.totalorder %s419, 7
      %s421 = scalar_select %p420, %s419, 7
      %s422 = smul.addr %s421, 2
      %s423 = scalar_lea.vmem %s0, %s422
      %s424 = smul.u32 2, %s23
      %s425 = smul.u32 2, %s23
      %p426 = scmp.lt.s32.totalorder %s425, 7
      %s427 = scalar_select %p426, %s425, 7
      %s428 = scalar_lea.vmem %s1, %s427
      %s429 = smul.u32 2, %s23
      %s430 = smul.u32 2, %s23
      %p431 = scmp.lt.s32.totalorder %s430, 7
      %s432 = scalar_select %p431, %s430, 7
      %s433 = smul.addr %s432, 2
      %s434 = scalar_lea.vmem %s12, %s433
      %s435 = smul.u32 2, %s23
      %v437 = vld [vmem:[%s423] sm:$0x3]
      %v438 = vld [vmem:[%s423 + $0x2] sm:$0x3]
      %v439 = vunpack.c.l.bf16 %v437
      %v440 = vunpack.c.l.bf16 %v438
      %v441 = vld [vmem:[%s428] sm:$0x1]
      %v442 = vld [vmem:[%s428 + $0x1] sm:$0x1]
      %v443 = vxor.u32 %v441, 2147483648
      %v444 = vxor.u32 %v442, 2147483648
      %v445 = vmul.f32 %v443, 1.442695
      %v446 = vpow.pop %v445
      %v447 = vmul.f32 %v444, 1.442695
      %v448 = vpow.pop %v447
      %v449 = vadd.f32 %v446, 1.0
      %v450 = vadd.f32 %v448, 1.0
      %v451 = vrcp.pop %v449
      %v452 = vmul.f32 %v449, %v451
      %v453 = vsub.f32 1.0, %v452
      %v454 = vmul.f32 %v451, %v453
      %v455 = vadd.f32 %v451, %v454
      %vm456 = vweird.f32 %v449
      %vm457 = vweird.f32 %v451
      %vm458 = vmor %vm456, %vm457
      %v459 = vsel %vm458, %v451, %v455
      %v460 = vand.u32 2147483647, %v449
      %vm461 = vcmp.eq.f32.partialorder %v460, 8.507059e+37
      %v462 = vand.u32 %v449, 2147483648
      %v463 = vor.u32 1.1754944e-38, %v462
      %v464 = vsel %vm461, %v463, %v459
      %v465 = vmul.f32 1.0, %v464
      %v466 = vrcp.pop %v450
      %v467 = vmul.f32 %v450, %v466
      %v468 = vsub.f32 1.0, %v467
      %v469 = vmul.f32 %v466, %v468
      %v470 = vadd.f32 %v466, %v469
      %vm471 = vweird.f32 %v450
      %vm472 = vweird.f32 %v466
      %vm473 = vmor %vm471, %vm472
      %v474 = vsel %vm473, %v466, %v470
      %v475 = vand.u32 2147483647, %v450
      %vm476 = vcmp.eq.f32.partialorder %v475, 8.507059e+37
      %v477 = vand.u32 %v450, 2147483648
      %v478 = vor.u32 1.1754944e-38, %v477
      %v479 = vsel %vm476, %v478, %v474
      %v480 = vmul.f32 1.0, %v479
      %v481 = vmul.f32 %v441, %v465
      %v482 = vmul.f32 %v442, %v480
      %v483 = vpack.c.bf16 %v481, %v481
      %v484 = vpack.c.bf16 %v482, %v482
      %v485 = vld [vmem:[%s2] sm:$0xff]
      %v486 = vld [vmem:[%s2 + $0x8] sm:$0xff]
      %v487 = vld [vmem:[%s2 + $0x10] sm:$0xff]
      %v488 = vld [vmem:[%s2 + $0x18] sm:$0xff]
      %v489 = vld [vmem:[%s3] sm:$0x3]
      %v491 = vperm.slane %v489, 0
      %v492 = vperm.slane %v489, 1
      %v497 = vunpack.c.l.b16 %v483
      %v498 = vunpack.c.l.b16 %v484
      %v499 = vrot.slane %v498, 7
      %vm500 = vcmask 1041409
      %v501 = vsel %vm500, %v499, %v497
      %v502 = vpack.c.b16 %v501, %v501
      %v507 = vunpack.c.l.b16 %v485
      %v508 = vunpack.c.h.b16 %v485
      %v509 = vunpack.c.l.b16 %v486
      %v510 = vunpack.c.h.b16 %v486
      %v511 = vunpack.c.l.b16 %v487
      %v512 = vunpack.c.h.b16 %v487
      %v513 = vunpack.c.l.b16 %v488
      %v514 = vunpack.c.h.b16 %v488
      %v515 = vpack.c.b16 %v509, %v507
      %v516 = vpack.c.b16 %v510, %v508
      %v517 = vpack.c.b16 %v513, %v511
      %v518 = vpack.c.b16 %v514, %v512
      %vm523 = vcmask 261120
      %v525 = vsel %vm523, %v502, 0
      %527 = vmatpush.bf16.msra.mxu0 0
      %528 = vmatpush.bf16.msra.mxu0 0
      %529 = vmatpush.bf16.msra.mxu0 0
      %530 = vmatpush.bf16.msra.mxu0 0
      %531 = vmatpush.bf16.msra.mxu0 0
      %532 = vmatpush.bf16.msra.mxu0 0
      %533 = vmatpush.bf16.msra.mxu0 %v517
      %534 = vmatpush.bf16.msra.mxu0 %v515
      %535 = vmatmul.bf16.gmra.mxu0 %v525
      %v536 = vpop.f32.mrf.mxu0
      %v537 = vadd.f32 %v491, %v536
      %v538 = vpop.f32.mrf.mxu0
      %539 = vdwg.mxu0
      %540 = vmatpush.bf16.msra.mxu0 0
      %541 = vmatpush.bf16.msra.mxu0 0
      %542 = vmatpush.bf16.msra.mxu0 0
      %543 = vmatpush.bf16.msra.mxu0 0
      %544 = vmatpush.bf16.msra.mxu0 0
      %545 = vmatpush.bf16.msra.mxu0 0
      %546 = vmatpush.bf16.msra.mxu0 %v518
      %547 = vmatpush.bf16.msra.mxu0 %v516
      %548 = vmatmul.bf16.gmra.mxu0 %v525
      %v549 = vpop.f32.mrf.mxu0
      %v550 = vadd.f32 %v492, %v549
      %v551 = vpop.f32.mrf.mxu0
      %552 = vdwg.mxu0
      %554 = vrot.lane.b32.xlu0 %v537, 96
      %v555 = vpop.permute.xlu0 %554
      %557 = vrot.lane.b32.xlu0 %v537, 64
      %v558 = vpop.permute.xlu0 %557
      %560 = vrot.lane.b32.xlu0 %v537, 32
      %v561 = vpop.permute.xlu0 %560
      %564 = vrot.lane.b32.xlu0 %v550, 96
      %v565 = vpop.permute.xlu0 %564
      %v566 = vrot.slane %v558, 4
      %vm567 = vcmask 1047556
      %v568 = vsel %vm567, %v566, %v537
      %v570 = vunpack.c.l.s4 1983009808
      %v571 = vunpack.c.0.s8 %v570
      %v572 = vperm.slane %v568, %v571
      %v573 = vrot.slane %v561, 4
      %v574 = vsel %vm567, %v573, %v555
      %v576 = vunpack.c.l.s4 1983009808
      %v577 = vunpack.c.0.s8 %v576
      %v578 = vperm.slane %v574, %v577
      %v580 = vrot.slane %v578, 4
      %v581 = vsel %vm567, %v580, %v572
      %v583 = vunpack.c.l.s4 1934713408
      %v584 = vunpack.c.0.s8 %v583
      %v585 = vperm.slane %v581, %v584
      %v586 = vrot.slane %v565, 4
      %v587 = vsel %vm567, %v586, %v550
      %v589 = vunpack.c.l.s4 1934713408
      %v590 = vunpack.c.0.s8 %v589
      %v591 = vperm.slane %v587, %v590
      %v592 = vrot.slane %v591, 4
      %v593 = vsel %vm567, %v592, %v585
      %v594 = vrot.slane %v585, 4
      %v595 = vsel %vm567, %v591, %v594
      %vm596 = vcmask 257024
      %v597 = vsel %vm596, %v439, 0.0
      %598 = vadd.xlane.f32.xlu0 %v597
      %v599 = vpop.xlane.xlu0 %598
      %v600 = vsel %vm596, %v440, 0.0
      %601 = vadd.xlane.f32.xlu0 %v600
      %v602 = vpop.xlane.xlu0 %601
      %v603 = vrcp.pop 32.0
      %v604 = vmul.f32 32.0, %v603
      %v605 = vsub.f32 1.0, %v604
      %v606 = vmul.f32 %v603, %v605
      %v607 = vadd.f32 %v603, %v606
      %vm608 = vweird.f32 %v603
      %v609 = vsel %vm608, %v603, %v607
      %v610 = vmul.f32 %v599, %v609
      %v611 = vmul.f32 %v602, %v609
      %v612 = vsub.f32 %v439, %v610
      %v613 = vsub.f32 %v440, %v611
      %v614 = vmul.f32 %v612, %v612
      %v615 = vmul.f32 %v613, %v613
      %v616 = vsel %vm596, %v614, 0.0
      %617 = vadd.xlane.f32.xlu0 %v616
      %v618 = vpop.xlane.xlu0 %617
      %v619 = vsel %vm596, %v615, 0.0
      %620 = vadd.xlane.f32.xlu0 %v619
      %v621 = vpop.xlane.xlu0 %620
      %v622 = vmul.f32 %v618, %v609
      %v623 = vmul.f32 %v621, %v609
      %v624 = vadd.f32 %v622, 1e-06
      %v625 = vadd.f32 %v623, 1e-06
      %v626 = vrsqrt.pop %v624
      %v627 = vmul.f32 %v626, %v624
      %v628 = vmul.f32 %v627, %v626
      %v629 = vmul.f32 0.5, %v628
      %v630 = vsub.f32 1.5, %v629
      %v631 = vmul.f32 %v626, %v630
      %vm632 = vweird.f32 %v624
      %vm633 = vweird.f32 %v626
      %vm634 = vmor %vm632, %vm633
      %v635 = vsel %vm634, %v626, %v631
      %v636 = vrsqrt.pop %v625
      %v637 = vmul.f32 %v636, %v625
      %v638 = vmul.f32 %v637, %v636
      %v639 = vmul.f32 0.5, %v638
      %v640 = vsub.f32 1.5, %v639
      %v641 = vmul.f32 %v636, %v640
      %vm642 = vweird.f32 %v625
      %vm643 = vweird.f32 %v636
      %vm644 = vmor %vm642, %vm643
      %v645 = vsel %vm644, %v636, %v641
      %v646 = vmul.f32 %v612, %v635
      %v647 = vmul.f32 %v613, %v645
      %v648 = vadd.f32 %v593, 1.0
      %v649 = vadd.f32 %v595, 1.0
      %v650 = vperm.slane %v648, 1
      %v651 = vperm.slane %v649, 1
      %v652 = vmul.f32 %v646, %v650
      %v653 = vmul.f32 %v647, %v651
      %v654 = vperm.slane %v593, 0
      %v655 = vperm.slane %v595, 0
      %v656 = vadd.f32 %v652, %v654
      %v657 = vadd.f32 %v653, %v655
      %660 = vst [vmem:[#allocation1] ss:$2 sm:$0xff] %v656
      %s661 = scalar_lea.vmem [#allocation1], 1
      %662 = vst [vmem:[%s661] ss:$2 sm:$0xff] %v657
      %v663 = vld.sshfl [vmem:[#allocation1] sm:$0xff pattern:$0x75316420]
      %v665 = vpack.c.bf16 %v663, %v663
      %v666 = vld [vmem:[%s4] sm:$0xf]
      %v667 = vld [vmem:[%s4 + $0x4] sm:$0xf]
      %v668 = vld [vmem:[%s4 + $0x8] sm:$0xf]
      %v669 = vld [vmem:[%s4 + $0xc] sm:$0xf]
      %v670 = vld [vmem:[%s5] sm:$0x1]
      %v672 = vperm.slane %v670, 0
      %v678 = vunpack.c.l.b16 %v666
      %v679 = vunpack.c.l.b16 %v667
      %v680 = vunpack.c.l.b16 %v668
      %v681 = vunpack.c.l.b16 %v669
      %v682 = vpack.c.b16 %v679, %v678
      %v683 = vpack.c.b16 %v681, %v680
      %v687 = vsel %vm523, %v665, 0
      %689 = vmatpush.bf16.msra.mxu0 0
      %690 = vmatpush.bf16.msra.mxu0 0
      %691 = vmatpush.bf16.msra.mxu0 0
      %692 = vmatpush.bf16.msra.mxu0 0
      %693 = vmatpush.bf16.msra.mxu0 0
      %694 = vmatpush.bf16.msra.mxu0 0
      %695 = vmatpush.bf16.msra.mxu0 %v683
      %696 = vmatpush.bf16.msra.mxu0 %v682
      %697 = vmatmul.bf16.gmra.mxu0 %v687
      %v698 = vpop.f32.mrf.mxu0
      %v699 = vadd.f32 %v672, %v698
      %v700 = vpop.f32.mrf.mxu0
      %701 = vdwg.mxu0
      %v703 = vrot.slane %v699, 4
      %v705 = vpack.c.bf16 %v699, %v699
      %v706 = vpack.c.bf16 %v703, %v703
      %v708 = vunpack.c.l.b16 %v705
      %v709 = vpack.c.b16 %v708, %v708
      %710 = vrot.lane.b32.xlu0 %v709, 96
      %v711 = vpop.permute.xlu0 %710
      %vm712 = vcmask 64512
      %v714 = vsel %vm712, %v705, 0
      %v717 = vsel %vm712, %v711, 0
      %719 = vmatpush.bf16.xpose.msra.mxu0 0
      %720 = vmatpush.bf16.xpose.msra.mxu0 0
      %721 = vmatpush.bf16.xpose.msra.mxu0 0
      %722 = vmatpush.bf16.xpose.msra.mxu0 0
      %723 = vmatpush.bf16.xpose.msra.mxu0 0
      %724 = vmatpush.bf16.xpose.msra.mxu0 0
      %725 = vmatpush.bf16.xpose.msra.mxu0 0
      %726 = vmatpush.bf16.xpose.msra.mxu0 %v717
      %727 = vmatmul.bf16.gmra.mxu0 %v714
      %v728 = vpop.f32.mrf.mxu0
      %v729 = vadd.f32 0.0, %v728
      %v730 = vpop.f32.mrf.mxu0
      %731 = vdwg.mxu0
      %v733 = vunpack.c.l.b16 %v706
      %v734 = vpack.c.b16 %v733, %v733
      %735 = vrot.lane.b32.xlu0 %v734, 96
      %v736 = vpop.permute.xlu0 %735
      %v738 = vsel %vm712, %v706, 0
      %v741 = vsel %vm712, %v736, 0
      %743 = vmatpush.bf16.xpose.msra.mxu0 0
      %744 = vmatpush.bf16.xpose.msra.mxu0 0
      %745 = vmatpush.bf16.xpose.msra.mxu0 0
      %746 = vmatpush.bf16.xpose.msra.mxu0 0
      %747 = vmatpush.bf16.xpose.msra.mxu0 0
      %748 = vmatpush.bf16.xpose.msra.mxu0 0
      %749 = vmatpush.bf16.xpose.msra.mxu0 0
      %750 = vmatpush.bf16.xpose.msra.mxu0 %v741
      %751 = vmatmul.bf16.gmra.mxu0 %v738
      %v752 = vpop.f32.mrf.mxu0
      %v753 = vadd.f32 0.0, %v752
      %v754 = vpop.f32.mrf.mxu0
      %755 = vdwg.mxu0
      %vm756 = vcmask 27648
      %v757 = vsel %vm756, %v729, -inf
      %758 = vmax.xlane.f32.xlu0 %v757
      %v759 = vpop.xlane.xlu0 %758
      %v760 = vsel %vm756, %v753, -inf
      %761 = vmax.xlane.f32.xlu0 %v760
      %v762 = vpop.xlane.xlu0 %761
      %v763 = vsub.f32 %v729, %v759
      %v764 = vsub.f32 %v753, %v762
      %v765 = vmul.f32 %v763, 1.442695
      %v766 = vpow.pop %v765
      %v767 = vmul.f32 %v764, 1.442695
      %v768 = vpow.pop %v767
      %v769 = vsel %vm756, %v766, 0.0
      %770 = vadd.xlane.f32.xlu0 %v769
      %v771 = vpop.xlane.xlu0 %770
      %v772 = vsel %vm756, %v768, 0.0
      %773 = vadd.xlane.f32.xlu0 %v772
      %v774 = vpop.xlane.xlu0 %773
      %v775 = vrcp.pop %v771
      %v776 = vrcp.pop %v774
      %v777 = vmul.f32 %v766, %v775
      %v778 = vmul.f32 %v768, %v776
      %v779 = vpack.c.bf16 %v777, %v777
      %v780 = vpack.c.bf16 %v778, %v778
      %781 = vrot.lane.b32.xlu0 %v709, 64
      %v782 = vpop.permute.xlu0 %781
      %vm783 = vcmask 31744
      %v785 = vsel %vm783, %v779, 0
      %vm787 = vcmask 1041408
      %v789 = vsel %vm787, %v782, 0
      %791 = vmatpush.bf16.msra.mxu0 0
      %792 = vmatpush.bf16.msra.mxu0 0
      %793 = vmatpush.bf16.msra.mxu0 0
      %794 = vmatpush.bf16.msra.mxu0 0
      %795 = vmatpush.bf16.msra.mxu0 0
      %796 = vmatpush.bf16.msra.mxu0 0
      %797 = vmatpush.bf16.msra.mxu0 0
      %798 = vmatpush.bf16.msra.mxu0 %v789
      %799 = vmatmul.bf16.gmra.mxu0 %v785
      %v800 = vpop.f32.mrf.mxu0
      %v801 = vadd.f32 0.0, %v800
      %v802 = vpop.f32.mrf.mxu0
      %803 = vdwg.mxu0
      %804 = vrot.lane.b32.xlu0 %v734, 64
      %v805 = vpop.permute.xlu0 %804
      %v807 = vsel %vm783, %v780, 0
      %v810 = vsel %vm787, %v805, 0
      %812 = vmatpush.bf16.msra.mxu0 0
      %813 = vmatpush.bf16.msra.mxu0 0
      %814 = vmatpush.bf16.msra.mxu0 0
      %815 = vmatpush.bf16.msra.mxu0 0
      %816 = vmatpush.bf16.msra.mxu0 0
      %817 = vmatpush.bf16.msra.mxu0 0
      %818 = vmatpush.bf16.msra.mxu0 0
      %819 = vmatpush.bf16.msra.mxu0 %v810
      %820 = vmatmul.bf16.gmra.mxu0 %v807
      %v821 = vpop.f32.mrf.mxu0
      %v822 = vadd.f32 0.0, %v821
      %v823 = vpop.f32.mrf.mxu0
      %824 = vdwg.mxu0
      %827 = vst [vmem:[#allocation1] ss:$2 sm:$0xff] %v801
      %s828 = scalar_lea.vmem [#allocation1], 1
      %829 = vst [vmem:[%s828] ss:$2 sm:$0xff] %v822
      %v830 = vld.sshfl [vmem:[#allocation1] sm:$0xff pattern:$0x75316420]
      %v832 = vpack.c.bf16 %v830, %v830
      %v833 = vld [vmem:[%s6] sm:$0xf]
      %834 = vrot.lane.b32.xlu0 %v709, 120
      %v835 = vpop.permute.xlu0 %834
      %836 = vrot.lane.b32.xlu0 %v709, 88
      %v837 = vpop.permute.xlu0 %836
      %v839 = vsel %vm712, %v835, 0
      %v842 = vsel %vm712, %v837, 0
      %844 = vmatpush.bf16.xpose.msra.mxu0 0
      %845 = vmatpush.bf16.xpose.msra.mxu0 0
      %846 = vmatpush.bf16.xpose.msra.mxu0 0
      %847 = vmatpush.bf16.xpose.msra.mxu0 0
      %848 = vmatpush.bf16.xpose.msra.mxu0 0
      %849 = vmatpush.bf16.xpose.msra.mxu0 0
      %850 = vmatpush.bf16.xpose.msra.mxu0 0
      %851 = vmatpush.bf16.xpose.msra.mxu0 %v842
      %852 = vmatmul.bf16.gmra.mxu0 %v839
      %v853 = vpop.f32.mrf.mxu0
      %v854 = vadd.f32 0.0, %v853
      %v855 = vpop.f32.mrf.mxu0
      %856 = vdwg.mxu0
      %857 = vrot.lane.b32.xlu0 %v734, 120
      %v858 = vpop.permute.xlu0 %857
      %859 = vrot.lane.b32.xlu0 %v734, 88
      %v860 = vpop.permute.xlu0 %859
      %v862 = vsel %vm712, %v858, 0
      %v865 = vsel %vm712, %v860, 0
      %867 = vmatpush.bf16.xpose.msra.mxu0 0
      %868 = vmatpush.bf16.xpose.msra.mxu0 0
      %869 = vmatpush.bf16.xpose.msra.mxu0 0
      %870 = vmatpush.bf16.xpose.msra.mxu0 0
      %871 = vmatpush.bf16.xpose.msra.mxu0 0
      %872 = vmatpush.bf16.xpose.msra.mxu0 0
      %873 = vmatpush.bf16.xpose.msra.mxu0 0
      %874 = vmatpush.bf16.xpose.msra.mxu0 %v865
      %875 = vmatmul.bf16.gmra.mxu0 %v862
      %v876 = vpop.f32.mrf.mxu0
      %v877 = vadd.f32 0.0, %v876
      %v878 = vpop.f32.mrf.mxu0
      %879 = vdwg.mxu0
      %v880 = vsel %vm756, %v854, -inf
      %881 = vmax.xlane.f32.xlu0 %v880
      %v882 = vpop.xlane.xlu0 %881
      %v883 = vsel %vm756, %v877, -inf
      %884 = vmax.xlane.f32.xlu0 %v883
      %v885 = vpop.xlane.xlu0 %884
      %v886 = vsub.f32 %v854, %v882
      %v887 = vsub.f32 %v877, %v885
      %v888 = vmul.f32 %v886, 1.442695
      %v889 = vpow.pop %v888
      %v890 = vmul.f32 %v887, 1.442695
      %v891 = vpow.pop %v890
      %v892 = vsel %vm756, %v889, 0.0
      %893 = vadd.xlane.f32.xlu0 %v892
      %v894 = vpop.xlane.xlu0 %893
      %v895 = vsel %vm756, %v891, 0.0
      %896 = vadd.xlane.f32.xlu0 %v895
      %v897 = vpop.xlane.xlu0 %896
      %v898 = vrcp.pop %v894
      %v899 = vrcp.pop %v897
      %v900 = vmul.f32 %v889, %v898
      %v901 = vmul.f32 %v891, %v899
      %v902 = vpack.c.bf16 %v900, %v900
      %v903 = vpack.c.bf16 %v901, %v901
      %904 = vrot.lane.b32.xlu0 %v709, 56
      %v905 = vpop.permute.xlu0 %904
      %v907 = vsel %vm783, %v902, 0
      %v910 = vsel %vm787, %v905, 0
      %912 = vmatpush.bf16.msra.mxu0 0
      %913 = vmatpush.bf16.msra.mxu0 0
      %914 = vmatpush.bf16.msra.mxu0 0
      %915 = vmatpush.bf16.msra.mxu0 0
      %916 = vmatpush.bf16.msra.mxu0 0
      %917 = vmatpush.bf16.msra.mxu0 0
      %918 = vmatpush.bf16.msra.mxu0 0
      %919 = vmatpush.bf16.msra.mxu0 %v910
      %920 = vmatmul.bf16.gmra.mxu0 %v907
      %v921 = vpop.f32.mrf.mxu0
      %v922 = vadd.f32 0.0, %v921
      %v923 = vpop.f32.mrf.mxu0
      %924 = vdwg.mxu0
      %925 = vrot.lane.b32.xlu0 %v734, 56
      %v926 = vpop.permute.xlu0 %925
      %v928 = vsel %vm783, %v903, 0
      %v931 = vsel %vm787, %v926, 0
      %933 = vmatpush.bf16.msra.mxu0 0
      %934 = vmatpush.bf16.msra.mxu0 0
      %935 = vmatpush.bf16.msra.mxu0 0
      %936 = vmatpush.bf16.msra.mxu0 0
      %937 = vmatpush.bf16.msra.mxu0 0
      %938 = vmatpush.bf16.msra.mxu0 0
      %939 = vmatpush.bf16.msra.mxu0 0
      %940 = vmatpush.bf16.msra.mxu0 %v931
      %941 = vmatmul.bf16.gmra.mxu0 %v928
      %v942 = vpop.f32.mrf.mxu0
      %v943 = vadd.f32 0.0, %v942
      %v944 = vpop.f32.mrf.mxu0
      %945 = vdwg.mxu0
      %948 = vst [vmem:[#allocation1] ss:$2 sm:$0xff] %v922
      %s949 = scalar_lea.vmem [#allocation1], 1
      %950 = vst [vmem:[%s949] ss:$2 sm:$0xff] %v943
      %v951 = vld.sshfl [vmem:[#allocation1] sm:$0xff pattern:$0x75316420]
      %v953 = vpack.c.bf16 %v951, %v951
      %s954 = scalar_lea.vmem %s6, 4
      %v955 = vld [vmem:[%s954] sm:$0xf]
      %v957 = vsel %vm712, %v953, 0
      %vm959 = vcmask 1043456
      %v961 = vsel %vm959, %v955, 0
      %963 = vmatpush.bf16.msra.mxu0 0
      %964 = vmatpush.bf16.msra.mxu0 0
      %965 = vmatpush.bf16.msra.mxu0 0
      %966 = vmatpush.bf16.msra.mxu0 0
      %967 = vmatpush.bf16.msra.mxu0 0
      %968 = vmatpush.bf16.msra.mxu0 0
      %969 = vmatpush.bf16.msra.mxu0 0
      %970 = vmatpush.bf16.msra.mxu0 %v961
      %971 = vmatmul.bf16.gmra.mxu0 %v957
      %v972 = vpop.f32.mrf.mxu0
      %v973 = vadd.f32 0.0, %v972
      %v974 = vpop.f32.mrf.mxu0
      %975 = vdwg.mxu0
      %v977 = vsel %vm712, %v832, 0
      %v980 = vsel %vm959, %v833, 0
      %982 = vmatpush.bf16.msra.mxu0 0
      %983 = vmatpush.bf16.msra.mxu0 0
      %984 = vmatpush.bf16.msra.mxu0 0
      %985 = vmatpush.bf16.msra.mxu0 0
      %986 = vmatpush.bf16.msra.mxu0 0
      %987 = vmatpush.bf16.msra.mxu0 0
      %988 = vmatpush.bf16.msra.mxu0 0
      %989 = vmatpush.bf16.msra.mxu0 %v980
      %990 = vmatmul.bf16.gmra.mxu0 %v977
      %v991 = vpop.f32.mrf.mxu0
      %v992 = vadd.f32 %v973, %v991
      %v993 = vpop.f32.mrf.mxu0
      %994 = vdwg.mxu0
      %995 = vrot.lane.b32.xlu0 %v709, 112
      %v996 = vpop.permute.xlu0 %995
      %997 = vrot.lane.b32.xlu0 %v709, 80
      %v998 = vpop.permute.xlu0 %997
      %v1000 = vsel %vm712, %v996, 0
      %v1003 = vsel %vm712, %v998, 0
      %1005 = vmatpush.bf16.xpose.msra.mxu0 0
      %1006 = vmatpush.bf16.xpose.msra.mxu0 0
      %1007 = vmatpush.bf16.xpose.msra.mxu0 0
      %1008 = vmatpush.bf16.xpose.msra.mxu0 0
      %1009 = vmatpush.bf16.xpose.msra.mxu0 0
      %1010 = vmatpush.bf16.xpose.msra.mxu0 0
      %1011 = vmatpush.bf16.xpose.msra.mxu0 0
      %1012 = vmatpush.bf16.xpose.msra.mxu0 %v1003
      %1013 = vmatmul.bf16.gmra.mxu0 %v1000
      %v1014 = vpop.f32.mrf.mxu0
      %v1015 = vadd.f32 0.0, %v1014
      %v1016 = vpop.f32.mrf.mxu0
      %1017 = vdwg.mxu0
      %1018 = vrot.lane.b32.xlu0 %v734, 112
      %v1019 = vpop.permute.xlu0 %1018
      %1020 = vrot.lane.b32.xlu0 %v734, 80
      %v1021 = vpop.permute.xlu0 %1020
      %v1023 = vsel %vm712, %v1019, 0
      %v1026 = vsel %vm712, %v1021, 0
      %1028 = vmatpush.bf16.xpose.msra.mxu0 0
      %1029 = vmatpush.bf16.xpose.msra.mxu0 0
      %1030 = vmatpush.bf16.xpose.msra.mxu0 0
      %1031 = vmatpush.bf16.xpose.msra.mxu0 0
      %1032 = vmatpush.bf16.xpose.msra.mxu0 0
      %1033 = vmatpush.bf16.xpose.msra.mxu0 0
      %1034 = vmatpush.bf16.xpose.msra.mxu0 0
      %1035 = vmatpush.bf16.xpose.msra.mxu0 %v1026
      %1036 = vmatmul.bf16.gmra.mxu0 %v1023
      %v1037 = vpop.f32.mrf.mxu0
      %v1038 = vadd.f32 0.0, %v1037
      %v1039 = vpop.f32.mrf.mxu0
      %1040 = vdwg.mxu0
      %v1041 = vsel %vm756, %v1015, -inf
      %1042 = vmax.xlane.f32.xlu0 %v1041
      %v1043 = vpop.xlane.xlu0 %1042
      %v1044 = vsel %vm756, %v1038, -inf
      %1045 = vmax.xlane.f32.xlu0 %v1044
      %v1046 = vpop.xlane.xlu0 %1045
      %v1047 = vsub.f32 %v1015, %v1043
      %v1048 = vsub.f32 %v1038, %v1046
      %v1049 = vmul.f32 %v1047, 1.442695
      %v1050 = vpow.pop %v1049
      %v1051 = vmul.f32 %v1048, 1.442695
      %v1052 = vpow.pop %v1051
      %v1053 = vsel %vm756, %v1050, 0.0
      %1054 = vadd.xlane.f32.xlu0 %v1053
      %v1055 = vpop.xlane.xlu0 %1054
      %v1056 = vsel %vm756, %v1052, 0.0
      %1057 = vadd.xlane.f32.xlu0 %v1056
      %v1058 = vpop.xlane.xlu0 %1057
      %v1059 = vrcp.pop %v1055
      %v1060 = vrcp.pop %v1058
      %v1061 = vmul.f32 %v1050, %v1059
      %v1062 = vmul.f32 %v1052, %v1060
      %v1063 = vpack.c.bf16 %v1061, %v1061
      %v1064 = vpack.c.bf16 %v1062, %v1062
      %1065 = vrot.lane.b32.xlu0 %v709, 48
      %v1066 = vpop.permute.xlu0 %1065
      %v1068 = vsel %vm783, %v1063, 0
      %v1071 = vsel %vm787, %v1066, 0
      %1073 = vmatpush.bf16.msra.mxu0 0
      %1074 = vmatpush.bf16.msra.mxu0 0
      %1075 = vmatpush.bf16.msra.mxu0 0
      %1076 = vmatpush.bf16.msra.mxu0 0
      %1077 = vmatpush.bf16.msra.mxu0 0
      %1078 = vmatpush.bf16.msra.mxu0 0
      %1079 = vmatpush.bf16.msra.mxu0 0
      %1080 = vmatpush.bf16.msra.mxu0 %v1071
      %1081 = vmatmul.bf16.gmra.mxu0 %v1068
      %v1082 = vpop.f32.mrf.mxu0
      %v1083 = vadd.f32 0.0, %v1082
      %v1084 = vpop.f32.mrf.mxu0
      %1085 = vdwg.mxu0
      %1086 = vrot.lane.b32.xlu0 %v734, 48
      %v1087 = vpop.permute.xlu0 %1086
      %v1089 = vsel %vm783, %v1064, 0
      %v1092 = vsel %vm787, %v1087, 0
      %1094 = vmatpush.bf16.msra.mxu0 0
      %1095 = vmatpush.bf16.msra.mxu0 0
      %1096 = vmatpush.bf16.msra.mxu0 0
      %1097 = vmatpush.bf16.msra.mxu0 0
      %1098 = vmatpush.bf16.msra.mxu0 0
      %1099 = vmatpush.bf16.msra.mxu0 0
      %1100 = vmatpush.bf16.msra.mxu0 0
      %1101 = vmatpush.bf16.msra.mxu0 %v1092
      %1102 = vmatmul.bf16.gmra.mxu0 %v1089
      %v1103 = vpop.f32.mrf.mxu0
      %v1104 = vadd.f32 0.0, %v1103
      %v1105 = vpop.f32.mrf.mxu0
      %1106 = vdwg.mxu0
      %1109 = vst [vmem:[#allocation1] ss:$2 sm:$0xff] %v1083
      %s1110 = scalar_lea.vmem [#allocation1], 1
      %1111 = vst [vmem:[%s1110] ss:$2 sm:$0xff] %v1104
      %v1112 = vld.sshfl [vmem:[#allocation1] sm:$0xff pattern:$0x75316420]
      %v1114 = vpack.c.bf16 %v1112, %v1112
      %s1115 = scalar_lea.vmem %s6, 8
      %v1116 = vld [vmem:[%s1115] sm:$0xf]
      %v1118 = vsel %vm712, %v1114, 0
      %v1121 = vsel %vm959, %v1116, 0
      %1123 = vmatpush.bf16.msra.mxu0 0
      %1124 = vmatpush.bf16.msra.mxu0 0
      %1125 = vmatpush.bf16.msra.mxu0 0
      %1126 = vmatpush.bf16.msra.mxu0 0
      %1127 = vmatpush.bf16.msra.mxu0 0
      %1128 = vmatpush.bf16.msra.mxu0 0
      %1129 = vmatpush.bf16.msra.mxu0 0
      %1130 = vmatpush.bf16.msra.mxu0 %v1121
      %1131 = vmatmul.bf16.gmra.mxu0 %v1118
      %v1132 = vpop.f32.mrf.mxu0
      %v1133 = vadd.f32 0.0, %v1132
      %v1134 = vpop.f32.mrf.mxu0
      %1135 = vdwg.mxu0
      %v1136 = vadd.f32 %v992, %v1133
      %1137 = vrot.lane.b32.xlu0 %v709, 104
      %v1138 = vpop.permute.xlu0 %1137
      %1139 = vrot.lane.b32.xlu0 %v709, 72
      %v1140 = vpop.permute.xlu0 %1139
      %v1142 = vsel %vm712, %v1138, 0
      %v1145 = vsel %vm712, %v1140, 0
      %1147 = vmatpush.bf16.xpose.msra.mxu0 0
      %1148 = vmatpush.bf16.xpose.msra.mxu0 0
      %1149 = vmatpush.bf16.xpose.msra.mxu0 0
      %1150 = vmatpush.bf16.xpose.msra.mxu0 0
      %1151 = vmatpush.bf16.xpose.msra.mxu0 0
      %1152 = vmatpush.bf16.xpose.msra.mxu0 0
      %1153 = vmatpush.bf16.xpose.msra.mxu0 0
      %1154 = vmatpush.bf16.xpose.msra.mxu0 %v1145
      %1155 = vmatmul.bf16.gmra.mxu0 %v1142
      %v1156 = vpop.f32.mrf.mxu0
      %v1157 = vadd.f32 0.0, %v1156
      %v1158 = vpop.f32.mrf.mxu0
      %1159 = vdwg.mxu0
      %1160 = vrot.lane.b32.xlu0 %v734, 104
      %v1161 = vpop.permute.xlu0 %1160
      %1162 = vrot.lane.b32.xlu0 %v734, 72
      %v1163 = vpop.permute.xlu0 %1162
      %v1165 = vsel %vm712, %v1161, 0
      %v1168 = vsel %vm712, %v1163, 0
      %1170 = vmatpush.bf16.xpose.msra.mxu0 0
      %1171 = vmatpush.bf16.xpose.msra.mxu0 0
      %1172 = vmatpush.bf16.xpose.msra.mxu0 0
      %1173 = vmatpush.bf16.xpose.msra.mxu0 0
      %1174 = vmatpush.bf16.xpose.msra.mxu0 0
      %1175 = vmatpush.bf16.xpose.msra.mxu0 0
      %1176 = vmatpush.bf16.xpose.msra.mxu0 0
      %1177 = vmatpush.bf16.xpose.msra.mxu0 %v1168
      %1178 = vmatmul.bf16.gmra.mxu0 %v1165
      %v1179 = vpop.f32.mrf.mxu0
      %v1180 = vadd.f32 0.0, %v1179
      %v1181 = vpop.f32.mrf.mxu0
      %1182 = vdwg.mxu0
      %v1183 = vsel %vm756, %v1157, -inf
      %1184 = vmax.xlane.f32.xlu0 %v1183
      %v1185 = vpop.xlane.xlu0 %1184
      %v1186 = vsel %vm756, %v1180, -inf
      %1187 = vmax.xlane.f32.xlu0 %v1186
      %v1188 = vpop.xlane.xlu0 %1187
      %v1189 = vsub.f32 %v1157, %v1185
      %v1190 = vsub.f32 %v1180, %v1188
      %v1191 = vmul.f32 %v1189, 1.442695
      %v1192 = vpow.pop %v1191
      %v1193 = vmul.f32 %v1190, 1.442695
      %v1194 = vpow.pop %v1193
      %v1195 = vsel %vm756, %v1192, 0.0
      %1196 = vadd.xlane.f32.xlu0 %v1195
      %v1197 = vpop.xlane.xlu0 %1196
      %v1198 = vsel %vm756, %v1194, 0.0
      %1199 = vadd.xlane.f32.xlu0 %v1198
      %v1200 = vpop.xlane.xlu0 %1199
      %v1201 = vrcp.pop %v1197
      %v1202 = vrcp.pop %v1200
      %v1203 = vmul.f32 %v1192, %v1201
      %v1204 = vmul.f32 %v1194, %v1202
      %v1205 = vpack.c.bf16 %v1203, %v1203
      %v1206 = vpack.c.bf16 %v1204, %v1204
      %1207 = vrot.lane.b32.xlu0 %v709, 40
      %v1208 = vpop.permute.xlu0 %1207
      %v1210 = vsel %vm783, %v1205, 0
      %v1213 = vsel %vm787, %v1208, 0
      %1215 = vmatpush.bf16.msra.mxu0 0
      %1216 = vmatpush.bf16.msra.mxu0 0
      %1217 = vmatpush.bf16.msra.mxu0 0
      %1218 = vmatpush.bf16.msra.mxu0 0
      %1219 = vmatpush.bf16.msra.mxu0 0
      %1220 = vmatpush.bf16.msra.mxu0 0
      %1221 = vmatpush.bf16.msra.mxu0 0
      %1222 = vmatpush.bf16.msra.mxu0 %v1213
      %1223 = vmatmul.bf16.gmra.mxu0 %v1210
      %v1224 = vpop.f32.mrf.mxu0
      %v1225 = vadd.f32 0.0, %v1224
      %v1226 = vpop.f32.mrf.mxu0
      %1227 = vdwg.mxu0
      %1228 = vrot.lane.b32.xlu0 %v734, 40
      %v1229 = vpop.permute.xlu0 %1228
      %v1231 = vsel %vm783, %v1206, 0
      %v1234 = vsel %vm787, %v1229, 0
      %1236 = vmatpush.bf16.msra.mxu0 0
      %1237 = vmatpush.bf16.msra.mxu0 0
      %1238 = vmatpush.bf16.msra.mxu0 0
      %1239 = vmatpush.bf16.msra.mxu0 0
      %1240 = vmatpush.bf16.msra.mxu0 0
      %1241 = vmatpush.bf16.msra.mxu0 0
      %1242 = vmatpush.bf16.msra.mxu0 0
      %1243 = vmatpush.bf16.msra.mxu0 %v1234
      %1244 = vmatmul.bf16.gmra.mxu0 %v1231
      %v1245 = vpop.f32.mrf.mxu0
      %v1246 = vadd.f32 0.0, %v1245
      %v1247 = vpop.f32.mrf.mxu0
      %1248 = vdwg.mxu0
      %1251 = vst [vmem:[#allocation1] ss:$2 sm:$0xff] %v1225
      %s1252 = scalar_lea.vmem [#allocation1], 1
      %1253 = vst [vmem:[%s1252] ss:$2 sm:$0xff] %v1246
      %v1254 = vld.sshfl [vmem:[#allocation1] sm:$0xff pattern:$0x75316420]
      %v1256 = vpack.c.bf16 %v1254, %v1254
      %s1257 = scalar_lea.vmem %s6, 12
      %v1258 = vld [vmem:[%s1257] sm:$0xf]
      %v1260 = vsel %vm712, %v1256, 0
      %v1263 = vsel %vm959, %v1258, 0
      %1265 = vmatpush.bf16.msra.mxu0 0
      %1266 = vmatpush.bf16.msra.mxu0 0
      %1267 = vmatpush.bf16.msra.mxu0 0
      %1268 = vmatpush.bf16.msra.mxu0 0
      %1269 = vmatpush.bf16.msra.mxu0 0
      %1270 = vmatpush.bf16.msra.mxu0 0
      %1271 = vmatpush.bf16.msra.mxu0 0
      %1272 = vmatpush.bf16.msra.mxu0 %v1263
      %1273 = vmatmul.bf16.gmra.mxu0 %v1260
      %v1274 = vpop.f32.mrf.mxu0
      %v1275 = vadd.f32 0.0, %v1274
      %v1276 = vpop.f32.mrf.mxu0
      %1277 = vdwg.mxu0
      %v1278 = vadd.f32 %v1136, %v1275
      %v1279 = vld [vmem:[%s7] sm:$0x1]
      %v1281 = vperm.slane %v1279, 0
      %v1283 = vadd.f32 %v1278, %v1281
      %v1285 = vrot.slane %v1283, 4
      %v1287 = vperm.slane %v593, 2
      %v1288 = vperm.slane %v595, 2
      %v1289 = vmul.f32 %v1287, %v1283
      %v1290 = vmul.f32 %v1288, %v1285
      %v1291 = vadd.f32 %v439, %v1289
      %v1292 = vadd.f32 %v440, %v1290
      %v1293 = vsel %vm596, %v1291, 0.0
      %1294 = vadd.xlane.f32.xlu0 %v1293
      %v1295 = vpop.xlane.xlu0 %1294
      %v1296 = vsel %vm596, %v1292, 0.0
      %1297 = vadd.xlane.f32.xlu0 %v1296
      %v1298 = vpop.xlane.xlu0 %1297
      %v1299 = vmul.f32 %v1295, %v609
      %v1300 = vmul.f32 %v1298, %v609
      %v1301 = vsub.f32 %v1291, %v1299
      %v1302 = vsub.f32 %v1292, %v1300
      %v1303 = vmul.f32 %v1301, %v1301
      %v1304 = vmul.f32 %v1302, %v1302
      %v1305 = vsel %vm596, %v1303, 0.0
      %1306 = vadd.xlane.f32.xlu0 %v1305
      %v1307 = vpop.xlane.xlu0 %1306
      %v1308 = vsel %vm596, %v1304, 0.0
      %1309 = vadd.xlane.f32.xlu0 %v1308
      %v1310 = vpop.xlane.xlu0 %1309
      %v1311 = vmul.f32 %v1307, %v609
      %v1312 = vmul.f32 %v1310, %v609
      %v1313 = vadd.f32 %v1311, 1e-06
      %v1314 = vadd.f32 %v1312, 1e-06
      %v1315 = vrsqrt.pop %v1313
      %v1316 = vmul.f32 %v1315, %v1313
      %v1317 = vmul.f32 %v1316, %v1315
      %v1318 = vmul.f32 0.5, %v1317
      %v1319 = vsub.f32 1.5, %v1318
      %v1320 = vmul.f32 %v1315, %v1319
      %vm1321 = vweird.f32 %v1313
      %vm1322 = vweird.f32 %v1315
      %vm1323 = vmor %vm1321, %vm1322
      %v1324 = vsel %vm1323, %v1315, %v1320
      %v1325 = vrsqrt.pop %v1314
      %v1326 = vmul.f32 %v1325, %v1314
      %v1327 = vmul.f32 %v1326, %v1325
      %v1328 = vmul.f32 0.5, %v1327
      %v1329 = vsub.f32 1.5, %v1328
      %v1330 = vmul.f32 %v1325, %v1329
      %vm1331 = vweird.f32 %v1314
      %vm1332 = vweird.f32 %v1325
      %vm1333 = vmor %vm1331, %vm1332
      %v1334 = vsel %vm1333, %v1325, %v1330
      %v1335 = vmul.f32 %v1301, %v1324
      %v1336 = vmul.f32 %v1302, %v1334
      %v1337 = vperm.slane %v648, 4
      %v1338 = vperm.slane %v649, 4
      %v1339 = vmul.f32 %v1335, %v1337
      %v1340 = vmul.f32 %v1336, %v1338
      %v1341 = vperm.slane %v593, 3
      %v1342 = vperm.slane %v595, 3
      %v1343 = vadd.f32 %v1339, %v1341
      %v1344 = vadd.f32 %v1340, %v1342
      %1347 = vst [vmem:[#allocation1] ss:$2 sm:$0xff] %v1343
      %s1348 = scalar_lea.vmem [#allocation1], 1
      %1349 = vst [vmem:[%s1348] ss:$2 sm:$0xff] %v1344
      %v1350 = vld.sshfl [vmem:[#allocation1] sm:$0xff pattern:$0x75316420]
      %v1352 = vpack.c.bf16 %v1350, %v1350
      %v1353 = vld [vmem:[%s8] sm:$0xf]
      %v1354 = vld [vmem:[%s8 + $0x4] sm:$0xf]
      %v1355 = vld [vmem:[%s8 + $0x8] sm:$0xf]
      %v1356 = vld [vmem:[%s8 + $0xc] sm:$0xf]
      %v1357 = vld [vmem:[%s9] sm:$0x1]
      %v1359 = vperm.slane %v1357, 0
      %v1365 = vunpack.c.l.b16 %v1353
      %v1366 = vunpack.c.l.b16 %v1354
      %v1367 = vunpack.c.l.b16 %v1355
      %v1368 = vunpack.c.l.b16 %v1356
      %v1369 = vpack.c.b16 %v1366, %v1365
      %v1370 = vpack.c.b16 %v1368, %v1367
      %v1374 = vsel %vm523, %v1352, 0
      %1376 = vmatpush.bf16.msra.mxu0 0
      %1377 = vmatpush.bf16.msra.mxu0 0
      %1378 = vmatpush.bf16.msra.mxu0 0
      %1379 = vmatpush.bf16.msra.mxu0 0
      %1380 = vmatpush.bf16.msra.mxu0 0
      %1381 = vmatpush.bf16.msra.mxu0 0
      %1382 = vmatpush.bf16.msra.mxu0 %v1370
      %1383 = vmatpush.bf16.msra.mxu0 %v1369
      %1384 = vmatmul.bf16.gmra.mxu0 %v1374
      %v1385 = vpop.f32.mrf.mxu0
      %v1386 = vadd.f32 %v1359, %v1385
      %v1387 = vpop.f32.mrf.mxu0
      %1388 = vdwg.mxu0
      %v1389 = vmul.f32 %v1386, 0.5
      %v1390 = vmul.f32 %v1386, 0.044715
      %v1391 = vmul.f32 %v1390, %v1386
      %v1392 = vmul.f32 %v1391, %v1386
      %v1393 = vadd.f32 %v1386, %v1392
      %v1394 = vmul.f32 %v1393, 0.7978846
      %v1395 = vtanh.pop %v1394
      %v1396 = vadd.f32 %v1395, 1.0
      %v1397 = vmul.f32 %v1389, %v1396
      %v1398 = vpack.c.bf16 %v1397, %v1397
      %v1399 = vld [vmem:[%s10] sm:$0xf]
      %v1400 = vld [vmem:[%s10 + $0x4] sm:$0xf]
      %v1401 = vld [vmem:[%s10 + $0x8] sm:$0xf]
      %v1402 = vld [vmem:[%s10 + $0xc] sm:$0xf]
      %v1403 = vld [vmem:[%s10 + $0x10] sm:$0xf]
      %v1404 = vld [vmem:[%s10 + $0x14] sm:$0xf]
      %v1405 = vld [vmem:[%s10 + $0x18] sm:$0xf]
      %v1406 = vld [vmem:[%s10 + $0x1c] sm:$0xf]
      %v1407 = vld [vmem:[%s10 + $0x20] sm:$0xf]
      %v1408 = vld [vmem:[%s10 + $0x24] sm:$0xf]
      %v1409 = vld [vmem:[%s10 + $0x28] sm:$0xf]
      %v1410 = vld [vmem:[%s10 + $0x2c] sm:$0xf]
      %v1411 = vld [vmem:[%s10 + $0x30] sm:$0xf]
      %v1412 = vld [vmem:[%s10 + $0x34] sm:$0xf]
      %v1413 = vld [vmem:[%s10 + $0x38] sm:$0xf]
      %v1414 = vld [vmem:[%s10 + $0x3c] sm:$0xf]
      %v1415 = vld [vmem:[%s11] sm:$0x1]
      %v1417 = vperm.slane %v1415, 0
      %v1435 = vunpack.c.l.b16 %v1399
      %v1436 = vunpack.c.l.b16 %v1400
      %v1437 = vunpack.c.l.b16 %v1401
      %v1438 = vunpack.c.l.b16 %v1402
      %v1439 = vunpack.c.l.b16 %v1403
      %v1440 = vunpack.c.l.b16 %v1404
      %v1441 = vunpack.c.l.b16 %v1405
      %v1442 = vunpack.c.l.b16 %v1406
      %v1443 = vunpack.c.l.b16 %v1407
      %v1444 = vunpack.c.l.b16 %v1408
      %v1445 = vunpack.c.l.b16 %v1409
      %v1446 = vunpack.c.l.b16 %v1410
      %v1447 = vunpack.c.l.b16 %v1411
      %v1448 = vunpack.c.l.b16 %v1412
      %v1449 = vunpack.c.l.b16 %v1413
      %v1450 = vunpack.c.l.b16 %v1414
      %v1451 = vpack.c.b16 %v1436, %v1435
      %v1452 = vpack.c.b16 %v1438, %v1437
      %v1453 = vpack.c.b16 %v1440, %v1439
      %v1454 = vpack.c.b16 %v1442, %v1441
      %v1455 = vpack.c.b16 %v1444, %v1443
      %v1456 = vpack.c.b16 %v1446, %v1445
      %v1457 = vpack.c.b16 %v1448, %v1447
      %v1458 = vpack.c.b16 %v1450, %v1449
      %1467 = vmatpush.bf16.msra.mxu0 %v1458
      %1468 = vmatpush.bf16.msra.mxu0 %v1457
      %1469 = vmatpush.bf16.msra.mxu0 %v1456
      %1470 = vmatpush.bf16.msra.mxu0 %v1455
      %1471 = vmatpush.bf16.msra.mxu0 %v1454
      %1472 = vmatpush.bf16.msra.mxu0 %v1453
      %1473 = vmatpush.bf16.msra.mxu0 %v1452
      %1474 = vmatpush.bf16.msra.mxu0 %v1451
      %1475 = vmatmul.bf16.gmra.mxu0 %v1398
      %v1476 = vpop.f32.mrf.mxu0
      %v1477 = vadd.f32 %v1417, %v1476
      %v1478 = vpop.f32.mrf.mxu0
      %1479 = vdwg.mxu0
      %v1481 = vrot.slane %v1477, 4
      %v1483 = vperm.slane %v593, 5
      %v1484 = vperm.slane %v595, 5
      %v1485 = vmul.f32 %v1483, %v1477
      %v1486 = vmul.f32 %v1484, %v1481
      %v1487 = vadd.f32 %v1291, %v1485
      %v1488 = vadd.f32 %v1292, %v1486
      %v1489 = vpack.c.bf16 %v1487, %v1487
      %v1490 = vpack.c.bf16 %v1488, %v1488
      %vm1491 = vcmask 254976
      %1492 = vst.msk [vmem:[%s434] sm:$0x3] %vm1491, %v1489
      %1493 = vst.msk [vmem:[%s434 + $0x2] sm:$0x3] %vm1491, %v1490
      %s1494 = smul.u32 2, %s23
      %p1495 = scmp.lt.s32.totalorder %s1494, 7
      %s1496 = scalar_select %p1495, %s1494, 7
      %s1497 = smul.addr %s1496, 2
      %s1498 = scalar_lea.vmem %s12, %s1497
      // Predicated region
      $region69: #{forward.11} parent=67 // pred_check
        %p1499 = pneg %p303
      $region70: #{forward.11} parent=67 // pred_check_branch
        %1501 = sbr.rel (%p1499) target = $region72
      $region71: #{forward.11} parent=67 // pred_region
        %s1502 = smul.u32 2, %s23
      $region72: #{forward.11} parent=67 // pred_fallthru
        _
    $region68: #{forward.11} parent=5 // pred_fallthru
      _
    %p1503 = scmp.le.s32.totalorder 2, %s18
    // Predicated region
    $region73: #{forward.11} parent=5 // pred_check
      %p1504 = pneg %p1503
    $region74: #{forward.11} parent=5 // pred_check_branch
      %1506 = sbr.rel (%p1504) target = $region76
    $region75: #{forward.11} parent=5 // pred_region
      %s1507 = ssub.s32 %s18, 2
      // Predicated region
      $region77: #{forward.11} parent=75 // pred_check
        %p1508 = pneg %p309
      $region78: #{forward.11} parent=75 // pred_check_branch
        %1510 = sbr.rel (%p1508) target = $region80
      $region79: #{forward.11} parent=75 // pred_region
        %s1511 = smul.u32 2, %s24
        %p1512 = scmp.lt.s32.totalorder %s1511, 7
        %s1513 = scalar_select %p1512, %s1511, 7
        %s1514 = smul.addr %s1513, 2
        %s1515 = scalar_lea.vmem %s12, %s1514
      $region80: #{forward.11} parent=75 // pred_fallthru
        _
    $region76: #{forward.11} parent=5 // pred_fallthru
      _
  $region6: #{forward.11} parent=0 // loop_footer
    %s22 = sadd.s32 1, %s18
  $region7: #{forward.11} parent=0 // loop_footer_branch
    %17 = sbr.rel target = $region3
  $region8: #{forward.11} parent=0 // loop_exit
    _

// kernel: forward.14
$region0: #{forward.14}
  #allocation0 [shape = 'u32[]', space=smem, size = 0x4, offset = 0x4, fixed_abs, tag = 'smem constant byte address 0x4 - core index']
  #allocation1 [shape = 'u32[72,128]{1,0:T(1,128)}', space=vmem, size = 0x9000, scoped, tag = 'internal scratch']
  %s0 = inlined_call_operand.vmem [shape: bf16[8,4,32], index: 0, kind: input, shape index: {}]
  %s1 = inlined_call_operand.vmem [shape: f32[8,1,32], index: 1, kind: input, shape index: {}]
  %s2 = inlined_call_operand.vmem [shape: bf16[32,192], index: 2, kind: input, shape index: {}]
  %s3 = inlined_call_operand.vmem [shape: f32[1,192], index: 3, kind: input, shape index: {}]
  %s4 = inlined_call_operand.vmem [shape: bf16[32,96], index: 4, kind: input, shape index: {}]
  %s5 = inlined_call_operand.hbm [shape: f32[1,96], index: 5, kind: input, shape index: {}]
  %s6 = inlined_call_operand.vmem [shape: bf16[4,8,32], index: 6, kind: input, shape index: {}]
  %s7 = inlined_call_operand.hbm [shape: f32[1,32], index: 7, kind: input, shape index: {}]
  %s8 = inlined_call_operand.vmem [shape: bf16[32,128], index: 8, kind: input, shape index: {}]
  %s9 = inlined_call_operand.hbm [shape: f32[1,128], index: 9, kind: input, shape index: {}]
  %s10 = inlined_call_operand.vmem [shape: bf16[128,32], index: 10, kind: input, shape index: {}]
  %s11 = inlined_call_operand.hbm [shape: f32[1,32], index: 11, kind: input, shape index: {}]
  %s12 = inlined_call_operand.vmem [shape: bf16[8,4,32], index: 12, kind: output, shape index: {}]
  %s13 = sld [smem:[#allocation0]]
  $region97: #{forward.14} parent=0
    _
  %s15 = ssub.s32 1, %s13
  %s16 = scalar_select 0, %s15, %s13
  $region1: #{forward.14} parent=0
    #allocation2 [shape = 'u8[512]{0}', space=vmem, size = 0x400, scoped, tag = 'input window, operand 5, single buffered']
    #allocation3 [shape = 's32[2]{0}', space=sflag, size = 0x8, scoped, tag = 'scoped memory for forward.14']
    #allocation4 [shape = 'u8[512]{0}', space=vmem, size = 0x400, scoped, tag = 'input window, operand 7, single buffered']
    #allocation5 [shape = 's32[1]{0}', space=sflag, size = 0x4, scoped, tag = 'scoped memory for forward.14']
    #allocation6 [shape = 'u8[512]{0}', space=vmem, size = 0x400, scoped, tag = 'input window, operand 9, single buffered']
    #allocation7 [shape = 'u8[512]{0}', space=vmem, size = 0x400, scoped, tag = 'input window, operand 11, single buffered']
    #allocation8 [shape = 's32[1]{0}', space=sflag, size = 0x4, scoped, tag = 'scoped memory for forward.14']
    %17 = vsyncpa [#allocation3], 0
    %18 = vsyncpa [#allocation5], 0
    %19 = vsyncpa [#allocation8], 0
    loop: start=0, step=1, limit=6
    $region2: #{forward.14} parent=1 // loop_pre_header
      _
    $region3: #{forward.14} parent=1 // loop_header
      %s21 = sphi 0, %s25
      %p22 = scmp.ge.s32.totalorder %s21, 6
      %s31 = sphi 0, %s33
      %s34 = sphi 0, %s31
      %s35 = sphi 0, %s34
      %s51 = sphi 0, %s35
      %s57 = sphi 0, %s59
      %s60 = sphi 0, %s57
      %s61 = sphi 0, %s60
      %s77 = sphi 0, %s61
      %s81 = sphi 0, %s81
      %s83 = sphi 0, %s81
      %s84 = sphi 0, %s83
      %s98 = sphi 0, %s84
      %s102 = sphi 0, %s102
      %s104 = sphi 0, %s102
      %s105 = sphi 0, %s104
      %s119 = sphi 0, %s105
      %s123 = sphi 0, %s123
      %s125 = sphi 0, %s123
      %s126 = sphi 0, %s125
      %s140 = sphi 0, %s126
      %s144 = sphi 0, %s144
      %s146 = sphi 0, %s144
      %s147 = sphi 0, %s146
      %s161 = sphi 0, %s147
      %s165 = sphi 0, %s165
      %s167 = sphi 0, %s165
      %s168 = sphi 0, %s167
      %s182 = sphi 0, %s168
      %s186 = sphi 0, %s186
      %s188 = sphi 0, %s186
      %s189 = sphi 0, %s188
      %s203 = sphi 0, %s189
      %s207 = sphi 0, %s207
      %s209 = sphi 0, %s207
      %s210 = sphi 0, %s209
      %s224 = sphi 0, %s210
      %s228 = sphi 0, %s228
      %s230 = sphi 0, %s228
      %s231 = sphi 0, %s230
      %s245 = sphi 0, %s231
      %s249 = sphi 0, %s249
      %s251 = sphi 0, %s249
      %s252 = sphi 0, %s251
      %s266 = sphi 0, %s252
      %s270 = sphi 0, %s270
      %s272 = sphi 0, %s270
      %s273 = sphi 0, %s272
      %s287 = sphi 0, %s273
      %s293 = sphi 0, %s295
      %s296 = sphi 0, %s293
      %s297 = sphi 0, %s296
      %s313 = sphi 0, %s297
    $region4: #{forward.14} parent=1 // loop_header_branch
      %24 = sbr.rel (%p22) target = $region8
    $region5: #{forward.14} parent=1 // loop_body
      %s26 = ssub.s32 %s21, 1
      %s27 = ssub.s32 %s21, 2
      %s28 = sadd.s32 %s21, 1
      %s29 = ssub.s32 %s21, %s28
      %p30 = scmp.eq.s32.totalorder %s29, 0
      %s32 = sadd.s32 %s31, 1
      %s33 = scalar_select %p30, %s31, %s32
      %p36 = pneg %p30
      %p37 = scmp.eq.s32.totalorder %s21, 3
      %p38 = por %p36, %p37
      %p39 = scmp.ne.s32.totalorder %s31, %s34
      %p40 = scmp.eq.s32.totalorder %s21, 0
      %p41 = por %p39, %p40
      %p42 = scmp.ne.s32.totalorder %s31, %s34
      %p43 = scmp.eq.s32.totalorder %s26, 3
      %p44 = por %p42, %p43
      %p45 = scmp.ne.s32.totalorder %s34, %s35
      %p46 = scmp.eq.s32.totalorder %s26, 0
      %p47 = por %p45, %p46
      %p48 = scmp.ne.s32.totalorder %s34, %s35
      %p49 = scmp.eq.s32.totalorder %s27, 3
      %p50 = por %p48, %p49
      %p52 = scmp.ne.s32.totalorder %s35, %s51
      %p53 = scmp.eq.s32.totalorder %s27, 0
      %p54 = por %p52, %p53
      %s55 = ssub.s32 %s21, %s28
      %p56 = scmp.eq.s32.totalorder %s55, 0
      %s58 = sadd.s32 %s57, 1
      %s59 = scalar_select %p56, %s57, %s58
      %p62 = pneg %p56
      %p63 = scmp.eq.s32.totalorder %s21, 3
      %p64 = por %p62, %p63
      %p65 = scmp.ne.s32.totalorder %s57, %s60
      %p66 = scmp.eq.s32.totalorder %s21, 0
      %p67 = por %p65, %p66
      %p68 = scmp.ne.s32.totalorder %s57, %s60
      %p69 = scmp.eq.s32.totalorder %s26, 3
      %p70 = por %p68, %p69
      %p71 = scmp.ne.s32.totalorder %s60, %s61
      %p72 = scmp.eq.s32.totalorder %s26, 0
      %p73 = por %p71, %p72
      %p74 = scmp.ne.s32.totalorder %s60, %s61
      %p75 = scmp.eq.s32.totalorder %s27, 3
      %p76 = por %p74, %p75
      %p78 = scmp.ne.s32.totalorder %s61, %s77
      %p79 = scmp.eq.s32.totalorder %s27, 0
      %p80 = por %p78, %p79
      %s82 = sadd.s32 %s81, 1
      %p85 = scmp.eq.s32.totalorder %s21, 3
      %p86 = scmp.ne.s32.totalorder %s81, %s83
      %p87 = scmp.eq.s32.totalorder %s21, 0
      %p88 = por %p86, %p87
      %p89 = scmp.ne.s32.totalorder %s81, %s83
      %p90 = scmp.eq.s32.totalorder %s26, 3
      %p91 = por %p89, %p90
      %p92 = scmp.ne.s32.totalorder %s83, %s84
      %p93 = scmp.eq.s32.totalorder %s26, 0
      %p94 = por %p92, %p93
      %p95 = scmp.ne.s32.totalorder %s83, %s84
      %p96 = scmp.eq.s32.totalorder %s27, 3
      %p97 = por %p95, %p96
      %p99 = scmp.ne.s32.totalorder %s84, %s98
      %p100 = scmp.eq.s32.totalorder %s27, 0
      %p101 = por %p99, %p100
      %s103 = sadd.s32 %s102, 1
      %p106 = scmp.eq.s32.totalorder %s21, 3
      %p107 = scmp.ne.s32.totalorder %s102, %s104
      %p108 = scmp.eq.s32.totalorder %s21, 0
      %p109 = por %p107, %p108
      %p110 = scmp.ne.s32.totalorder %s102, %s104
      %p111 = scmp.eq.s32.totalorder %s26, 3
      %p112 = por %p110, %p111
      %p113 = scmp.ne.s32.totalorder %s104, %s105
      %p114 = scmp.eq.s32.totalorder %s26, 0
      %p115 = por %p113, %p114
      %p116 = scmp.ne.s32.totalorder %s104, %s105
      %p117 = scmp.eq.s32.totalorder %s27, 3
      %p118 = por %p116, %p117
      %p120 = scmp.ne.s32.totalorder %s105, %s119
      %p121 = scmp.eq.s32.totalorder %s27, 0
      %p122 = por %p120, %p121
      %s124 = sadd.s32 %s123, 1
      %p127 = scmp.eq.s32.totalorder %s21, 3
      %p128 = scmp.ne.s32.totalorder %s123, %s125
      %p129 = scmp.eq.s32.totalorder %s21, 0
      %p130 = por %p128, %p129
      %p131 = scmp.ne.s32.totalorder %s123, %s125
      %p132 = scmp.eq.s32.totalorder %s26, 3
      %p133 = por %p131, %p132
      %p134 = scmp.ne.s32.totalorder %s125, %s126
      %p135 = scmp.eq.s32.totalorder %s26, 0
      %p136 = por %p134, %p135
      %p137 = scmp.ne.s32.totalorder %s125, %s126
      %p138 = scmp.eq.s32.totalorder %s27, 3
      %p139 = por %p137, %p138
      %p141 = scmp.ne.s32.totalorder %s126, %s140
      %p142 = scmp.eq.s32.totalorder %s27, 0
      %p143 = por %p141, %p142
      %s145 = sadd.s32 %s144, 1
      %p148 = scmp.eq.s32.totalorder %s21, 3
      %p149 = scmp.ne.s32.totalorder %s144, %s146
      %p150 = scmp.eq.s32.totalorder %s21, 0
      %p151 = por %p149, %p150
      %p152 = scmp.ne.s32.totalorder %s144, %s146
      %p153 = scmp.eq.s32.totalorder %s26, 3
      %p154 = por %p152, %p153
      %p155 = scmp.ne.s32.totalorder %s146, %s147
      %p156 = scmp.eq.s32.totalorder %s26, 0
      %p157 = por %p155, %p156
      %p158 = scmp.ne.s32.totalorder %s146, %s147
      %p159 = scmp.eq.s32.totalorder %s27, 3
      %p160 = por %p158, %p159
      %p162 = scmp.ne.s32.totalorder %s147, %s161
      %p163 = scmp.eq.s32.totalorder %s27, 0
      %p164 = por %p162, %p163
      %s166 = sadd.s32 %s165, 1
      %p169 = scmp.eq.s32.totalorder %s21, 3
      %p170 = scmp.ne.s32.totalorder %s165, %s167
      %p171 = scmp.eq.s32.totalorder %s21, 0
      %p172 = por %p170, %p171
      %p173 = scmp.ne.s32.totalorder %s165, %s167
      %p174 = scmp.eq.s32.totalorder %s26, 3
      %p175 = por %p173, %p174
      %p176 = scmp.ne.s32.totalorder %s167, %s168
      %p177 = scmp.eq.s32.totalorder %s26, 0
      %p178 = por %p176, %p177
      %p179 = scmp.ne.s32.totalorder %s167, %s168
      %p180 = scmp.eq.s32.totalorder %s27, 3
      %p181 = por %p179, %p180
      %p183 = scmp.ne.s32.totalorder %s168, %s182
      %p184 = scmp.eq.s32.totalorder %s27, 0
      %p185 = por %p183, %p184
      %s187 = sadd.s32 %s186, 1
      %p190 = scmp.eq.s32.totalorder %s21, 3
      %p191 = scmp.ne.s32.totalorder %s186, %s188
      %p192 = scmp.eq.s32.totalorder %s21, 0
      %p193 = por %p191, %p192
      %p194 = scmp.ne.s32.totalorder %s186, %s188
      %p195 = scmp.eq.s32.totalorder %s26, 3
      %p196 = por %p194, %p195
      %p197 = scmp.ne.s32.totalorder %s188, %s189
      %p198 = scmp.eq.s32.totalorder %s26, 0
      %p199 = por %p197, %p198
      %p200 = scmp.ne.s32.totalorder %s188, %s189
      %p201 = scmp.eq.s32.totalorder %s27, 3
      %p202 = por %p200, %p201
      %p204 = scmp.ne.s32.totalorder %s189, %s203
      %p205 = scmp.eq.s32.totalorder %s27, 0
      %p206 = por %p204, %p205
      %s208 = sadd.s32 %s207, 1
      %p211 = scmp.eq.s32.totalorder %s21, 3
      %p212 = scmp.ne.s32.totalorder %s207, %s209
      %p213 = scmp.eq.s32.totalorder %s21, 0
      %p214 = por %p212, %p213
      %p215 = scmp.ne.s32.totalorder %s207, %s209
      %p216 = scmp.eq.s32.totalorder %s26, 3
      %p217 = por %p215, %p216
      %p218 = scmp.ne.s32.totalorder %s209, %s210
      %p219 = scmp.eq.s32.totalorder %s26, 0
      %p220 = por %p218, %p219
      %p221 = scmp.ne.s32.totalorder %s209, %s210
      %p222 = scmp.eq.s32.totalorder %s27, 3
      %p223 = por %p221, %p222
      %p225 = scmp.ne.s32.totalorder %s210, %s224
      %p226 = scmp.eq.s32.totalorder %s27, 0
      %p227 = por %p225, %p226
      %s229 = sadd.s32 %s228, 1
      %p232 = scmp.eq.s32.totalorder %s21, 3
      %p233 = scmp.ne.s32.totalorder %s228, %s230
      %p234 = scmp.eq.s32.totalorder %s21, 0
      %p235 = por %p233, %p234
      %p236 = scmp.ne.s32.totalorder %s228, %s230
      %p237 = scmp.eq.s32.totalorder %s26, 3
      %p238 = por %p236, %p237
      %p239 = scmp.ne.s32.totalorder %s230, %s231
      %p240 = scmp.eq.s32.totalorder %s26, 0
      %p241 = por %p239, %p240
      %p242 = scmp.ne.s32.totalorder %s230, %s231
      %p243 = scmp.eq.s32.totalorder %s27, 3
      %p244 = por %p242, %p243
      %p246 = scmp.ne.s32.totalorder %s231, %s245
      %p247 = scmp.eq.s32.totalorder %s27, 0
      %p248 = por %p246, %p247
      %s250 = sadd.s32 %s249, 1
      %p253 = scmp.eq.s32.totalorder %s21, 3
      %p254 = scmp.ne.s32.totalorder %s249, %s251
      %p255 = scmp.eq.s32.totalorder %s21, 0
      %p256 = por %p254, %p255
      %p257 = scmp.ne.s32.totalorder %s249, %s251
      %p258 = scmp.eq.s32.totalorder %s26, 3
      %p259 = por %p257, %p258
      %p260 = scmp.ne.s32.totalorder %s251, %s252
      %p261 = scmp.eq.s32.totalorder %s26, 0
      %p262 = por %p260, %p261
      %p263 = scmp.ne.s32.totalorder %s251, %s252
      %p264 = scmp.eq.s32.totalorder %s27, 3
      %p265 = por %p263, %p264
      %p267 = scmp.ne.s32.totalorder %s252, %s266
      %p268 = scmp.eq.s32.totalorder %s27, 0
      %p269 = por %p267, %p268
      %s271 = sadd.s32 %s270, 1
      %p274 = scmp.eq.s32.totalorder %s21, 3
      %p275 = scmp.ne.s32.totalorder %s270, %s272
      %p276 = scmp.eq.s32.totalorder %s21, 0
      %p277 = por %p275, %p276
      %p278 = scmp.ne.s32.totalorder %s270, %s272
      %p279 = scmp.eq.s32.totalorder %s26, 3
      %p280 = por %p278, %p279
      %p281 = scmp.ne.s32.totalorder %s272, %s273
      %p282 = scmp.eq.s32.totalorder %s26, 0
      %p283 = por %p281, %p282
      %p284 = scmp.ne.s32.totalorder %s272, %s273
      %p285 = scmp.eq.s32.totalorder %s27, 3
      %p286 = por %p284, %p285
      %p288 = scmp.ne.s32.totalorder %s273, %s287
      %p289 = scmp.eq.s32.totalorder %s27, 0
      %p290 = por %p288, %p289
      %s291 = ssub.s32 %s21, %s28
      %p292 = scmp.eq.s32.totalorder %s291, 0
      %s294 = sadd.s32 %s293, 1
      %s295 = scalar_select %p292, %s293, %s294
      %p298 = pneg %p292
      %p299 = scmp.eq.s32.totalorder %s21, 3
      %p300 = por %p298, %p299
      %p301 = scmp.ne.s32.totalorder %s293, %s296
      %p302 = scmp.eq.s32.totalorder %s21, 0
      %p303 = por %p301, %p302
      %p304 = scmp.ne.s32.totalorder %s293, %s296
      %p305 = scmp.eq.s32.totalorder %s26, 3
      %p306 = por %p304, %p305
      %p307 = scmp.ne.s32.totalorder %s296, %s297
      %p308 = scmp.eq.s32.totalorder %s26, 0
      %p309 = por %p307, %p308
      %p310 = scmp.ne.s32.totalorder %s296, %s297
      %p311 = scmp.eq.s32.totalorder %s27, 3
      %p312 = por %p310, %p311
      %p314 = scmp.ne.s32.totalorder %s297, %s313
      %p315 = scmp.eq.s32.totalorder %s27, 0
      %p316 = por %p314, %p315
      %p317 = scmp.le.s32.totalorder 1, %s21
      %p318 = scmp.lt.s32.totalorder %s21, 5
      %p319 = pnand %p317, %p318
      %p320 = pneg %p319
      // Predicated region
      $region9: #{forward.14} parent=5 // pred_check
        _
      $region10: #{forward.14} parent=5 // pred_check_branch
        %322 = sbr.rel (%p319) target = $region12
      $region11: #{forward.14} parent=5 // pred_region
        %s323 = ssub.s32 %s21, 1
        // Predicated region
        $region13: #{forward.14} parent=11 // pred_check
          %p324 = pneg %p94
        $region14: #{forward.14} parent=11 // pred_check_branch
          %326 = sbr.rel (%p324) target = $region16
        $region15: #{forward.14} parent=11 // pred_region
          _
        $region16: #{forward.14} parent=11 // pred_fallthru
          _
        // Predicated region
        $region17: #{forward.14} parent=11 // pred_check
          %p327 = pneg %p115
        $region18: #{forward.14} parent=11 // pred_check_branch
          %329 = sbr.rel (%p327) target = $region20
        $region19: #{forward.14} parent=11 // pred_region
          _
        $region20: #{forward.14} parent=11 // pred_fallthru
          _
        // Predicated region
        $region21: #{forward.14} parent=11 // pred_check
          %p330 = pneg %p136
        $region22: #{forward.14} parent=11 // pred_check_branch
          %332 = sbr.rel (%p330) target = $region24
        $region23: #{forward.14} parent=11 // pred_region
          _
        $region24: #{forward.14} parent=11 // pred_fallthru
          _
        // Predicated region
        $region25: #{forward.14} parent=11 // pred_check
          %p333 = pneg %p157
        $region26: #{forward.14} parent=11 // pred_check_branch
          %335 = sbr.rel (%p333) target = $region28
        $region27: #{forward.14} parent=11 // pred_region
          %337 = vsyncadd [#allocation3], 0
          %s339 = sshll.u32 %s5, 4
          %s340 = int_to_ptr.hbm [resolvable:$true] %s339
          %s341 = sshll.u32 [#allocation2], 4
          %s342 = int_to_ptr.vmem [resolvable:$true] %s341
          %344 = dma.hbm_to_vmem [thread:$0]  %s340, 16, %s342, [#allocation3]
        $region28: #{forward.14} parent=11 // pred_fallthru
          _
        // Predicated region
        $region29: #{forward.14} parent=11 // pred_check
          %p345 = pneg %p178
        $region30: #{forward.14} parent=11 // pred_check_branch
          %347 = sbr.rel (%p345) target = $region32
        $region31: #{forward.14} parent=11 // pred_region
          _
        $region32: #{forward.14} parent=11 // pred_fallthru
          _
        // Predicated region
        $region33: #{forward.14} parent=11 // pred_check
          %p348 = pneg %p199
        $region34: #{forward.14} parent=11 // pred_check_branch
          %350 = sbr.rel (%p348) target = $region36
        $region35: #{forward.14} parent=11 // pred_region
          %352 = vsyncadd [#allocation5], 0
          %s354 = sshll.u32 %s7, 4
          %s355 = int_to_ptr.hbm [resolvable:$true] %s354
          %s356 = sshll.u32 [#allocation4], 4
          %s357 = int_to_ptr.vmem [resolvable:$true] %s356
          %359 = dma.hbm_to_vmem [thread:$0]  %s355, 16, %s357, [#allocation5]
        $region36: #{forward.14} parent=11 // pred_fallthru
          _
        // Predicated region
        $region37: #{forward.14} parent=11 // pred_check
          %p360 = pneg %p220
        $region38: #{forward.14} parent=11 // pred_check_branch
          %362 = sbr.rel (%p360) target = $region40
        $region39: #{forward.14} parent=11 // pred_region
          _
        $region40: #{forward.14} parent=11 // pred_fallthru
          _
        // Predicated region
        $region41: #{forward.14} parent=11 // pred_check
          %p363 = pneg %p241
        $region42: #{forward.14} parent=11 // pred_check_branch
          %365 = sbr.rel (%p363) target = $region44
        $region43: #{forward.14} parent=11 // pred_region
          %367 = vsyncadd [#allocation5], 0
          %s369 = sshll.u32 %s9, 4
          %s370 = int_to_ptr.hbm [resolvable:$true] %s369
          %s371 = sshll.u32 [#allocation6], 4
          %s372 = int_to_ptr.vmem [resolvable:$true] %s371
          %374 = dma.hbm_to_vmem [thread:$0]  %s370, 16, %s372, [#allocation5]
        $region44: #{forward.14} parent=11 // pred_fallthru
          _
        // Predicated region
        $region45: #{forward.14} parent=11 // pred_check
          %p375 = pneg %p262
        $region46: #{forward.14} parent=11 // pred_check_branch
          %377 = sbr.rel (%p375) target = $region48
        $region47: #{forward.14} parent=11 // pred_region
          _
        $region48: #{forward.14} parent=11 // pred_fallthru
          _
        // Predicated region
        $region49: #{forward.14} parent=11 // pred_check
          %p378 = pneg %p283
        $region50: #{forward.14} parent=11 // pred_check_branch
          %380 = sbr.rel (%p378) target = $region52
        $region51: #{forward.14} parent=11 // pred_region
          %382 = vsyncadd [#allocation8], 0
          %s384 = sshll.u32 %s11, 4
          %s385 = int_to_ptr.hbm [resolvable:$true] %s384
          %s386 = sshll.u32 [#allocation7], 4
          %s387 = int_to_ptr.vmem [resolvable:$true] %s386
          %389 = dma.hbm_to_vmem [thread:$0]  %s385, 16, %s387, [#allocation8]
        $region52: #{forward.14} parent=11 // pred_fallthru
          _
      $region12: #{forward.14} parent=5 // pred_fallthru
        _
      %p390 = scmp.lt.s32.totalorder %s21, 4
      // Predicated region
      $region53: #{forward.14} parent=5 // pred_check
        %p391 = pneg %p390
      $region54: #{forward.14} parent=5 // pred_check_branch
        %393 = sbr.rel (%p391) target = $region56
      $region55: #{forward.14} parent=5 // pred_region
        // Predicated region
        $region57: #{forward.14} parent=55 // pred_check
          %p394 = pneg %p41
        $region58: #{forward.14} parent=55 // pred_check_branch
          %396 = sbr.rel (%p394) target = $region60
        $region59: #{forward.14} parent=55 // pred_region
          %s397 = smul.u32 2, %s21
          %p398 = scmp.lt.s32.totalorder %s397, 7
          %s399 = scalar_select %p398, %s397, 7
          %s400 = smul.addr %s399, 2
          %s401 = scalar_lea.vmem %s0, %s400
          %s402 = smul.u32 2, %s21
        $region60: #{forward.14} parent=55 // pred_fallthru
          _
        // Predicated region
        $region61: #{forward.14} parent=55 // pred_check
          %p403 = pneg %p67
        $region62: #{forward.14} parent=55 // pred_check_branch
          %405 = sbr.rel (%p403) target = $region64
        $region63: #{forward.14} parent=55 // pred_region
          %s406 = smul.u32 2, %s21
          %p407 = scmp.lt.s32.totalorder %s406, 7
          %s408 = scalar_select %p407, %s406, 7
          %s409 = scalar_lea.vmem %s1, %s408
          %s410 = smul.u32 2, %s21
        $region64: #{forward.14} parent=55 // pred_fallthru
          _
      $region56: #{forward.14} parent=5 // pred_fallthru
        _
      %p411 = scmp.le.s32.totalorder 1, %s21
      %p412 = scmp.lt.s32.totalorder %s21, 5
      %p413 = pnand %p411, %p412
      %p414 = pneg %p413
      // Predicated region
      $region65: #{forward.14} parent=5 // pred_check
        _
      $region66: #{forward.14} parent=5 // pred_check_branch
        %416 = sbr.rel (%p413) target = $region68
      $region67: #{forward.14} parent=5 // pred_region
        %s417 = ssub.s32 %s21, 1
        // Predicated region
        $region69: #{forward.14} parent=67 // pred_check
          %p418 = pneg %p157
        $region70: #{forward.14} parent=67 // pred_check_branch
          %420 = sbr.rel (%p418) target = $region72
        $region71: #{forward.14} parent=67 // pred_region
          %422 = dma.done [#allocation3], 16
        $region72: #{forward.14} parent=67 // pred_fallthru
          _
        // Predicated region
        $region73: #{forward.14} parent=67 // pred_check
          %p423 = pneg %p199
        $region74: #{forward.14} parent=67 // pred_check_branch
          %425 = sbr.rel (%p423) target = $region76
        $region75: #{forward.14} parent=67 // pred_region
          %427 = dma.done [#allocation5], 16
        $region76: #{forward.14} parent=67 // pred_fallthru
          _
        // Predicated region
        $region77: #{forward.14} parent=67 // pred_check
          %p428 = pneg %p241
        $region78: #{forward.14} parent=67 // pred_check_branch
          %430 = sbr.rel (%p428) target = $region80
        $region79: #{forward.14} parent=67 // pred_region
          %432 = dma.done [#allocation5], 16
        $region80: #{forward.14} parent=67 // pred_fallthru
          _
        // Predicated region
        $region81: #{forward.14} parent=67 // pred_check
          %p433 = pneg %p283
        $region82: #{forward.14} parent=67 // pred_check_branch
          %435 = sbr.rel (%p433) target = $region84
        $region83: #{forward.14} parent=67 // pred_region
          %437 = dma.done [#allocation8], 16
        $region84: #{forward.14} parent=67 // pred_fallthru
          _
        %s438 = smul.u32 2, %s26
        %p439 = scmp.lt.s32.totalorder %s438, 7
        %s440 = scalar_select %p439, %s438, 7
        %s441 = smul.addr %s440, 2
        %s442 = scalar_lea.vmem %s0, %s441
        %p443 = pneg %p47
        %p444 = pneg %p44
        %s445 = smul.u32 2, %s26
        %p446 = scmp.lt.s32.totalorder %s445, 7
        %s447 = scalar_select %p446, %s445, 7
        %s448 = scalar_lea.vmem %s1, %s447
        %p449 = pneg %p73
        %p450 = pneg %p70
        %p451 = pneg %p94
        %p452 = pneg %p91
        %p453 = pneg %p115
        %p454 = pneg %p112
        %p455 = pneg %p136
        %p456 = pneg %p133
        %p457 = pneg %p157
        %p458 = pneg %p154
        %p459 = pneg %p178
        %p460 = pneg %p175
        %p461 = pneg %p199
        %p462 = pneg %p196
        %p463 = pneg %p220
        %p464 = pneg %p217
        %p465 = pneg %p241
        %p466 = pneg %p238
        %p467 = pneg %p262
        %p468 = pneg %p259
        %p469 = pneg %p283
        %p470 = pneg %p280
        %p471 = pneg %p309
        %p472 = pneg %p306
        %s473 = smul.u32 2, %s26
        %p474 = scmp.lt.s32.totalorder %s473, 7
        %s475 = scalar_select %p474, %s473, 7
        %s476 = smul.addr %s475, 2
        %s477 = scalar_lea.vmem %s12, %s476
        %s478 = smul.u32 2, %s26
        %p479 = scmp.lt.s32.totalorder %s478, 7
        %s480 = scalar_select %p479, %s478, 7
        %s481 = smul.addr %s480, 2
        %s482 = scalar_lea.vmem %s0, %s481
        %s483 = smul.u32 2, %s26
        %s484 = smul.u32 2, %s26
        %p485 = scmp.lt.s32.totalorder %s484, 7
        %s486 = scalar_select %p485, %s484, 7
        %s487 = scalar_lea.vmem %s1, %s486
        %s488 = smul.u32 2, %s26
        %s489 = smul.u32 2, %s26
        %p490 = scmp.lt.s32.totalorder %s489, 7
        %s491 = scalar_select %p490, %s489, 7
        %s492 = smul.addr %s491, 2
        %s493 = scalar_lea.vmem %s12, %s492
        %s494 = smul.u32 2, %s26
        %v496 = vld [vmem:[%s482] sm:$0x3]
        %v497 = vld [vmem:[%s482 + $0x2] sm:$0x3]
        %v498 = vunpack.c.l.bf16 %v496
        %v499 = vunpack.c.l.bf16 %v497
        %v500 = vld [vmem:[%s487] sm:$0x1]
        %v501 = vld [vmem:[%s487 + $0x1] sm:$0x1]
        %v502 = vxor.u32 %v500, 2147483648
        %v503 = vxor.u32 %v501, 2147483648
        %v504 = vmul.f32 %v502, 1.442695
        %v505 = vpow.pop %v504
        %v506 = vmul.f32 %v503, 1.442695
        %v507 = vpow.pop %v506
        %v508 = vadd.f32 %v505, 1.0
        %v509 = vadd.f32 %v507, 1.0
        %v510 = vrcp.pop %v508
        %v511 = vmul.f32 %v508, %v510
        %v512 = vsub.f32 1.0, %v511
        %v513 = vmul.f32 %v510, %v512
        %v514 = vadd.f32 %v510, %v513
        %vm515 = vweird.f32 %v508
        %vm516 = vweird.f32 %v510
        %vm517 = vmor %vm515, %vm516
        %v518 = vsel %vm517, %v510, %v514
        %v519 = vand.u32 2147483647, %v508
        %vm520 = vcmp.eq.f32.partialorder %v519, 8.507059e+37
        %v521 = vand.u32 %v508, 2147483648
        %v522 = vor.u32 1.1754944e-38, %v521
        %v523 = vsel %vm520, %v522, %v518
        %v524 = vmul.f32 1.0, %v523
        %v525 = vrcp.pop %v509
        %v526 = vmul.f32 %v509, %v525
        %v527 = vsub.f32 1.0, %v526
        %v528 = vmul.f32 %v525, %v527
        %v529 = vadd.f32 %v525, %v528
        %vm530 = vweird.f32 %v509
        %vm531 = vweird.f32 %v525
        %vm532 = vmor %vm530, %vm531
        %v533 = vsel %vm532, %v525, %v529
        %v534 = vand.u32 2147483647, %v509
        %vm535 = vcmp.eq.f32.partialorder %v534, 8.507059e+37
        %v536 = vand.u32 %v509, 2147483648
        %v537 = vor.u32 1.1754944e-38, %v536
        %v538 = vsel %vm535, %v537, %v533
        %v539 = vmul.f32 1.0, %v538
        %v540 = vmul.f32 %v500, %v524
        %v541 = vmul.f32 %v501, %v539
        %v542 = vpack.c.bf16 %v540, %v540
        %v543 = vpack.c.bf16 %v541, %v541
        %v544 = vld [vmem:[%s2] sm:$0xff]
        %v545 = vld [vmem:[%s2 + $0x8] sm:$0xff]
        %v546 = vld [vmem:[%s2 + $0x10] sm:$0xff]
        %v547 = vld [vmem:[%s2 + $0x18] sm:$0xff]
        %v548 = vld [vmem:[%s3] sm:$0x3]
        %v550 = vperm.slane %v548, 0
        %v551 = vperm.slane %v548, 1
        %v556 = vunpack.c.l.b16 %v542
        %v557 = vunpack.c.l.b16 %v543
        %v558 = vrot.slane %v557, 7
        %vm559 = vcmask 1041409
        %v560 = vsel %vm559, %v558, %v556
        %v561 = vpack.c.b16 %v560, %v560
        %v566 = vunpack.c.l.b16 %v544
        %v567 = vunpack.c.h.b16 %v544
        %v568 = vunpack.c.l.b16 %v545
        %v569 = vunpack.c.h.b16 %v545
        %v570 = vunpack.c.l.b16 %v546
        %v571 = vunpack.c.h.b16 %v546
        %v572 = vunpack.c.l.b16 %v547
        %v573 = vunpack.c.h.b16 %v547
        %v574 = vpack.c.b16 %v568, %v566
        %v575 = vpack.c.b16 %v569, %v567
        %v576 = vpack.c.b16 %v572, %v570
        %v577 = vpack.c.b16 %v573, %v571
        %vm582 = vcmask 261120
        %v584 = vsel %vm582, %v561, 0
        %586 = vmatpush.bf16.msra.mxu0 0
        %587 = vmatpush.bf16.msra.mxu0 0
        %588 = vmatpush.bf16.msra.mxu0 0
        %589 = vmatpush.bf16.msra.mxu0 0
        %590 = vmatpush.bf16.msra.mxu0 0
        %591 = vmatpush.bf16.msra.mxu0 0
        %592 = vmatpush.bf16.msra.mxu0 %v576
        %593 = vmatpush.bf16.msra.mxu0 %v574
        %594 = vmatmul.bf16.gmra.mxu0 %v584
        %v595 = vpop.f32.mrf.mxu0
        %v596 = vadd.f32 %v550, %v595
        %v597 = vpop.f32.mrf.mxu0
        %598 = vdwg.mxu0
        %599 = vmatpush.bf16.msra.mxu0 0
        %600 = vmatpush.bf16.msra.mxu0 0
        %601 = vmatpush.bf16.msra.mxu0 0
        %602 = vmatpush.bf16.msra.mxu0 0
        %603 = vmatpush.bf16.msra.mxu0 0
        %604 = vmatpush.bf16.msra.mxu0 0
        %605 = vmatpush.bf16.msra.mxu0 %v577
        %606 = vmatpush.bf16.msra.mxu0 %v575
        %607 = vmatmul.bf16.gmra.mxu0 %v584
        %v608 = vpop.f32.mrf.mxu0
        %v609 = vadd.f32 %v551, %v608
        %v610 = vpop.f32.mrf.mxu0
        %611 = vdwg.mxu0
        %613 = vrot.lane.b32.xlu0 %v596, 96
        %v614 = vpop.permute.xlu0 %613
        %616 = vrot.lane.b32.xlu0 %v596, 64
        %v617 = vpop.permute.xlu0 %616
        %619 = vrot.lane.b32.xlu0 %v596, 32
        %v620 = vpop.permute.xlu0 %619
        %623 = vrot.lane.b32.xlu0 %v609, 96
        %v624 = vpop.permute.xlu0 %623
        %v625 = vrot.slane %v617, 4
        %vm626 = vcmask 1047556
        %v627 = vsel %vm626, %v625, %v596
        %v629 = vunpack.c.l.s4 1983009808
        %v630 = vunpack.c.0.s8 %v629
        %v631 = vperm.slane %v627, %v630
        %v632 = vrot.slane %v620, 4
        %v633 = vsel %vm626, %v632, %v614
        %v635 = vunpack.c.l.s4 1983009808
        %v636 = vunpack.c.0.s8 %v635
        %v637 = vperm.slane %v633, %v636
        %v639 = vrot.slane %v637, 4
        %v640 = vsel %vm626, %v639, %v631
        %v642 = vunpack.c.l.s4 1934713408
        %v643 = vunpack.c.0.s8 %v642
        %v644 = vperm.slane %v640, %v643
        %v645 = vrot.slane %v624, 4
        %v646 = vsel %vm626, %v645, %v609
        %v648 = vunpack.c.l.s4 1934713408
        %v649 = vunpack.c.0.s8 %v648
        %v650 = vperm.slane %v646, %v649
        %v651 = vrot.slane %v650, 4
        %v652 = vsel %vm626, %v651, %v644
        %v653 = vrot.slane %v644, 4
        %v654 = vsel %vm626, %v650, %v653
        %vm655 = vcmask 257024
        %v656 = vsel %vm655, %v498, 0.0
        %657 = vadd.xlane.f32.xlu0 %v656
        %v658 = vpop.xlane.xlu0 %657
        %v659 = vsel %vm655, %v499, 0.0
        %660 = vadd.xlane.f32.xlu0 %v659
        %v661 = vpop.xlane.xlu0 %660
        %v662 = vrcp.pop 32.0
        %v663 = vmul.f32 32.0, %v662
        %v664 = vsub.f32 1.0, %v663
        %v665 = vmul.f32 %v662, %v664
        %v666 = vadd.f32 %v662, %v665
        %vm667 = vweird.f32 %v662
        %v668 = vsel %vm667, %v662, %v666
        %v669 = vmul.f32 %v658, %v668
        %v670 = vmul.f32 %v661, %v668
        %v671 = vsub.f32 %v498, %v669
        %v672 = vsub.f32 %v499, %v670
        %v673 = vmul.f32 %v671, %v671
        %v674 = vmul.f32 %v672, %v672
        %v675 = vsel %vm655, %v673, 0.0
        %676 = vadd.xlane.f32.xlu0 %v675
        %v677 = vpop.xlane.xlu0 %676
        %v678 = vsel %vm655, %v674, 0.0
        %679 = vadd.xlane.f32.xlu0 %v678
        %v680 = vpop.xlane.xlu0 %679
        %v681 = vmul.f32 %v677, %v668
        %v682 = vmul.f32 %v680, %v668
        %v683 = vadd.f32 %v681, 1e-06
        %v684 = vadd.f32 %v682, 1e-06
        %v685 = vrsqrt.pop %v683
        %v686 = vmul.f32 %v685, %v683
        %v687 = vmul.f32 %v686, %v685
        %v688 = vmul.f32 0.5, %v687
        %v689 = vsub.f32 1.5, %v688
        %v690 = vmul.f32 %v685, %v689
        %vm691 = vweird.f32 %v683
        %vm692 = vweird.f32 %v685
        %vm693 = vmor %vm691, %vm692
        %v694 = vsel %vm693, %v685, %v690
        %v695 = vrsqrt.pop %v684
        %v696 = vmul.f32 %v695, %v684
        %v697 = vmul.f32 %v696, %v695
        %v698 = vmul.f32 0.5, %v697
        %v699 = vsub.f32 1.5, %v698
        %v700 = vmul.f32 %v695, %v699
        %vm701 = vweird.f32 %v684
        %vm702 = vweird.f32 %v695
        %vm703 = vmor %vm701, %vm702
        %v704 = vsel %vm703, %v695, %v700
        %v705 = vmul.f32 %v671, %v694
        %v706 = vmul.f32 %v672, %v704
        %v707 = vadd.f32 %v652, 1.0
        %v708 = vadd.f32 %v654, 1.0
        %v709 = vperm.slane %v707, 1
        %v710 = vperm.slane %v708, 1
        %v711 = vmul.f32 %v705, %v709
        %v712 = vmul.f32 %v706, %v710
        %v713 = vperm.slane %v652, 0
        %v714 = vperm.slane %v654, 0
        %v715 = vadd.f32 %v711, %v713
        %v716 = vadd.f32 %v712, %v714
        %719 = vst [vmem:[#allocation1] ss:$2 sm:$0xff] %v715
        %s720 = scalar_lea.vmem [#allocation1], 1
        %721 = vst [vmem:[%s720] ss:$2 sm:$0xff] %v716
        %v722 = vld.sshfl [vmem:[#allocation1] sm:$0xff pattern:$0x75316420]
        %v724 = vpack.c.bf16 %v722, %v722
        %v725 = vld [vmem:[%s4] sm:$0xf]
        %v726 = vld [vmem:[%s4 + $0x4] sm:$0xf]
        %v727 = vld [vmem:[%s4 + $0x8] sm:$0xf]
        %v728 = vld [vmem:[%s4 + $0xc] sm:$0xf]
        %v729 = vld [vmem:[#allocation2] sm:$0x1]
        %v731 = vperm.slane %v729, 0
        %v737 = vunpack.c.l.b16 %v725
        %v738 = vunpack.c.l.b16 %v726
        %v739 = vunpack.c.l.b16 %v727
        %v740 = vunpack.c.l.b16 %v728
        %v741 = vpack.c.b16 %v738, %v737
        %v742 = vpack.c.b16 %v740, %v739
        %v746 = vsel %vm582, %v724, 0
        %748 = vmatpush.bf16.msra.mxu0 0
        %749 = vmatpush.bf16.msra.mxu0 0
        %750 = vmatpush.bf16.msra.mxu0 0
        %751 = vmatpush.bf16.msra.mxu0 0
        %752 = vmatpush.bf16.msra.mxu0 0
        %753 = vmatpush.bf16.msra.mxu0 0
        %754 = vmatpush.bf16.msra.mxu0 %v742
        %755 = vmatpush.bf16.msra.mxu0 %v741
        %756 = vmatmul.bf16.gmra.mxu0 %v746
        %v757 = vpop.f32.mrf.mxu0
        %v758 = vadd.f32 %v731, %v757
        %v759 = vpop.f32.mrf.mxu0
        %760 = vdwg.mxu0
        %v762 = vrot.slane %v758, 4
        %v764 = vpack.c.bf16 %v758, %v758
        %v765 = vpack.c.bf16 %v762, %v762
        %v767 = vunpack.c.l.b16 %v764
        %v768 = vpack.c.b16 %v767, %v767
        %769 = vrot.lane.b32.xlu0 %v768, 96
        %v770 = vpop.permute.xlu0 %769
        %vm771 = vcmask 64512
        %v773 = vsel %vm771, %v764, 0
        %v776 = vsel %vm771, %v770, 0
        %778 = vmatpush.bf16.xpose.msra.mxu0 0
        %779 = vmatpush.bf16.xpose.msra.mxu0 0
        %780 = vmatpush.bf16.xpose.msra.mxu0 0
        %781 = vmatpush.bf16.xpose.msra.mxu0 0
        %782 = vmatpush.bf16.xpose.msra.mxu0 0
        %783 = vmatpush.bf16.xpose.msra.mxu0 0
        %784 = vmatpush.bf16.xpose.msra.mxu0 0
        %785 = vmatpush.bf16.xpose.msra.mxu0 %v776
        %786 = vmatmul.bf16.gmra.mxu0 %v773
        %v787 = vpop.f32.mrf.mxu0
        %v788 = vadd.f32 0.0, %v787
        %v789 = vpop.f32.mrf.mxu0
        %790 = vdwg.mxu0
        %v792 = vunpack.c.l.b16 %v765
        %v793 = vpack.c.b16 %v792, %v792
        %794 = vrot.lane.b32.xlu0 %v793, 96
        %v795 = vpop.permute.xlu0 %794
        %v797 = vsel %vm771, %v765, 0
        %v800 = vsel %vm771, %v795, 0
        %802 = vmatpush.bf16.xpose.msra.mxu0 0
        %803 = vmatpush.bf16.xpose.msra.mxu0 0
        %804 = vmatpush.bf16.xpose.msra.mxu0 0
        %805 = vmatpush.bf16.xpose.msra.mxu0 0
        %806 = vmatpush.bf16.xpose.msra.mxu0 0
        %807 = vmatpush.bf16.xpose.msra.mxu0 0
        %808 = vmatpush.bf16.xpose.msra.mxu0 0
        %809 = vmatpush.bf16.xpose.msra.mxu0 %v800
        %810 = vmatmul.bf16.gmra.mxu0 %v797
        %v811 = vpop.f32.mrf.mxu0
        %v812 = vadd.f32 0.0, %v811
        %v813 = vpop.f32.mrf.mxu0
        %814 = vdwg.mxu0
        %vm815 = vcmask 27648
        %v816 = vsel %vm815, %v788, -inf
        %817 = vmax.xlane.f32.xlu0 %v816
        %v818 = vpop.xlane.xlu0 %817
        %v819 = vsel %vm815, %v812, -inf
        %820 = vmax.xlane.f32.xlu0 %v819
        %v821 = vpop.xlane.xlu0 %820
        %v822 = vsub.f32 %v788, %v818
        %v823 = vsub.f32 %v812, %v821
        %v824 = vmul.f32 %v822, 1.442695
        %v825 = vpow.pop %v824
        %v826 = vmul.f32 %v823, 1.442695
        %v827 = vpow.pop %v826
        %v828 = vsel %vm815, %v825, 0.0
        %829 = vadd.xlane.f32.xlu0 %v828
        %v830 = vpop.xlane.xlu0 %829
        %v831 = vsel %vm815, %v827, 0.0
        %832 = vadd.xlane.f32.xlu0 %v831
        %v833 = vpop.xlane.xlu0 %832
        %v834 = vrcp.pop %v830
        %v835 = vrcp.pop %v833
        %v836 = vmul.f32 %v825, %v834
        %v837 = vmul.f32 %v827, %v835
        %v838 = vpack.c.bf16 %v836, %v836
        %v839 = vpack.c.bf16 %v837, %v837
        %840 = vrot.lane.b32.xlu0 %v768, 64
        %v841 = vpop.permute.xlu0 %840
        %vm842 = vcmask 31744
        %v844 = vsel %vm842, %v838, 0
        %vm846 = vcmask 1041408
        %v848 = vsel %vm846, %v841, 0
        %850 = vmatpush.bf16.msra.mxu0 0
        %851 = vmatpush.bf16.msra.mxu0 0
        %852 = vmatpush.bf16.msra.mxu0 0
        %853 = vmatpush.bf16.msra.mxu0 0
        %854 = vmatpush.bf16.msra.mxu0 0
        %855 = vmatpush.bf16.msra.mxu0 0
        %856 = vmatpush.bf16.msra.mxu0 0
        %857 = vmatpush.bf16.msra.mxu0 %v848
        %858 = vmatmul.bf16.gmra.mxu0 %v844
        %v859 = vpop.f32.mrf.mxu0
        %v860 = vadd.f32 0.0, %v859
        %v861 = vpop.f32.mrf.mxu0
        %862 = vdwg.mxu0
        %863 = vrot.lane.b32.xlu0 %v793, 64
        %v864 = vpop.permute.xlu0 %863
        %v866 = vsel %vm842, %v839, 0
        %v869 = vsel %vm846, %v864, 0
        %871 = vmatpush.bf16.msra.mxu0 0
        %872 = vmatpush.bf16.msra.mxu0 0
        %873 = vmatpush.bf16.msra.mxu0 0
        %874 = vmatpush.bf16.msra.mxu0 0
        %875 = vmatpush.bf16.msra.mxu0 0
        %876 = vmatpush.bf16.msra.mxu0 0
        %877 = vmatpush.bf16.msra.mxu0 0
        %878 = vmatpush.bf16.msra.mxu0 %v869
        %879 = vmatmul.bf16.gmra.mxu0 %v866
        %v880 = vpop.f32.mrf.mxu0
        %v881 = vadd.f32 0.0, %v880
        %v882 = vpop.f32.mrf.mxu0
        %883 = vdwg.mxu0
        %886 = vst [vmem:[#allocation1] ss:$2 sm:$0xff] %v860
        %s887 = scalar_lea.vmem [#allocation1], 1
        %888 = vst [vmem:[%s887] ss:$2 sm:$0xff] %v881
        %v889 = vld.sshfl [vmem:[#allocation1] sm:$0xff pattern:$0x75316420]
        %v891 = vpack.c.bf16 %v889, %v889
        %v892 = vld [vmem:[%s6] sm:$0xf]
        %893 = vrot.lane.b32.xlu0 %v768, 120
        %v894 = vpop.permute.xlu0 %893
        %895 = vrot.lane.b32.xlu0 %v768, 88
        %v896 = vpop.permute.xlu0 %895
        %v898 = vsel %vm771, %v894, 0
        %v901 = vsel %vm771, %v896, 0
        %903 = vmatpush.bf16.xpose.msra.mxu0 0
        %904 = vmatpush.bf16.xpose.msra.mxu0 0
        %905 = vmatpush.bf16.xpose.msra.mxu0 0
        %906 = vmatpush.bf16.xpose.msra.mxu0 0
        %907 = vmatpush.bf16.xpose.msra.mxu0 0
        %908 = vmatpush.bf16.xpose.msra.mxu0 0
        %909 = vmatpush.bf16.xpose.msra.mxu0 0
        %910 = vmatpush.bf16.xpose.msra.mxu0 %v901
        %911 = vmatmul.bf16.gmra.mxu0 %v898
        %v912 = vpop.f32.mrf.mxu0
        %v913 = vadd.f32 0.0, %v912
        %v914 = vpop.f32.mrf.mxu0
        %915 = vdwg.mxu0
        %916 = vrot.lane.b32.xlu0 %v793, 120
        %v917 = vpop.permute.xlu0 %916
        %918 = vrot.lane.b32.xlu0 %v793, 88
        %v919 = vpop.permute.xlu0 %918
        %v921 = vsel %vm771, %v917, 0
        %v924 = vsel %vm771, %v919, 0
        %926 = vmatpush.bf16.xpose.msra.mxu0 0
        %927 = vmatpush.bf16.xpose.msra.mxu0 0
        %928 = vmatpush.bf16.xpose.msra.mxu0 0
        %929 = vmatpush.bf16.xpose.msra.mxu0 0
        %930 = vmatpush.bf16.xpose.msra.mxu0 0
        %931 = vmatpush.bf16.xpose.msra.mxu0 0
        %932 = vmatpush.bf16.xpose.msra.mxu0 0
        %933 = vmatpush.bf16.xpose.msra.mxu0 %v924
        %934 = vmatmul.bf16.gmra.mxu0 %v921
        %v935 = vpop.f32.mrf.mxu0
        %v936 = vadd.f32 0.0, %v935
        %v937 = vpop.f32.mrf.mxu0
        %938 = vdwg.mxu0
        %v939 = vsel %vm815, %v913, -inf
        %940 = vmax.xlane.f32.xlu0 %v939
        %v941 = vpop.xlane.xlu0 %940
        %v942 = vsel %vm815, %v936, -inf
        %943 = vmax.xlane.f32.xlu0 %v942
        %v944 = vpop.xlane.xlu0 %943
        %v945 = vsub.f32 %v913, %v941
        %v946 = vsub.f32 %v936, %v944
        %v947 = vmul.f32 %v945, 1.442695
        %v948 = vpow.pop %v947
        %v949 = vmul.f32 %v946, 1.442695
        %v950 = vpow.pop %v949
        %v951 = vsel %vm815, %v948, 0.0
        %952 = vadd.xlane.f32.xlu0 %v951
        %v953 = vpop.xlane.xlu0 %952
        %v954 = vsel %vm815, %v950, 0.0
        %955 = vadd.xlane.f32.xlu0 %v954
        %v956 = vpop.xlane.xlu0 %955
        %v957 = vrcp.pop %v953
        %v958 = vrcp.pop %v956
        %v959 = vmul.f32 %v948, %v957
        %v960 = vmul.f32 %v950, %v958
        %v961 = vpack.c.bf16 %v959, %v959
        %v962 = vpack.c.bf16 %v960, %v960
        %963 = vrot.lane.b32.xlu0 %v768, 56
        %v964 = vpop.permute.xlu0 %963
        %v966 = vsel %vm842, %v961, 0
        %v969 = vsel %vm846, %v964, 0
        %971 = vmatpush.bf16.msra.mxu0 0
        %972 = vmatpush.bf16.msra.mxu0 0
        %973 = vmatpush.bf16.msra.mxu0 0
        %974 = vmatpush.bf16.msra.mxu0 0
        %975 = vmatpush.bf16.msra.mxu0 0
        %976 = vmatpush.bf16.msra.mxu0 0
        %977 = vmatpush.bf16.msra.mxu0 0
        %978 = vmatpush.bf16.msra.mxu0 %v969
        %979 = vmatmul.bf16.gmra.mxu0 %v966
        %v980 = vpop.f32.mrf.mxu0
        %v981 = vadd.f32 0.0, %v980
        %v982 = vpop.f32.mrf.mxu0
        %983 = vdwg.mxu0
        %984 = vrot.lane.b32.xlu0 %v793, 56
        %v985 = vpop.permute.xlu0 %984
        %v987 = vsel %vm842, %v962, 0
        %v990 = vsel %vm846, %v985, 0
        %992 = vmatpush.bf16.msra.mxu0 0
        %993 = vmatpush.bf16.msra.mxu0 0
        %994 = vmatpush.bf16.msra.mxu0 0
        %995 = vmatpush.bf16.msra.mxu0 0
        %996 = vmatpush.bf16.msra.mxu0 0
        %997 = vmatpush.bf16.msra.mxu0 0
        %998 = vmatpush.bf16.msra.mxu0 0
        %999 = vmatpush.bf16.msra.mxu0 %v990
        %1000 = vmatmul.bf16.gmra.mxu0 %v987
        %v1001 = vpop.f32.mrf.mxu0
        %v1002 = vadd.f32 0.0, %v1001
        %v1003 = vpop.f32.mrf.mxu0
        %1004 = vdwg.mxu0
        %1007 = vst [vmem:[#allocation1] ss:$2 sm:$0xff] %v981
        %s1008 = scalar_lea.vmem [#allocation1], 1
        %1009 = vst [vmem:[%s1008] ss:$2 sm:$0xff] %v1002
        %v1010 = vld.sshfl [vmem:[#allocation1] sm:$0xff pattern:$0x75316420]
        %v1012 = vpack.c.bf16 %v1010, %v1010
        %s1013 = scalar_lea.vmem %s6, 4
        %v1014 = vld [vmem:[%s1013] sm:$0xf]
        %v1016 = vsel %vm771, %v1012, 0
        %vm1018 = vcmask 1043456
        %v1020 = vsel %vm1018, %v1014, 0
        %1022 = vmatpush.bf16.msra.mxu0 0
        %1023 = vmatpush.bf16.msra.mxu0 0
        %1024 = vmatpush.bf16.msra.mxu0 0
        %1025 = vmatpush.bf16.msra.mxu0 0
        %1026 = vmatpush.bf16.msra.mxu0 0
        %1027 = vmatpush.bf16.msra.mxu0 0
        %1028 = vmatpush.bf16.msra.mxu0 0
        %1029 = vmatpush.bf16.msra.mxu0 %v1020
        %1030 = vmatmul.bf16.gmra.mxu0 %v1016
        %v1031 = vpop.f32.mrf.mxu0
        %v1032 = vadd.f32 0.0, %v1031
        %v1033 = vpop.f32.mrf.mxu0
        %1034 = vdwg.mxu0
        %v1036 = vsel %vm771, %v891, 0
        %v1039 = vsel %vm1018, %v892, 0
        %1041 = vmatpush.bf16.msra.mxu0 0
        %1042 = vmatpush.bf16.msra.mxu0 0
        %1043 = vmatpush.bf16.msra.mxu0 0
        %1044 = vmatpush.bf16.msra.mxu0 0
        %1045 = vmatpush.bf16.msra.mxu0 0
        %1046 = vmatpush.bf16.msra.mxu0 0
        %1047 = vmatpush.bf16.msra.mxu0 0
        %1048 = vmatpush.bf16.msra.mxu0 %v1039
        %1049 = vmatmul.bf16.gmra.mxu0 %v1036
        %v1050 = vpop.f32.mrf.mxu0
        %v1051 = vadd.f32 %v1032, %v1050
        %v1052 = vpop.f32.mrf.mxu0
        %1053 = vdwg.mxu0
        %1054 = vrot.lane.b32.xlu0 %v768, 112
        %v1055 = vpop.permute.xlu0 %1054
        %1056 = vrot.lane.b32.xlu0 %v768, 80
        %v1057 = vpop.permute.xlu0 %1056
        %v1059 = vsel %vm771, %v1055, 0
        %v1062 = vsel %vm771, %v1057, 0
        %1064 = vmatpush.bf16.xpose.msra.mxu0 0
        %1065 = vmatpush.bf16.xpose.msra.mxu0 0
        %1066 = vmatpush.bf16.xpose.msra.mxu0 0
        %1067 = vmatpush.bf16.xpose.msra.mxu0 0
        %1068 = vmatpush.bf16.xpose.msra.mxu0 0
        %1069 = vmatpush.bf16.xpose.msra.mxu0 0
        %1070 = vmatpush.bf16.xpose.msra.mxu0 0
        %1071 = vmatpush.bf16.xpose.msra.mxu0 %v1062
        %1072 = vmatmul.bf16.gmra.mxu0 %v1059
        %v1073 = vpop.f32.mrf.mxu0
        %v1074 = vadd.f32 0.0, %v1073
        %v1075 = vpop.f32.mrf.mxu0
        %1076 = vdwg.mxu0
        %1077 = vrot.lane.b32.xlu0 %v793, 112
        %v1078 = vpop.permute.xlu0 %1077
        %1079 = vrot.lane.b32.xlu0 %v793, 80
        %v1080 = vpop.permute.xlu0 %1079
        %v1082 = vsel %vm771, %v1078, 0
        %v1085 = vsel %vm771, %v1080, 0
        %1087 = vmatpush.bf16.xpose.msra.mxu0 0
        %1088 = vmatpush.bf16.xpose.msra.mxu0 0
        %1089 = vmatpush.bf16.xpose.msra.mxu0 0
        %1090 = vmatpush.bf16.xpose.msra.mxu0 0
        %1091 = vmatpush.bf16.xpose.msra.mxu0 0
        %1092 = vmatpush.bf16.xpose.msra.mxu0 0
        %1093 = vmatpush.bf16.xpose.msra.mxu0 0
        %1094 = vmatpush.bf16.xpose.msra.mxu0 %v1085
        %1095 = vmatmul.bf16.gmra.mxu0 %v1082
        %v1096 = vpop.f32.mrf.mxu0
        %v1097 = vadd.f32 0.0, %v1096
        %v1098 = vpop.f32.mrf.mxu0
        %1099 = vdwg.mxu0
        %v1100 = vsel %vm815, %v1074, -inf
        %1101 = vmax.xlane.f32.xlu0 %v1100
        %v1102 = vpop.xlane.xlu0 %1101
        %v1103 = vsel %vm815, %v1097, -inf
        %1104 = vmax.xlane.f32.xlu0 %v1103
        %v1105 = vpop.xlane.xlu0 %1104
        %v1106 = vsub.f32 %v1074, %v1102
        %v1107 = vsub.f32 %v1097, %v1105
        %v1108 = vmul.f32 %v1106, 1.442695
        %v1109 = vpow.pop %v1108
        %v1110 = vmul.f32 %v1107, 1.442695
        %v1111 = vpow.pop %v1110
        %v1112 = vsel %vm815, %v1109, 0.0
        %1113 = vadd.xlane.f32.xlu0 %v1112
        %v1114 = vpop.xlane.xlu0 %1113
        %v1115 = vsel %vm815, %v1111, 0.0
        %1116 = vadd.xlane.f32.xlu0 %v1115
        %v1117 = vpop.xlane.xlu0 %1116
        %v1118 = vrcp.pop %v1114
        %v1119 = vrcp.pop %v1117
        %v1120 = vmul.f32 %v1109, %v1118
        %v1121 = vmul.f32 %v1111, %v1119
        %v1122 = vpack.c.bf16 %v1120, %v1120
        %v1123 = vpack.c.bf16 %v1121, %v1121
        %1124 = vrot.lane.b32.xlu0 %v768, 48
        %v1125 = vpop.permute.xlu0 %1124
        %v1127 = vsel %vm842, %v1122, 0
        %v1130 = vsel %vm846, %v1125, 0
        %1132 = vmatpush.bf16.msra.mxu0 0
        %1133 = vmatpush.bf16.msra.mxu0 0
        %1134 = vmatpush.bf16.msra.mxu0 0
        %1135 = vmatpush.bf16.msra.mxu0 0
        %1136 = vmatpush.bf16.msra.mxu0 0
        %1137 = vmatpush.bf16.msra.mxu0 0
        %1138 = vmatpush.bf16.msra.mxu0 0
        %1139 = vmatpush.bf16.msra.mxu0 %v1130
        %1140 = vmatmul.bf16.gmra.mxu0 %v1127
        %v1141 = vpop.f32.mrf.mxu0
        %v1142 = vadd.f32 0.0, %v1141
        %v1143 = vpop.f32.mrf.mxu0
        %1144 = vdwg.mxu0
        %1145 = vrot.lane.b32.xlu0 %v793, 48
        %v1146 = vpop.permute.xlu0 %1145
        %v1148 = vsel %vm842, %v1123, 0
        %v1151 = vsel %vm846, %v1146, 0
        %1153 = vmatpush.bf16.msra.mxu0 0
        %1154 = vmatpush.bf16.msra.mxu0 0
        %1155 = vmatpush.bf16.msra.mxu0 0
        %1156 = vmatpush.bf16.msra.mxu0 0
        %1157 = vmatpush.bf16.msra.mxu0 0
        %1158 = vmatpush.bf16.msra.mxu0 0
        %1159 = vmatpush.bf16.msra.mxu0 0
        %1160 = vmatpush.bf16.msra.mxu0 %v1151
        %1161 = vmatmul.bf16.gmra.mxu0 %v1148
        %v1162 = vpop.f32.mrf.mxu0
        %v1163 = vadd.f32 0.0, %v1162
        %v1164 = vpop.f32.mrf.mxu0
        %1165 = vdwg.mxu0
        %1168 = vst [vmem:[#allocation1] ss:$2 sm:$0xff] %v1142
        %s1169 = scalar_lea.vmem [#allocation1], 1
        %1170 = vst [vmem:[%s1169] ss:$2 sm:$0xff] %v1163
        %v1171 = vld.sshfl [vmem:[#allocation1] sm:$0xff pattern:$0x75316420]
        %v1173 = vpack.c.bf16 %v1171, %v1171
        %s1174 = scalar_lea.vmem %s6, 8
        %v1175 = vld [vmem:[%s1174] sm:$0xf]
        %v1177 = vsel %vm771, %v1173, 0
        %v1180 = vsel %vm1018, %v1175, 0
        %1182 = vmatpush.bf16.msra.mxu0 0
        %1183 = vmatpush.bf16.msra.mxu0 0
        %1184 = vmatpush.bf16.msra.mxu0 0
        %1185 = vmatpush.bf16.msra.mxu0 0
        %1186 = vmatpush.bf16.msra.mxu0 0
        %1187 = vmatpush.bf16.msra.mxu0 0
        %1188 = vmatpush.bf16.msra.mxu0 0
        %1189 = vmatpush.bf16.msra.mxu0 %v1180
        %1190 = vmatmul.bf16.gmra.mxu0 %v1177
        %v1191 = vpop.f32.mrf.mxu0
        %v1192 = vadd.f32 0.0, %v1191
        %v1193 = vpop.f32.mrf.mxu0
        %1194 = vdwg.mxu0
        %v1195 = vadd.f32 %v1051, %v1192
        %1196 = vrot.lane.b32.xlu0 %v768, 104
        %v1197 = vpop.permute.xlu0 %1196
        %1198 = vrot.lane.b32.xlu0 %v768, 72
        %v1199 = vpop.permute.xlu0 %1198
        %v1201 = vsel %vm771, %v1197, 0
        %v1204 = vsel %vm771, %v1199, 0
        %1206 = vmatpush.bf16.xpose.msra.mxu0 0
        %1207 = vmatpush.bf16.xpose.msra.mxu0 0
        %1208 = vmatpush.bf16.xpose.msra.mxu0 0
        %1209 = vmatpush.bf16.xpose.msra.mxu0 0
        %1210 = vmatpush.bf16.xpose.msra.mxu0 0
        %1211 = vmatpush.bf16.xpose.msra.mxu0 0
        %1212 = vmatpush.bf16.xpose.msra.mxu0 0
        %1213 = vmatpush.bf16.xpose.msra.mxu0 %v1204
        %1214 = vmatmul.bf16.gmra.mxu0 %v1201
        %v1215 = vpop.f32.mrf.mxu0
        %v1216 = vadd.f32 0.0, %v1215
        %v1217 = vpop.f32.mrf.mxu0
        %1218 = vdwg.mxu0
        %1219 = vrot.lane.b32.xlu0 %v793, 104
        %v1220 = vpop.permute.xlu0 %1219
        %1221 = vrot.lane.b32.xlu0 %v793, 72
        %v1222 = vpop.permute.xlu0 %1221
        %v1224 = vsel %vm771, %v1220, 0
        %v1227 = vsel %vm771, %v1222, 0
        %1229 = vmatpush.bf16.xpose.msra.mxu0 0
        %1230 = vmatpush.bf16.xpose.msra.mxu0 0
        %1231 = vmatpush.bf16.xpose.msra.mxu0 0
        %1232 = vmatpush.bf16.xpose.msra.mxu0 0
        %1233 = vmatpush.bf16.xpose.msra.mxu0 0
        %1234 = vmatpush.bf16.xpose.msra.mxu0 0
        %1235 = vmatpush.bf16.xpose.msra.mxu0 0
        %1236 = vmatpush.bf16.xpose.msra.mxu0 %v1227
        %1237 = vmatmul.bf16.gmra.mxu0 %v1224
        %v1238 = vpop.f32.mrf.mxu0
        %v1239 = vadd.f32 0.0, %v1238
        %v1240 = vpop.f32.mrf.mxu0
        %1241 = vdwg.mxu0
        %v1242 = vsel %vm815, %v1216, -inf
        %1243 = vmax.xlane.f32.xlu0 %v1242
        %v1244 = vpop.xlane.xlu0 %1243
        %v1245 = vsel %vm815, %v1239, -inf
        %1246 = vmax.xlane.f32.xlu0 %v1245
        %v1247 = vpop.xlane.xlu0 %1246
        %v1248 = vsub.f32 %v1216, %v1244
        %v1249 = vsub.f32 %v1239, %v1247
        %v1250 = vmul.f32 %v1248, 1.442695
        %v1251 = vpow.pop %v1250
        %v1252 = vmul.f32 %v1249, 1.442695
        %v1253 = vpow.pop %v1252
        %v1254 = vsel %vm815, %v1251, 0.0
        %1255 = vadd.xlane.f32.xlu0 %v1254
        %v1256 = vpop.xlane.xlu0 %1255
        %v1257 = vsel %vm815, %v1253, 0.0
        %1258 = vadd.xlane.f32.xlu0 %v1257
        %v1259 = vpop.xlane.xlu0 %1258
        %v1260 = vrcp.pop %v1256
        %v1261 = vrcp.pop %v1259
        %v1262 = vmul.f32 %v1251, %v1260
        %v1263 = vmul.f32 %v1253, %v1261
        %v1264 = vpack.c.bf16 %v1262, %v1262
        %v1265 = vpack.c.bf16 %v1263, %v1263
        %1266 = vrot.lane.b32.xlu0 %v768, 40
        %v1267 = vpop.permute.xlu0 %1266
        %v1269 = vsel %vm842, %v1264, 0
        %v1272 = vsel %vm846, %v1267, 0
        %1274 = vmatpush.bf16.msra.mxu0 0
        %1275 = vmatpush.bf16.msra.mxu0 0
        %1276 = vmatpush.bf16.msra.mxu0 0
        %1277 = vmatpush.bf16.msra.mxu0 0
        %1278 = vmatpush.bf16.msra.mxu0 0
        %1279 = vmatpush.bf16.msra.mxu0 0
        %1280 = vmatpush.bf16.msra.mxu0 0
        %1281 = vmatpush.bf16.msra.mxu0 %v1272
        %1282 = vmatmul.bf16.gmra.mxu0 %v1269
        %v1283 = vpop.f32.mrf.mxu0
        %v1284 = vadd.f32 0.0, %v1283
        %v1285 = vpop.f32.mrf.mxu0
        %1286 = vdwg.mxu0
        %1287 = vrot.lane.b32.xlu0 %v793, 40
        %v1288 = vpop.permute.xlu0 %1287
        %v1290 = vsel %vm842, %v1265, 0
        %v1293 = vsel %vm846, %v1288, 0
        %1295 = vmatpush.bf16.msra.mxu0 0
        %1296 = vmatpush.bf16.msra.mxu0 0
        %1297 = vmatpush.bf16.msra.mxu0 0
        %1298 = vmatpush.bf16.msra.mxu0 0
        %1299 = vmatpush.bf16.msra.mxu0 0
        %1300 = vmatpush.bf16.msra.mxu0 0
        %1301 = vmatpush.bf16.msra.mxu0 0
        %1302 = vmatpush.bf16.msra.mxu0 %v1293
        %1303 = vmatmul.bf16.gmra.mxu0 %v1290
        %v1304 = vpop.f32.mrf.mxu0
        %v1305 = vadd.f32 0.0, %v1304
        %v1306 = vpop.f32.mrf.mxu0
        %1307 = vdwg.mxu0
        %1310 = vst [vmem:[#allocation1] ss:$2 sm:$0xff] %v1284
        %s1311 = scalar_lea.vmem [#allocation1], 1
        %1312 = vst [vmem:[%s1311] ss:$2 sm:$0xff] %v1305
        %v1313 = vld.sshfl [vmem:[#allocation1] sm:$0xff pattern:$0x75316420]
        %v1315 = vpack.c.bf16 %v1313, %v1313
        %s1316 = scalar_lea.vmem %s6, 12
        %v1317 = vld [vmem:[%s1316] sm:$0xf]
        %v1319 = vsel %vm771, %v1315, 0
        %v1322 = vsel %vm1018, %v1317, 0
        %1324 = vmatpush.bf16.msra.mxu0 0
        %1325 = vmatpush.bf16.msra.mxu0 0
        %1326 = vmatpush.bf16.msra.mxu0 0
        %1327 = vmatpush.bf16.msra.mxu0 0
        %1328 = vmatpush.bf16.msra.mxu0 0
        %1329 = vmatpush.bf16.msra.mxu0 0
        %1330 = vmatpush.bf16.msra.mxu0 0
        %1331 = vmatpush.bf16.msra.mxu0 %v1322
        %1332 = vmatmul.bf16.gmra.mxu0 %v1319
        %v1333 = vpop.f32.mrf.mxu0
        %v1334 = vadd.f32 0.0, %v1333
        %v1335 = vpop.f32.mrf.mxu0
        %1336 = vdwg.mxu0
        %v1337 = vadd.f32 %v1195, %v1334
        %v1338 = vld [vmem:[#allocation4] sm:$0x1]
        %v1340 = vperm.slane %v1338, 0
        %v1342 = vadd.f32 %v1337, %v1340
        %v1344 = vrot.slane %v1342, 4
        %v1346 = vperm.slane %v652, 2
        %v1347 = vperm.slane %v654, 2
        %v1348 = vmul.f32 %v1346, %v1342
        %v1349 = vmul.f32 %v1347, %v1344
        %v1350 = vadd.f32 %v498, %v1348
        %v1351 = vadd.f32 %v499, %v1349
        %v1352 = vsel %vm655, %v1350, 0.0
        %1353 = vadd.xlane.f32.xlu0 %v1352
        %v1354 = vpop.xlane.xlu0 %1353
        %v1355 = vsel %vm655, %v1351, 0.0
        %1356 = vadd.xlane.f32.xlu0 %v1355
        %v1357 = vpop.xlane.xlu0 %1356
        %v1358 = vmul.f32 %v1354, %v668
        %v1359 = vmul.f32 %v1357, %v668
        %v1360 = vsub.f32 %v1350, %v1358
        %v1361 = vsub.f32 %v1351, %v1359
        %v1362 = vmul.f32 %v1360, %v1360
        %v1363 = vmul.f32 %v1361, %v1361
        %v1364 = vsel %vm655, %v1362, 0.0
        %1365 = vadd.xlane.f32.xlu0 %v1364
        %v1366 = vpop.xlane.xlu0 %1365
        %v1367 = vsel %vm655, %v1363, 0.0
        %1368 = vadd.xlane.f32.xlu0 %v1367
        %v1369 = vpop.xlane.xlu0 %1368
        %v1370 = vmul.f32 %v1366, %v668
        %v1371 = vmul.f32 %v1369, %v668
        %v1372 = vadd.f32 %v1370, 1e-06
        %v1373 = vadd.f32 %v1371, 1e-06
        %v1374 = vrsqrt.pop %v1372
        %v1375 = vmul.f32 %v1374, %v1372
        %v1376 = vmul.f32 %v1375, %v1374
        %v1377 = vmul.f32 0.5, %v1376
        %v1378 = vsub.f32 1.5, %v1377
        %v1379 = vmul.f32 %v1374, %v1378
        %vm1380 = vweird.f32 %v1372
        %vm1381 = vweird.f32 %v1374
        %vm1382 = vmor %vm1380, %vm1381
        %v1383 = vsel %vm1382, %v1374, %v1379
        %v1384 = vrsqrt.pop %v1373
        %v1385 = vmul.f32 %v1384, %v1373
        %v1386 = vmul.f32 %v1385, %v1384
        %v1387 = vmul.f32 0.5, %v1386
        %v1388 = vsub.f32 1.5, %v1387
        %v1389 = vmul.f32 %v1384, %v1388
        %vm1390 = vweird.f32 %v1373
        %vm1391 = vweird.f32 %v1384
        %vm1392 = vmor %vm1390, %vm1391
        %v1393 = vsel %vm1392, %v1384, %v1389
        %v1394 = vmul.f32 %v1360, %v1383
        %v1395 = vmul.f32 %v1361, %v1393
        %v1396 = vperm.slane %v707, 4
        %v1397 = vperm.slane %v708, 4
        %v1398 = vmul.f32 %v1394, %v1396
        %v1399 = vmul.f32 %v1395, %v1397
        %v1400 = vperm.slane %v652, 3
        %v1401 = vperm.slane %v654, 3
        %v1402 = vadd.f32 %v1398, %v1400
        %v1403 = vadd.f32 %v1399, %v1401
        %1406 = vst [vmem:[#allocation1] ss:$2 sm:$0xff] %v1402
        %s1407 = scalar_lea.vmem [#allocation1], 1
        %1408 = vst [vmem:[%s1407] ss:$2 sm:$0xff] %v1403
        %v1409 = vld.sshfl [vmem:[#allocation1] sm:$0xff pattern:$0x75316420]
        %v1411 = vpack.c.bf16 %v1409, %v1409
        %v1412 = vld [vmem:[%s8] sm:$0xf]
        %v1413 = vld [vmem:[%s8 + $0x4] sm:$0xf]
        %v1414 = vld [vmem:[%s8 + $0x8] sm:$0xf]
        %v1415 = vld [vmem:[%s8 + $0xc] sm:$0xf]
        %v1416 = vld [vmem:[#allocation6] sm:$0x1]
        %v1418 = vperm.slane %v1416, 0
        %v1424 = vunpack.c.l.b16 %v1412
        %v1425 = vunpack.c.l.b16 %v1413
        %v1426 = vunpack.c.l.b16 %v1414
        %v1427 = vunpack.c.l.b16 %v1415
        %v1428 = vpack.c.b16 %v1425, %v1424
        %v1429 = vpack.c.b16 %v1427, %v1426
        %v1433 = vsel %vm582, %v1411, 0
        %1435 = vmatpush.bf16.msra.mxu0 0
        %1436 = vmatpush.bf16.msra.mxu0 0
        %1437 = vmatpush.bf16.msra.mxu0 0
        %1438 = vmatpush.bf16.msra.mxu0 0
        %1439 = vmatpush.bf16.msra.mxu0 0
        %1440 = vmatpush.bf16.msra.mxu0 0
        %1441 = vmatpush.bf16.msra.mxu0 %v1429
        %1442 = vmatpush.bf16.msra.mxu0 %v1428
        %1443 = vmatmul.bf16.gmra.mxu0 %v1433
        %v1444 = vpop.f32.mrf.mxu0
        %v1445 = vadd.f32 %v1418, %v1444
        %v1446 = vpop.f32.mrf.mxu0
        %1447 = vdwg.mxu0
        %v1448 = vmul.f32 %v1445, 0.5
        %v1449 = vmul.f32 %v1445, 0.044715
        %v1450 = vmul.f32 %v1449, %v1445
        %v1451 = vmul.f32 %v1450, %v1445
        %v1452 = vadd.f32 %v1445, %v1451
        %v1453 = vmul.f32 %v1452, 0.7978846
        %v1454 = vtanh.pop %v1453
        %v1455 = vadd.f32 %v1454, 1.0
        %v1456 = vmul.f32 %v1448, %v1455
        %v1457 = vpack.c.bf16 %v1456, %v1456
        %v1458 = vld [vmem:[%s10] sm:$0xf]
        %v1459 = vld [vmem:[%s10 + $0x4] sm:$0xf]
        %v1460 = vld [vmem:[%s10 + $0x8] sm:$0xf]
        %v1461 = vld [vmem:[%s10 + $0xc] sm:$0xf]
        %v1462 = vld [vmem:[%s10 + $0x10] sm:$0xf]
        %v1463 = vld [vmem:[%s10 + $0x14] sm:$0xf]
        %v1464 = vld [vmem:[%s10 + $0x18] sm:$0xf]
        %v1465 = vld [vmem:[%s10 + $0x1c] sm:$0xf]
        %v1466 = vld [vmem:[%s10 + $0x20] sm:$0xf]
        %v1467 = vld [vmem:[%s10 + $0x24] sm:$0xf]
        %v1468 = vld [vmem:[%s10 + $0x28] sm:$0xf]
        %v1469 = vld [vmem:[%s10 + $0x2c] sm:$0xf]
        %v1470 = vld [vmem:[%s10 + $0x30] sm:$0xf]
        %v1471 = vld [vmem:[%s10 + $0x34] sm:$0xf]
        %v1472 = vld [vmem:[%s10 + $0x38] sm:$0xf]
        %v1473 = vld [vmem:[%s10 + $0x3c] sm:$0xf]
        %v1474 = vld [vmem:[#allocation7] sm:$0x1]
        %v1476 = vperm.slane %v1474, 0
        %v1494 = vunpack.c.l.b16 %v1458
        %v1495 = vunpack.c.l.b16 %v1459
        %v1496 = vunpack.c.l.b16 %v1460
        %v1497 = vunpack.c.l.b16 %v1461
        %v1498 = vunpack.c.l.b16 %v1462
        %v1499 = vunpack.c.l.b16 %v1463
        %v1500 = vunpack.c.l.b16 %v1464
        %v1501 = vunpack.c.l.b16 %v1465
        %v1502 = vunpack.c.l.b16 %v1466
        %v1503 = vunpack.c.l.b16 %v1467
        %v1504 = vunpack.c.l.b16 %v1468
        %v1505 = vunpack.c.l.b16 %v1469
        %v1506 = vunpack.c.l.b16 %v1470
        %v1507 = vunpack.c.l.b16 %v1471
        %v1508 = vunpack.c.l.b16 %v1472
        %v1509 = vunpack.c.l.b16 %v1473
        %v1510 = vpack.c.b16 %v1495, %v1494
        %v1511 = vpack.c.b16 %v1497, %v1496
        %v1512 = vpack.c.b16 %v1499, %v1498
        %v1513 = vpack.c.b16 %v1501, %v1500
        %v1514 = vpack.c.b16 %v1503, %v1502
        %v1515 = vpack.c.b16 %v1505, %v1504
        %v1516 = vpack.c.b16 %v1507, %v1506
        %v1517 = vpack.c.b16 %v1509, %v1508
        %1526 = vmatpush.bf16.msra.mxu0 %v1517
        %1527 = vmatpush.bf16.msra.mxu0 %v1516
        %1528 = vmatpush.bf16.msra.mxu0 %v1515
        %1529 = vmatpush.bf16.msra.mxu0 %v1514
        %1530 = vmatpush.bf16.msra.mxu0 %v1513
        %1531 = vmatpush.bf16.msra.mxu0 %v1512
        %1532 = vmatpush.bf16.msra.mxu0 %v1511
        %1533 = vmatpush.bf16.msra.mxu0 %v1510
        %1534 = vmatmul.bf16.gmra.mxu0 %v1457
        %v1535 = vpop.f32.mrf.mxu0
        %v1536 = vadd.f32 %v1476, %v1535
        %v1537 = vpop.f32.mrf.mxu0
        %1538 = vdwg.mxu0
        %v1540 = vrot.slane %v1536, 4
        %v1542 = vperm.slane %v652, 5
        %v1543 = vperm.slane %v654, 5
        %v1544 = vmul.f32 %v1542, %v1536
        %v1545 = vmul.f32 %v1543, %v1540
        %v1546 = vadd.f32 %v1350, %v1544
        %v1547 = vadd.f32 %v1351, %v1545
        %v1548 = vpack.c.bf16 %v1546, %v1546
        %v1549 = vpack.c.bf16 %v1547, %v1547
        %vm1550 = vcmask 254976
        %1551 = vst.msk [vmem:[%s493] sm:$0x3] %vm1550, %v1548
        %1552 = vst.msk [vmem:[%s493 + $0x2] sm:$0x3] %vm1550, %v1549
        %s1553 = smul.u32 2, %s26
        %p1554 = scmp.lt.s32.totalorder %s1553, 7
        %s1555 = scalar_select %p1554, %s1553, 7
        %s1556 = smul.addr %s1555, 2
        %s1557 = scalar_lea.vmem %s12, %s1556
        // Predicated region
        $region85: #{forward.14} parent=67 // pred_check
          %p1558 = pneg %p306
        $region86: #{forward.14} parent=67 // pred_check_branch
          %1560 = sbr.rel (%p1558) target = $region88
        $region87: #{forward.14} parent=67 // pred_region
          %s1561 = smul.u32 2, %s26
        $region88: #{forward.14} parent=67 // pred_fallthru
          _
      $region68: #{forward.14} parent=5 // pred_fallthru
        _
      %p1562 = scmp.le.s32.totalorder 2, %s21
      // Predicated region
      $region89: #{forward.14} parent=5 // pred_check
        %p1563 = pneg %p1562
      $region90: #{forward.14} parent=5 // pred_check_branch
        %1565 = sbr.rel (%p1563) target = $region92
      $region91: #{forward.14} parent=5 // pred_region
        %s1566 = ssub.s32 %s21, 2
        // Predicated region
        $region93: #{forward.14} parent=91 // pred_check
          %p1567 = pneg %p312
        $region94: #{forward.14} parent=91 // pred_check_branch
          %1569 = sbr.rel (%p1567) target = $region96
        $region95: #{forward.14} parent=91 // pred_region
          %s1570 = smul.u32 2, %s27
          %p1571 = scmp.lt.s32.totalorder %s1570, 7
          %s1572 = scalar_select %p1571, %s1570, 7
          %s1573 = smul.addr %s1572, 2
          %s1574 = scalar_lea.vmem %s12, %s1573
        $region96: #{forward.14} parent=91 // pred_fallthru
          _
      $region92: #{forward.14} parent=5 // pred_fallthru
        _
    $region6: #{forward.14} parent=1 // loop_footer
      %s25 = sadd.s32 1, %s21
    $region7: #{forward.14} parent=1 // loop_footer_branch
      %20 = sbr.rel target = $region3
    $region8: #{forward.14} parent=1 // loop_exit
      _
    %1575 = vsyncpa [#allocation3], 1
    %s1576 = scalar_lea.sflag [#allocation3], 1
    %1577 = vsyncpa %s1576, 1
    %1578 = vsyncpa [#allocation5], 1
    %1579 = vsyncpa [#allocation8], 1

// kernel: forward.17
$region0: #{forward.17}
  #allocation0 [shape = 'u32[]', space=smem, size = 0x4, offset = 0x4, fixed_abs, tag = 'smem constant byte address 0x4 - core index']
  #allocation1 [shape = 'u32[72,128]{1,0:T(1,128)}', space=vmem, size = 0x9000, scoped, tag = 'internal scratch']
  %s0 = inlined_call_operand.vmem [shape: bf16[8,4,32], index: 0, kind: input, shape index: {}]
  %s1 = inlined_call_operand.vmem [shape: f32[8,1,32], index: 1, kind: input, shape index: {}]
  %s2 = inlined_call_operand.vmem [shape: bf16[32,64], index: 2, kind: input, shape index: {}]
  %s3 = inlined_call_operand.vmem [shape: f32[1,64], index: 3, kind: input, shape index: {}]
  %s4 = inlined_call_operand.vmem [shape: bf16[32,256], index: 4, kind: input, shape index: {}]
  %s5 = inlined_call_operand.vmem [shape: f32[1,256], index: 5, kind: input, shape index: {}]
  %s6 = inlined_call_operand.vmem [shape: f32[8,4,256], index: 6, kind: output, shape index: {}]
  %s7 = sld [smem:[#allocation0]]
  $region57: #{forward.17} parent=0
    _
  %s9 = ssub.s32 1, %s7
  %s10 = scalar_select 0, %s9, %s7
  loop: start=0, step=1, limit=6
  $region2: #{forward.17} parent=0 // loop_pre_header
    _
  $region3: #{forward.17} parent=0 // loop_header
    %s12 = sphi 0, %s16
    %p13 = scmp.ge.s32.totalorder %s12, 6
    %s22 = sphi 0, %s24
    %s25 = sphi 0, %s22
    %s26 = sphi 0, %s25
    %s42 = sphi 0, %s26
    %s48 = sphi 0, %s50
    %s51 = sphi 0, %s48
    %s52 = sphi 0, %s51
    %s68 = sphi 0, %s52
    %s72 = sphi 0, %s72
    %s74 = sphi 0, %s72
    %s75 = sphi 0, %s74
    %s89 = sphi 0, %s75
    %s93 = sphi 0, %s93
    %s95 = sphi 0, %s93
    %s96 = sphi 0, %s95
    %s110 = sphi 0, %s96
    %s114 = sphi 0, %s114
    %s116 = sphi 0, %s114
    %s117 = sphi 0, %s116
    %s131 = sphi 0, %s117
    %s135 = sphi 0, %s135
    %s137 = sphi 0, %s135
    %s138 = sphi 0, %s137
    %s152 = sphi 0, %s138
    %s158 = sphi 0, %s160
    %s161 = sphi 0, %s158
    %s162 = sphi 0, %s161
    %s178 = sphi 0, %s162
  $region4: #{forward.17} parent=0 // loop_header_branch
    %15 = sbr.rel (%p13) target = $region8
  $region5: #{forward.17} parent=0 // loop_body
    %s17 = ssub.s32 %s12, 1
    %s18 = ssub.s32 %s12, 2
    %s19 = sadd.s32 %s12, 1
    %s20 = ssub.s32 %s12, %s19
    %p21 = scmp.eq.s32.totalorder %s20, 0
    %s23 = sadd.s32 %s22, 1
    %s24 = scalar_select %p21, %s22, %s23
    %p27 = pneg %p21
    %p28 = scmp.eq.s32.totalorder %s12, 3
    %p29 = por %p27, %p28
    %p30 = scmp.ne.s32.totalorder %s22, %s25
    %p31 = scmp.eq.s32.totalorder %s12, 0
    %p32 = por %p30, %p31
    %p33 = scmp.ne.s32.totalorder %s22, %s25
    %p34 = scmp.eq.s32.totalorder %s17, 3
    %p35 = por %p33, %p34
    %p36 = scmp.ne.s32.totalorder %s25, %s26
    %p37 = scmp.eq.s32.totalorder %s17, 0
    %p38 = por %p36, %p37
    %p39 = scmp.ne.s32.totalorder %s25, %s26
    %p40 = scmp.eq.s32.totalorder %s18, 3
    %p41 = por %p39, %p40
    %p43 = scmp.ne.s32.totalorder %s26, %s42
    %p44 = scmp.eq.s32.totalorder %s18, 0
    %p45 = por %p43, %p44
    %s46 = ssub.s32 %s12, %s19
    %p47 = scmp.eq.s32.totalorder %s46, 0
    %s49 = sadd.s32 %s48, 1
    %s50 = scalar_select %p47, %s48, %s49
    %p53 = pneg %p47
    %p54 = scmp.eq.s32.totalorder %s12, 3
    %p55 = por %p53, %p54
    %p56 = scmp.ne.s32.totalorder %s48, %s51
    %p57 = scmp.eq.s32.totalorder %s12, 0
    %p58 = por %p56, %p57
    %p59 = scmp.ne.s32.totalorder %s48, %s51
    %p60 = scmp.eq.s32.totalorder %s17, 3
    %p61 = por %p59, %p60
    %p62 = scmp.ne.s32.totalorder %s51, %s52
    %p63 = scmp.eq.s32.totalorder %s17, 0
    %p64 = por %p62, %p63
    %p65 = scmp.ne.s32.totalorder %s51, %s52
    %p66 = scmp.eq.s32.totalorder %s18, 3
    %p67 = por %p65, %p66
    %p69 = scmp.ne.s32.totalorder %s52, %s68
    %p70 = scmp.eq.s32.totalorder %s18, 0
    %p71 = por %p69, %p70
    %s73 = sadd.s32 %s72, 1
    %p76 = scmp.eq.s32.totalorder %s12, 3
    %p77 = scmp.ne.s32.totalorder %s72, %s74
    %p78 = scmp.eq.s32.totalorder %s12, 0
    %p79 = por %p77, %p78
    %p80 = scmp.ne.s32.totalorder %s72, %s74
    %p81 = scmp.eq.s32.totalorder %s17, 3
    %p82 = por %p80, %p81
    %p83 = scmp.ne.s32.totalorder %s74, %s75
    %p84 = scmp.eq.s32.totalorder %s17, 0
    %p85 = por %p83, %p84
    %p86 = scmp.ne.s32.totalorder %s74, %s75
    %p87 = scmp.eq.s32.totalorder %s18, 3
    %p88 = por %p86, %p87
    %p90 = scmp.ne.s32.totalorder %s75, %s89
    %p91 = scmp.eq.s32.totalorder %s18, 0
    %p92 = por %p90, %p91
    %s94 = sadd.s32 %s93, 1
    %p97 = scmp.eq.s32.totalorder %s12, 3
    %p98 = scmp.ne.s32.totalorder %s93, %s95
    %p99 = scmp.eq.s32.totalorder %s12, 0
    %p100 = por %p98, %p99
    %p101 = scmp.ne.s32.totalorder %s93, %s95
    %p102 = scmp.eq.s32.totalorder %s17, 3
    %p103 = por %p101, %p102
    %p104 = scmp.ne.s32.totalorder %s95, %s96
    %p105 = scmp.eq.s32.totalorder %s17, 0
    %p106 = por %p104, %p105
    %p107 = scmp.ne.s32.totalorder %s95, %s96
    %p108 = scmp.eq.s32.totalorder %s18, 3
    %p109 = por %p107, %p108
    %p111 = scmp.ne.s32.totalorder %s96, %s110
    %p112 = scmp.eq.s32.totalorder %s18, 0
    %p113 = por %p111, %p112
    %s115 = sadd.s32 %s114, 1
    %p118 = scmp.eq.s32.totalorder %s12, 3
    %p119 = scmp.ne.s32.totalorder %s114, %s116
    %p120 = scmp.eq.s32.totalorder %s12, 0
    %p121 = por %p119, %p120
    %p122 = scmp.ne.s32.totalorder %s114, %s116
    %p123 = scmp.eq.s32.totalorder %s17, 3
    %p124 = por %p122, %p123
    %p125 = scmp.ne.s32.totalorder %s116, %s117
    %p126 = scmp.eq.s32.totalorder %s17, 0
    %p127 = por %p125, %p126
    %p128 = scmp.ne.s32.totalorder %s116, %s117
    %p129 = scmp.eq.s32.totalorder %s18, 3
    %p130 = por %p128, %p129
    %p132 = scmp.ne.s32.totalorder %s117, %s131
    %p133 = scmp.eq.s32.totalorder %s18, 0
    %p134 = por %p132, %p133
    %s136 = sadd.s32 %s135, 1
    %p139 = scmp.eq.s32.totalorder %s12, 3
    %p140 = scmp.ne.s32.totalorder %s135, %s137
    %p141 = scmp.eq.s32.totalorder %s12, 0
    %p142 = por %p140, %p141
    %p143 = scmp.ne.s32.totalorder %s135, %s137
    %p144 = scmp.eq.s32.totalorder %s17, 3
    %p145 = por %p143, %p144
    %p146 = scmp.ne.s32.totalorder %s137, %s138
    %p147 = scmp.eq.s32.totalorder %s17, 0
    %p148 = por %p146, %p147
    %p149 = scmp.ne.s32.totalorder %s137, %s138
    %p150 = scmp.eq.s32.totalorder %s18, 3
    %p151 = por %p149, %p150
    %p153 = scmp.ne.s32.totalorder %s138, %s152
    %p154 = scmp.eq.s32.totalorder %s18, 0
    %p155 = por %p153, %p154
    %s156 = ssub.s32 %s12, %s19
    %p157 = scmp.eq.s32.totalorder %s156, 0
    %s159 = sadd.s32 %s158, 1
    %s160 = scalar_select %p157, %s158, %s159
    %p163 = pneg %p157
    %p164 = scmp.eq.s32.totalorder %s12, 3
    %p165 = por %p163, %p164
    %p166 = scmp.ne.s32.totalorder %s158, %s161
    %p167 = scmp.eq.s32.totalorder %s12, 0
    %p168 = por %p166, %p167
    %p169 = scmp.ne.s32.totalorder %s158, %s161
    %p170 = scmp.eq.s32.totalorder %s17, 3
    %p171 = por %p169, %p170
    %p172 = scmp.ne.s32.totalorder %s161, %s162
    %p173 = scmp.eq.s32.totalorder %s17, 0
    %p174 = por %p172, %p173
    %p175 = scmp.ne.s32.totalorder %s161, %s162
    %p176 = scmp.eq.s32.totalorder %s18, 3
    %p177 = por %p175, %p176
    %p179 = scmp.ne.s32.totalorder %s162, %s178
    %p180 = scmp.eq.s32.totalorder %s18, 0
    %p181 = por %p179, %p180
    %p182 = scmp.le.s32.totalorder 1, %s12
    %p183 = scmp.lt.s32.totalorder %s12, 5
    %p184 = pnand %p182, %p183
    %p185 = pneg %p184
    // Predicated region
    $region9: #{forward.17} parent=5 // pred_check
      _
    $region10: #{forward.17} parent=5 // pred_check_branch
      %187 = sbr.rel (%p184) target = $region12
    $region11: #{forward.17} parent=5 // pred_region
      %s188 = ssub.s32 %s12, 1
      // Predicated region
      $region13: #{forward.17} parent=11 // pred_check
        %p189 = pneg %p85
      $region14: #{forward.17} parent=11 // pred_check_branch
        %191 = sbr.rel (%p189) target = $region16
      $region15: #{forward.17} parent=11 // pred_region
        _
      $region16: #{forward.17} parent=11 // pred_fallthru
        _
      // Predicated region
      $region17: #{forward.17} parent=11 // pred_check
        %p192 = pneg %p106
      $region18: #{forward.17} parent=11 // pred_check_branch
        %194 = sbr.rel (%p192) target = $region20
      $region19: #{forward.17} parent=11 // pred_region
        _
      $region20: #{forward.17} parent=11 // pred_fallthru
        _
      // Predicated region
      $region21: #{forward.17} parent=11 // pred_check
        %p195 = pneg %p127
      $region22: #{forward.17} parent=11 // pred_check_branch
        %197 = sbr.rel (%p195) target = $region24
      $region23: #{forward.17} parent=11 // pred_region
        _
      $region24: #{forward.17} parent=11 // pred_fallthru
        _
      // Predicated region
      $region25: #{forward.17} parent=11 // pred_check
        %p198 = pneg %p148
      $region26: #{forward.17} parent=11 // pred_check_branch
        %200 = sbr.rel (%p198) target = $region28
      $region27: #{forward.17} parent=11 // pred_region
        _
      $region28: #{forward.17} parent=11 // pred_fallthru
        _
    $region12: #{forward.17} parent=5 // pred_fallthru
      _
    %p201 = scmp.lt.s32.totalorder %s12, 4
    // Predicated region
    $region29: #{forward.17} parent=5 // pred_check
      %p202 = pneg %p201
    $region30: #{forward.17} parent=5 // pred_check_branch
      %204 = sbr.rel (%p202) target = $region32
    $region31: #{forward.17} parent=5 // pred_region
      // Predicated region
      $region33: #{forward.17} parent=31 // pred_check
        %p205 = pneg %p32
      $region34: #{forward.17} parent=31 // pred_check_branch
        %207 = sbr.rel (%p205) target = $region36
      $region35: #{forward.17} parent=31 // pred_region
        %s208 = smul.u32 2, %s12
        %p209 = scmp.lt.s32.totalorder %s208, 7
        %s210 = scalar_select %p209, %s208, 7
        %s211 = smul.addr %s210, 2
        %s212 = scalar_lea.vmem %s0, %s211
        %s213 = smul.u32 2, %s12
      $region36: #{forward.17} parent=31 // pred_fallthru
        _
      // Predicated region
      $region37: #{forward.17} parent=31 // pred_check
        %p214 = pneg %p58
      $region38: #{forward.17} parent=31 // pred_check_branch
        %216 = sbr.rel (%p214) target = $region40
      $region39: #{forward.17} parent=31 // pred_region
        %s217 = smul.u32 2, %s12
        %p218 = scmp.lt.s32.totalorder %s217, 7
        %s219 = scalar_select %p218, %s217, 7
        %s220 = scalar_lea.vmem %s1, %s219
        %s221 = smul.u32 2, %s12
      $region40: #{forward.17} parent=31 // pred_fallthru
        _
    $region32: #{forward.17} parent=5 // pred_fallthru
      _
    %p222 = scmp.le.s32.totalorder 1, %s12
    %p223 = scmp.lt.s32.totalorder %s12, 5
    %p224 = pnand %p222, %p223
    %p225 = pneg %p224
    // Predicated region
    $region41: #{forward.17} parent=5 // pred_check
      _
    $region42: #{forward.17} parent=5 // pred_check_branch
      %227 = sbr.rel (%p224) target = $region44
    $region43: #{forward.17} parent=5 // pred_region
      %s228 = ssub.s32 %s12, 1
      %s229 = smul.u32 2, %s17
      %p230 = scmp.lt.s32.totalorder %s229, 7
      %s231 = scalar_select %p230, %s229, 7
      %s232 = smul.addr %s231, 2
      %s233 = scalar_lea.vmem %s0, %s232
      %p234 = pneg %p38
      %p235 = pneg %p35
      %s236 = smul.u32 2, %s17
      %p237 = scmp.lt.s32.totalorder %s236, 7
      %s238 = scalar_select %p237, %s236, 7
      %s239 = scalar_lea.vmem %s1, %s238
      %p240 = pneg %p64
      %p241 = pneg %p61
      %p242 = pneg %p85
      %p243 = pneg %p82
      %p244 = pneg %p106
      %p245 = pneg %p103
      %p246 = pneg %p127
      %p247 = pneg %p124
      %p248 = pneg %p148
      %p249 = pneg %p145
      %p250 = pneg %p174
      %p251 = pneg %p171
      %s252 = smul.u32 2, %s17
      %p253 = scmp.lt.s32.totalorder %s252, 7
      %s254 = scalar_select %p253, %s252, 7
      %s255 = smul.addr %s254, 2
      %s256 = smul.addr %s255, 4
      %s257 = scalar_lea.vmem %s6, %s256
      %s258 = smul.u32 2, %s17
      %p259 = scmp.lt.s32.totalorder %s258, 7
      %s260 = scalar_select %p259, %s258, 7
      %s261 = smul.addr %s260, 2
      %s262 = scalar_lea.vmem %s0, %s261
      %s263 = smul.u32 2, %s17
      %s264 = smul.u32 2, %s17
      %p265 = scmp.lt.s32.totalorder %s264, 7
      %s266 = scalar_select %p265, %s264, 7
      %s267 = scalar_lea.vmem %s1, %s266
      %s268 = smul.u32 2, %s17
      %s269 = smul.u32 2, %s17
      %p270 = scmp.lt.s32.totalorder %s269, 7
      %s271 = scalar_select %p270, %s269, 7
      %s272 = smul.addr %s271, 2
      %s273 = smul.addr %s272, 4
      %s274 = scalar_lea.vmem %s6, %s273
      %s275 = smul.u32 2, %s17
      %v277 = vld [vmem:[%s262] sm:$0x3]
      %v278 = vld [vmem:[%s262 + $0x2] sm:$0x3]
      %v279 = vunpack.c.l.bf16 %v277
      %v280 = vunpack.c.l.bf16 %v278
      %v281 = vld [vmem:[%s267] sm:$0x1]
      %v282 = vld [vmem:[%s267 + $0x1] sm:$0x1]
      %v283 = vxor.u32 %v281, 2147483648
      %v284 = vxor.u32 %v282, 2147483648
      %v285 = vmul.f32 %v283, 1.442695
      %v286 = vpow.pop %v285
      %v287 = vmul.f32 %v284, 1.442695
      %v288 = vpow.pop %v287
      %v289 = vadd.f32 %v286, 1.0
      %v290 = vadd.f32 %v288, 1.0
      %v291 = vrcp.pop %v289
      %v292 = vmul.f32 %v289, %v291
      %v293 = vsub.f32 1.0, %v292
      %v294 = vmul.f32 %v291, %v293
      %v295 = vadd.f32 %v291, %v294
      %vm296 = vweird.f32 %v289
      %vm297 = vweird.f32 %v291
      %vm298 = vmor %vm296, %vm297
      %v299 = vsel %vm298, %v291, %v295
      %v300 = vand.u32 2147483647, %v289
      %vm301 = vcmp.eq.f32.partialorder %v300, 8.507059e+37
      %v302 = vand.u32 %v289, 2147483648
      %v303 = vor.u32 1.1754944e-38, %v302
      %v304 = vsel %vm301, %v303, %v299
      %v305 = vmul.f32 1.0, %v304
      %v306 = vrcp.pop %v290
      %v307 = vmul.f32 %v290, %v306
      %v308 = vsub.f32 1.0, %v307
      %v309 = vmul.f32 %v306, %v308
      %v310 = vadd.f32 %v306, %v309
      %vm311 = vweird.f32 %v290
      %vm312 = vweird.f32 %v306
      %vm313 = vmor %vm311, %vm312
      %v314 = vsel %vm313, %v306, %v310
      %v315 = vand.u32 2147483647, %v290
      %vm316 = vcmp.eq.f32.partialorder %v315, 8.507059e+37
      %v317 = vand.u32 %v290, 2147483648
      %v318 = vor.u32 1.1754944e-38, %v317
      %v319 = vsel %vm316, %v318, %v314
      %v320 = vmul.f32 1.0, %v319
      %v321 = vmul.f32 %v281, %v305
      %v322 = vmul.f32 %v282, %v320
      %v323 = vpack.c.bf16 %v321, %v321
      %v324 = vpack.c.bf16 %v322, %v322
      %v325 = vld [vmem:[%s2] sm:$0xf]
      %v326 = vld [vmem:[%s2 + $0x4] sm:$0xf]
      %v327 = vld [vmem:[%s2 + $0x8] sm:$0xf]
      %v328 = vld [vmem:[%s2 + $0xc] sm:$0xf]
      %v329 = vld [vmem:[%s3] sm:$0x1]
      %v331 = vperm.slane %v329, 0
      %v335 = vunpack.c.l.b16 %v323
      %v336 = vunpack.c.l.b16 %v324
      %v337 = vrot.slane %v336, 7
      %vm338 = vcmask 1041409
      %v339 = vsel %vm338, %v337, %v335
      %v340 = vpack.c.b16 %v339, %v339
      %v345 = vunpack.c.l.b16 %v325
      %v346 = vunpack.c.l.b16 %v326
      %v347 = vunpack.c.l.b16 %v327
      %v348 = vunpack.c.l.b16 %v328
      %v349 = vpack.c.b16 %v346, %v345
      %v350 = vpack.c.b16 %v348, %v347
      %vm353 = vcmask 261120
      %v355 = vsel %vm353, %v340, 0
      %357 = vmatpush.bf16.msra.mxu0 0
      %358 = vmatpush.bf16.msra.mxu0 0
      %359 = vmatpush.bf16.msra.mxu0 0
      %360 = vmatpush.bf16.msra.mxu0 0
      %361 = vmatpush.bf16.msra.mxu0 0
      %362 = vmatpush.bf16.msra.mxu0 0
      %363 = vmatpush.bf16.msra.mxu0 %v350
      %364 = vmatpush.bf16.msra.mxu0 %v349
      %365 = vmatmul.bf16.gmra.mxu0 %v355
      %v366 = vpop.f32.mrf.mxu0
      %v367 = vadd.f32 %v331, %v366
      %v368 = vpop.f32.mrf.mxu0
      %369 = vdwg.mxu0
      %371 = vrot.lane.b32.xlu0 %v367, 96
      %v372 = vpop.permute.xlu0 %371
      %v374 = vrot.slane %v372, 4
      %vm375 = vcmask 1047556
      %v376 = vsel %vm375, %v374, %v367
      %v378 = vunpack.c.l.s4 1934713408
      %v379 = vunpack.c.0.s8 %v378
      %v380 = vperm.slane %v376, %v379
      %v381 = vrot.slane %v380, 4
      %v382 = vsel %vm375, 0.0, %v381
      %vm383 = vcmask 257024
      %v384 = vsel %vm383, %v279, 0.0
      %385 = vadd.xlane.f32.xlu0 %v384
      %v386 = vpop.xlane.xlu0 %385
      %v387 = vsel %vm383, %v280, 0.0
      %388 = vadd.xlane.f32.xlu0 %v387
      %v389 = vpop.xlane.xlu0 %388
      %v390 = vrcp.pop 32.0
      %v391 = vmul.f32 32.0, %v390
      %v392 = vsub.f32 1.0, %v391
      %v393 = vmul.f32 %v390, %v392
      %v394 = vadd.f32 %v390, %v393
      %vm395 = vweird.f32 %v390
      %v396 = vsel %vm395, %v390, %v394
      %v397 = vmul.f32 %v386, %v396
      %v398 = vmul.f32 %v389, %v396
      %v399 = vsub.f32 %v279, %v397
      %v400 = vsub.f32 %v280, %v398
      %v401 = vmul.f32 %v399, %v399
      %v402 = vmul.f32 %v400, %v400
      %v403 = vsel %vm383, %v401, 0.0
      %404 = vadd.xlane.f32.xlu0 %v403
      %v405 = vpop.xlane.xlu0 %404
      %v406 = vsel %vm383, %v402, 0.0
      %407 = vadd.xlane.f32.xlu0 %v406
      %v408 = vpop.xlane.xlu0 %407
      %v409 = vmul.f32 %v405, %v396
      %v410 = vmul.f32 %v408, %v396
      %v411 = vadd.f32 %v409, 1e-06
      %v412 = vadd.f32 %v410, 1e-06
      %v413 = vrsqrt.pop %v411
      %v414 = vmul.f32 %v413, %v411
      %v415 = vmul.f32 %v414, %v413
      %v416 = vmul.f32 0.5, %v415
      %v417 = vsub.f32 1.5, %v416
      %v418 = vmul.f32 %v413, %v417
      %vm419 = vweird.f32 %v411
      %vm420 = vweird.f32 %v413
      %vm421 = vmor %vm419, %vm420
      %v422 = vsel %vm421, %v413, %v418
      %v423 = vrsqrt.pop %v412
      %v424 = vmul.f32 %v423, %v412
      %v425 = vmul.f32 %v424, %v423
      %v426 = vmul.f32 0.5, %v425
      %v427 = vsub.f32 1.5, %v426
      %v428 = vmul.f32 %v423, %v427
      %vm429 = vweird.f32 %v412
      %vm430 = vweird.f32 %v423
      %vm431 = vmor %vm429, %vm430
      %v432 = vsel %vm431, %v423, %v428
      %v433 = vmul.f32 %v399, %v422
      %v434 = vmul.f32 %v400, %v432
      %v435 = vadd.f32 %v380, 1.0
      %v436 = vadd.f32 %v382, 1.0
      %v437 = vperm.slane %v435, 1
      %v438 = vperm.slane %v436, 1
      %v439 = vmul.f32 %v433, %v437
      %v440 = vmul.f32 %v434, %v438
      %v441 = vperm.slane %v380, 0
      %v442 = vperm.slane %v382, 0
      %v443 = vadd.f32 %v439, %v441
      %v444 = vadd.f32 %v440, %v442
      %447 = vst [vmem:[#allocation1] ss:$2 sm:$0xff] %v443
      %s448 = scalar_lea.vmem [#allocation1], 1
      %449 = vst [vmem:[%s448] ss:$2 sm:$0xff] %v444
      %v450 = vld.sshfl [vmem:[#allocation1] sm:$0xff pattern:$0x75316420]
      %v452 = vpack.c.bf16 %v450, %v450
      %v453 = vld [vmem:[%s4] sm:$0xff]
      %v454 = vld [vmem:[%s4 + $0x8] sm:$0xff]
      %v455 = vld [vmem:[%s4 + $0x10] sm:$0xff]
      %v456 = vld [vmem:[%s4 + $0x18] sm:$0xff]
      %v457 = vld [vmem:[%s5] sm:$0x3]
      %v459 = vperm.slane %v457, 0
      %v460 = vperm.slane %v457, 1
      %v467 = vunpack.c.l.b16 %v453
      %v468 = vunpack.c.h.b16 %v453
      %v469 = vunpack.c.l.b16 %v454
      %v470 = vunpack.c.h.b16 %v454
      %v471 = vunpack.c.l.b16 %v455
      %v472 = vunpack.c.h.b16 %v455
      %v473 = vunpack.c.l.b16 %v456
      %v474 = vunpack.c.h.b16 %v456
      %v475 = vpack.c.b16 %v469, %v467
      %v476 = vpack.c.b16 %v470, %v468
      %v477 = vpack.c.b16 %v473, %v471
      %v478 = vpack.c.b16 %v474, %v472
      %v484 = vsel %vm353, %v452, 0
      %486 = vmatpush.bf16.msra.mxu0 0
      %487 = vmatpush.bf16.msra.mxu0 0
      %488 = vmatpush.bf16.msra.mxu0 0
      %489 = vmatpush.bf16.msra.mxu0 0
      %490 = vmatpush.bf16.msra.mxu0 0
      %491 = vmatpush.bf16.msra.mxu0 0
      %492 = vmatpush.bf16.msra.mxu0 %v477
      %493 = vmatpush.bf16.msra.mxu0 %v475
      %494 = vmatmul.bf16.gmra.mxu0 %v484
      %v495 = vpop.f32.mrf.mxu0
      %v496 = vadd.f32 %v459, %v495
      %v497 = vpop.f32.mrf.mxu0
      %498 = vdwg.mxu0
      %499 = vmatpush.bf16.msra.mxu0 0
      %500 = vmatpush.bf16.msra.mxu0 0
      %501 = vmatpush.bf16.msra.mxu0 0
      %502 = vmatpush.bf16.msra.mxu0 0
      %503 = vmatpush.bf16.msra.mxu0 0
      %504 = vmatpush.bf16.msra.mxu0 0
      %505 = vmatpush.bf16.msra.mxu0 %v478
      %506 = vmatpush.bf16.msra.mxu0 %v476
      %507 = vmatmul.bf16.gmra.mxu0 %v484
      %v508 = vpop.f32.mrf.mxu0
      %v509 = vadd.f32 %v460, %v508
      %v510 = vpop.f32.mrf.mxu0
      %511 = vdwg.mxu0
      %v514 = vrot.slane %v509, 4
      %vm515 = vcmask 1043456
      %v516 = vsel %vm515, %v496, %v514
      %v517 = vsel %vm515, %v514, %v496
      %v518 = vrot.slane %v517, 4
      %521 = vst [vmem:[%s274] sm:$0xff] %v516
      %522 = vst [vmem:[%s274 + $0x8] sm:$0xff] %v518
      %s523 = smul.u32 2, %s17
      %p524 = scmp.lt.s32.totalorder %s523, 7
      %s525 = scalar_select %p524, %s523, 7
      %s526 = smul.addr %s525, 2
      %s527 = smul.addr %s526, 4
      %s528 = scalar_lea.vmem %s6, %s527
      // Predicated region
      $region45: #{forward.17} parent=43 // pred_check
        %p529 = pneg %p171
      $region46: #{forward.17} parent=43 // pred_check_branch
        %531 = sbr.rel (%p529) target = $region48
      $region47: #{forward.17} parent=43 // pred_region
        %s532 = smul.u32 2, %s17
      $region48: #{forward.17} parent=43 // pred_fallthru
        _
    $region44: #{forward.17} parent=5 // pred_fallthru
      _
    %p533 = scmp.le.s32.totalorder 2, %s12
    // Predicated region
    $region49: #{forward.17} parent=5 // pred_check
      %p534 = pneg %p533
    $region50: #{forward.17} parent=5 // pred_check_branch
      %536 = sbr.rel (%p534) target = $region52
    $region51: #{forward.17} parent=5 // pred_region
      %s537 = ssub.s32 %s12, 2
      // Predicated region
      $region53: #{forward.17} parent=51 // pred_check
        %p538 = pneg %p177
      $region54: #{forward.17} parent=51 // pred_check_branch
        %540 = sbr.rel (%p538) target = $region56
      $region55: #{forward.17} parent=51 // pred_region
        %s541 = smul.u32 2, %s18
        %p542 = scmp.lt.s32.totalorder %s541, 7
        %s543 = scalar_select %p542, %s541, 7
        %s544 = smul.addr %s543, 2
        %s545 = smul.addr %s544, 4
        %s546 = scalar_lea.vmem %s6, %s545
      $region56: #{forward.17} parent=51 // pred_fallthru
        _
    $region52: #{forward.17} parent=5 // pred_fallthru
      _
  $region6: #{forward.17} parent=0 // loop_footer
    %s16 = sadd.s32 1, %s12
  $region7: #{forward.17} parent=0 // loop_footer_branch
    %11 = sbr.rel target = $region3
  $region8: #{forward.17} parent=0 // loop_exit
    _

</llo_original>
